<compile_context>
chip_gen: v6e
topology: v6e:2x2x1
jax: 0.10.0
libtpu: 0.0.40
codegen_flags: <defaults>
</compile_context>

<pallas_src>
import jax
import jax.numpy as jnp
import numpy as np
from jax.experimental import pallas as pl
from jax.experimental.pallas import tpu as pltpu

N_EMBD = 64
BLOCK_SIZE = 32
N_HEAD = 4
HEAD_SIZE = N_EMBD // N_HEAD
N_LAYER = 4
VOCAB_SIZE = 65                            # stands in for len(chars)
VPAD = ((VOCAB_SIZE + 127) // 128) * 128   # lane-padded vocab head width (128)
LN_EPS = 1e-5                              # torch.nn.LayerNorm default
ATT_SCALE = float(N_EMBD) ** 0.5           # reference MULTIPLIES by sqrt(C)

C = N_EMBD
# per-layer bf16 weight slab lane layout: [wqkv(pad->4C) | w1(4C) | wp(C)] -> 9C lanes
_W_COLS = 9 * C
# per-layer f32 slab lane layout:
# [ln1w | ln1b | ln2w | ln2b | bqkv(pad->4C) | bp | b1(4C) | b2] -> 14C lanes
_F_COLS = 14 * C


# ------------------------- shared math helpers -------------------------

def _layernorm(x, w, b):
    mu = jnp.mean(x, axis=-1, keepdims=True)
    var = jnp.mean(jnp.square(x - mu), axis=-1, keepdims=True)
    return (x - mu) * jax.lax.rsqrt(var + LN_EPS) * w + b


def _softmax(x):                           # exact-division softmax (reference only)
    x = x - jnp.max(x, axis=-1, keepdims=True)
    e = jnp.exp(x)
    return e / jnp.sum(e, axis=-1, keepdims=True)


# ------------------------- fused Pallas kernel -------------------------

def fused_kernel(x_ref, mask_ref, w_ref, w2_ref, f_ref, o_ref):
    B, T, _ = x_ref.shape
    BT = B * T
    D = HEAD_SIZE

    x = x_ref[...].reshape(BT, C)          # f32 residual stream (B*T, C)
    bias = mask_ref[...]                   # (T, T) additive causal bias (0 / -inf)

    def heads_to_batch(m, off):
        # (BT, lanes) -> (N_HEAD*B, T, D): 16-lane slices + major-dim concat
        # (no sublane/major transpose, no XLU relayout of the score path).
        return jnp.concatenate(
            [m[:, off + h * D: off + (h + 1) * D].reshape(B, T, D)
             for h in range(N_HEAD)], axis=0)

    for l in range(N_LAYER):               # static unroll: whole net in one kernel
        # ---------- multi-head causal self-attention over ln1(x) ----------
        h = _layernorm(x, f_ref[l, :, 0:C], f_ref[l, :, C:2 * C]).astype(jnp.bfloat16)
        # fused q/k/v projection: one 256-lane MXU matmul (sqrt(C) folded into q)
        qkv = (jnp.dot(h, w_ref[l, :, 0:4 * C], preferred_element_type=jnp.float32)
               + f_ref[l, :, 4 * C:8 * C]).astype(jnp.bfloat16)        # (BT, 4C)
        qb = heads_to_batch(qkv, 0)
        kb = heads_to_batch(qkv, C)
        vb = heads_to_batch(qkv, 2 * C)
        # all heads of all batches in ONE batched matmul pair
        wei = jnp.einsum("bqd,bkd->bqk", qb, kb,
                         preferred_element_type=jnp.float32) + bias    # (H*B, T, T)
        wei = wei - jnp.max(wei, axis=-1, keepdims=True)
        e = jnp.exp(wei)                   # attention dropout -> identity (eval)
        p = e * pl.reciprocal(jnp.sum(e, axis=-1, keepdims=True), approx=True)
        ob = jnp.einsum("bqk,bkd->bqd", p.astype(jnp.bfloat16), vb,
                        preferred_element_type=jnp.float32)            # (H*B, T, D)
        # value-level lane concat of heads (no VMEM scratch round-trip)
        att = jnp.concatenate(
            [ob[h * B:(h + 1) * B].reshape(BT, D) for h in range(N_HEAD)],
            axis=-1).astype(jnp.bfloat16)                              # (BT, C)
        x = x + (jnp.dot(att, w_ref[l, :, 8 * C:9 * C],
                         preferred_element_type=jnp.float32)
                 + f_ref[l, :, 8 * C:9 * C])

        # ---------- feed-forward over ln2(x) ----------
        h = _layernorm(x, f_ref[l, :, 2 * C:3 * C],
                       f_ref[l, :, 3 * C:4 * C]).astype(jnp.bfloat16)
        h1 = jnp.maximum(
            jnp.dot(h, w_ref[l, :, 4 * C:8 * C], preferred_element_type=jnp.float32)
            + f_ref[l, :, 9 * C:13 * C], 0.0)
        x = x + (jnp.dot(h1.astype(jnp.bfloat16), w2_ref[l],
                         preferred_element_type=jnp.float32)
                 + f_ref[l, :, 13 * C:14 * C])

    # ---------- final LayerNorm + lane-padded vocab head ----------
    h = _layernorm(x, f_ref[N_LAYER, :, 0:C],
                   f_ref[N_LAYER, :, C:2 * C]).astype(jnp.bfloat16)
    logits = (jnp.dot(h, w_ref[N_LAYER, :, 0:VPAD],
                      preferred_element_type=jnp.float32)
              + f_ref[N_LAYER, :, 2 * C:2 * C + VPAD])
    o_ref[...] = logits.reshape(B, T, VPAD)        # (B, T, 128): lane-dense store


# ------------------------- parameter packing -------------------------

def prepare_params(params):
    """Pack ALL parameters into 3 slabs (bf16 [wqkv|w1|wp] slab, bf16 w2 slab,
    f32 LN/bias slab), fold the sqrt(C) attention scale into wq/bq (exact,
    power of two), and lane-pad the vocab head.  Done once, outside the fwd."""
    w_rows, f_rows, w2_rows = [], [], []
    for blk in params["blocks"]:
        wqkv = jnp.concatenate([blk["wq"] * ATT_SCALE, blk["wk"], blk["wv"]], axis=1)
        wqkv = jnp.pad(wqkv, ((0, 0), (0, C)))                     # 3C -> 4C lanes
        w_rows.append(jnp.concatenate([wqkv, blk["w1"], blk["wp"]], axis=1))
        bqkv = jnp.concatenate([blk["bq"] * ATT_SCALE, blk["bk"], blk["bv"]], axis=1)
        bqkv = jnp.pad(bqkv, ((0, 0), (0, C)))
        f_rows.append(jnp.concatenate(
            [blk["ln1w"], blk["ln1b"], blk["ln2w"], blk["ln2b"],
             bqkv, blk["bp"], blk["b1"], blk["b2"]], axis=1))
        w2_rows.append(blk["w2"])
    head = params["head"]
    wh = jnp.pad(head["wh"], ((0, 0), (0, VPAD - VOCAB_SIZE)))     # (C, 128)
    w_rows.append(jnp.pad(wh, ((0, 0), (0, _W_COLS - VPAD))))
    bh = jnp.pad(head["bh"], ((0, 0), (0, VPAD - VOCAB_SIZE)))     # (1, 128)
    f_rows.append(jnp.pad(jnp.concatenate([head["lnw"], head["lnb"], bh], axis=1),
                          ((0, 0), (0, _F_COLS - (2 * C + VPAD)))))
    return {
        "wslab": jnp.stack(w_rows).astype(jnp.bfloat16),    # (L+1, C, 9C)
        "w2slab": jnp.stack(w2_rows).astype(jnp.bfloat16),  # (L, 4C, C)
        "fslab": jnp.stack(f_rows).astype(jnp.float32),     # (L+1, 1, 14C)
        "tok_emb": params["tok_emb"], "pos_emb": params["pos_emb"],
    }


# ------------------------- pallas_call wrapper -------------------------

def baby_pt_forward(packed, tokens):
    """tokens: (B, T) int32.  Returns (logits (B, T, vocab), loss=None)."""
    B, T = tokens.shape
    # token / positional embedding gathers stay in plain JAX (glue)
    x = packed["tok_emb"][tokens] + packed["pos_emb"][:T][None, :, :]
    # causal mask hoisted out of the kernel (additive 0 / -inf bias)
    mask = jnp.where(jnp.tril(jnp.ones((T, T), bool)), 0.0, -jnp.inf).astype(jnp.float32)

    vmem = lambda: pl.BlockSpec(memory_space=pltpu.MemorySpace.VMEM)
    logits_padded = pl.pallas_call(
        fused_kernel,
        out_shape=jax.ShapeDtypeStruct((B, T, VPAD), jnp.float32),
        # no grid: single invocation, whole (tiny) operands resident in VMEM,
        # no double-buffering / pipelining machinery (review item 7).
        in_specs=[vmem() for _ in range(5)],
        out_specs=vmem(),
    )(x, mask, packed["wslab"], packed["w2slab"], packed["fslab"])

    # TODO(synk): cross-entropy loss branch (targets != None) and generate()
    # sampling loop are not kernelized; forward here matches targets=None.
    return logits_padded[..., :VOCAB_SIZE], None


# ------------------------- deterministic parameter init -------------------------

def init_params(key):
    def dense(k, fan_in, fan_out):
        k1, k2 = jax.random.split(k)
        w = jax.random.normal(k1, (fan_in, fan_out), jnp.float32) * 0.02
        b = jax.random.normal(k2, (1, fan_out), jnp.float32) * 0.02
        return w, b

    keys = jax.random.split(key, 3 + N_LAYER)
    params = {
        "tok_emb": jax.random.normal(keys[0], (VOCAB_SIZE, N_EMBD), jnp.float32) * 0.02,
        "pos_emb": jax.random.normal(keys[1], (BLOCK_SIZE, N_EMBD), jnp.float32) * 0.02,
    }
    blocks = []
    for l in range(N_LAYER):
        lk = jax.random.split(keys[2 + l], 6)
        wq, bq = dense(lk[0], N_EMBD, N_EMBD)
        wk, bk = dense(lk[1], N_EMBD, N_EMBD)
        wv, bv = dense(lk[2], N_EMBD, N_EMBD)
        wp, bp = dense(lk[3], N_EMBD, N_EMBD)
        w1, b1 = dense(lk[4], N_EMBD, 4 * N_EMBD)
        w2, b2 = dense(lk[5], 4 * N_EMBD, N_EMBD)
        blocks.append(dict(
            ln1w=jnp.ones((1, N_EMBD), jnp.float32),
            ln1b=jnp.zeros((1, N_EMBD), jnp.float32),
            wq=wq, bq=bq, wk=wk, bk=bk, wv=wv, bv=bv, wp=wp, bp=bp,
            ln2w=jnp.ones((1, N_EMBD), jnp.float32),
            ln2b=jnp.zeros((1, N_EMBD), jnp.float32),
            w1=w1, b1=b1, w2=w2, b2=b2))
    params["blocks"] = blocks
    wh, bh = dense(keys[2 + N_LAYER], N_EMBD, VOCAB_SIZE)
    params["head"] = dict(lnw=jnp.ones((1, N_EMBD), jnp.float32),
                          lnb=jnp.zeros((1, N_EMBD), jnp.float32),
                          wh=wh, bh=bh)
    return params


# ------------------------- pure-JAX references -------------------------

def _ref_forward(params, tokens, mm_dtype):
    """mm_dtype=float32 -> original f32 PyTorch semantics (HIGHEST precision);
    mm_dtype=bfloat16 -> mirrors the kernel's bf16-input / f32-acc MXU math."""
    B, T = tokens.shape
    prec = jax.lax.Precision.HIGHEST if mm_dtype == jnp.float32 else None
    c = lambda a: a.astype(mm_dtype)
    x = (params["tok_emb"][tokens] + params["pos_emb"][:T][None]).reshape(B * T, N_EMBD)
    bias = jnp.where(jnp.tril(jnp.ones((T, T), bool)), 0.0, -jnp.inf).astype(jnp.float32)
    for p in params["blocks"]:
        h = _layernorm(x, p["ln1w"], p["ln1b"])
        q = jnp.dot(c(h), c(p["wq"]), preferred_element_type=jnp.float32, precision=prec) + p["bq"]
        k = jnp.dot(c(h), c(p["wk"]), preferred_element_type=jnp.float32, precision=prec) + p["bk"]
        v = jnp.dot(c(h), c(p["wv"]), preferred_element_type=jnp.float32, precision=prec) + p["bv"]
        outs = []
        for hh in range(N_HEAD):
            s = slice(hh * HEAD_SIZE, (hh + 1) * HEAD_SIZE)
            qh = q[:, s].reshape(B, T, HEAD_SIZE)
            kh = k[:, s].reshape(B, T, HEAD_SIZE)
            vh = v[:, s].reshape(B, T, HEAD_SIZE)
            wei = jnp.einsum("bqd,bkd->bqk", c(qh), c(kh),
                             preferred_element_type=jnp.float32, precision=prec) * ATT_SCALE
            pr = _softmax(wei + bias)
            outs.append(jnp.einsum("bqk,bkd->bqd", c(pr), c(vh),
                                   preferred_element_type=jnp.float32, precision=prec))
        att = jnp.concatenate(outs, -1).reshape(B * T, N_EMBD)
        x = x + jnp.dot(c(att), c(p["wp"]), preferred_element_type=jnp.float32, precision=prec) + p["bp"]
        h = _layernorm(x, p["ln2w"], p["ln2b"])
        h1 = jnp.maximum(
            jnp.dot(c(h), c(p["w1"]), preferred_element_type=jnp.float32, precision=prec) + p["b1"], 0.0)
        x = x + jnp.dot(c(h1), c(p["w2"]), preferred_element_type=jnp.float32, precision=prec) + p["b2"]
    h = _layernorm(x, params["head"]["lnw"], params["head"]["lnb"])
    logits = jnp.dot(c(h), c(params["head"]["wh"]),
                     preferred_element_type=jnp.float32, precision=prec) + params["head"]["bh"]
    return logits.reshape(B, T, VOCAB_SIZE)


if __name__ == "__main__":
    key = jax.random.PRNGKey(0)
    pkey, tkey = jax.random.split(key)
    params = init_params(pkey)
    packed = prepare_params(params)

    B, T = 2, 8                             # T <= block_size (32)
    tokens = jax.random.randint(tkey, (B, T), 0, VOCAB_SIZE, dtype=jnp.int32)

    fwd = jax.jit(baby_pt_forward)
    logits, loss = fwd(packed, tokens)
    logits = jax.block_until_ready(logits)

    # 1) tight check vs a JAX reference mirroring the kernel's bf16-input math
    #    (tolerance covers the approx-reciprocal softmax denominator)
    ref_bf16 = _ref_forward(params, tokens, jnp.bfloat16)
    np.testing.assert_allclose(np.asarray(logits), np.asarray(ref_bf16),
                               atol=5e-3, rtol=5e-3)

    # 2) loose check vs the original full-f32 semantics (bf16 MXU-input error)
    ref_f32 = _ref_forward(params, tokens, jnp.float32)
    np.testing.assert_allclose(np.asarray(logits), np.asarray(ref_f32),
                               atol=5e-2, rtol=5e-2)

    assert logits.shape == (B, T, VOCAB_SIZE) and loss is None
    print("KERNEL_OK")
</pallas_src>

<mosaic_0001>
module attributes {stable_mosaic.version = 11 : i64} {
  func.func @fused_kernel(%arg0: memref<2x8x64xf32, #tpu.memory_space<vmem>>, %arg1: memref<8x8xf32, #tpu.memory_space<vmem>>, %arg2: memref<5x64x576xbf16, #tpu.memory_space<vmem>>, %arg3: memref<4x256x64xbf16, #tpu.memory_space<vmem>>, %arg4: memref<5x1x896xf32, #tpu.memory_space<vmem>>, %arg5: memref<2x8x128xf32, #tpu.memory_space<vmem>>) attributes {dimension_semantics = [], scalar_prefetch = 0 : i64, scratch_operands = 0 : i64, tpu.core_type = #tpu.core_type<tc>} {
    %c0 = arith.constant 0 : index
    %c0_0 = arith.constant 0 : index
    %c0_1 = arith.constant 0 : index
    %0 = vector.load %arg0[%c0, %c0_0, %c0_1] : memref<2x8x64xf32, #tpu.memory_space<vmem>>, vector<2x8x64xf32>
    %1 = vector.shape_cast %0 : vector<2x8x64xf32> to vector<16x64xf32>
    %c0_2 = arith.constant 0 : index
    %c0_3 = arith.constant 0 : index
    %2 = vector.load %arg1[%c0_2, %c0_3] : memref<8x8xf32, #tpu.memory_space<vmem>>, vector<8x8xf32>
    %c0_4 = arith.constant 0 : index
    %c0_5 = arith.constant 0 : index
    %c0_6 = arith.constant 0 : index
    %3 = vector.load %arg4[%c0_4, %c0_5, %c0_6] : memref<5x1x896xf32, #tpu.memory_space<vmem>>, vector<1x1x64xf32>
    %4 = vector.shape_cast %3 : vector<1x1x64xf32> to vector<1x64xf32>
    %c0_7 = arith.constant 0 : index
    %c0_8 = arith.constant 0 : index
    %c64 = arith.constant 64 : index
    %5 = vector.load %arg4[%c0_7, %c0_8, %c64] : memref<5x1x896xf32, #tpu.memory_space<vmem>>, vector<1x1x64xf32>
    %6 = vector.shape_cast %5 : vector<1x1x64xf32> to vector<1x64xf32>
    %cst = arith.constant dense<0.000000e+00> : vector<16xf32>
    %7 = vector.multi_reduction <add>, %1, %cst [1] : vector<16x64xf32> to vector<16xf32>
    %8 = vector.shape_cast %7 : vector<16xf32> to vector<16x1xf32>
    %cst_9 = arith.constant 6.400000e+01 : f32
    %9 = vector.broadcast %cst_9 : f32 to vector<16x1xf32>
    %10 = arith.divf %8, %9 : vector<16x1xf32>
    %11 = vector.broadcast %10 : vector<16x1xf32> to vector<16x64xf32>
    %12 = arith.subf %1, %11 : vector<16x64xf32>
    %13 = arith.mulf %12, %12 : vector<16x64xf32>
    %cst_10 = arith.constant dense<0.000000e+00> : vector<16xf32>
    %14 = vector.multi_reduction <add>, %13, %cst_10 [1] : vector<16x64xf32> to vector<16xf32>
    %15 = vector.shape_cast %14 : vector<16xf32> to vector<16x1xf32>
    %cst_11 = arith.constant 6.400000e+01 : f32
    %16 = vector.broadcast %cst_11 : f32 to vector<16x1xf32>
    %17 = arith.divf %15, %16 : vector<16x1xf32>
    %18 = vector.broadcast %10 : vector<16x1xf32> to vector<16x64xf32>
    %19 = arith.subf %1, %18 : vector<16x64xf32>
    %cst_12 = arith.constant 9.99999974E-6 : f32
    %20 = vector.broadcast %cst_12 : f32 to vector<16x1xf32>
    %21 = arith.addf %17, %20 : vector<16x1xf32>
    %22 = math.rsqrt %21 : vector<16x1xf32>
    %23 = vector.broadcast %22 : vector<16x1xf32> to vector<16x64xf32>
    %24 = arith.mulf %19, %23 : vector<16x64xf32>
    %25 = vector.broadcast %4 : vector<1x64xf32> to vector<16x64xf32>
    %26 = arith.mulf %24, %25 : vector<16x64xf32>
    %27 = vector.broadcast %6 : vector<1x64xf32> to vector<16x64xf32>
    %28 = arith.addf %26, %27 : vector<16x64xf32>
    %29 = arith.truncf %28 : vector<16x64xf32> to vector<16x64xbf16>
    %c0_13 = arith.constant 0 : index
    %c0_14 = arith.constant 0 : index
    %c0_15 = arith.constant 0 : index
    %30 = vector.load %arg2[%c0_13, %c0_14, %c0_15] : memref<5x64x576xbf16, #tpu.memory_space<vmem>>, vector<1x64x256xbf16>
    %31 = vector.shape_cast %30 : vector<1x64x256xbf16> to vector<64x256xbf16>
    %cst_16 = arith.constant dense<0.000000e+00> : vector<16x256xf32>
    %32 = tpu.matmul %29, %31, %cst_16 {dimension_numbers = #tpu.dot_dimension_numbers<[1], [0], [0], [1], [0, 0, 1, 1], [], []>} : vector<16x64xbf16>, vector<64x256xbf16>, vector<16x256xf32> -> vector<16x256xf32>
    %c0_17 = arith.constant 0 : index
    %c0_18 = arith.constant 0 : index
    %c256 = arith.constant 256 : index
    %33 = vector.load %arg4[%c0_17, %c0_18, %c256] : memref<5x1x896xf32, #tpu.memory_space<vmem>>, vector<1x1x256xf32>
    %34 = vector.shape_cast %33 : vector<1x1x256xf32> to vector<1x256xf32>
    %35 = vector.broadcast %34 : vector<1x256xf32> to vector<16x256xf32>
    %36 = arith.addf %32, %35 : vector<16x256xf32>
    %37 = arith.truncf %36 : vector<16x256xf32> to vector<16x256xbf16>
    %38 = vector.extract_strided_slice %37 {offsets = [0, 0], sizes = [16, 16], strides = [1, 1]} : vector<16x256xbf16> to vector<16x16xbf16>
    %39 = vector.shape_cast %38 : vector<16x16xbf16> to vector<2x8x16xbf16>
    %40 = vector.extract_strided_slice %37 {offsets = [0, 16], sizes = [16, 16], strides = [1, 1]} : vector<16x256xbf16> to vector<16x16xbf16>
    %41 = vector.shape_cast %40 : vector<16x16xbf16> to vector<2x8x16xbf16>
    %42 = vector.extract_strided_slice %37 {offsets = [0, 32], sizes = [16, 16], strides = [1, 1]} : vector<16x256xbf16> to vector<16x16xbf16>
    %43 = vector.shape_cast %42 : vector<16x16xbf16> to vector<2x8x16xbf16>
    %44 = vector.extract_strided_slice %37 {offsets = [0, 48], sizes = [16, 16], strides = [1, 1]} : vector<16x256xbf16> to vector<16x16xbf16>
    %45 = vector.shape_cast %44 : vector<16x16xbf16> to vector<2x8x16xbf16>
    %46 = tpu.concatenate %39, %41, %43, %45 in 0 : vector<2x8x16xbf16>, vector<2x8x16xbf16>, vector<2x8x16xbf16>, vector<2x8x16xbf16> -> vector<8x8x16xbf16>
    %47 = vector.extract_strided_slice %37 {offsets = [0, 64], sizes = [16, 16], strides = [1, 1]} : vector<16x256xbf16> to vector<16x16xbf16>
    %48 = vector.shape_cast %47 : vector<16x16xbf16> to vector<2x8x16xbf16>
    %49 = vector.extract_strided_slice %37 {offsets = [0, 80], sizes = [16, 16], strides = [1, 1]} : vector<16x256xbf16> to vector<16x16xbf16>
    %50 = vector.shape_cast %49 : vector<16x16xbf16> to vector<2x8x16xbf16>
    %51 = vector.extract_strided_slice %37 {offsets = [0, 96], sizes = [16, 16], strides = [1, 1]} : vector<16x256xbf16> to vector<16x16xbf16>
    %52 = vector.shape_cast %51 : vector<16x16xbf16> to vector<2x8x16xbf16>
    %53 = vector.extract_strided_slice %37 {offsets = [0, 112], sizes = [16, 16], strides = [1, 1]} : vector<16x256xbf16> to vector<16x16xbf16>
    %54 = vector.shape_cast %53 : vector<16x16xbf16> to vector<2x8x16xbf16>
    %55 = tpu.concatenate %48, %50, %52, %54 in 0 : vector<2x8x16xbf16>, vector<2x8x16xbf16>, vector<2x8x16xbf16>, vector<2x8x16xbf16> -> vector<8x8x16xbf16>
    %56 = vector.extract_strided_slice %37 {offsets = [0, 128], sizes = [16, 16], strides = [1, 1]} : vector<16x256xbf16> to vector<16x16xbf16>
    %57 = vector.shape_cast %56 : vector<16x16xbf16> to vector<2x8x16xbf16>
    %58 = vector.extract_strided_slice %37 {offsets = [0, 144], sizes = [16, 16], strides = [1, 1]} : vector<16x256xbf16> to vector<16x16xbf16>
    %59 = vector.shape_cast %58 : vector<16x16xbf16> to vector<2x8x16xbf16>
    %60 = vector.extract_strided_slice %37 {offsets = [0, 160], sizes = [16, 16], strides = [1, 1]} : vector<16x256xbf16> to vector<16x16xbf16>
    %61 = vector.shape_cast %60 : vector<16x16xbf16> to vector<2x8x16xbf16>
    %62 = vector.extract_strided_slice %37 {offsets = [0, 176], sizes = [16, 16], strides = [1, 1]} : vector<16x256xbf16> to vector<16x16xbf16>
    %63 = vector.shape_cast %62 : vector<16x16xbf16> to vector<2x8x16xbf16>
    %64 = tpu.concatenate %57, %59, %61, %63 in 0 : vector<2x8x16xbf16>, vector<2x8x16xbf16>, vector<2x8x16xbf16>, vector<2x8x16xbf16> -> vector<8x8x16xbf16>
    "tpu.trace_start"() <{level = 10 : i32, message = "bqd,bkd->bqk"}> : () -> ()
    %cst_19 = arith.constant dense<0.000000e+00> : vector<8x8x8xf32>
    %65 = tpu.matmul %46, %55, %cst_19 {dimension_numbers = #tpu.dot_dimension_numbers<[2], [2], [1], [1], [0, 0, 0, 1, 1, 1], [0], [0]>} : vector<8x8x16xbf16>, vector<8x8x16xbf16>, vector<8x8x8xf32> -> vector<8x8x8xf32>
    "tpu.trace_stop"() : () -> ()
    %66 = vector.shape_cast %2 : vector<8x8xf32> to vector<1x8x8xf32>
    %67 = vector.broadcast %66 : vector<1x8x8xf32> to vector<8x8x8xf32>
    %68 = arith.addf %65, %67 : vector<8x8x8xf32>
    %cst_20 = arith.constant dense<0xFF800000> : vector<8x8xf32>
    %69 = vector.multi_reduction <maximumf>, %68, %cst_20 [2] : vector<8x8x8xf32> to vector<8x8xf32>
    %70 = vector.shape_cast %69 : vector<8x8xf32> to vector<8x8x1xf32>
    %71 = vector.broadcast %70 : vector<8x8x1xf32> to vector<8x8x8xf32>
    %72 = arith.subf %68, %71 : vector<8x8x8xf32>
    %73 = math.exp %72 : vector<8x8x8xf32>
    %cst_21 = arith.constant dense<0.000000e+00> : vector<8x8xf32>
    %74 = vector.multi_reduction <add>, %73, %cst_21 [2] : vector<8x8x8xf32> to vector<8x8xf32>
    %75 = vector.shape_cast %74 : vector<8x8xf32> to vector<8x8x1xf32>
    %76 = tpu.reciprocal %75 {approx = true} : vector<8x8x1xf32> -> vector<8x8x1xf32>
    %77 = vector.broadcast %76 : vector<8x8x1xf32> to vector<8x8x8xf32>
    %78 = arith.mulf %73, %77 : vector<8x8x8xf32>
    %79 = arith.truncf %78 : vector<8x8x8xf32> to vector<8x8x8xbf16>
    "tpu.trace_start"() <{level = 10 : i32, message = "bqk,bkd->bqd"}> : () -> ()
    %cst_22 = arith.constant dense<0.000000e+00> : vector<8x8x16xf32>
    %80 = tpu.matmul %79, %64, %cst_22 {dimension_numbers = #tpu.dot_dimension_numbers<[2], [1], [1], [2], [0, 0, 0, 1, 1, 2], [0], [0]>} : vector<8x8x8xbf16>, vector<8x8x16xbf16>, vector<8x8x16xf32> -> vector<8x8x16xf32>
    "tpu.trace_stop"() : () -> ()
    %81 = vector.extract_strided_slice %80 {offsets = [0, 0, 0], sizes = [2, 8, 16], strides = [1, 1, 1]} : vector<8x8x16xf32> to vector<2x8x16xf32>
    %82 = vector.shape_cast %81 : vector<2x8x16xf32> to vector<16x16xf32>
    %83 = vector.extract_strided_slice %80 {offsets = [2, 0, 0], sizes = [2, 8, 16], strides = [1, 1, 1]} : vector<8x8x16xf32> to vector<2x8x16xf32>
    %84 = vector.shape_cast %83 : vector<2x8x16xf32> to vector<16x16xf32>
    %85 = vector.extract_strided_slice %80 {offsets = [4, 0, 0], sizes = [2, 8, 16], strides = [1, 1, 1]} : vector<8x8x16xf32> to vector<2x8x16xf32>
    %86 = vector.shape_cast %85 : vector<2x8x16xf32> to vector<16x16xf32>
    %87 = vector.extract_strided_slice %80 {offsets = [6, 0, 0], sizes = [2, 8, 16], strides = [1, 1, 1]} : vector<8x8x16xf32> to vector<2x8x16xf32>
    %88 = vector.shape_cast %87 : vector<2x8x16xf32> to vector<16x16xf32>
    %89 = tpu.concatenate %82, %84, %86, %88 in 1 : vector<16x16xf32>, vector<16x16xf32>, vector<16x16xf32>, vector<16x16xf32> -> vector<16x64xf32>
    %90 = arith.truncf %89 : vector<16x64xf32> to vector<16x64xbf16>
    %c0_23 = arith.constant 0 : index
    %c0_24 = arith.constant 0 : index
    %c512 = arith.constant 512 : index
    %91 = vector.load %arg2[%c0_23, %c0_24, %c512] : memref<5x64x576xbf16, #tpu.memory_space<vmem>>, vector<1x64x64xbf16>
    %92 = vector.shape_cast %91 : vector<1x64x64xbf16> to vector<64x64xbf16>
    %cst_25 = arith.constant dense<0.000000e+00> : vector<16x64xf32>
    %93 = tpu.matmul %90, %92, %cst_25 {dimension_numbers = #tpu.dot_dimension_numbers<[1], [0], [0], [1], [0, 0, 1, 1], [], []>} : vector<16x64xbf16>, vector<64x64xbf16>, vector<16x64xf32> -> vector<16x64xf32>
    %c0_26 = arith.constant 0 : index
    %c0_27 = arith.constant 0 : index
    %c512_28 = arith.constant 512 : index
    %94 = vector.load %arg4[%c0_26, %c0_27, %c512_28] : memref<5x1x896xf32, #tpu.memory_space<vmem>>, vector<1x1x64xf32>
    %95 = vector.shape_cast %94 : vector<1x1x64xf32> to vector<1x64xf32>
    %96 = vector.broadcast %95 : vector<1x64xf32> to vector<16x64xf32>
    %97 = arith.addf %93, %96 : vector<16x64xf32>
    %98 = arith.addf %1, %97 : vector<16x64xf32>
    %c0_29 = arith.constant 0 : index
    %c0_30 = arith.constant 0 : index
    %c128 = arith.constant 128 : index
    %99 = vector.load %arg4[%c0_29, %c0_30, %c128] : memref<5x1x896xf32, #tpu.memory_space<vmem>>, vector<1x1x64xf32>
    %100 = vector.shape_cast %99 : vector<1x1x64xf32> to vector<1x64xf32>
    %c0_31 = arith.constant 0 : index
    %c0_32 = arith.constant 0 : index
    %c192 = arith.constant 192 : index
    %101 = vector.load %arg4[%c0_31, %c0_32, %c192] : memref<5x1x896xf32, #tpu.memory_space<vmem>>, vector<1x1x64xf32>
    %102 = vector.shape_cast %101 : vector<1x1x64xf32> to vector<1x64xf32>
    %cst_33 = arith.constant dense<0.000000e+00> : vector<16xf32>
    %103 = vector.multi_reduction <add>, %98, %cst_33 [1] : vector<16x64xf32> to vector<16xf32>
    %104 = vector.shape_cast %103 : vector<16xf32> to vector<16x1xf32>
    %cst_34 = arith.constant 6.400000e+01 : f32
    %105 = vector.broadcast %cst_34 : f32 to vector<16x1xf32>
    %106 = arith.divf %104, %105 : vector<16x1xf32>
    %107 = vector.broadcast %106 : vector<16x1xf32> to vector<16x64xf32>
    %108 = arith.subf %98, %107 : vector<16x64xf32>
    %109 = arith.mulf %108, %108 : vector<16x64xf32>
    %cst_35 = arith.constant dense<0.000000e+00> : vector<16xf32>
    %110 = vector.multi_reduction <add>, %109, %cst_35 [1] : vector<16x64xf32> to vector<16xf32>
    %111 = vector.shape_cast %110 : vector<16xf32> to vector<16x1xf32>
    %cst_36 = arith.constant 6.400000e+01 : f32
    %112 = vector.broadcast %cst_36 : f32 to vector<16x1xf32>
    %113 = arith.divf %111, %112 : vector<16x1xf32>
    %114 = vector.broadcast %106 : vector<16x1xf32> to vector<16x64xf32>
    %115 = arith.subf %98, %114 : vector<16x64xf32>
    %cst_37 = arith.constant 9.99999974E-6 : f32
    %116 = vector.broadcast %cst_37 : f32 to vector<16x1xf32>
    %117 = arith.addf %113, %116 : vector<16x1xf32>
    %118 = math.rsqrt %117 : vector<16x1xf32>
    %119 = vector.broadcast %118 : vector<16x1xf32> to vector<16x64xf32>
    %120 = arith.mulf %115, %119 : vector<16x64xf32>
    %121 = vector.broadcast %100 : vector<1x64xf32> to vector<16x64xf32>
    %122 = arith.mulf %120, %121 : vector<16x64xf32>
    %123 = vector.broadcast %102 : vector<1x64xf32> to vector<16x64xf32>
    %124 = arith.addf %122, %123 : vector<16x64xf32>
    %125 = arith.truncf %124 : vector<16x64xf32> to vector<16x64xbf16>
    %c0_38 = arith.constant 0 : index
    %c0_39 = arith.constant 0 : index
    %c256_40 = arith.constant 256 : index
    %126 = vector.load %arg2[%c0_38, %c0_39, %c256_40] : memref<5x64x576xbf16, #tpu.memory_space<vmem>>, vector<1x64x256xbf16>
    %127 = vector.shape_cast %126 : vector<1x64x256xbf16> to vector<64x256xbf16>
    %cst_41 = arith.constant dense<0.000000e+00> : vector<16x256xf32>
    %128 = tpu.matmul %125, %127, %cst_41 {dimension_numbers = #tpu.dot_dimension_numbers<[1], [0], [0], [1], [0, 0, 1, 1], [], []>} : vector<16x64xbf16>, vector<64x256xbf16>, vector<16x256xf32> -> vector<16x256xf32>
    %c0_42 = arith.constant 0 : index
    %c0_43 = arith.constant 0 : index
    %c576 = arith.constant 576 : index
    %129 = vector.load %arg4[%c0_42, %c0_43, %c576] : memref<5x1x896xf32, #tpu.memory_space<vmem>>, vector<1x1x256xf32>
    %130 = vector.shape_cast %129 : vector<1x1x256xf32> to vector<1x256xf32>
    %131 = vector.broadcast %130 : vector<1x256xf32> to vector<16x256xf32>
    %132 = arith.addf %128, %131 : vector<16x256xf32>
    %cst_44 = arith.constant 0.000000e+00 : f32
    %133 = vector.broadcast %cst_44 : f32 to vector<16x256xf32>
    %134 = arith.maximumf %132, %133 : vector<16x256xf32>
    %135 = arith.truncf %134 : vector<16x256xf32> to vector<16x256xbf16>
    %c0_45 = arith.constant 0 : index
    %c0_46 = arith.constant 0 : index
    %c0_47 = arith.constant 0 : index
    %136 = vector.load %arg3[%c0_45, %c0_46, %c0_47] : memref<4x256x64xbf16, #tpu.memory_space<vmem>>, vector<1x256x64xbf16>
    %137 = vector.shape_cast %136 : vector<1x256x64xbf16> to vector<256x64xbf16>
    %cst_48 = arith.constant dense<0.000000e+00> : vector<16x64xf32>
    %138 = tpu.matmul %135, %137, %cst_48 {dimension_numbers = #tpu.dot_dimension_numbers<[1], [0], [0], [1], [0, 0, 1, 1], [], []>} : vector<16x256xbf16>, vector<256x64xbf16>, vector<16x64xf32> -> vector<16x64xf32>
    %c0_49 = arith.constant 0 : index
    %c0_50 = arith.constant 0 : index
    %c832 = arith.constant 832 : index
    %139 = vector.load %arg4[%c0_49, %c0_50, %c832] : memref<5x1x896xf32, #tpu.memory_space<vmem>>, vector<1x1x64xf32>
    %140 = vector.shape_cast %139 : vector<1x1x64xf32> to vector<1x64xf32>
    %141 = vector.broadcast %140 : vector<1x64xf32> to vector<16x64xf32>
    %142 = arith.addf %138, %141 : vector<16x64xf32>
    %143 = arith.addf %98, %142 : vector<16x64xf32>
    %c1 = arith.constant 1 : index
    %c0_51 = arith.constant 0 : index
    %c0_52 = arith.constant 0 : index
    %144 = vector.load %arg4[%c1, %c0_51, %c0_52] : memref<5x1x896xf32, #tpu.memory_space<vmem>>, vector<1x1x64xf32>
    %145 = vector.shape_cast %144 : vector<1x1x64xf32> to vector<1x64xf32>
    %c1_53 = arith.constant 1 : index
    %c0_54 = arith.constant 0 : index
    %c64_55 = arith.constant 64 : index
    %146 = vector.load %arg4[%c1_53, %c0_54, %c64_55] : memref<5x1x896xf32, #tpu.memory_space<vmem>>, vector<1x1x64xf32>
    %147 = vector.shape_cast %146 : vector<1x1x64xf32> to vector<1x64xf32>
    %cst_56 = arith.constant dense<0.000000e+00> : vector<16xf32>
    %148 = vector.multi_reduction <add>, %143, %cst_56 [1] : vector<16x64xf32> to vector<16xf32>
    %149 = vector.shape_cast %148 : vector<16xf32> to vector<16x1xf32>
    %cst_57 = arith.constant 6.400000e+01 : f32
    %150 = vector.broadcast %cst_57 : f32 to vector<16x1xf32>
    %151 = arith.divf %149, %150 : vector<16x1xf32>
    %152 = vector.broadcast %151 : vector<16x1xf32> to vector<16x64xf32>
    %153 = arith.subf %143, %152 : vector<16x64xf32>
    %154 = arith.mulf %153, %153 : vector<16x64xf32>
    %cst_58 = arith.constant dense<0.000000e+00> : vector<16xf32>
    %155 = vector.multi_reduction <add>, %154, %cst_58 [1] : vector<16x64xf32> to vector<16xf32>
    %156 = vector.shape_cast %155 : vector<16xf32> to vector<16x1xf32>
    %cst_59 = arith.constant 6.400000e+01 : f32
    %157 = vector.broadcast %cst_59 : f32 to vector<16x1xf32>
    %158 = arith.divf %156, %157 : vector<16x1xf32>
    %159 = vector.broadcast %151 : vector<16x1xf32> to vector<16x64xf32>
    %160 = arith.subf %143, %159 : vector<16x64xf32>
    %cst_60 = arith.constant 9.99999974E-6 : f32
    %161 = vector.broadcast %cst_60 : f32 to vector<16x1xf32>
    %162 = arith.addf %158, %161 : vector<16x1xf32>
    %163 = math.rsqrt %162 : vector<16x1xf32>
    %164 = vector.broadcast %163 : vector<16x1xf32> to vector<16x64xf32>
    %165 = arith.mulf %160, %164 : vector<16x64xf32>
    %166 = vector.broadcast %145 : vector<1x64xf32> to vector<16x64xf32>
    %167 = arith.mulf %165, %166 : vector<16x64xf32>
    %168 = vector.broadcast %147 : vector<1x64xf32> to vector<16x64xf32>
    %169 = arith.addf %167, %168 : vector<16x64xf32>
    %170 = arith.truncf %169 : vector<16x64xf32> to vector<16x64xbf16>
    %c1_61 = arith.constant 1 : index
    %c0_62 = arith.constant 0 : index
    %c0_63 = arith.constant 0 : index
    %171 = vector.load %arg2[%c1_61, %c0_62, %c0_63] : memref<5x64x576xbf16, #tpu.memory_space<vmem>>, vector<1x64x256xbf16>
    %172 = vector.shape_cast %171 : vector<1x64x256xbf16> to vector<64x256xbf16>
    %cst_64 = arith.constant dense<0.000000e+00> : vector<16x256xf32>
    %173 = tpu.matmul %170, %172, %cst_64 {dimension_numbers = #tpu.dot_dimension_numbers<[1], [0], [0], [1], [0, 0, 1, 1], [], []>} : vector<16x64xbf16>, vector<64x256xbf16>, vector<16x256xf32> -> vector<16x256xf32>
    %c1_65 = arith.constant 1 : index
    %c0_66 = arith.constant 0 : index
    %c256_67 = arith.constant 256 : index
    %174 = vector.load %arg4[%c1_65, %c0_66, %c256_67] : memref<5x1x896xf32, #tpu.memory_space<vmem>>, vector<1x1x256xf32>
    %175 = vector.shape_cast %174 : vector<1x1x256xf32> to vector<1x256xf32>
    %176 = vector.broadcast %175 : vector<1x256xf32> to vector<16x256xf32>
    %177 = arith.addf %173, %176 : vector<16x256xf32>
    %178 = arith.truncf %177 : vector<16x256xf32> to vector<16x256xbf16>
    %179 = vector.extract_strided_slice %178 {offsets = [0, 0], sizes = [16, 16], strides = [1, 1]} : vector<16x256xbf16> to vector<16x16xbf16>
    %180 = vector.shape_cast %179 : vector<16x16xbf16> to vector<2x8x16xbf16>
    %181 = vector.extract_strided_slice %178 {offsets = [0, 16], sizes = [16, 16], strides = [1, 1]} : vector<16x256xbf16> to vector<16x16xbf16>
    %182 = vector.shape_cast %181 : vector<16x16xbf16> to vector<2x8x16xbf16>
    %183 = vector.extract_strided_slice %178 {offsets = [0, 32], sizes = [16, 16], strides = [1, 1]} : vector<16x256xbf16> to vector<16x16xbf16>
    %184 = vector.shape_cast %183 : vector<16x16xbf16> to vector<2x8x16xbf16>
    %185 = vector.extract_strided_slice %178 {offsets = [0, 48], sizes = [16, 16], strides = [1, 1]} : vector<16x256xbf16> to vector<16x16xbf16>
    %186 = vector.shape_cast %185 : vector<16x16xbf16> to vector<2x8x16xbf16>
    %187 = tpu.concatenate %180, %182, %184, %186 in 0 : vector<2x8x16xbf16>, vector<2x8x16xbf16>, vector<2x8x16xbf16>, vector<2x8x16xbf16> -> vector<8x8x16xbf16>
    %188 = vector.extract_strided_slice %178 {offsets = [0, 64], sizes = [16, 16], strides = [1, 1]} : vector<16x256xbf16> to vector<16x16xbf16>
    %189 = vector.shape_cast %188 : vector<16x16xbf16> to vector<2x8x16xbf16>
    %190 = vector.extract_strided_slice %178 {offsets = [0, 80], sizes = [16, 16], strides = [1, 1]} : vector<16x256xbf16> to vector<16x16xbf16>
    %191 = vector.shape_cast %190 : vector<16x16xbf16> to vector<2x8x16xbf16>
    %192 = vector.extract_strided_slice %178 {offsets = [0, 96], sizes = [16, 16], strides = [1, 1]} : vector<16x256xbf16> to vector<16x16xbf16>
    %193 = vector.shape_cast %192 : vector<16x16xbf16> to vector<2x8x16xbf16>
    %194 = vector.extract_strided_slice %178 {offsets = [0, 112], sizes = [16, 16], strides = [1, 1]} : vector<16x256xbf16> to vector<16x16xbf16>
    %195 = vector.shape_cast %194 : vector<16x16xbf16> to vector<2x8x16xbf16>
    %196 = tpu.concatenate %189, %191, %193, %195 in 0 : vector<2x8x16xbf16>, vector<2x8x16xbf16>, vector<2x8x16xbf16>, vector<2x8x16xbf16> -> vector<8x8x16xbf16>
    %197 = vector.extract_strided_slice %178 {offsets = [0, 128], sizes = [16, 16], strides = [1, 1]} : vector<16x256xbf16> to vector<16x16xbf16>
    %198 = vector.shape_cast %197 : vector<16x16xbf16> to vector<2x8x16xbf16>
    %199 = vector.extract_strided_slice %178 {offsets = [0, 144], sizes = [16, 16], strides = [1, 1]} : vector<16x256xbf16> to vector<16x16xbf16>
    %200 = vector.shape_cast %199 : vector<16x16xbf16> to vector<2x8x16xbf16>
    %201 = vector.extract_strided_slice %178 {offsets = [0, 160], sizes = [16, 16], strides = [1, 1]} : vector<16x256xbf16> to vector<16x16xbf16>
    %202 = vector.shape_cast %201 : vector<16x16xbf16> to vector<2x8x16xbf16>
    %203 = vector.extract_strided_slice %178 {offsets = [0, 176], sizes = [16, 16], strides = [1, 1]} : vector<16x256xbf16> to vector<16x16xbf16>
    %204 = vector.shape_cast %203 : vector<16x16xbf16> to vector<2x8x16xbf16>
    %205 = tpu.concatenate %198, %200, %202, %204 in 0 : vector<2x8x16xbf16>, vector<2x8x16xbf16>, vector<2x8x16xbf16>, vector<2x8x16xbf16> -> vector<8x8x16xbf16>
    "tpu.trace_start"() <{level = 10 : i32, message = "bqd,bkd->bqk"}> : () -> ()
    %cst_68 = arith.constant dense<0.000000e+00> : vector<8x8x8xf32>
    %206 = tpu.matmul %187, %196, %cst_68 {dimension_numbers = #tpu.dot_dimension_numbers<[2], [2], [1], [1], [0, 0, 0, 1, 1, 1], [0], [0]>} : vector<8x8x16xbf16>, vector<8x8x16xbf16>, vector<8x8x8xf32> -> vector<8x8x8xf32>
    "tpu.trace_stop"() : () -> ()
    %207 = vector.shape_cast %2 : vector<8x8xf32> to vector<1x8x8xf32>
    %208 = vector.broadcast %207 : vector<1x8x8xf32> to vector<8x8x8xf32>
    %209 = arith.addf %206, %208 : vector<8x8x8xf32>
    %cst_69 = arith.constant dense<0xFF800000> : vector<8x8xf32>
    %210 = vector.multi_reduction <maximumf>, %209, %cst_69 [2] : vector<8x8x8xf32> to vector<8x8xf32>
    %211 = vector.shape_cast %210 : vector<8x8xf32> to vector<8x8x1xf32>
    %212 = vector.broadcast %211 : vector<8x8x1xf32> to vector<8x8x8xf32>
    %213 = arith.subf %209, %212 : vector<8x8x8xf32>
    %214 = math.exp %213 : vector<8x8x8xf32>
    %cst_70 = arith.constant dense<0.000000e+00> : vector<8x8xf32>
    %215 = vector.multi_reduction <add>, %214, %cst_70 [2] : vector<8x8x8xf32> to vector<8x8xf32>
    %216 = vector.shape_cast %215 : vector<8x8xf32> to vector<8x8x1xf32>
    %217 = tpu.reciprocal %216 {approx = true} : vector<8x8x1xf32> -> vector<8x8x1xf32>
    %218 = vector.broadcast %217 : vector<8x8x1xf32> to vector<8x8x8xf32>
    %219 = arith.mulf %214, %218 : vector<8x8x8xf32>
    %220 = arith.truncf %219 : vector<8x8x8xf32> to vector<8x8x8xbf16>
    "tpu.trace_start"() <{level = 10 : i32, message = "bqk,bkd->bqd"}> : () -> ()
    %cst_71 = arith.constant dense<0.000000e+00> : vector<8x8x16xf32>
    %221 = tpu.matmul %220, %205, %cst_71 {dimension_numbers = #tpu.dot_dimension_numbers<[2], [1], [1], [2], [0, 0, 0, 1, 1, 2], [0], [0]>} : vector<8x8x8xbf16>, vector<8x8x16xbf16>, vector<8x8x16xf32> -> vector<8x8x16xf32>
    "tpu.trace_stop"() : () -> ()
    %222 = vector.extract_strided_slice %221 {offsets = [0, 0, 0], sizes = [2, 8, 16], strides = [1, 1, 1]} : vector<8x8x16xf32> to vector<2x8x16xf32>
    %223 = vector.shape_cast %222 : vector<2x8x16xf32> to vector<16x16xf32>
    %224 = vector.extract_strided_slice %221 {offsets = [2, 0, 0], sizes = [2, 8, 16], strides = [1, 1, 1]} : vector<8x8x16xf32> to vector<2x8x16xf32>
    %225 = vector.shape_cast %224 : vector<2x8x16xf32> to vector<16x16xf32>
    %226 = vector.extract_strided_slice %221 {offsets = [4, 0, 0], sizes = [2, 8, 16], strides = [1, 1, 1]} : vector<8x8x16xf32> to vector<2x8x16xf32>
    %227 = vector.shape_cast %226 : vector<2x8x16xf32> to vector<16x16xf32>
    %228 = vector.extract_strided_slice %221 {offsets = [6, 0, 0], sizes = [2, 8, 16], strides = [1, 1, 1]} : vector<8x8x16xf32> to vector<2x8x16xf32>
    %229 = vector.shape_cast %228 : vector<2x8x16xf32> to vector<16x16xf32>
    %230 = tpu.concatenate %223, %225, %227, %229 in 1 : vector<16x16xf32>, vector<16x16xf32>, vector<16x16xf32>, vector<16x16xf32> -> vector<16x64xf32>
    %231 = arith.truncf %230 : vector<16x64xf32> to vector<16x64xbf16>
    %c1_72 = arith.constant 1 : index
    %c0_73 = arith.constant 0 : index
    %c512_74 = arith.constant 512 : index
    %232 = vector.load %arg2[%c1_72, %c0_73, %c512_74] : memref<5x64x576xbf16, #tpu.memory_space<vmem>>, vector<1x64x64xbf16>
    %233 = vector.shape_cast %232 : vector<1x64x64xbf16> to vector<64x64xbf16>
    %cst_75 = arith.constant dense<0.000000e+00> : vector<16x64xf32>
    %234 = tpu.matmul %231, %233, %cst_75 {dimension_numbers = #tpu.dot_dimension_numbers<[1], [0], [0], [1], [0, 0, 1, 1], [], []>} : vector<16x64xbf16>, vector<64x64xbf16>, vector<16x64xf32> -> vector<16x64xf32>
    %c1_76 = arith.constant 1 : index
    %c0_77 = arith.constant 0 : index
    %c512_78 = arith.constant 512 : index
    %235 = vector.load %arg4[%c1_76, %c0_77, %c512_78] : memref<5x1x896xf32, #tpu.memory_space<vmem>>, vector<1x1x64xf32>
    %236 = vector.shape_cast %235 : vector<1x1x64xf32> to vector<1x64xf32>
    %237 = vector.broadcast %236 : vector<1x64xf32> to vector<16x64xf32>
    %238 = arith.addf %234, %237 : vector<16x64xf32>
    %239 = arith.addf %143, %238 : vector<16x64xf32>
    %c1_79 = arith.constant 1 : index
    %c0_80 = arith.constant 0 : index
    %c128_81 = arith.constant 128 : index
    %240 = vector.load %arg4[%c1_79, %c0_80, %c128_81] : memref<5x1x896xf32, #tpu.memory_space<vmem>>, vector<1x1x64xf32>
    %241 = vector.shape_cast %240 : vector<1x1x64xf32> to vector<1x64xf32>
    %c1_82 = arith.constant 1 : index
    %c0_83 = arith.constant 0 : index
    %c192_84 = arith.constant 192 : index
    %242 = vector.load %arg4[%c1_82, %c0_83, %c192_84] : memref<5x1x896xf32, #tpu.memory_space<vmem>>, vector<1x1x64xf32>
    %243 = vector.shape_cast %242 : vector<1x1x64xf32> to vector<1x64xf32>
    %cst_85 = arith.constant dense<0.000000e+00> : vector<16xf32>
    %244 = vector.multi_reduction <add>, %239, %cst_85 [1] : vector<16x64xf32> to vector<16xf32>
    %245 = vector.shape_cast %244 : vector<16xf32> to vector<16x1xf32>
    %cst_86 = arith.constant 6.400000e+01 : f32
    %246 = vector.broadcast %cst_86 : f32 to vector<16x1xf32>
    %247 = arith.divf %245, %246 : vector<16x1xf32>
    %248 = vector.broadcast %247 : vector<16x1xf32> to vector<16x64xf32>
    %249 = arith.subf %239, %248 : vector<16x64xf32>
    %250 = arith.mulf %249, %249 : vector<16x64xf32>
    %cst_87 = arith.constant dense<0.000000e+00> : vector<16xf32>
    %251 = vector.multi_reduction <add>, %250, %cst_87 [1] : vector<16x64xf32> to vector<16xf32>
    %252 = vector.shape_cast %251 : vector<16xf32> to vector<16x1xf32>
    %cst_88 = arith.constant 6.400000e+01 : f32
    %253 = vector.broadcast %cst_88 : f32 to vector<16x1xf32>
    %254 = arith.divf %252, %253 : vector<16x1xf32>
    %255 = vector.broadcast %247 : vector<16x1xf32> to vector<16x64xf32>
    %256 = arith.subf %239, %255 : vector<16x64xf32>
    %cst_89 = arith.constant 9.99999974E-6 : f32
    %257 = vector.broadcast %cst_89 : f32 to vector<16x1xf32>
    %258 = arith.addf %254, %257 : vector<16x1xf32>
    %259 = math.rsqrt %258 : vector<16x1xf32>
    %260 = vector.broadcast %259 : vector<16x1xf32> to vector<16x64xf32>
    %261 = arith.mulf %256, %260 : vector<16x64xf32>
    %262 = vector.broadcast %241 : vector<1x64xf32> to vector<16x64xf32>
    %263 = arith.mulf %261, %262 : vector<16x64xf32>
    %264 = vector.broadcast %243 : vector<1x64xf32> to vector<16x64xf32>
    %265 = arith.addf %263, %264 : vector<16x64xf32>
    %266 = arith.truncf %265 : vector<16x64xf32> to vector<16x64xbf16>
    %c1_90 = arith.constant 1 : index
    %c0_91 = arith.constant 0 : index
    %c256_92 = arith.constant 256 : index
    %267 = vector.load %arg2[%c1_90, %c0_91, %c256_92] : memref<5x64x576xbf16, #tpu.memory_space<vmem>>, vector<1x64x256xbf16>
    %268 = vector.shape_cast %267 : vector<1x64x256xbf16> to vector<64x256xbf16>
    %cst_93 = arith.constant dense<0.000000e+00> : vector<16x256xf32>
    %269 = tpu.matmul %266, %268, %cst_93 {dimension_numbers = #tpu.dot_dimension_numbers<[1], [0], [0], [1], [0, 0, 1, 1], [], []>} : vector<16x64xbf16>, vector<64x256xbf16>, vector<16x256xf32> -> vector<16x256xf32>
    %c1_94 = arith.constant 1 : index
    %c0_95 = arith.constant 0 : index
    %c576_96 = arith.constant 576 : index
    %270 = vector.load %arg4[%c1_94, %c0_95, %c576_96] : memref<5x1x896xf32, #tpu.memory_space<vmem>>, vector<1x1x256xf32>
    %271 = vector.shape_cast %270 : vector<1x1x256xf32> to vector<1x256xf32>
    %272 = vector.broadcast %271 : vector<1x256xf32> to vector<16x256xf32>
    %273 = arith.addf %269, %272 : vector<16x256xf32>
    %cst_97 = arith.constant 0.000000e+00 : f32
    %274 = vector.broadcast %cst_97 : f32 to vector<16x256xf32>
    %275 = arith.maximumf %273, %274 : vector<16x256xf32>
    %276 = arith.truncf %275 : vector<16x256xf32> to vector<16x256xbf16>
    %c1_98 = arith.constant 1 : index
    %c0_99 = arith.constant 0 : index
    %c0_100 = arith.constant 0 : index
    %277 = vector.load %arg3[%c1_98, %c0_99, %c0_100] : memref<4x256x64xbf16, #tpu.memory_space<vmem>>, vector<1x256x64xbf16>
    %278 = vector.shape_cast %277 : vector<1x256x64xbf16> to vector<256x64xbf16>
    %cst_101 = arith.constant dense<0.000000e+00> : vector<16x64xf32>
    %279 = tpu.matmul %276, %278, %cst_101 {dimension_numbers = #tpu.dot_dimension_numbers<[1], [0], [0], [1], [0, 0, 1, 1], [], []>} : vector<16x256xbf16>, vector<256x64xbf16>, vector<16x64xf32> -> vector<16x64xf32>
    %c1_102 = arith.constant 1 : index
    %c0_103 = arith.constant 0 : index
    %c832_104 = arith.constant 832 : index
    %280 = vector.load %arg4[%c1_102, %c0_103, %c832_104] : memref<5x1x896xf32, #tpu.memory_space<vmem>>, vector<1x1x64xf32>
    %281 = vector.shape_cast %280 : vector<1x1x64xf32> to vector<1x64xf32>
    %282 = vector.broadcast %281 : vector<1x64xf32> to vector<16x64xf32>
    %283 = arith.addf %279, %282 : vector<16x64xf32>
    %284 = arith.addf %239, %283 : vector<16x64xf32>
    %c2 = arith.constant 2 : index
    %c0_105 = arith.constant 0 : index
    %c0_106 = arith.constant 0 : index
    %285 = vector.load %arg4[%c2, %c0_105, %c0_106] : memref<5x1x896xf32, #tpu.memory_space<vmem>>, vector<1x1x64xf32>
    %286 = vector.shape_cast %285 : vector<1x1x64xf32> to vector<1x64xf32>
    %c2_107 = arith.constant 2 : index
    %c0_108 = arith.constant 0 : index
    %c64_109 = arith.constant 64 : index
    %287 = vector.load %arg4[%c2_107, %c0_108, %c64_109] : memref<5x1x896xf32, #tpu.memory_space<vmem>>, vector<1x1x64xf32>
    %288 = vector.shape_cast %287 : vector<1x1x64xf32> to vector<1x64xf32>
    %cst_110 = arith.constant dense<0.000000e+00> : vector<16xf32>
    %289 = vector.multi_reduction <add>, %284, %cst_110 [1] : vector<16x64xf32> to vector<16xf32>
    %290 = vector.shape_cast %289 : vector<16xf32> to vector<16x1xf32>
    %cst_111 = arith.constant 6.400000e+01 : f32
    %291 = vector.broadcast %cst_111 : f32 to vector<16x1xf32>
    %292 = arith.divf %290, %291 : vector<16x1xf32>
    %293 = vector.broadcast %292 : vector<16x1xf32> to vector<16x64xf32>
    %294 = arith.subf %284, %293 : vector<16x64xf32>
    %295 = arith.mulf %294, %294 : vector<16x64xf32>
    %cst_112 = arith.constant dense<0.000000e+00> : vector<16xf32>
    %296 = vector.multi_reduction <add>, %295, %cst_112 [1] : vector<16x64xf32> to vector<16xf32>
    %297 = vector.shape_cast %296 : vector<16xf32> to vector<16x1xf32>
    %cst_113 = arith.constant 6.400000e+01 : f32
    %298 = vector.broadcast %cst_113 : f32 to vector<16x1xf32>
    %299 = arith.divf %297, %298 : vector<16x1xf32>
    %300 = vector.broadcast %292 : vector<16x1xf32> to vector<16x64xf32>
    %301 = arith.subf %284, %300 : vector<16x64xf32>
    %cst_114 = arith.constant 9.99999974E-6 : f32
    %302 = vector.broadcast %cst_114 : f32 to vector<16x1xf32>
    %303 = arith.addf %299, %302 : vector<16x1xf32>
    %304 = math.rsqrt %303 : vector<16x1xf32>
    %305 = vector.broadcast %304 : vector<16x1xf32> to vector<16x64xf32>
    %306 = arith.mulf %301, %305 : vector<16x64xf32>
    %307 = vector.broadcast %286 : vector<1x64xf32> to vector<16x64xf32>
    %308 = arith.mulf %306, %307 : vector<16x64xf32>
    %309 = vector.broadcast %288 : vector<1x64xf32> to vector<16x64xf32>
    %310 = arith.addf %308, %309 : vector<16x64xf32>
    %311 = arith.truncf %310 : vector<16x64xf32> to vector<16x64xbf16>
    %c2_115 = arith.constant 2 : index
    %c0_116 = arith.constant 0 : index
    %c0_117 = arith.constant 0 : index
    %312 = vector.load %arg2[%c2_115, %c0_116, %c0_117] : memref<5x64x576xbf16, #tpu.memory_space<vmem>>, vector<1x64x256xbf16>
    %313 = vector.shape_cast %312 : vector<1x64x256xbf16> to vector<64x256xbf16>
    %cst_118 = arith.constant dense<0.000000e+00> : vector<16x256xf32>
    %314 = tpu.matmul %311, %313, %cst_118 {dimension_numbers = #tpu.dot_dimension_numbers<[1], [0], [0], [1], [0, 0, 1, 1], [], []>} : vector<16x64xbf16>, vector<64x256xbf16>, vector<16x256xf32> -> vector<16x256xf32>
    %c2_119 = arith.constant 2 : index
    %c0_120 = arith.constant 0 : index
    %c256_121 = arith.constant 256 : index
    %315 = vector.load %arg4[%c2_119, %c0_120, %c256_121] : memref<5x1x896xf32, #tpu.memory_space<vmem>>, vector<1x1x256xf32>
    %316 = vector.shape_cast %315 : vector<1x1x256xf32> to vector<1x256xf32>
    %317 = vector.broadcast %316 : vector<1x256xf32> to vector<16x256xf32>
    %318 = arith.addf %314, %317 : vector<16x256xf32>
    %319 = arith.truncf %318 : vector<16x256xf32> to vector<16x256xbf16>
    %320 = vector.extract_strided_slice %319 {offsets = [0, 0], sizes = [16, 16], strides = [1, 1]} : vector<16x256xbf16> to vector<16x16xbf16>
    %321 = vector.shape_cast %320 : vector<16x16xbf16> to vector<2x8x16xbf16>
    %322 = vector.extract_strided_slice %319 {offsets = [0, 16], sizes = [16, 16], strides = [1, 1]} : vector<16x256xbf16> to vector<16x16xbf16>
    %323 = vector.shape_cast %322 : vector<16x16xbf16> to vector<2x8x16xbf16>
    %324 = vector.extract_strided_slice %319 {offsets = [0, 32], sizes = [16, 16], strides = [1, 1]} : vector<16x256xbf16> to vector<16x16xbf16>
    %325 = vector.shape_cast %324 : vector<16x16xbf16> to vector<2x8x16xbf16>
    %326 = vector.extract_strided_slice %319 {offsets = [0, 48], sizes = [16, 16], strides = [1, 1]} : vector<16x256xbf16> to vector<16x16xbf16>
    %327 = vector.shape_cast %326 : vector<16x16xbf16> to vector<2x8x16xbf16>
    %328 = tpu.concatenate %321, %323, %325, %327 in 0 : vector<2x8x16xbf16>, vector<2x8x16xbf16>, vector<2x8x16xbf16>, vector<2x8x16xbf16> -> vector<8x8x16xbf16>
    %329 = vector.extract_strided_slice %319 {offsets = [0, 64], sizes = [16, 16], strides = [1, 1]} : vector<16x256xbf16> to vector<16x16xbf16>
    %330 = vector.shape_cast %329 : vector<16x16xbf16> to vector<2x8x16xbf16>
    %331 = vector.extract_strided_slice %319 {offsets = [0, 80], sizes = [16, 16], strides = [1, 1]} : vector<16x256xbf16> to vector<16x16xbf16>
    %332 = vector.shape_cast %331 : vector<16x16xbf16> to vector<2x8x16xbf16>
    %333 = vector.extract_strided_slice %319 {offsets = [0, 96], sizes = [16, 16], strides = [1, 1]} : vector<16x256xbf16> to vector<16x16xbf16>
    %334 = vector.shape_cast %333 : vector<16x16xbf16> to vector<2x8x16xbf16>
    %335 = vector.extract_strided_slice %319 {offsets = [0, 112], sizes = [16, 16], strides = [1, 1]} : vector<16x256xbf16> to vector<16x16xbf16>
    %336 = vector.shape_cast %335 : vector<16x16xbf16> to vector<2x8x16xbf16>
    %337 = tpu.concatenate %330, %332, %334, %336 in 0 : vector<2x8x16xbf16>, vector<2x8x16xbf16>, vector<2x8x16xbf16>, vector<2x8x16xbf16> -> vector<8x8x16xbf16>
    %338 = vector.extract_strided_slice %319 {offsets = [0, 128], sizes = [16, 16], strides = [1, 1]} : vector<16x256xbf16> to vector<16x16xbf16>
    %339 = vector.shape_cast %338 : vector<16x16xbf16> to vector<2x8x16xbf16>
    %340 = vector.extract_strided_slice %319 {offsets = [0, 144], sizes = [16, 16], strides = [1, 1]} : vector<16x256xbf16> to vector<16x16xbf16>
    %341 = vector.shape_cast %340 : vector<16x16xbf16> to vector<2x8x16xbf16>
    %342 = vector.extract_strided_slice %319 {offsets = [0, 160], sizes = [16, 16], strides = [1, 1]} : vector<16x256xbf16> to vector<16x16xbf16>
    %343 = vector.shape_cast %342 : vector<16x16xbf16> to vector<2x8x16xbf16>
    %344 = vector.extract_strided_slice %319 {offsets = [0, 176], sizes = [16, 16], strides = [1, 1]} : vector<16x256xbf16> to vector<16x16xbf16>
    %345 = vector.shape_cast %344 : vector<16x16xbf16> to vector<2x8x16xbf16>
    %346 = tpu.concatenate %339, %341, %343, %345 in 0 : vector<2x8x16xbf16>, vector<2x8x16xbf16>, vector<2x8x16xbf16>, vector<2x8x16xbf16> -> vector<8x8x16xbf16>
    "tpu.trace_start"() <{level = 10 : i32, message = "bqd,bkd->bqk"}> : () -> ()
    %cst_122 = arith.constant dense<0.000000e+00> : vector<8x8x8xf32>
    %347 = tpu.matmul %328, %337, %cst_122 {dimension_numbers = #tpu.dot_dimension_numbers<[2], [2], [1], [1], [0, 0, 0, 1, 1, 1], [0], [0]>} : vector<8x8x16xbf16>, vector<8x8x16xbf16>, vector<8x8x8xf32> -> vector<8x8x8xf32>
    "tpu.trace_stop"() : () -> ()
    %348 = vector.shape_cast %2 : vector<8x8xf32> to vector<1x8x8xf32>
    %349 = vector.broadcast %348 : vector<1x8x8xf32> to vector<8x8x8xf32>
    %350 = arith.addf %347, %349 : vector<8x8x8xf32>
    %cst_123 = arith.constant dense<0xFF800000> : vector<8x8xf32>
    %351 = vector.multi_reduction <maximumf>, %350, %cst_123 [2] : vector<8x8x8xf32> to vector<8x8xf32>
    %352 = vector.shape_cast %351 : vector<8x8xf32> to vector<8x8x1xf32>
    %353 = vector.broadcast %352 : vector<8x8x1xf32> to vector<8x8x8xf32>
    %354 = arith.subf %350, %353 : vector<8x8x8xf32>
    %355 = math.exp %354 : vector<8x8x8xf32>
    %cst_124 = arith.constant dense<0.000000e+00> : vector<8x8xf32>
    %356 = vector.multi_reduction <add>, %355, %cst_124 [2] : vector<8x8x8xf32> to vector<8x8xf32>
    %357 = vector.shape_cast %356 : vector<8x8xf32> to vector<8x8x1xf32>
    %358 = tpu.reciprocal %357 {approx = true} : vector<8x8x1xf32> -> vector<8x8x1xf32>
    %359 = vector.broadcast %358 : vector<8x8x1xf32> to vector<8x8x8xf32>
    %360 = arith.mulf %355, %359 : vector<8x8x8xf32>
    %361 = arith.truncf %360 : vector<8x8x8xf32> to vector<8x8x8xbf16>
    "tpu.trace_start"() <{level = 10 : i32, message = "bqk,bkd->bqd"}> : () -> ()
    %cst_125 = arith.constant dense<0.000000e+00> : vector<8x8x16xf32>
    %362 = tpu.matmul %361, %346, %cst_125 {dimension_numbers = #tpu.dot_dimension_numbers<[2], [1], [1], [2], [0, 0, 0, 1, 1, 2], [0], [0]>} : vector<8x8x8xbf16>, vector<8x8x16xbf16>, vector<8x8x16xf32> -> vector<8x8x16xf32>
    "tpu.trace_stop"() : () -> ()
    %363 = vector.extract_strided_slice %362 {offsets = [0, 0, 0], sizes = [2, 8, 16], strides = [1, 1, 1]} : vector<8x8x16xf32> to vector<2x8x16xf32>
    %364 = vector.shape_cast %363 : vector<2x8x16xf32> to vector<16x16xf32>
    %365 = vector.extract_strided_slice %362 {offsets = [2, 0, 0], sizes = [2, 8, 16], strides = [1, 1, 1]} : vector<8x8x16xf32> to vector<2x8x16xf32>
    %366 = vector.shape_cast %365 : vector<2x8x16xf32> to vector<16x16xf32>
    %367 = vector.extract_strided_slice %362 {offsets = [4, 0, 0], sizes = [2, 8, 16], strides = [1, 1, 1]} : vector<8x8x16xf32> to vector<2x8x16xf32>
    %368 = vector.shape_cast %367 : vector<2x8x16xf32> to vector<16x16xf32>
    %369 = vector.extract_strided_slice %362 {offsets = [6, 0, 0], sizes = [2, 8, 16], strides = [1, 1, 1]} : vector<8x8x16xf32> to vector<2x8x16xf32>
    %370 = vector.shape_cast %369 : vector<2x8x16xf32> to vector<16x16xf32>
    %371 = tpu.concatenate %364, %366, %368, %370 in 1 : vector<16x16xf32>, vector<16x16xf32>, vector<16x16xf32>, vector<16x16xf32> -> vector<16x64xf32>
    %372 = arith.truncf %371 : vector<16x64xf32> to vector<16x64xbf16>
    %c2_126 = arith.constant 2 : index
    %c0_127 = arith.constant 0 : index
    %c512_128 = arith.constant 512 : index
    %373 = vector.load %arg2[%c2_126, %c0_127, %c512_128] : memref<5x64x576xbf16, #tpu.memory_space<vmem>>, vector<1x64x64xbf16>
    %374 = vector.shape_cast %373 : vector<1x64x64xbf16> to vector<64x64xbf16>
    %cst_129 = arith.constant dense<0.000000e+00> : vector<16x64xf32>
    %375 = tpu.matmul %372, %374, %cst_129 {dimension_numbers = #tpu.dot_dimension_numbers<[1], [0], [0], [1], [0, 0, 1, 1], [], []>} : vector<16x64xbf16>, vector<64x64xbf16>, vector<16x64xf32> -> vector<16x64xf32>
    %c2_130 = arith.constant 2 : index
    %c0_131 = arith.constant 0 : index
    %c512_132 = arith.constant 512 : index
    %376 = vector.load %arg4[%c2_130, %c0_131, %c512_132] : memref<5x1x896xf32, #tpu.memory_space<vmem>>, vector<1x1x64xf32>
    %377 = vector.shape_cast %376 : vector<1x1x64xf32> to vector<1x64xf32>
    %378 = vector.broadcast %377 : vector<1x64xf32> to vector<16x64xf32>
    %379 = arith.addf %375, %378 : vector<16x64xf32>
    %380 = arith.addf %284, %379 : vector<16x64xf32>
    %c2_133 = arith.constant 2 : index
    %c0_134 = arith.constant 0 : index
    %c128_135 = arith.constant 128 : index
    %381 = vector.load %arg4[%c2_133, %c0_134, %c128_135] : memref<5x1x896xf32, #tpu.memory_space<vmem>>, vector<1x1x64xf32>
    %382 = vector.shape_cast %381 : vector<1x1x64xf32> to vector<1x64xf32>
    %c2_136 = arith.constant 2 : index
    %c0_137 = arith.constant 0 : index
    %c192_138 = arith.constant 192 : index
    %383 = vector.load %arg4[%c2_136, %c0_137, %c192_138] : memref<5x1x896xf32, #tpu.memory_space<vmem>>, vector<1x1x64xf32>
    %384 = vector.shape_cast %383 : vector<1x1x64xf32> to vector<1x64xf32>
    %cst_139 = arith.constant dense<0.000000e+00> : vector<16xf32>
    %385 = vector.multi_reduction <add>, %380, %cst_139 [1] : vector<16x64xf32> to vector<16xf32>
    %386 = vector.shape_cast %385 : vector<16xf32> to vector<16x1xf32>
    %cst_140 = arith.constant 6.400000e+01 : f32
    %387 = vector.broadcast %cst_140 : f32 to vector<16x1xf32>
    %388 = arith.divf %386, %387 : vector<16x1xf32>
    %389 = vector.broadcast %388 : vector<16x1xf32> to vector<16x64xf32>
    %390 = arith.subf %380, %389 : vector<16x64xf32>
    %391 = arith.mulf %390, %390 : vector<16x64xf32>
    %cst_141 = arith.constant dense<0.000000e+00> : vector<16xf32>
    %392 = vector.multi_reduction <add>, %391, %cst_141 [1] : vector<16x64xf32> to vector<16xf32>
    %393 = vector.shape_cast %392 : vector<16xf32> to vector<16x1xf32>
    %cst_142 = arith.constant 6.400000e+01 : f32
    %394 = vector.broadcast %cst_142 : f32 to vector<16x1xf32>
    %395 = arith.divf %393, %394 : vector<16x1xf32>
    %396 = vector.broadcast %388 : vector<16x1xf32> to vector<16x64xf32>
    %397 = arith.subf %380, %396 : vector<16x64xf32>
    %cst_143 = arith.constant 9.99999974E-6 : f32
    %398 = vector.broadcast %cst_143 : f32 to vector<16x1xf32>
    %399 = arith.addf %395, %398 : vector<16x1xf32>
    %400 = math.rsqrt %399 : vector<16x1xf32>
    %401 = vector.broadcast %400 : vector<16x1xf32> to vector<16x64xf32>
    %402 = arith.mulf %397, %401 : vector<16x64xf32>
    %403 = vector.broadcast %382 : vector<1x64xf32> to vector<16x64xf32>
    %404 = arith.mulf %402, %403 : vector<16x64xf32>
    %405 = vector.broadcast %384 : vector<1x64xf32> to vector<16x64xf32>
    %406 = arith.addf %404, %405 : vector<16x64xf32>
    %407 = arith.truncf %406 : vector<16x64xf32> to vector<16x64xbf16>
    %c2_144 = arith.constant 2 : index
    %c0_145 = arith.constant 0 : index
    %c256_146 = arith.constant 256 : index
    %408 = vector.load %arg2[%c2_144, %c0_145, %c256_146] : memref<5x64x576xbf16, #tpu.memory_space<vmem>>, vector<1x64x256xbf16>
    %409 = vector.shape_cast %408 : vector<1x64x256xbf16> to vector<64x256xbf16>
    %cst_147 = arith.constant dense<0.000000e+00> : vector<16x256xf32>
    %410 = tpu.matmul %407, %409, %cst_147 {dimension_numbers = #tpu.dot_dimension_numbers<[1], [0], [0], [1], [0, 0, 1, 1], [], []>} : vector<16x64xbf16>, vector<64x256xbf16>, vector<16x256xf32> -> vector<16x256xf32>
    %c2_148 = arith.constant 2 : index
    %c0_149 = arith.constant 0 : index
    %c576_150 = arith.constant 576 : index
    %411 = vector.load %arg4[%c2_148, %c0_149, %c576_150] : memref<5x1x896xf32, #tpu.memory_space<vmem>>, vector<1x1x256xf32>
    %412 = vector.shape_cast %411 : vector<1x1x256xf32> to vector<1x256xf32>
    %413 = vector.broadcast %412 : vector<1x256xf32> to vector<16x256xf32>
    %414 = arith.addf %410, %413 : vector<16x256xf32>
    %cst_151 = arith.constant 0.000000e+00 : f32
    %415 = vector.broadcast %cst_151 : f32 to vector<16x256xf32>
    %416 = arith.maximumf %414, %415 : vector<16x256xf32>
    %417 = arith.truncf %416 : vector<16x256xf32> to vector<16x256xbf16>
    %c2_152 = arith.constant 2 : index
    %c0_153 = arith.constant 0 : index
    %c0_154 = arith.constant 0 : index
    %418 = vector.load %arg3[%c2_152, %c0_153, %c0_154] : memref<4x256x64xbf16, #tpu.memory_space<vmem>>, vector<1x256x64xbf16>
    %419 = vector.shape_cast %418 : vector<1x256x64xbf16> to vector<256x64xbf16>
    %cst_155 = arith.constant dense<0.000000e+00> : vector<16x64xf32>
    %420 = tpu.matmul %417, %419, %cst_155 {dimension_numbers = #tpu.dot_dimension_numbers<[1], [0], [0], [1], [0, 0, 1, 1], [], []>} : vector<16x256xbf16>, vector<256x64xbf16>, vector<16x64xf32> -> vector<16x64xf32>
    %c2_156 = arith.constant 2 : index
    %c0_157 = arith.constant 0 : index
    %c832_158 = arith.constant 832 : index
    %421 = vector.load %arg4[%c2_156, %c0_157, %c832_158] : memref<5x1x896xf32, #tpu.memory_space<vmem>>, vector<1x1x64xf32>
    %422 = vector.shape_cast %421 : vector<1x1x64xf32> to vector<1x64xf32>
    %423 = vector.broadcast %422 : vector<1x64xf32> to vector<16x64xf32>
    %424 = arith.addf %420, %423 : vector<16x64xf32>
    %425 = arith.addf %380, %424 : vector<16x64xf32>
    %c3 = arith.constant 3 : index
    %c0_159 = arith.constant 0 : index
    %c0_160 = arith.constant 0 : index
    %426 = vector.load %arg4[%c3, %c0_159, %c0_160] : memref<5x1x896xf32, #tpu.memory_space<vmem>>, vector<1x1x64xf32>
    %427 = vector.shape_cast %426 : vector<1x1x64xf32> to vector<1x64xf32>
    %c3_161 = arith.constant 3 : index
    %c0_162 = arith.constant 0 : index
    %c64_163 = arith.constant 64 : index
    %428 = vector.load %arg4[%c3_161, %c0_162, %c64_163] : memref<5x1x896xf32, #tpu.memory_space<vmem>>, vector<1x1x64xf32>
    %429 = vector.shape_cast %428 : vector<1x1x64xf32> to vector<1x64xf32>
    %cst_164 = arith.constant dense<0.000000e+00> : vector<16xf32>
    %430 = vector.multi_reduction <add>, %425, %cst_164 [1] : vector<16x64xf32> to vector<16xf32>
    %431 = vector.shape_cast %430 : vector<16xf32> to vector<16x1xf32>
    %cst_165 = arith.constant 6.400000e+01 : f32
    %432 = vector.broadcast %cst_165 : f32 to vector<16x1xf32>
    %433 = arith.divf %431, %432 : vector<16x1xf32>
    %434 = vector.broadcast %433 : vector<16x1xf32> to vector<16x64xf32>
    %435 = arith.subf %425, %434 : vector<16x64xf32>
    %436 = arith.mulf %435, %435 : vector<16x64xf32>
    %cst_166 = arith.constant dense<0.000000e+00> : vector<16xf32>
    %437 = vector.multi_reduction <add>, %436, %cst_166 [1] : vector<16x64xf32> to vector<16xf32>
    %438 = vector.shape_cast %437 : vector<16xf32> to vector<16x1xf32>
    %cst_167 = arith.constant 6.400000e+01 : f32
    %439 = vector.broadcast %cst_167 : f32 to vector<16x1xf32>
    %440 = arith.divf %438, %439 : vector<16x1xf32>
    %441 = vector.broadcast %433 : vector<16x1xf32> to vector<16x64xf32>
    %442 = arith.subf %425, %441 : vector<16x64xf32>
    %cst_168 = arith.constant 9.99999974E-6 : f32
    %443 = vector.broadcast %cst_168 : f32 to vector<16x1xf32>
    %444 = arith.addf %440, %443 : vector<16x1xf32>
    %445 = math.rsqrt %444 : vector<16x1xf32>
    %446 = vector.broadcast %445 : vector<16x1xf32> to vector<16x64xf32>
    %447 = arith.mulf %442, %446 : vector<16x64xf32>
    %448 = vector.broadcast %427 : vector<1x64xf32> to vector<16x64xf32>
    %449 = arith.mulf %447, %448 : vector<16x64xf32>
    %450 = vector.broadcast %429 : vector<1x64xf32> to vector<16x64xf32>
    %451 = arith.addf %449, %450 : vector<16x64xf32>
    %452 = arith.truncf %451 : vector<16x64xf32> to vector<16x64xbf16>
    %c3_169 = arith.constant 3 : index
    %c0_170 = arith.constant 0 : index
    %c0_171 = arith.constant 0 : index
    %453 = vector.load %arg2[%c3_169, %c0_170, %c0_171] : memref<5x64x576xbf16, #tpu.memory_space<vmem>>, vector<1x64x256xbf16>
    %454 = vector.shape_cast %453 : vector<1x64x256xbf16> to vector<64x256xbf16>
    %cst_172 = arith.constant dense<0.000000e+00> : vector<16x256xf32>
    %455 = tpu.matmul %452, %454, %cst_172 {dimension_numbers = #tpu.dot_dimension_numbers<[1], [0], [0], [1], [0, 0, 1, 1], [], []>} : vector<16x64xbf16>, vector<64x256xbf16>, vector<16x256xf32> -> vector<16x256xf32>
    %c3_173 = arith.constant 3 : index
    %c0_174 = arith.constant 0 : index
    %c256_175 = arith.constant 256 : index
    %456 = vector.load %arg4[%c3_173, %c0_174, %c256_175] : memref<5x1x896xf32, #tpu.memory_space<vmem>>, vector<1x1x256xf32>
    %457 = vector.shape_cast %456 : vector<1x1x256xf32> to vector<1x256xf32>
    %458 = vector.broadcast %457 : vector<1x256xf32> to vector<16x256xf32>
    %459 = arith.addf %455, %458 : vector<16x256xf32>
    %460 = arith.truncf %459 : vector<16x256xf32> to vector<16x256xbf16>
    %461 = vector.extract_strided_slice %460 {offsets = [0, 0], sizes = [16, 16], strides = [1, 1]} : vector<16x256xbf16> to vector<16x16xbf16>
    %462 = vector.shape_cast %461 : vector<16x16xbf16> to vector<2x8x16xbf16>
    %463 = vector.extract_strided_slice %460 {offsets = [0, 16], sizes = [16, 16], strides = [1, 1]} : vector<16x256xbf16> to vector<16x16xbf16>
    %464 = vector.shape_cast %463 : vector<16x16xbf16> to vector<2x8x16xbf16>
    %465 = vector.extract_strided_slice %460 {offsets = [0, 32], sizes = [16, 16], strides = [1, 1]} : vector<16x256xbf16> to vector<16x16xbf16>
    %466 = vector.shape_cast %465 : vector<16x16xbf16> to vector<2x8x16xbf16>
    %467 = vector.extract_strided_slice %460 {offsets = [0, 48], sizes = [16, 16], strides = [1, 1]} : vector<16x256xbf16> to vector<16x16xbf16>
    %468 = vector.shape_cast %467 : vector<16x16xbf16> to vector<2x8x16xbf16>
    %469 = tpu.concatenate %462, %464, %466, %468 in 0 : vector<2x8x16xbf16>, vector<2x8x16xbf16>, vector<2x8x16xbf16>, vector<2x8x16xbf16> -> vector<8x8x16xbf16>
    %470 = vector.extract_strided_slice %460 {offsets = [0, 64], sizes = [16, 16], strides = [1, 1]} : vector<16x256xbf16> to vector<16x16xbf16>
    %471 = vector.shape_cast %470 : vector<16x16xbf16> to vector<2x8x16xbf16>
    %472 = vector.extract_strided_slice %460 {offsets = [0, 80], sizes = [16, 16], strides = [1, 1]} : vector<16x256xbf16> to vector<16x16xbf16>
    %473 = vector.shape_cast %472 : vector<16x16xbf16> to vector<2x8x16xbf16>
    %474 = vector.extract_strided_slice %460 {offsets = [0, 96], sizes = [16, 16], strides = [1, 1]} : vector<16x256xbf16> to vector<16x16xbf16>
    %475 = vector.shape_cast %474 : vector<16x16xbf16> to vector<2x8x16xbf16>
    %476 = vector.extract_strided_slice %460 {offsets = [0, 112], sizes = [16, 16], strides = [1, 1]} : vector<16x256xbf16> to vector<16x16xbf16>
    %477 = vector.shape_cast %476 : vector<16x16xbf16> to vector<2x8x16xbf16>
    %478 = tpu.concatenate %471, %473, %475, %477 in 0 : vector<2x8x16xbf16>, vector<2x8x16xbf16>, vector<2x8x16xbf16>, vector<2x8x16xbf16> -> vector<8x8x16xbf16>
    %479 = vector.extract_strided_slice %460 {offsets = [0, 128], sizes = [16, 16], strides = [1, 1]} : vector<16x256xbf16> to vector<16x16xbf16>
    %480 = vector.shape_cast %479 : vector<16x16xbf16> to vector<2x8x16xbf16>
    %481 = vector.extract_strided_slice %460 {offsets = [0, 144], sizes = [16, 16], strides = [1, 1]} : vector<16x256xbf16> to vector<16x16xbf16>
    %482 = vector.shape_cast %481 : vector<16x16xbf16> to vector<2x8x16xbf16>
    %483 = vector.extract_strided_slice %460 {offsets = [0, 160], sizes = [16, 16], strides = [1, 1]} : vector<16x256xbf16> to vector<16x16xbf16>
    %484 = vector.shape_cast %483 : vector<16x16xbf16> to vector<2x8x16xbf16>
    %485 = vector.extract_strided_slice %460 {offsets = [0, 176], sizes = [16, 16], strides = [1, 1]} : vector<16x256xbf16> to vector<16x16xbf16>
    %486 = vector.shape_cast %485 : vector<16x16xbf16> to vector<2x8x16xbf16>
    %487 = tpu.concatenate %480, %482, %484, %486 in 0 : vector<2x8x16xbf16>, vector<2x8x16xbf16>, vector<2x8x16xbf16>, vector<2x8x16xbf16> -> vector<8x8x16xbf16>
    "tpu.trace_start"() <{level = 10 : i32, message = "bqd,bkd->bqk"}> : () -> ()
    %cst_176 = arith.constant dense<0.000000e+00> : vector<8x8x8xf32>
    %488 = tpu.matmul %469, %478, %cst_176 {dimension_numbers = #tpu.dot_dimension_numbers<[2], [2], [1], [1], [0, 0, 0, 1, 1, 1], [0], [0]>} : vector<8x8x16xbf16>, vector<8x8x16xbf16>, vector<8x8x8xf32> -> vector<8x8x8xf32>
    "tpu.trace_stop"() : () -> ()
    %489 = vector.shape_cast %2 : vector<8x8xf32> to vector<1x8x8xf32>
    %490 = vector.broadcast %489 : vector<1x8x8xf32> to vector<8x8x8xf32>
    %491 = arith.addf %488, %490 : vector<8x8x8xf32>
    %cst_177 = arith.constant dense<0xFF800000> : vector<8x8xf32>
    %492 = vector.multi_reduction <maximumf>, %491, %cst_177 [2] : vector<8x8x8xf32> to vector<8x8xf32>
    %493 = vector.shape_cast %492 : vector<8x8xf32> to vector<8x8x1xf32>
    %494 = vector.broadcast %493 : vector<8x8x1xf32> to vector<8x8x8xf32>
    %495 = arith.subf %491, %494 : vector<8x8x8xf32>
    %496 = math.exp %495 : vector<8x8x8xf32>
    %cst_178 = arith.constant dense<0.000000e+00> : vector<8x8xf32>
    %497 = vector.multi_reduction <add>, %496, %cst_178 [2] : vector<8x8x8xf32> to vector<8x8xf32>
    %498 = vector.shape_cast %497 : vector<8x8xf32> to vector<8x8x1xf32>
    %499 = tpu.reciprocal %498 {approx = true} : vector<8x8x1xf32> -> vector<8x8x1xf32>
    %500 = vector.broadcast %499 : vector<8x8x1xf32> to vector<8x8x8xf32>
    %501 = arith.mulf %496, %500 : vector<8x8x8xf32>
    %502 = arith.truncf %501 : vector<8x8x8xf32> to vector<8x8x8xbf16>
    "tpu.trace_start"() <{level = 10 : i32, message = "bqk,bkd->bqd"}> : () -> ()
    %cst_179 = arith.constant dense<0.000000e+00> : vector<8x8x16xf32>
    %503 = tpu.matmul %502, %487, %cst_179 {dimension_numbers = #tpu.dot_dimension_numbers<[2], [1], [1], [2], [0, 0, 0, 1, 1, 2], [0], [0]>} : vector<8x8x8xbf16>, vector<8x8x16xbf16>, vector<8x8x16xf32> -> vector<8x8x16xf32>
    "tpu.trace_stop"() : () -> ()
    %504 = vector.extract_strided_slice %503 {offsets = [0, 0, 0], sizes = [2, 8, 16], strides = [1, 1, 1]} : vector<8x8x16xf32> to vector<2x8x16xf32>
    %505 = vector.shape_cast %504 : vector<2x8x16xf32> to vector<16x16xf32>
    %506 = vector.extract_strided_slice %503 {offsets = [2, 0, 0], sizes = [2, 8, 16], strides = [1, 1, 1]} : vector<8x8x16xf32> to vector<2x8x16xf32>
    %507 = vector.shape_cast %506 : vector<2x8x16xf32> to vector<16x16xf32>
    %508 = vector.extract_strided_slice %503 {offsets = [4, 0, 0], sizes = [2, 8, 16], strides = [1, 1, 1]} : vector<8x8x16xf32> to vector<2x8x16xf32>
    %509 = vector.shape_cast %508 : vector<2x8x16xf32> to vector<16x16xf32>
    %510 = vector.extract_strided_slice %503 {offsets = [6, 0, 0], sizes = [2, 8, 16], strides = [1, 1, 1]} : vector<8x8x16xf32> to vector<2x8x16xf32>
    %511 = vector.shape_cast %510 : vector<2x8x16xf32> to vector<16x16xf32>
    %512 = tpu.concatenate %505, %507, %509, %511 in 1 : vector<16x16xf32>, vector<16x16xf32>, vector<16x16xf32>, vector<16x16xf32> -> vector<16x64xf32>
    %513 = arith.truncf %512 : vector<16x64xf32> to vector<16x64xbf16>
    %c3_180 = arith.constant 3 : index
    %c0_181 = arith.constant 0 : index
    %c512_182 = arith.constant 512 : index
    %514 = vector.load %arg2[%c3_180, %c0_181, %c512_182] : memref<5x64x576xbf16, #tpu.memory_space<vmem>>, vector<1x64x64xbf16>
    %515 = vector.shape_cast %514 : vector<1x64x64xbf16> to vector<64x64xbf16>
    %cst_183 = arith.constant dense<0.000000e+00> : vector<16x64xf32>
    %516 = tpu.matmul %513, %515, %cst_183 {dimension_numbers = #tpu.dot_dimension_numbers<[1], [0], [0], [1], [0, 0, 1, 1], [], []>} : vector<16x64xbf16>, vector<64x64xbf16>, vector<16x64xf32> -> vector<16x64xf32>
    %c3_184 = arith.constant 3 : index
    %c0_185 = arith.constant 0 : index
    %c512_186 = arith.constant 512 : index
    %517 = vector.load %arg4[%c3_184, %c0_185, %c512_186] : memref<5x1x896xf32, #tpu.memory_space<vmem>>, vector<1x1x64xf32>
    %518 = vector.shape_cast %517 : vector<1x1x64xf32> to vector<1x64xf32>
    %519 = vector.broadcast %518 : vector<1x64xf32> to vector<16x64xf32>
    %520 = arith.addf %516, %519 : vector<16x64xf32>
    %521 = arith.addf %425, %520 : vector<16x64xf32>
    %c3_187 = arith.constant 3 : index
    %c0_188 = arith.constant 0 : index
    %c128_189 = arith.constant 128 : index
    %522 = vector.load %arg4[%c3_187, %c0_188, %c128_189] : memref<5x1x896xf32, #tpu.memory_space<vmem>>, vector<1x1x64xf32>
    %523 = vector.shape_cast %522 : vector<1x1x64xf32> to vector<1x64xf32>
    %c3_190 = arith.constant 3 : index
    %c0_191 = arith.constant 0 : index
    %c192_192 = arith.constant 192 : index
    %524 = vector.load %arg4[%c3_190, %c0_191, %c192_192] : memref<5x1x896xf32, #tpu.memory_space<vmem>>, vector<1x1x64xf32>
    %525 = vector.shape_cast %524 : vector<1x1x64xf32> to vector<1x64xf32>
    %cst_193 = arith.constant dense<0.000000e+00> : vector<16xf32>
    %526 = vector.multi_reduction <add>, %521, %cst_193 [1] : vector<16x64xf32> to vector<16xf32>
    %527 = vector.shape_cast %526 : vector<16xf32> to vector<16x1xf32>
    %cst_194 = arith.constant 6.400000e+01 : f32
    %528 = vector.broadcast %cst_194 : f32 to vector<16x1xf32>
    %529 = arith.divf %527, %528 : vector<16x1xf32>
    %530 = vector.broadcast %529 : vector<16x1xf32> to vector<16x64xf32>
    %531 = arith.subf %521, %530 : vector<16x64xf32>
    %532 = arith.mulf %531, %531 : vector<16x64xf32>
    %cst_195 = arith.constant dense<0.000000e+00> : vector<16xf32>
    %533 = vector.multi_reduction <add>, %532, %cst_195 [1] : vector<16x64xf32> to vector<16xf32>
    %534 = vector.shape_cast %533 : vector<16xf32> to vector<16x1xf32>
    %cst_196 = arith.constant 6.400000e+01 : f32
    %535 = vector.broadcast %cst_196 : f32 to vector<16x1xf32>
    %536 = arith.divf %534, %535 : vector<16x1xf32>
    %537 = vector.broadcast %529 : vector<16x1xf32> to vector<16x64xf32>
    %538 = arith.subf %521, %537 : vector<16x64xf32>
    %cst_197 = arith.constant 9.99999974E-6 : f32
    %539 = vector.broadcast %cst_197 : f32 to vector<16x1xf32>
    %540 = arith.addf %536, %539 : vector<16x1xf32>
    %541 = math.rsqrt %540 : vector<16x1xf32>
    %542 = vector.broadcast %541 : vector<16x1xf32> to vector<16x64xf32>
    %543 = arith.mulf %538, %542 : vector<16x64xf32>
    %544 = vector.broadcast %523 : vector<1x64xf32> to vector<16x64xf32>
    %545 = arith.mulf %543, %544 : vector<16x64xf32>
    %546 = vector.broadcast %525 : vector<1x64xf32> to vector<16x64xf32>
    %547 = arith.addf %545, %546 : vector<16x64xf32>
    %548 = arith.truncf %547 : vector<16x64xf32> to vector<16x64xbf16>
    %c3_198 = arith.constant 3 : index
    %c0_199 = arith.constant 0 : index
    %c256_200 = arith.constant 256 : index
    %549 = vector.load %arg2[%c3_198, %c0_199, %c256_200] : memref<5x64x576xbf16, #tpu.memory_space<vmem>>, vector<1x64x256xbf16>
    %550 = vector.shape_cast %549 : vector<1x64x256xbf16> to vector<64x256xbf16>
    %cst_201 = arith.constant dense<0.000000e+00> : vector<16x256xf32>
    %551 = tpu.matmul %548, %550, %cst_201 {dimension_numbers = #tpu.dot_dimension_numbers<[1], [0], [0], [1], [0, 0, 1, 1], [], []>} : vector<16x64xbf16>, vector<64x256xbf16>, vector<16x256xf32> -> vector<16x256xf32>
    %c3_202 = arith.constant 3 : index
    %c0_203 = arith.constant 0 : index
    %c576_204 = arith.constant 576 : index
    %552 = vector.load %arg4[%c3_202, %c0_203, %c576_204] : memref<5x1x896xf32, #tpu.memory_space<vmem>>, vector<1x1x256xf32>
    %553 = vector.shape_cast %552 : vector<1x1x256xf32> to vector<1x256xf32>
    %554 = vector.broadcast %553 : vector<1x256xf32> to vector<16x256xf32>
    %555 = arith.addf %551, %554 : vector<16x256xf32>
    %cst_205 = arith.constant 0.000000e+00 : f32
    %556 = vector.broadcast %cst_205 : f32 to vector<16x256xf32>
    %557 = arith.maximumf %555, %556 : vector<16x256xf32>
    %558 = arith.truncf %557 : vector<16x256xf32> to vector<16x256xbf16>
    %c3_206 = arith.constant 3 : index
    %c0_207 = arith.constant 0 : index
    %c0_208 = arith.constant 0 : index
    %559 = vector.load %arg3[%c3_206, %c0_207, %c0_208] : memref<4x256x64xbf16, #tpu.memory_space<vmem>>, vector<1x256x64xbf16>
    %560 = vector.shape_cast %559 : vector<1x256x64xbf16> to vector<256x64xbf16>
    %cst_209 = arith.constant dense<0.000000e+00> : vector<16x64xf32>
    %561 = tpu.matmul %558, %560, %cst_209 {dimension_numbers = #tpu.dot_dimension_numbers<[1], [0], [0], [1], [0, 0, 1, 1], [], []>} : vector<16x256xbf16>, vector<256x64xbf16>, vector<16x64xf32> -> vector<16x64xf32>
    %c3_210 = arith.constant 3 : index
    %c0_211 = arith.constant 0 : index
    %c832_212 = arith.constant 832 : index
    %562 = vector.load %arg4[%c3_210, %c0_211, %c832_212] : memref<5x1x896xf32, #tpu.memory_space<vmem>>, vector<1x1x64xf32>
    %563 = vector.shape_cast %562 : vector<1x1x64xf32> to vector<1x64xf32>
    %564 = vector.broadcast %563 : vector<1x64xf32> to vector<16x64xf32>
    %565 = arith.addf %561, %564 : vector<16x64xf32>
    %566 = arith.addf %521, %565 : vector<16x64xf32>
    %c4 = arith.constant 4 : index
    %c0_213 = arith.constant 0 : index
    %c0_214 = arith.constant 0 : index
    %567 = vector.load %arg4[%c4, %c0_213, %c0_214] : memref<5x1x896xf32, #tpu.memory_space<vmem>>, vector<1x1x64xf32>
    %568 = vector.shape_cast %567 : vector<1x1x64xf32> to vector<1x64xf32>
    %c4_215 = arith.constant 4 : index
    %c0_216 = arith.constant 0 : index
    %c64_217 = arith.constant 64 : index
    %569 = vector.load %arg4[%c4_215, %c0_216, %c64_217] : memref<5x1x896xf32, #tpu.memory_space<vmem>>, vector<1x1x64xf32>
    %570 = vector.shape_cast %569 : vector<1x1x64xf32> to vector<1x64xf32>
    %cst_218 = arith.constant dense<0.000000e+00> : vector<16xf32>
    %571 = vector.multi_reduction <add>, %566, %cst_218 [1] : vector<16x64xf32> to vector<16xf32>
    %572 = vector.shape_cast %571 : vector<16xf32> to vector<16x1xf32>
    %cst_219 = arith.constant 6.400000e+01 : f32
    %573 = vector.broadcast %cst_219 : f32 to vector<16x1xf32>
    %574 = arith.divf %572, %573 : vector<16x1xf32>
    %575 = vector.broadcast %574 : vector<16x1xf32> to vector<16x64xf32>
    %576 = arith.subf %566, %575 : vector<16x64xf32>
    %577 = arith.mulf %576, %576 : vector<16x64xf32>
    %cst_220 = arith.constant dense<0.000000e+00> : vector<16xf32>
    %578 = vector.multi_reduction <add>, %577, %cst_220 [1] : vector<16x64xf32> to vector<16xf32>
    %579 = vector.shape_cast %578 : vector<16xf32> to vector<16x1xf32>
    %cst_221 = arith.constant 6.400000e+01 : f32
    %580 = vector.broadcast %cst_221 : f32 to vector<16x1xf32>
    %581 = arith.divf %579, %580 : vector<16x1xf32>
    %582 = vector.broadcast %574 : vector<16x1xf32> to vector<16x64xf32>
    %583 = arith.subf %566, %582 : vector<16x64xf32>
    %cst_222 = arith.constant 9.99999974E-6 : f32
    %584 = vector.broadcast %cst_222 : f32 to vector<16x1xf32>
    %585 = arith.addf %581, %584 : vector<16x1xf32>
    %586 = math.rsqrt %585 : vector<16x1xf32>
    %587 = vector.broadcast %586 : vector<16x1xf32> to vector<16x64xf32>
    %588 = arith.mulf %583, %587 : vector<16x64xf32>
    %589 = vector.broadcast %568 : vector<1x64xf32> to vector<16x64xf32>
    %590 = arith.mulf %588, %589 : vector<16x64xf32>
    %591 = vector.broadcast %570 : vector<1x64xf32> to vector<16x64xf32>
    %592 = arith.addf %590, %591 : vector<16x64xf32>
    %593 = arith.truncf %592 : vector<16x64xf32> to vector<16x64xbf16>
    %c4_223 = arith.constant 4 : index
    %c0_224 = arith.constant 0 : index
    %c0_225 = arith.constant 0 : index
    %594 = vector.load %arg2[%c4_223, %c0_224, %c0_225] : memref<5x64x576xbf16, #tpu.memory_space<vmem>>, vector<1x64x128xbf16>
    %595 = vector.shape_cast %594 : vector<1x64x128xbf16> to vector<64x128xbf16>
    %cst_226 = arith.constant dense<0.000000e+00> : vector<16x128xf32>
    %596 = tpu.matmul %593, %595, %cst_226 {dimension_numbers = #tpu.dot_dimension_numbers<[1], [0], [0], [1], [0, 0, 1, 1], [], []>} : vector<16x64xbf16>, vector<64x128xbf16>, vector<16x128xf32> -> vector<16x128xf32>
    %c4_227 = arith.constant 4 : index
    %c0_228 = arith.constant 0 : index
    %c128_229 = arith.constant 128 : index
    %597 = vector.load %arg4[%c4_227, %c0_228, %c128_229] : memref<5x1x896xf32, #tpu.memory_space<vmem>>, vector<1x1x128xf32>
    %598 = vector.shape_cast %597 : vector<1x1x128xf32> to vector<1x128xf32>
    %599 = vector.broadcast %598 : vector<1x128xf32> to vector<16x128xf32>
    %600 = arith.addf %596, %599 : vector<16x128xf32>
    %601 = vector.shape_cast %600 : vector<16x128xf32> to vector<2x8x128xf32>
    %c0_230 = arith.constant 0 : index
    %c0_231 = arith.constant 0 : index
    %c0_232 = arith.constant 0 : index
    %602 = vector.load %arg5[%c0_230, %c0_231, %c0_232] : memref<2x8x128xf32, #tpu.memory_space<vmem>>, vector<2x8x128xf32>
    tpu.vector_store %arg5[%c0_230, %c0_231, %c0_232], %601 {strides = array<i32>} : memref<2x8x128xf32, #tpu.memory_space<vmem>>, vector<2x8x128xf32>,
    return
  }
}

</mosaic_0001>

<llo_original>
// kernel: baby_pt_forward.1
$region0: #{baby_pt_forward.1}
  #allocation0 [shape = 'u32[]', space=smem, size = 0x4, offset = 0x4, fixed_abs, tag = 'smem constant byte address 0x4 - core index']
  #allocation1 [shape = 'u32[144,128]{1,0:T(1,128)}', space=vmem, size = 0x12000, scoped, tag = 'internal scratch']
  %s0 = inlined_call_operand.vmem [shape: f32[2,8,64], index: 0, kind: input, shape index: {}]
  %s1 = inlined_call_operand.vmem [shape: f32[8,8], index: 1, kind: input, shape index: {}]
  %s2 = inlined_call_operand.vmem [shape: bf16[5,64,576], index: 2, kind: input, shape index: {}]
  %s3 = inlined_call_operand.vmem [shape: bf16[4,256,64], index: 3, kind: input, shape index: {}]
  %s4 = inlined_call_operand.vmem [shape: f32[5,1,896], index: 4, kind: input, shape index: {}]
  %s5 = inlined_call_operand.hbm [shape: f32[2,8,128], index: 5, kind: output, shape index: {}]
  %s6 = sld [smem:[#allocation0]]
  $region30: #{baby_pt_forward.1} parent=0
    _
  %s8 = ssub.s32 1, %s6
  %s9 = scalar_select 0, %s8, %s6
  $region1: #{baby_pt_forward.1} parent=0
    #allocation2 [shape = 'u8[8192]{0}', space=vmem, size = 0x2000, scoped, tag = 'output window, operand 0, single buffered']
    #allocation3 [shape = 's32[1]{0}', space=sflag, size = 0x4, scoped, tag = 'scoped memory for baby_pt_forward.1']
    %10 = vsyncpa [#allocation3], 0
    // Predicated region
    $region2: #{baby_pt_forward.1} parent=1 // pred_check
      _
    $region3: #{baby_pt_forward.1} parent=1 // pred_check_branch
      %12 = sbr.rel (0) target = $region5
    $region4: #{baby_pt_forward.1} parent=1 // pred_region
      _
    $region5: #{baby_pt_forward.1} parent=1 // pred_fallthru
      _
    // Predicated region
    $region6: #{baby_pt_forward.1} parent=1 // pred_check
      _
    $region7: #{baby_pt_forward.1} parent=1 // pred_check_branch
      %14 = sbr.rel (0) target = $region9
    $region8: #{baby_pt_forward.1} parent=1 // pred_region
      _
    $region9: #{baby_pt_forward.1} parent=1 // pred_fallthru
      _
    // Predicated region
    $region10: #{baby_pt_forward.1} parent=1 // pred_check
      _
    $region11: #{baby_pt_forward.1} parent=1 // pred_check_branch
      %16 = sbr.rel (0) target = $region13
    $region12: #{baby_pt_forward.1} parent=1 // pred_region
      _
    $region13: #{baby_pt_forward.1} parent=1 // pred_fallthru
      _
    // Predicated region
    $region14: #{baby_pt_forward.1} parent=1 // pred_check
      _
    $region15: #{baby_pt_forward.1} parent=1 // pred_check_branch
      %18 = sbr.rel (0) target = $region17
    $region16: #{baby_pt_forward.1} parent=1 // pred_region
      _
    $region17: #{baby_pt_forward.1} parent=1 // pred_fallthru
      _
    // Predicated region
    $region18: #{baby_pt_forward.1} parent=1 // pred_check
      _
    $region19: #{baby_pt_forward.1} parent=1 // pred_check_branch
      %20 = sbr.rel (0) target = $region21
    $region20: #{baby_pt_forward.1} parent=1 // pred_region
      _
    $region21: #{baby_pt_forward.1} parent=1 // pred_fallthru
      _
    %v22 = vld [vmem:[%s0] sm:$0xff]
    %v23 = vld [vmem:[%s0 + $0x8] sm:$0xff]
    %v24 = vld [vmem:[%s1] sm:$0xff]
    %v25 = vld [vmem:[%s4] sm:$0x1]
    %vm26 = vcmask 523264
    %v27 = vsel %vm26, %v22, 0.0
    %28 = vadd.xlane.f32.xlu0 %v27
    %v29 = vpop.xlane.xlu0 %28
    %v30 = vsel %vm26, %v23, 0.0
    %31 = vadd.xlane.f32.xlu0 %v30
    %v32 = vpop.xlane.xlu0 %31
    %v33 = vrcp.pop 64.0
    %v34 = vmul.f32 %v29, %v33
    %v35 = vmul.f32 %v32, %v33
    %v36 = vsub.f32 %v22, %v34
    %v37 = vsub.f32 %v23, %v35
    %v38 = vmul.f32 %v36, %v36
    %v39 = vmul.f32 %v37, %v37
    %v40 = vsel %vm26, %v38, 0.0
    %41 = vadd.xlane.f32.xlu0 %v40
    %v42 = vpop.xlane.xlu0 %41
    %v43 = vsel %vm26, %v39, 0.0
    %44 = vadd.xlane.f32.xlu0 %v43
    %v45 = vpop.xlane.xlu0 %44
    %v46 = vmul.f32 %v42, %v33
    %v47 = vmul.f32 %v45, %v33
    %v48 = vadd.f32 %v46, 1e-05
    %v49 = vadd.f32 %v47, 1e-05
    %v50 = vrsqrt.pop %v48
    %v51 = vrsqrt.pop %v49
    %v52 = vmul.f32 %v36, %v50
    %v53 = vmul.f32 %v37, %v51
    %v55 = vlaneseq
    %v56 = vshrl.u32 %v55, 7
    %v57 = vsub.s32 0, %v56
    %v58 = vrot.slane %v25, %v57
    %v60 = vmul.f32 %v52, %v58
    %v61 = vmul.f32 %v53, %v58
    %62 = vrot.lane.b32.xlu0 %v58, 64
    %v63 = vpop.permute.xlu0 %62
    %v65 = vadd.f32 %v60, %v63
    %v66 = vadd.f32 %v61, %v63
    %v67 = vpack.c.bf16 %v66, %v65
    %v68 = vld [vmem:[%s2] sm:$0xff]
    %v69 = vld [vmem:[%s2 + $0x14] sm:$0xff]
    %v70 = vld [vmem:[%s2 + $0x28] sm:$0xff]
    %v71 = vld [vmem:[%s2 + $0x3c] sm:$0xff]
    %v72 = vld [vmem:[%s2 + $0x50] sm:$0xff]
    %v73 = vld [vmem:[%s2 + $0x64] sm:$0xff]
    %v74 = vld [vmem:[%s2 + $0x78] sm:$0xff]
    %v75 = vld [vmem:[%s2 + $0x8c] sm:$0xff]
    %v76 = vld [vmem:[%s4 + $0x2] sm:$0x3]
    %v78 = vlaneseq
    %v79 = vshrl.u32 %v78, 7
    %v80 = vsub.s32 0, %v79
    %v81 = vrot.slane %v76, %v80
    %v82 = vlaneseq
    %v83 = vshrl.u32 %v82, 7
    %v84 = vsub.s32 1, %v83
    %v85 = vrot.slane %v76, %v84
    %v96 = vunpack.c.l.b16 %v68
    %v97 = vunpack.c.h.b16 %v68
    %v98 = vunpack.c.l.b16 %v69
    %v99 = vunpack.c.h.b16 %v69
    %v100 = vunpack.c.l.b16 %v70
    %v101 = vunpack.c.h.b16 %v70
    %v102 = vunpack.c.l.b16 %v71
    %v103 = vunpack.c.h.b16 %v71
    %v104 = vunpack.c.l.b16 %v72
    %v105 = vunpack.c.h.b16 %v72
    %v106 = vunpack.c.l.b16 %v73
    %v107 = vunpack.c.h.b16 %v73
    %v108 = vunpack.c.l.b16 %v74
    %v109 = vunpack.c.h.b16 %v74
    %v110 = vunpack.c.l.b16 %v75
    %v111 = vunpack.c.h.b16 %v75
    %v112 = vpack.c.b16 %v98, %v96
    %v113 = vpack.c.b16 %v99, %v97
    %v114 = vpack.c.b16 %v102, %v100
    %v115 = vpack.c.b16 %v103, %v101
    %v116 = vpack.c.b16 %v106, %v104
    %v117 = vpack.c.b16 %v107, %v105
    %v118 = vpack.c.b16 %v110, %v108
    %v119 = vpack.c.b16 %v111, %v109
    %v129 = vsel %vm26, %v67, 0
    %131 = vmatprep.subr.bf16.mxu0 0
    %132 = vmatpush1.bf16.msra.mxu0 0
    %133 = vmatprep.subr.bf16.mxu0 0
    %134 = vmatpush1.bf16.msra.mxu0 0
    %135 = vmatprep.subr.bf16.mxu0 0
    %136 = vmatpush1.bf16.msra.mxu0 0
    %137 = vmatprep.subr.bf16.mxu0 0
    %138 = vmatpush1.bf16.msra.mxu0 0
    %139 = vmatprep.subr.bf16.mxu0 %v119
    %140 = vmatpush1.bf16.msra.mxu0 %v118
    %141 = vmatprep.subr.bf16.mxu0 %v117
    %142 = vmatpush1.bf16.msra.mxu0 %v116
    %143 = vmatprep.subr.bf16.mxu0 %v115
    %144 = vmatpush1.bf16.msra.mxu0 %v114
    %145 = vmatprep.subr.bf16.mxu0 %v113
    %146 = vmatpush1.bf16.msra.mxu0 %v112
    %147 = vmatprep.subr.bf16.mxu0 0
    %148 = vmatpush2.bf16.msra.mxu0 0
    %149 = vmatprep.subr.bf16.mxu0 0
    %150 = vmatpush2.bf16.msra.mxu0 0
    %151 = vmatprep.subr.bf16.mxu0 0
    %152 = vmatpush2.bf16.msra.mxu0 0
    %153 = vmatprep.subr.bf16.mxu0 0
    %154 = vmatpush2.bf16.msra.mxu0 0
    %155 = vmatprep.subr.bf16.mxu0 0
    %156 = vmatpush2.bf16.msra.mxu0 0
    %157 = vmatprep.subr.bf16.mxu0 0
    %158 = vmatpush2.bf16.msra.mxu0 0
    %159 = vmatprep.subr.bf16.mxu0 0
    %160 = vmatpush2.bf16.msra.mxu0 0
    %161 = vmatprep.subr.bf16.mxu0 0
    %162 = vmatpush2.bf16.msra.mxu0 0
    %163 = vmatprep.mubr.bf16.mxu0 0
    %164 = vmatmul.mubr.bf16.gmra.mxu0 %v129
    %v165 = vpop.f32.mrf.mxu0
    %v166 = vadd.f32 %v81, %v165
    %v167 = vpop.f32.mrf.mxu0
    %v168 = vadd.f32 %v85, %v167
    %v169 = vpop.f32.mrf.mxu0
    %v170 = vadd.f32 %v81, %v169
    %v171 = vpop.f32.mrf.mxu0
    %v172 = vadd.f32 %v85, %v171
    %173 = vdwg.mxu0
    %v174 = vpack.c.bf16 %v170, %v166
    %v175 = vpack.c.bf16 %v172, %v168
    %v177 = vunpack.c.l.b16 %v174
    %v178 = vunpack.c.h.b16 %v174
    %v179 = vpack.c.b16 %v177, %v177
    %v180 = vpack.c.b16 %v178, %v178
    %181 = vrot.lane.b32.xlu0 %v179, 112
    %v182 = vpop.permute.xlu0 %181
    %183 = vrot.lane.b32.xlu0 %v180, 112
    %v184 = vpop.permute.xlu0 %183
    %185 = vrot.lane.b32.xlu0 %v179, 96
    %v186 = vpop.permute.xlu0 %185
    %187 = vrot.lane.b32.xlu0 %v180, 96
    %v188 = vpop.permute.xlu0 %187
    %189 = vrot.lane.b32.xlu0 %v179, 80
    %v190 = vpop.permute.xlu0 %189
    %191 = vrot.lane.b32.xlu0 %v180, 80
    %v192 = vpop.permute.xlu0 %191
    %v194 = vunpack.c.l.b16 %v175
    %v195 = vunpack.c.h.b16 %v175
    %v196 = vpack.c.b16 %v194, %v194
    %v197 = vpack.c.b16 %v195, %v195
    %198 = vrot.lane.b32.xlu0 %v196, 112
    %v199 = vpop.permute.xlu0 %198
    %200 = vrot.lane.b32.xlu0 %v197, 112
    %v201 = vpop.permute.xlu0 %200
    %202 = vrot.lane.b32.xlu0 %v196, 96
    %v203 = vpop.permute.xlu0 %202
    %204 = vrot.lane.b32.xlu0 %v197, 96
    %v205 = vpop.permute.xlu0 %204
    %206 = vrot.lane.b32.xlu0 %v196, 80
    %v207 = vpop.permute.xlu0 %206
    %208 = vrot.lane.b32.xlu0 %v197, 80
    %v209 = vpop.permute.xlu0 %208
    %210 = vrot.lane.b32.xlu0 %v179, 64
    %v211 = vpop.permute.xlu0 %210
    %vm212 = vcmask 130048
    %v214 = vsel %vm212, %v179, 0
    %v217 = vsel %vm212, %v211, 0
    %219 = vmatprep.subr.bf16.mxu0 0
    %220 = vmatpush1.bf16.xpose.msra.mxu0 0
    %221 = vmatprep.subr.bf16.mxu0 0
    %222 = vmatpush1.bf16.xpose.msra.mxu0 0
    %223 = vmatprep.subr.bf16.mxu0 0
    %224 = vmatpush1.bf16.xpose.msra.mxu0 0
    %225 = vmatprep.subr.bf16.mxu0 0
    %226 = vmatpush1.bf16.xpose.msra.mxu0 0
    %227 = vmatprep.subr.bf16.mxu0 0
    %228 = vmatpush1.bf16.xpose.msra.mxu0 0
    %229 = vmatprep.subr.bf16.mxu0 0
    %230 = vmatpush1.bf16.xpose.msra.mxu0 0
    %231 = vmatprep.subr.bf16.mxu0 0
    %232 = vmatpush1.bf16.xpose.msra.mxu0 0
    %233 = vmatprep.subr.bf16.mxu0 0
    %234 = vmatpush1.bf16.xpose.msra.mxu0 %v217
    %235 = vmatprep.subr.bf16.mxu0 0
    %236 = vmatpush2.bf16.xpose.msra.mxu0 0
    %237 = vmatprep.subr.bf16.mxu0 0
    %238 = vmatpush2.bf16.xpose.msra.mxu0 0
    %239 = vmatprep.subr.bf16.mxu0 0
    %240 = vmatpush2.bf16.xpose.msra.mxu0 0
    %241 = vmatprep.subr.bf16.mxu0 0
    %242 = vmatpush2.bf16.xpose.msra.mxu0 0
    %243 = vmatprep.subr.bf16.mxu0 0
    %244 = vmatpush2.bf16.xpose.msra.mxu0 0
    %245 = vmatprep.subr.bf16.mxu0 0
    %246 = vmatpush2.bf16.xpose.msra.mxu0 0
    %247 = vmatprep.subr.bf16.mxu0 0
    %248 = vmatpush2.bf16.xpose.msra.mxu0 0
    %249 = vmatprep.subr.bf16.mxu0 0
    %250 = vmatpush2.bf16.xpose.msra.mxu0 0
    %251 = vmatprep.mubr.bf16.mxu0 0
    %252 = vmatmul.mubr.bf16.gmra.mxu0 %v214
    %v253 = vpop.f32.mrf.mxu0
    %v254 = vadd.f32 %v24, %v253
    %v255 = vpop.f32.mrf.mxu0
    %v256 = vpop.f32.mrf.mxu0
    %v257 = vpop.f32.mrf.mxu0
    %258 = vdwg.mxu0
    %259 = vrot.lane.b32.xlu0 %v180, 64
    %v260 = vpop.permute.xlu0 %259
    %v262 = vsel %vm212, %v180, 0
    %v265 = vsel %vm212, %v260, 0
    %267 = vmatprep.subr.bf16.mxu0 0
    %268 = vmatpush1.bf16.xpose.msra.mxu0 0
    %269 = vmatprep.subr.bf16.mxu0 0
    %270 = vmatpush1.bf16.xpose.msra.mxu0 0
    %271 = vmatprep.subr.bf16.mxu0 0
    %272 = vmatpush1.bf16.xpose.msra.mxu0 0
    %273 = vmatprep.subr.bf16.mxu0 0
    %274 = vmatpush1.bf16.xpose.msra.mxu0 0
    %275 = vmatprep.subr.bf16.mxu0 0
    %276 = vmatpush1.bf16.xpose.msra.mxu0 0
    %277 = vmatprep.subr.bf16.mxu0 0
    %278 = vmatpush1.bf16.xpose.msra.mxu0 0
    %279 = vmatprep.subr.bf16.mxu0 0
    %280 = vmatpush1.bf16.xpose.msra.mxu0 0
    %281 = vmatprep.subr.bf16.mxu0 0
    %282 = vmatpush1.bf16.xpose.msra.mxu0 %v265
    %283 = vmatprep.subr.bf16.mxu0 0
    %284 = vmatpush2.bf16.xpose.msra.mxu0 0
    %285 = vmatprep.subr.bf16.mxu0 0
    %286 = vmatpush2.bf16.xpose.msra.mxu0 0
    %287 = vmatprep.subr.bf16.mxu0 0
    %288 = vmatpush2.bf16.xpose.msra.mxu0 0
    %289 = vmatprep.subr.bf16.mxu0 0
    %290 = vmatpush2.bf16.xpose.msra.mxu0 0
    %291 = vmatprep.subr.bf16.mxu0 0
    %292 = vmatpush2.bf16.xpose.msra.mxu0 0
    %293 = vmatprep.subr.bf16.mxu0 0
    %294 = vmatpush2.bf16.xpose.msra.mxu0 0
    %295 = vmatprep.subr.bf16.mxu0 0
    %296 = vmatpush2.bf16.xpose.msra.mxu0 0
    %297 = vmatprep.subr.bf16.mxu0 0
    %298 = vmatpush2.bf16.xpose.msra.mxu0 0
    %299 = vmatprep.mubr.bf16.mxu0 0
    %300 = vmatmul.mubr.bf16.gmra.mxu0 %v262
    %v301 = vpop.f32.mrf.mxu0
    %v302 = vadd.f32 %v24, %v301
    %v303 = vpop.f32.mrf.mxu0
    %v304 = vpop.f32.mrf.mxu0
    %v305 = vpop.f32.mrf.mxu0
    %306 = vdwg.mxu0
    %v307 = vunpack.c.l.b16 %v182
    %v308 = vpack.c.b16 %v307, %v307
    %309 = vrot.lane.b32.xlu0 %v308, 64
    %v310 = vpop.permute.xlu0 %309
    %v312 = vsel %vm212, %v182, 0
    %v315 = vsel %vm212, %v310, 0
    %317 = vmatprep.subr.bf16.mxu0 0
    %318 = vmatpush1.bf16.xpose.msra.mxu0 0
    %319 = vmatprep.subr.bf16.mxu0 0
    %320 = vmatpush1.bf16.xpose.msra.mxu0 0
    %321 = vmatprep.subr.bf16.mxu0 0
    %322 = vmatpush1.bf16.xpose.msra.mxu0 0
    %323 = vmatprep.subr.bf16.mxu0 0
    %324 = vmatpush1.bf16.xpose.msra.mxu0 0
    %325 = vmatprep.subr.bf16.mxu0 0
    %326 = vmatpush1.bf16.xpose.msra.mxu0 0
    %327 = vmatprep.subr.bf16.mxu0 0
    %328 = vmatpush1.bf16.xpose.msra.mxu0 0
    %329 = vmatprep.subr.bf16.mxu0 0
    %330 = vmatpush1.bf16.xpose.msra.mxu0 0
    %331 = vmatprep.subr.bf16.mxu0 0
    %332 = vmatpush1.bf16.xpose.msra.mxu0 %v315
    %333 = vmatprep.subr.bf16.mxu0 0
    %334 = vmatpush2.bf16.xpose.msra.mxu0 0
    %335 = vmatprep.subr.bf16.mxu0 0
    %336 = vmatpush2.bf16.xpose.msra.mxu0 0
    %337 = vmatprep.subr.bf16.mxu0 0
    %338 = vmatpush2.bf16.xpose.msra.mxu0 0
    %339 = vmatprep.subr.bf16.mxu0 0
    %340 = vmatpush2.bf16.xpose.msra.mxu0 0
    %341 = vmatprep.subr.bf16.mxu0 0
    %342 = vmatpush2.bf16.xpose.msra.mxu0 0
    %343 = vmatprep.subr.bf16.mxu0 0
    %344 = vmatpush2.bf16.xpose.msra.mxu0 0
    %345 = vmatprep.subr.bf16.mxu0 0
    %346 = vmatpush2.bf16.xpose.msra.mxu0 0
    %347 = vmatprep.subr.bf16.mxu0 0
    %348 = vmatpush2.bf16.xpose.msra.mxu0 0
    %349 = vmatprep.mubr.bf16.mxu0 0
    %350 = vmatmul.mubr.bf16.gmra.mxu0 %v312
    %v351 = vpop.f32.mrf.mxu0
    %v352 = vadd.f32 %v24, %v351
    %v353 = vpop.f32.mrf.mxu0
    %v354 = vpop.f32.mrf.mxu0
    %v355 = vpop.f32.mrf.mxu0
    %356 = vdwg.mxu0
    %v357 = vunpack.c.l.b16 %v184
    %v358 = vpack.c.b16 %v357, %v357
    %359 = vrot.lane.b32.xlu0 %v358, 64
    %v360 = vpop.permute.xlu0 %359
    %v362 = vsel %vm212, %v184, 0
    %v365 = vsel %vm212, %v360, 0
    %367 = vmatprep.subr.bf16.mxu0 0
    %368 = vmatpush1.bf16.xpose.msra.mxu0 0
    %369 = vmatprep.subr.bf16.mxu0 0
    %370 = vmatpush1.bf16.xpose.msra.mxu0 0
    %371 = vmatprep.subr.bf16.mxu0 0
    %372 = vmatpush1.bf16.xpose.msra.mxu0 0
    %373 = vmatprep.subr.bf16.mxu0 0
    %374 = vmatpush1.bf16.xpose.msra.mxu0 0
    %375 = vmatprep.subr.bf16.mxu0 0
    %376 = vmatpush1.bf16.xpose.msra.mxu0 0
    %377 = vmatprep.subr.bf16.mxu0 0
    %378 = vmatpush1.bf16.xpose.msra.mxu0 0
    %379 = vmatprep.subr.bf16.mxu0 0
    %380 = vmatpush1.bf16.xpose.msra.mxu0 0
    %381 = vmatprep.subr.bf16.mxu0 0
    %382 = vmatpush1.bf16.xpose.msra.mxu0 %v365
    %383 = vmatprep.subr.bf16.mxu0 0
    %384 = vmatpush2.bf16.xpose.msra.mxu0 0
    %385 = vmatprep.subr.bf16.mxu0 0
    %386 = vmatpush2.bf16.xpose.msra.mxu0 0
    %387 = vmatprep.subr.bf16.mxu0 0
    %388 = vmatpush2.bf16.xpose.msra.mxu0 0
    %389 = vmatprep.subr.bf16.mxu0 0
    %390 = vmatpush2.bf16.xpose.msra.mxu0 0
    %391 = vmatprep.subr.bf16.mxu0 0
    %392 = vmatpush2.bf16.xpose.msra.mxu0 0
    %393 = vmatprep.subr.bf16.mxu0 0
    %394 = vmatpush2.bf16.xpose.msra.mxu0 0
    %395 = vmatprep.subr.bf16.mxu0 0
    %396 = vmatpush2.bf16.xpose.msra.mxu0 0
    %397 = vmatprep.subr.bf16.mxu0 0
    %398 = vmatpush2.bf16.xpose.msra.mxu0 0
    %399 = vmatprep.mubr.bf16.mxu0 0
    %400 = vmatmul.mubr.bf16.gmra.mxu0 %v362
    %v401 = vpop.f32.mrf.mxu0
    %v402 = vadd.f32 %v24, %v401
    %v403 = vpop.f32.mrf.mxu0
    %v404 = vpop.f32.mrf.mxu0
    %v405 = vpop.f32.mrf.mxu0
    %406 = vdwg.mxu0
    %v407 = vunpack.c.l.b16 %v186
    %v408 = vpack.c.b16 %v407, %v407
    %409 = vrot.lane.b32.xlu0 %v408, 64
    %v410 = vpop.permute.xlu0 %409
    %v412 = vsel %vm212, %v186, 0
    %v415 = vsel %vm212, %v410, 0
    %417 = vmatprep.subr.bf16.mxu0 0
    %418 = vmatpush1.bf16.xpose.msra.mxu0 0
    %419 = vmatprep.subr.bf16.mxu0 0
    %420 = vmatpush1.bf16.xpose.msra.mxu0 0
    %421 = vmatprep.subr.bf16.mxu0 0
    %422 = vmatpush1.bf16.xpose.msra.mxu0 0
    %423 = vmatprep.subr.bf16.mxu0 0
    %424 = vmatpush1.bf16.xpose.msra.mxu0 0
    %425 = vmatprep.subr.bf16.mxu0 0
    %426 = vmatpush1.bf16.xpose.msra.mxu0 0
    %427 = vmatprep.subr.bf16.mxu0 0
    %428 = vmatpush1.bf16.xpose.msra.mxu0 0
    %429 = vmatprep.subr.bf16.mxu0 0
    %430 = vmatpush1.bf16.xpose.msra.mxu0 0
    %431 = vmatprep.subr.bf16.mxu0 0
    %432 = vmatpush1.bf16.xpose.msra.mxu0 %v415
    %433 = vmatprep.subr.bf16.mxu0 0
    %434 = vmatpush2.bf16.xpose.msra.mxu0 0
    %435 = vmatprep.subr.bf16.mxu0 0
    %436 = vmatpush2.bf16.xpose.msra.mxu0 0
    %437 = vmatprep.subr.bf16.mxu0 0
    %438 = vmatpush2.bf16.xpose.msra.mxu0 0
    %439 = vmatprep.subr.bf16.mxu0 0
    %440 = vmatpush2.bf16.xpose.msra.mxu0 0
    %441 = vmatprep.subr.bf16.mxu0 0
    %442 = vmatpush2.bf16.xpose.msra.mxu0 0
    %443 = vmatprep.subr.bf16.mxu0 0
    %444 = vmatpush2.bf16.xpose.msra.mxu0 0
    %445 = vmatprep.subr.bf16.mxu0 0
    %446 = vmatpush2.bf16.xpose.msra.mxu0 0
    %447 = vmatprep.subr.bf16.mxu0 0
    %448 = vmatpush2.bf16.xpose.msra.mxu0 0
    %449 = vmatprep.mubr.bf16.mxu0 0
    %450 = vmatmul.mubr.bf16.gmra.mxu0 %v412
    %v451 = vpop.f32.mrf.mxu0
    %v452 = vadd.f32 %v24, %v451
    %v453 = vpop.f32.mrf.mxu0
    %v454 = vpop.f32.mrf.mxu0
    %v455 = vpop.f32.mrf.mxu0
    %456 = vdwg.mxu0
    %v457 = vunpack.c.l.b16 %v188
    %v458 = vpack.c.b16 %v457, %v457
    %459 = vrot.lane.b32.xlu0 %v458, 64
    %v460 = vpop.permute.xlu0 %459
    %v462 = vsel %vm212, %v188, 0
    %v465 = vsel %vm212, %v460, 0
    %467 = vmatprep.subr.bf16.mxu0 0
    %468 = vmatpush1.bf16.xpose.msra.mxu0 0
    %469 = vmatprep.subr.bf16.mxu0 0
    %470 = vmatpush1.bf16.xpose.msra.mxu0 0
    %471 = vmatprep.subr.bf16.mxu0 0
    %472 = vmatpush1.bf16.xpose.msra.mxu0 0
    %473 = vmatprep.subr.bf16.mxu0 0
    %474 = vmatpush1.bf16.xpose.msra.mxu0 0
    %475 = vmatprep.subr.bf16.mxu0 0
    %476 = vmatpush1.bf16.xpose.msra.mxu0 0
    %477 = vmatprep.subr.bf16.mxu0 0
    %478 = vmatpush1.bf16.xpose.msra.mxu0 0
    %479 = vmatprep.subr.bf16.mxu0 0
    %480 = vmatpush1.bf16.xpose.msra.mxu0 0
    %481 = vmatprep.subr.bf16.mxu0 0
    %482 = vmatpush1.bf16.xpose.msra.mxu0 %v465
    %483 = vmatprep.subr.bf16.mxu0 0
    %484 = vmatpush2.bf16.xpose.msra.mxu0 0
    %485 = vmatprep.subr.bf16.mxu0 0
    %486 = vmatpush2.bf16.xpose.msra.mxu0 0
    %487 = vmatprep.subr.bf16.mxu0 0
    %488 = vmatpush2.bf16.xpose.msra.mxu0 0
    %489 = vmatprep.subr.bf16.mxu0 0
    %490 = vmatpush2.bf16.xpose.msra.mxu0 0
    %491 = vmatprep.subr.bf16.mxu0 0
    %492 = vmatpush2.bf16.xpose.msra.mxu0 0
    %493 = vmatprep.subr.bf16.mxu0 0
    %494 = vmatpush2.bf16.xpose.msra.mxu0 0
    %495 = vmatprep.subr.bf16.mxu0 0
    %496 = vmatpush2.bf16.xpose.msra.mxu0 0
    %497 = vmatprep.subr.bf16.mxu0 0
    %498 = vmatpush2.bf16.xpose.msra.mxu0 0
    %499 = vmatprep.mubr.bf16.mxu0 0
    %500 = vmatmul.mubr.bf16.gmra.mxu0 %v462
    %v501 = vpop.f32.mrf.mxu0
    %v502 = vadd.f32 %v24, %v501
    %v503 = vpop.f32.mrf.mxu0
    %v504 = vpop.f32.mrf.mxu0
    %v505 = vpop.f32.mrf.mxu0
    %506 = vdwg.mxu0
    %v507 = vunpack.c.l.b16 %v190
    %v508 = vpack.c.b16 %v507, %v507
    %509 = vrot.lane.b32.xlu0 %v508, 64
    %v510 = vpop.permute.xlu0 %509
    %v512 = vsel %vm212, %v190, 0
    %v515 = vsel %vm212, %v510, 0
    %517 = vmatprep.subr.bf16.mxu0 0
    %518 = vmatpush1.bf16.xpose.msra.mxu0 0
    %519 = vmatprep.subr.bf16.mxu0 0
    %520 = vmatpush1.bf16.xpose.msra.mxu0 0
    %521 = vmatprep.subr.bf16.mxu0 0
    %522 = vmatpush1.bf16.xpose.msra.mxu0 0
    %523 = vmatprep.subr.bf16.mxu0 0
    %524 = vmatpush1.bf16.xpose.msra.mxu0 0
    %525 = vmatprep.subr.bf16.mxu0 0
    %526 = vmatpush1.bf16.xpose.msra.mxu0 0
    %527 = vmatprep.subr.bf16.mxu0 0
    %528 = vmatpush1.bf16.xpose.msra.mxu0 0
    %529 = vmatprep.subr.bf16.mxu0 0
    %530 = vmatpush1.bf16.xpose.msra.mxu0 0
    %531 = vmatprep.subr.bf16.mxu0 0
    %532 = vmatpush1.bf16.xpose.msra.mxu0 %v515
    %533 = vmatprep.subr.bf16.mxu0 0
    %534 = vmatpush2.bf16.xpose.msra.mxu0 0
    %535 = vmatprep.subr.bf16.mxu0 0
    %536 = vmatpush2.bf16.xpose.msra.mxu0 0
    %537 = vmatprep.subr.bf16.mxu0 0
    %538 = vmatpush2.bf16.xpose.msra.mxu0 0
    %539 = vmatprep.subr.bf16.mxu0 0
    %540 = vmatpush2.bf16.xpose.msra.mxu0 0
    %541 = vmatprep.subr.bf16.mxu0 0
    %542 = vmatpush2.bf16.xpose.msra.mxu0 0
    %543 = vmatprep.subr.bf16.mxu0 0
    %544 = vmatpush2.bf16.xpose.msra.mxu0 0
    %545 = vmatprep.subr.bf16.mxu0 0
    %546 = vmatpush2.bf16.xpose.msra.mxu0 0
    %547 = vmatprep.subr.bf16.mxu0 0
    %548 = vmatpush2.bf16.xpose.msra.mxu0 0
    %549 = vmatprep.mubr.bf16.mxu0 0
    %550 = vmatmul.mubr.bf16.gmra.mxu0 %v512
    %v551 = vpop.f32.mrf.mxu0
    %v552 = vadd.f32 %v24, %v551
    %v553 = vpop.f32.mrf.mxu0
    %v554 = vpop.f32.mrf.mxu0
    %v555 = vpop.f32.mrf.mxu0
    %556 = vdwg.mxu0
    %v557 = vunpack.c.l.b16 %v192
    %v558 = vpack.c.b16 %v557, %v557
    %559 = vrot.lane.b32.xlu0 %v558, 64
    %v560 = vpop.permute.xlu0 %559
    %v562 = vsel %vm212, %v192, 0
    %v565 = vsel %vm212, %v560, 0
    %567 = vmatprep.subr.bf16.mxu0 0
    %568 = vmatpush1.bf16.xpose.msra.mxu0 0
    %569 = vmatprep.subr.bf16.mxu0 0
    %570 = vmatpush1.bf16.xpose.msra.mxu0 0
    %571 = vmatprep.subr.bf16.mxu0 0
    %572 = vmatpush1.bf16.xpose.msra.mxu0 0
    %573 = vmatprep.subr.bf16.mxu0 0
    %574 = vmatpush1.bf16.xpose.msra.mxu0 0
    %575 = vmatprep.subr.bf16.mxu0 0
    %576 = vmatpush1.bf16.xpose.msra.mxu0 0
    %577 = vmatprep.subr.bf16.mxu0 0
    %578 = vmatpush1.bf16.xpose.msra.mxu0 0
    %579 = vmatprep.subr.bf16.mxu0 0
    %580 = vmatpush1.bf16.xpose.msra.mxu0 0
    %581 = vmatprep.subr.bf16.mxu0 0
    %582 = vmatpush1.bf16.xpose.msra.mxu0 %v565
    %583 = vmatprep.subr.bf16.mxu0 0
    %584 = vmatpush2.bf16.xpose.msra.mxu0 0
    %585 = vmatprep.subr.bf16.mxu0 0
    %586 = vmatpush2.bf16.xpose.msra.mxu0 0
    %587 = vmatprep.subr.bf16.mxu0 0
    %588 = vmatpush2.bf16.xpose.msra.mxu0 0
    %589 = vmatprep.subr.bf16.mxu0 0
    %590 = vmatpush2.bf16.xpose.msra.mxu0 0
    %591 = vmatprep.subr.bf16.mxu0 0
    %592 = vmatpush2.bf16.xpose.msra.mxu0 0
    %593 = vmatprep.subr.bf16.mxu0 0
    %594 = vmatpush2.bf16.xpose.msra.mxu0 0
    %595 = vmatprep.subr.bf16.mxu0 0
    %596 = vmatpush2.bf16.xpose.msra.mxu0 0
    %597 = vmatprep.subr.bf16.mxu0 0
    %598 = vmatpush2.bf16.xpose.msra.mxu0 0
    %599 = vmatprep.mubr.bf16.mxu0 0
    %600 = vmatmul.mubr.bf16.gmra.mxu0 %v562
    %v601 = vpop.f32.mrf.mxu0
    %v602 = vadd.f32 %v24, %v601
    %v603 = vpop.f32.mrf.mxu0
    %v604 = vpop.f32.mrf.mxu0
    %v605 = vpop.f32.mrf.mxu0
    %606 = vdwg.mxu0
    %vm607 = vcmask 64512
    %v608 = vsel %vm607, %v254, -inf
    %609 = vmax.xlane.f32.xlu0 %v608
    %v610 = vpop.xlane.xlu0 %609
    %v611 = vsel %vm607, %v302, -inf
    %612 = vmax.xlane.f32.xlu0 %v611
    %v613 = vpop.xlane.xlu0 %612
    %v614 = vsel %vm607, %v352, -inf
    %615 = vmax.xlane.f32.xlu0 %v614
    %v616 = vpop.xlane.xlu0 %615
    %v617 = vsel %vm607, %v402, -inf
    %618 = vmax.xlane.f32.xlu0 %v617
    %v619 = vpop.xlane.xlu0 %618
    %v620 = vsel %vm607, %v452, -inf
    %621 = vmax.xlane.f32.xlu0 %v620
    %v622 = vpop.xlane.xlu0 %621
    %v623 = vsel %vm607, %v502, -inf
    %624 = vmax.xlane.f32.xlu0 %v623
    %v625 = vpop.xlane.xlu0 %624
    %v626 = vsel %vm607, %v552, -inf
    %627 = vmax.xlane.f32.xlu0 %v626
    %v628 = vpop.xlane.xlu0 %627
    %v629 = vsel %vm607, %v602, -inf
    %630 = vmax.xlane.f32.xlu0 %v629
    %v631 = vpop.xlane.xlu0 %630
    %v632 = vsub.f32 %v254, %v610
    %v633 = vsub.f32 %v302, %v613
    %v634 = vsub.f32 %v352, %v616
    %v635 = vsub.f32 %v402, %v619
    %v636 = vsub.f32 %v452, %v622
    %v637 = vsub.f32 %v502, %v625
    %v638 = vsub.f32 %v552, %v628
    %v639 = vsub.f32 %v602, %v631
    %v640 = vmul.f32 %v632, 1.442695
    %v641 = vpow.pop %v640
    %v642 = vmul.f32 %v633, 1.442695
    %v643 = vpow.pop %v642
    %v644 = vmul.f32 %v634, 1.442695
    %v645 = vpow.pop %v644
    %v646 = vmul.f32 %v635, 1.442695
    %v647 = vpow.pop %v646
    %v648 = vmul.f32 %v636, 1.442695
    %v649 = vpow.pop %v648
    %v650 = vmul.f32 %v637, 1.442695
    %v651 = vpow.pop %v650
    %v652 = vmul.f32 %v638, 1.442695
    %v653 = vpow.pop %v652
    %v654 = vmul.f32 %v639, 1.442695
    %v655 = vpow.pop %v654
    %v656 = vsel %vm607, %v641, 0.0
    %657 = vadd.xlane.f32.xlu0 %v656
    %v658 = vpop.xlane.xlu0 %657
    %v659 = vsel %vm607, %v643, 0.0
    %660 = vadd.xlane.f32.xlu0 %v659
    %v661 = vpop.xlane.xlu0 %660
    %v662 = vsel %vm607, %v645, 0.0
    %663 = vadd.xlane.f32.xlu0 %v662
    %v664 = vpop.xlane.xlu0 %663
    %v665 = vsel %vm607, %v647, 0.0
    %666 = vadd.xlane.f32.xlu0 %v665
    %v667 = vpop.xlane.xlu0 %666
    %v668 = vsel %vm607, %v649, 0.0
    %669 = vadd.xlane.f32.xlu0 %v668
    %v670 = vpop.xlane.xlu0 %669
    %v671 = vsel %vm607, %v651, 0.0
    %672 = vadd.xlane.f32.xlu0 %v671
    %v673 = vpop.xlane.xlu0 %672
    %v674 = vsel %vm607, %v653, 0.0
    %675 = vadd.xlane.f32.xlu0 %v674
    %v676 = vpop.xlane.xlu0 %675
    %v677 = vsel %vm607, %v655, 0.0
    %678 = vadd.xlane.f32.xlu0 %v677
    %v679 = vpop.xlane.xlu0 %678
    %v680 = vrcp.pop %v658
    %v681 = vrcp.pop %v661
    %v682 = vrcp.pop %v664
    %v683 = vrcp.pop %v667
    %v684 = vrcp.pop %v670
    %v685 = vrcp.pop %v673
    %v686 = vrcp.pop %v676
    %v687 = vrcp.pop %v679
    %v688 = vmul.f32 %v641, %v680
    %v689 = vmul.f32 %v643, %v681
    %v690 = vmul.f32 %v645, %v682
    %v691 = vmul.f32 %v647, %v683
    %v692 = vmul.f32 %v649, %v684
    %v693 = vmul.f32 %v651, %v685
    %v694 = vmul.f32 %v653, %v686
    %v695 = vmul.f32 %v655, %v687
    %v696 = vpack.c.bf16 %v688, %v688
    %v697 = vpack.c.bf16 %v689, %v689
    %v698 = vpack.c.bf16 %v690, %v690
    %v699 = vpack.c.bf16 %v691, %v691
    %v700 = vpack.c.bf16 %v692, %v692
    %v701 = vpack.c.bf16 %v693, %v693
    %v702 = vpack.c.bf16 %v694, %v694
    %v703 = vpack.c.bf16 %v695, %v695
    %v705 = vsel %vm607, %v696, 0
    %vm707 = vcmask 1043456
    %v709 = vsel %vm707, %v196, 0
    %711 = vmatprep.subr.bf16.mxu0 0
    %712 = vmatpush1.bf16.msra.mxu0 0
    %713 = vmatprep.subr.bf16.mxu0 0
    %714 = vmatpush1.bf16.msra.mxu0 0
    %715 = vmatprep.subr.bf16.mxu0 0
    %716 = vmatpush1.bf16.msra.mxu0 0
    %717 = vmatprep.subr.bf16.mxu0 0
    %718 = vmatpush1.bf16.msra.mxu0 0
    %719 = vmatprep.subr.bf16.mxu0 0
    %720 = vmatpush1.bf16.msra.mxu0 0
    %721 = vmatprep.subr.bf16.mxu0 0
    %722 = vmatpush1.bf16.msra.mxu0 0
    %723 = vmatprep.subr.bf16.mxu0 0
    %724 = vmatpush1.bf16.msra.mxu0 0
    %725 = vmatprep.subr.bf16.mxu0 0
    %726 = vmatpush1.bf16.msra.mxu0 %v709
    %727 = vmatprep.subr.bf16.mxu0 0
    %728 = vmatpush2.bf16.msra.mxu0 0
    %729 = vmatprep.subr.bf16.mxu0 0
    %730 = vmatpush2.bf16.msra.mxu0 0
    %731 = vmatprep.subr.bf16.mxu0 0
    %732 = vmatpush2.bf16.msra.mxu0 0
    %733 = vmatprep.subr.bf16.mxu0 0
    %734 = vmatpush2.bf16.msra.mxu0 0
    %735 = vmatprep.subr.bf16.mxu0 0
    %736 = vmatpush2.bf16.msra.mxu0 0
    %737 = vmatprep.subr.bf16.mxu0 0
    %738 = vmatpush2.bf16.msra.mxu0 0
    %739 = vmatprep.subr.bf16.mxu0 0
    %740 = vmatpush2.bf16.msra.mxu0 0
    %741 = vmatprep.subr.bf16.mxu0 0
    %742 = vmatpush2.bf16.msra.mxu0 0
    %743 = vmatprep.mubr.bf16.mxu0 0
    %744 = vmatmul.mubr.bf16.gmra.mxu0 %v705
    %v745 = vpop.f32.mrf.mxu0
    %v746 = vadd.f32 0.0, %v745
    %v747 = vpop.f32.mrf.mxu0
    %v748 = vpop.f32.mrf.mxu0
    %v749 = vpop.f32.mrf.mxu0
    %750 = vdwg.mxu0
    %v752 = vsel %vm607, %v697, 0
    %v755 = vsel %vm707, %v197, 0
    %757 = vmatprep.subr.bf16.mxu0 0
    %758 = vmatpush1.bf16.msra.mxu0 0
    %759 = vmatprep.subr.bf16.mxu0 0
    %760 = vmatpush1.bf16.msra.mxu0 0
    %761 = vmatprep.subr.bf16.mxu0 0
    %762 = vmatpush1.bf16.msra.mxu0 0
    %763 = vmatprep.subr.bf16.mxu0 0
    %764 = vmatpush1.bf16.msra.mxu0 0
    %765 = vmatprep.subr.bf16.mxu0 0
    %766 = vmatpush1.bf16.msra.mxu0 0
    %767 = vmatprep.subr.bf16.mxu0 0
    %768 = vmatpush1.bf16.msra.mxu0 0
    %769 = vmatprep.subr.bf16.mxu0 0
    %770 = vmatpush1.bf16.msra.mxu0 0
    %771 = vmatprep.subr.bf16.mxu0 0
    %772 = vmatpush1.bf16.msra.mxu0 %v755
    %773 = vmatprep.subr.bf16.mxu0 0
    %774 = vmatpush2.bf16.msra.mxu0 0
    %775 = vmatprep.subr.bf16.mxu0 0
    %776 = vmatpush2.bf16.msra.mxu0 0
    %777 = vmatprep.subr.bf16.mxu0 0
    %778 = vmatpush2.bf16.msra.mxu0 0
    %779 = vmatprep.subr.bf16.mxu0 0
    %780 = vmatpush2.bf16.msra.mxu0 0
    %781 = vmatprep.subr.bf16.mxu0 0
    %782 = vmatpush2.bf16.msra.mxu0 0
    %783 = vmatprep.subr.bf16.mxu0 0
    %784 = vmatpush2.bf16.msra.mxu0 0
    %785 = vmatprep.subr.bf16.mxu0 0
    %786 = vmatpush2.bf16.msra.mxu0 0
    %787 = vmatprep.subr.bf16.mxu0 0
    %788 = vmatpush2.bf16.msra.mxu0 0
    %789 = vmatprep.mubr.bf16.mxu0 0
    %790 = vmatmul.mubr.bf16.gmra.mxu0 %v752
    %v791 = vpop.f32.mrf.mxu0
    %v792 = vadd.f32 0.0, %v791
    %v793 = vpop.f32.mrf.mxu0
    %v794 = vpop.f32.mrf.mxu0
    %v795 = vpop.f32.mrf.mxu0
    %796 = vdwg.mxu0
    %v798 = vsel %vm607, %v698, 0
    %v801 = vsel %vm707, %v199, 0
    %803 = vmatprep.subr.bf16.mxu0 0
    %804 = vmatpush1.bf16.msra.mxu0 0
    %805 = vmatprep.subr.bf16.mxu0 0
    %806 = vmatpush1.bf16.msra.mxu0 0
    %807 = vmatprep.subr.bf16.mxu0 0
    %808 = vmatpush1.bf16.msra.mxu0 0
    %809 = vmatprep.subr.bf16.mxu0 0
    %810 = vmatpush1.bf16.msra.mxu0 0
    %811 = vmatprep.subr.bf16.mxu0 0
    %812 = vmatpush1.bf16.msra.mxu0 0
    %813 = vmatprep.subr.bf16.mxu0 0
    %814 = vmatpush1.bf16.msra.mxu0 0
    %815 = vmatprep.subr.bf16.mxu0 0
    %816 = vmatpush1.bf16.msra.mxu0 0
    %817 = vmatprep.subr.bf16.mxu0 0
    %818 = vmatpush1.bf16.msra.mxu0 %v801
    %819 = vmatprep.subr.bf16.mxu0 0
    %820 = vmatpush2.bf16.msra.mxu0 0
    %821 = vmatprep.subr.bf16.mxu0 0
    %822 = vmatpush2.bf16.msra.mxu0 0
    %823 = vmatprep.subr.bf16.mxu0 0
    %824 = vmatpush2.bf16.msra.mxu0 0
    %825 = vmatprep.subr.bf16.mxu0 0
    %826 = vmatpush2.bf16.msra.mxu0 0
    %827 = vmatprep.subr.bf16.mxu0 0
    %828 = vmatpush2.bf16.msra.mxu0 0
    %829 = vmatprep.subr.bf16.mxu0 0
    %830 = vmatpush2.bf16.msra.mxu0 0
    %831 = vmatprep.subr.bf16.mxu0 0
    %832 = vmatpush2.bf16.msra.mxu0 0
    %833 = vmatprep.subr.bf16.mxu0 0
    %834 = vmatpush2.bf16.msra.mxu0 0
    %835 = vmatprep.mubr.bf16.mxu0 0
    %836 = vmatmul.mubr.bf16.gmra.mxu0 %v798
    %v837 = vpop.f32.mrf.mxu0
    %v838 = vadd.f32 0.0, %v837
    %v839 = vpop.f32.mrf.mxu0
    %v840 = vpop.f32.mrf.mxu0
    %v841 = vpop.f32.mrf.mxu0
    %842 = vdwg.mxu0
    %v844 = vsel %vm607, %v699, 0
    %v847 = vsel %vm707, %v201, 0
    %849 = vmatprep.subr.bf16.mxu0 0
    %850 = vmatpush1.bf16.msra.mxu0 0
    %851 = vmatprep.subr.bf16.mxu0 0
    %852 = vmatpush1.bf16.msra.mxu0 0
    %853 = vmatprep.subr.bf16.mxu0 0
    %854 = vmatpush1.bf16.msra.mxu0 0
    %855 = vmatprep.subr.bf16.mxu0 0
    %856 = vmatpush1.bf16.msra.mxu0 0
    %857 = vmatprep.subr.bf16.mxu0 0
    %858 = vmatpush1.bf16.msra.mxu0 0
    %859 = vmatprep.subr.bf16.mxu0 0
    %860 = vmatpush1.bf16.msra.mxu0 0
    %861 = vmatprep.subr.bf16.mxu0 0
    %862 = vmatpush1.bf16.msra.mxu0 0
    %863 = vmatprep.subr.bf16.mxu0 0
    %864 = vmatpush1.bf16.msra.mxu0 %v847
    %865 = vmatprep.subr.bf16.mxu0 0
    %866 = vmatpush2.bf16.msra.mxu0 0
    %867 = vmatprep.subr.bf16.mxu0 0
    %868 = vmatpush2.bf16.msra.mxu0 0
    %869 = vmatprep.subr.bf16.mxu0 0
    %870 = vmatpush2.bf16.msra.mxu0 0
    %871 = vmatprep.subr.bf16.mxu0 0
    %872 = vmatpush2.bf16.msra.mxu0 0
    %873 = vmatprep.subr.bf16.mxu0 0
    %874 = vmatpush2.bf16.msra.mxu0 0
    %875 = vmatprep.subr.bf16.mxu0 0
    %876 = vmatpush2.bf16.msra.mxu0 0
    %877 = vmatprep.subr.bf16.mxu0 0
    %878 = vmatpush2.bf16.msra.mxu0 0
    %879 = vmatprep.subr.bf16.mxu0 0
    %880 = vmatpush2.bf16.msra.mxu0 0
    %881 = vmatprep.mubr.bf16.mxu0 0
    %882 = vmatmul.mubr.bf16.gmra.mxu0 %v844
    %v883 = vpop.f32.mrf.mxu0
    %v884 = vadd.f32 0.0, %v883
    %v885 = vpop.f32.mrf.mxu0
    %v886 = vpop.f32.mrf.mxu0
    %v887 = vpop.f32.mrf.mxu0
    %888 = vdwg.mxu0
    %v890 = vsel %vm607, %v700, 0
    %v893 = vsel %vm707, %v203, 0
    %895 = vmatprep.subr.bf16.mxu0 0
    %896 = vmatpush1.bf16.msra.mxu0 0
    %897 = vmatprep.subr.bf16.mxu0 0
    %898 = vmatpush1.bf16.msra.mxu0 0
    %899 = vmatprep.subr.bf16.mxu0 0
    %900 = vmatpush1.bf16.msra.mxu0 0
    %901 = vmatprep.subr.bf16.mxu0 0
    %902 = vmatpush1.bf16.msra.mxu0 0
    %903 = vmatprep.subr.bf16.mxu0 0
    %904 = vmatpush1.bf16.msra.mxu0 0
    %905 = vmatprep.subr.bf16.mxu0 0
    %906 = vmatpush1.bf16.msra.mxu0 0
    %907 = vmatprep.subr.bf16.mxu0 0
    %908 = vmatpush1.bf16.msra.mxu0 0
    %909 = vmatprep.subr.bf16.mxu0 0
    %910 = vmatpush1.bf16.msra.mxu0 %v893
    %911 = vmatprep.subr.bf16.mxu0 0
    %912 = vmatpush2.bf16.msra.mxu0 0
    %913 = vmatprep.subr.bf16.mxu0 0
    %914 = vmatpush2.bf16.msra.mxu0 0
    %915 = vmatprep.subr.bf16.mxu0 0
    %916 = vmatpush2.bf16.msra.mxu0 0
    %917 = vmatprep.subr.bf16.mxu0 0
    %918 = vmatpush2.bf16.msra.mxu0 0
    %919 = vmatprep.subr.bf16.mxu0 0
    %920 = vmatpush2.bf16.msra.mxu0 0
    %921 = vmatprep.subr.bf16.mxu0 0
    %922 = vmatpush2.bf16.msra.mxu0 0
    %923 = vmatprep.subr.bf16.mxu0 0
    %924 = vmatpush2.bf16.msra.mxu0 0
    %925 = vmatprep.subr.bf16.mxu0 0
    %926 = vmatpush2.bf16.msra.mxu0 0
    %927 = vmatprep.mubr.bf16.mxu0 0
    %928 = vmatmul.mubr.bf16.gmra.mxu0 %v890
    %v929 = vpop.f32.mrf.mxu0
    %v930 = vadd.f32 0.0, %v929
    %v931 = vpop.f32.mrf.mxu0
    %v932 = vpop.f32.mrf.mxu0
    %v933 = vpop.f32.mrf.mxu0
    %934 = vdwg.mxu0
    %v936 = vsel %vm607, %v701, 0
    %v939 = vsel %vm707, %v205, 0
    %941 = vmatprep.subr.bf16.mxu0 0
    %942 = vmatpush1.bf16.msra.mxu0 0
    %943 = vmatprep.subr.bf16.mxu0 0
    %944 = vmatpush1.bf16.msra.mxu0 0
    %945 = vmatprep.subr.bf16.mxu0 0
    %946 = vmatpush1.bf16.msra.mxu0 0
    %947 = vmatprep.subr.bf16.mxu0 0
    %948 = vmatpush1.bf16.msra.mxu0 0
    %949 = vmatprep.subr.bf16.mxu0 0
    %950 = vmatpush1.bf16.msra.mxu0 0
    %951 = vmatprep.subr.bf16.mxu0 0
    %952 = vmatpush1.bf16.msra.mxu0 0
    %953 = vmatprep.subr.bf16.mxu0 0
    %954 = vmatpush1.bf16.msra.mxu0 0
    %955 = vmatprep.subr.bf16.mxu0 0
    %956 = vmatpush1.bf16.msra.mxu0 %v939
    %957 = vmatprep.subr.bf16.mxu0 0
    %958 = vmatpush2.bf16.msra.mxu0 0
    %959 = vmatprep.subr.bf16.mxu0 0
    %960 = vmatpush2.bf16.msra.mxu0 0
    %961 = vmatprep.subr.bf16.mxu0 0
    %962 = vmatpush2.bf16.msra.mxu0 0
    %963 = vmatprep.subr.bf16.mxu0 0
    %964 = vmatpush2.bf16.msra.mxu0 0
    %965 = vmatprep.subr.bf16.mxu0 0
    %966 = vmatpush2.bf16.msra.mxu0 0
    %967 = vmatprep.subr.bf16.mxu0 0
    %968 = vmatpush2.bf16.msra.mxu0 0
    %969 = vmatprep.subr.bf16.mxu0 0
    %970 = vmatpush2.bf16.msra.mxu0 0
    %971 = vmatprep.subr.bf16.mxu0 0
    %972 = vmatpush2.bf16.msra.mxu0 0
    %973 = vmatprep.mubr.bf16.mxu0 0
    %974 = vmatmul.mubr.bf16.gmra.mxu0 %v936
    %v975 = vpop.f32.mrf.mxu0
    %v976 = vadd.f32 0.0, %v975
    %v977 = vpop.f32.mrf.mxu0
    %v978 = vpop.f32.mrf.mxu0
    %v979 = vpop.f32.mrf.mxu0
    %980 = vdwg.mxu0
    %v982 = vsel %vm607, %v702, 0
    %v985 = vsel %vm707, %v207, 0
    %987 = vmatprep.subr.bf16.mxu0 0
    %988 = vmatpush1.bf16.msra.mxu0 0
    %989 = vmatprep.subr.bf16.mxu0 0
    %990 = vmatpush1.bf16.msra.mxu0 0
    %991 = vmatprep.subr.bf16.mxu0 0
    %992 = vmatpush1.bf16.msra.mxu0 0
    %993 = vmatprep.subr.bf16.mxu0 0
    %994 = vmatpush1.bf16.msra.mxu0 0
    %995 = vmatprep.subr.bf16.mxu0 0
    %996 = vmatpush1.bf16.msra.mxu0 0
    %997 = vmatprep.subr.bf16.mxu0 0
    %998 = vmatpush1.bf16.msra.mxu0 0
    %999 = vmatprep.subr.bf16.mxu0 0
    %1000 = vmatpush1.bf16.msra.mxu0 0
    %1001 = vmatprep.subr.bf16.mxu0 0
    %1002 = vmatpush1.bf16.msra.mxu0 %v985
    %1003 = vmatprep.subr.bf16.mxu0 0
    %1004 = vmatpush2.bf16.msra.mxu0 0
    %1005 = vmatprep.subr.bf16.mxu0 0
    %1006 = vmatpush2.bf16.msra.mxu0 0
    %1007 = vmatprep.subr.bf16.mxu0 0
    %1008 = vmatpush2.bf16.msra.mxu0 0
    %1009 = vmatprep.subr.bf16.mxu0 0
    %1010 = vmatpush2.bf16.msra.mxu0 0
    %1011 = vmatprep.subr.bf16.mxu0 0
    %1012 = vmatpush2.bf16.msra.mxu0 0
    %1013 = vmatprep.subr.bf16.mxu0 0
    %1014 = vmatpush2.bf16.msra.mxu0 0
    %1015 = vmatprep.subr.bf16.mxu0 0
    %1016 = vmatpush2.bf16.msra.mxu0 0
    %1017 = vmatprep.subr.bf16.mxu0 0
    %1018 = vmatpush2.bf16.msra.mxu0 0
    %1019 = vmatprep.mubr.bf16.mxu0 0
    %1020 = vmatmul.mubr.bf16.gmra.mxu0 %v982
    %v1021 = vpop.f32.mrf.mxu0
    %v1022 = vadd.f32 0.0, %v1021
    %v1023 = vpop.f32.mrf.mxu0
    %v1024 = vpop.f32.mrf.mxu0
    %v1025 = vpop.f32.mrf.mxu0
    %1026 = vdwg.mxu0
    %v1028 = vsel %vm607, %v703, 0
    %v1031 = vsel %vm707, %v209, 0
    %1033 = vmatprep.subr.bf16.mxu0 0
    %1034 = vmatpush1.bf16.msra.mxu0 0
    %1035 = vmatprep.subr.bf16.mxu0 0
    %1036 = vmatpush1.bf16.msra.mxu0 0
    %1037 = vmatprep.subr.bf16.mxu0 0
    %1038 = vmatpush1.bf16.msra.mxu0 0
    %1039 = vmatprep.subr.bf16.mxu0 0
    %1040 = vmatpush1.bf16.msra.mxu0 0
    %1041 = vmatprep.subr.bf16.mxu0 0
    %1042 = vmatpush1.bf16.msra.mxu0 0
    %1043 = vmatprep.subr.bf16.mxu0 0
    %1044 = vmatpush1.bf16.msra.mxu0 0
    %1045 = vmatprep.subr.bf16.mxu0 0
    %1046 = vmatpush1.bf16.msra.mxu0 0
    %1047 = vmatprep.subr.bf16.mxu0 0
    %1048 = vmatpush1.bf16.msra.mxu0 %v1031
    %1049 = vmatprep.subr.bf16.mxu0 0
    %1050 = vmatpush2.bf16.msra.mxu0 0
    %1051 = vmatprep.subr.bf16.mxu0 0
    %1052 = vmatpush2.bf16.msra.mxu0 0
    %1053 = vmatprep.subr.bf16.mxu0 0
    %1054 = vmatpush2.bf16.msra.mxu0 0
    %1055 = vmatprep.subr.bf16.mxu0 0
    %1056 = vmatpush2.bf16.msra.mxu0 0
    %1057 = vmatprep.subr.bf16.mxu0 0
    %1058 = vmatpush2.bf16.msra.mxu0 0
    %1059 = vmatprep.subr.bf16.mxu0 0
    %1060 = vmatpush2.bf16.msra.mxu0 0
    %1061 = vmatprep.subr.bf16.mxu0 0
    %1062 = vmatpush2.bf16.msra.mxu0 0
    %1063 = vmatprep.subr.bf16.mxu0 0
    %1064 = vmatpush2.bf16.msra.mxu0 0
    %1065 = vmatprep.mubr.bf16.mxu0 0
    %1066 = vmatmul.mubr.bf16.gmra.mxu0 %v1028
    %v1067 = vpop.f32.mrf.mxu0
    %v1068 = vadd.f32 0.0, %v1067
    %v1069 = vpop.f32.mrf.mxu0
    %v1070 = vpop.f32.mrf.mxu0
    %v1071 = vpop.f32.mrf.mxu0
    %1072 = vdwg.mxu0
    %1075 = vrot.lane.b32.xlu0 %v838, 16
    %v1076 = vpop.permute.xlu0 %1075
    %1077 = vrot.lane.b32.xlu0 %v884, 16
    %v1078 = vpop.permute.xlu0 %1077
    %1083 = vrot.lane.b32.xlu0 %v930, 32
    %v1084 = vpop.permute.xlu0 %1083
    %1085 = vrot.lane.b32.xlu0 %v976, 32
    %v1086 = vpop.permute.xlu0 %1085
    %1091 = vrot.lane.b32.xlu0 %v1022, 48
    %v1092 = vpop.permute.xlu0 %1091
    %1093 = vrot.lane.b32.xlu0 %v1068, 48
    %v1094 = vpop.permute.xlu0 %1093
    %v1097 = vsel %vm212, %v746, %v1076
    %v1098 = vsel %vm212, %v792, %v1078
    %vm1099 = vcmask 261120
    %v1100 = vsel %vm1099, %v1097, %v1084
    %v1101 = vsel %vm1099, %v1098, %v1086
    %vm1102 = vcmask 392192
    %v1103 = vsel %vm1102, %v1100, %v1092
    %v1104 = vsel %vm1102, %v1101, %v1094
    %v1105 = vpack.c.bf16 %v1104, %v1103
    %v1106 = vld [vmem:[%s2 + $0x10] sm:$0xf]
    %v1107 = vld [vmem:[%s2 + $0x24] sm:$0xf]
    %v1108 = vld [vmem:[%s2 + $0x38] sm:$0xf]
    %v1109 = vld [vmem:[%s2 + $0x4c] sm:$0xf]
    %v1110 = vld [vmem:[%s2 + $0x60] sm:$0xf]
    %v1111 = vld [vmem:[%s2 + $0x74] sm:$0xf]
    %v1112 = vld [vmem:[%s2 + $0x88] sm:$0xf]
    %v1113 = vld [vmem:[%s2 + $0x9c] sm:$0xf]
    %v1114 = vld [vmem:[%s4 + $0x4] sm:$0x1]
    %v1116 = vlaneseq
    %v1117 = vshrl.u32 %v1116, 7
    %v1118 = vsub.s32 0, %v1117
    %v1119 = vrot.slane %v1114, %v1118
    %v1129 = vunpack.c.l.b16 %v1106
    %v1130 = vunpack.c.l.b16 %v1107
    %v1131 = vunpack.c.l.b16 %v1108
    %v1132 = vunpack.c.l.b16 %v1109
    %v1133 = vunpack.c.l.b16 %v1110
    %v1134 = vunpack.c.l.b16 %v1111
    %v1135 = vunpack.c.l.b16 %v1112
    %v1136 = vunpack.c.l.b16 %v1113
    %v1137 = vpack.c.b16 %v1130, %v1129
    %v1138 = vpack.c.b16 %v1132, %v1131
    %v1139 = vpack.c.b16 %v1134, %v1133
    %v1140 = vpack.c.b16 %v1136, %v1135
    %v1146 = vsel %vm26, %v1105, 0
    %1148 = vmatprep.subr.bf16.mxu0 0
    %1149 = vmatpush1.bf16.msra.mxu0 0
    %1150 = vmatprep.subr.bf16.mxu0 0
    %1151 = vmatpush1.bf16.msra.mxu0 0
    %1152 = vmatprep.subr.bf16.mxu0 0
    %1153 = vmatpush1.bf16.msra.mxu0 0
    %1154 = vmatprep.subr.bf16.mxu0 0
    %1155 = vmatpush1.bf16.msra.mxu0 0
    %1156 = vmatprep.subr.bf16.mxu0 0
    %1157 = vmatpush1.bf16.msra.mxu0 %v1140
    %1158 = vmatprep.subr.bf16.mxu0 0
    %1159 = vmatpush1.bf16.msra.mxu0 %v1139
    %1160 = vmatprep.subr.bf16.mxu0 0
    %1161 = vmatpush1.bf16.msra.mxu0 %v1138
    %1162 = vmatprep.subr.bf16.mxu0 0
    %1163 = vmatpush1.bf16.msra.mxu0 %v1137
    %1164 = vmatprep.subr.bf16.mxu0 0
    %1165 = vmatpush2.bf16.msra.mxu0 0
    %1166 = vmatprep.subr.bf16.mxu0 0
    %1167 = vmatpush2.bf16.msra.mxu0 0
    %1168 = vmatprep.subr.bf16.mxu0 0
    %1169 = vmatpush2.bf16.msra.mxu0 0
    %1170 = vmatprep.subr.bf16.mxu0 0
    %1171 = vmatpush2.bf16.msra.mxu0 0
    %1172 = vmatprep.subr.bf16.mxu0 0
    %1173 = vmatpush2.bf16.msra.mxu0 0
    %1174 = vmatprep.subr.bf16.mxu0 0
    %1175 = vmatpush2.bf16.msra.mxu0 0
    %1176 = vmatprep.subr.bf16.mxu0 0
    %1177 = vmatpush2.bf16.msra.mxu0 0
    %1178 = vmatprep.subr.bf16.mxu0 0
    %1179 = vmatpush2.bf16.msra.mxu0 0
    %1180 = vmatprep.mubr.bf16.mxu0 0
    %1181 = vmatmul.mubr.bf16.gmra.mxu0 %v1146
    %v1182 = vpop.f32.mrf.mxu0
    %v1183 = vadd.f32 %v1119, %v1182
    %v1184 = vpop.f32.mrf.mxu0
    %v1185 = vpop.f32.mrf.mxu0
    %v1186 = vadd.f32 %v1119, %v1185
    %v1187 = vpop.f32.mrf.mxu0
    %1188 = vdwg.mxu0
    %v1189 = vadd.f32 %v22, %v1183
    %v1190 = vadd.f32 %v23, %v1186
    %v1191 = vld [vmem:[%s4 + $0x1] sm:$0x1]
    %v1192 = vsel %vm26, %v1189, 0.0
    %1193 = vadd.xlane.f32.xlu0 %v1192
    %v1194 = vpop.xlane.xlu0 %1193
    %v1195 = vsel %vm26, %v1190, 0.0
    %1196 = vadd.xlane.f32.xlu0 %v1195
    %v1197 = vpop.xlane.xlu0 %1196
    %v1198 = vmul.f32 %v1194, %v33
    %v1199 = vmul.f32 %v1197, %v33
    %v1200 = vsub.f32 %v1189, %v1198
    %v1201 = vsub.f32 %v1190, %v1199
    %v1202 = vmul.f32 %v1200, %v1200
    %v1203 = vmul.f32 %v1201, %v1201
    %v1204 = vsel %vm26, %v1202, 0.0
    %1205 = vadd.xlane.f32.xlu0 %v1204
    %v1206 = vpop.xlane.xlu0 %1205
    %v1207 = vsel %vm26, %v1203, 0.0
    %1208 = vadd.xlane.f32.xlu0 %v1207
    %v1209 = vpop.xlane.xlu0 %1208
    %v1210 = vmul.f32 %v1206, %v33
    %v1211 = vmul.f32 %v1209, %v33
    %v1212 = vadd.f32 %v1210, 1e-05
    %v1213 = vadd.f32 %v1211, 1e-05
    %v1214 = vrsqrt.pop %v1212
    %v1215 = vrsqrt.pop %v1213
    %v1216 = vmul.f32 %v1200, %v1214
    %v1217 = vmul.f32 %v1201, %v1215
    %v1219 = vlaneseq
    %v1220 = vshrl.u32 %v1219, 7
    %v1221 = vsub.s32 0, %v1220
    %v1222 = vrot.slane %v1191, %v1221
    %v1224 = vmul.f32 %v1216, %v1222
    %v1225 = vmul.f32 %v1217, %v1222
    %1226 = vrot.lane.b32.xlu0 %v1222, 64
    %v1227 = vpop.permute.xlu0 %1226
    %v1229 = vadd.f32 %v1224, %v1227
    %v1230 = vadd.f32 %v1225, %v1227
    %v1231 = vpack.c.bf16 %v1230, %v1229
    %v1232 = vld [vmem:[%s2 + $0x8] sm:$0xff]
    %v1233 = vld [vmem:[%s2 + $0x1c] sm:$0xff]
    %v1234 = vld [vmem:[%s2 + $0x30] sm:$0xff]
    %v1235 = vld [vmem:[%s2 + $0x44] sm:$0xff]
    %v1236 = vld [vmem:[%s2 + $0x58] sm:$0xff]
    %v1237 = vld [vmem:[%s2 + $0x6c] sm:$0xff]
    %v1238 = vld [vmem:[%s2 + $0x80] sm:$0xff]
    %v1239 = vld [vmem:[%s2 + $0x94] sm:$0xff]
    %v1240 = vld [vmem:[%s4 + $0x4] sm:$0x7]
    %v1242 = vlaneseq
    %v1243 = vshrl.u32 %v1242, 7
    %v1244 = vsub.s32 0, %v1243
    %v1245 = vrot.slane %v1240, %v1244
    %v1246 = vlaneseq
    %v1247 = vshrl.u32 %v1246, 7
    %v1248 = vsub.s32 1, %v1247
    %v1249 = vrot.slane %v1240, %v1248
    %v1250 = vlaneseq
    %v1251 = vshrl.u32 %v1250, 7
    %v1252 = vsub.s32 2, %v1251
    %v1253 = vrot.slane %v1240, %v1252
    %v1262 = vunpack.c.l.b16 %v1232
    %v1263 = vunpack.c.h.b16 %v1232
    %v1264 = vunpack.c.l.b16 %v1233
    %v1265 = vunpack.c.h.b16 %v1233
    %v1266 = vunpack.c.l.b16 %v1234
    %v1267 = vunpack.c.h.b16 %v1234
    %v1268 = vunpack.c.l.b16 %v1235
    %v1269 = vunpack.c.h.b16 %v1235
    %v1270 = vunpack.c.l.b16 %v1236
    %v1271 = vunpack.c.h.b16 %v1236
    %v1272 = vunpack.c.l.b16 %v1237
    %v1273 = vunpack.c.h.b16 %v1237
    %v1274 = vunpack.c.l.b16 %v1238
    %v1275 = vunpack.c.h.b16 %v1238
    %v1276 = vunpack.c.l.b16 %v1239
    %v1277 = vunpack.c.h.b16 %v1239
    %v1278 = vpack.c.b16 %v1264, %v1262
    %v1279 = vpack.c.b16 %v1265, %v1263
    %v1280 = vpack.c.b16 %v1268, %v1266
    %v1281 = vpack.c.b16 %v1269, %v1267
    %v1282 = vpack.c.b16 %v1272, %v1270
    %v1283 = vpack.c.b16 %v1273, %v1271
    %v1284 = vpack.c.b16 %v1276, %v1274
    %v1285 = vpack.c.b16 %v1277, %v1275
    %1294 = vrot.lane.b32.xlu0 %v1245, 64
    %v1295 = vpop.permute.xlu0 %1294
    %1296 = vrot.lane.b32.xlu0 %v1249, 64
    %v1297 = vpop.permute.xlu0 %1296
    %1298 = vrot.lane.b32.xlu0 %v1253, 64
    %v1299 = vpop.permute.xlu0 %1298
    %v1300 = vsel %vm26, %v1295, %v1297
    %v1301 = vsel %vm26, %v1297, %v1299
    %v1305 = vsel %vm26, %v1231, 0
    %1307 = vmatprep.subr.bf16.mxu0 0
    %1308 = vmatpush1.bf16.msra.mxu0 0
    %1309 = vmatprep.subr.bf16.mxu0 0
    %1310 = vmatpush1.bf16.msra.mxu0 0
    %1311 = vmatprep.subr.bf16.mxu0 0
    %1312 = vmatpush1.bf16.msra.mxu0 0
    %1313 = vmatprep.subr.bf16.mxu0 0
    %1314 = vmatpush1.bf16.msra.mxu0 0
    %1315 = vmatprep.subr.bf16.mxu0 %v1285
    %1316 = vmatpush1.bf16.msra.mxu0 %v1284
    %1317 = vmatprep.subr.bf16.mxu0 %v1283
    %1318 = vmatpush1.bf16.msra.mxu0 %v1282
    %1319 = vmatprep.subr.bf16.mxu0 %v1281
    %1320 = vmatpush1.bf16.msra.mxu0 %v1280
    %1321 = vmatprep.subr.bf16.mxu0 %v1279
    %1322 = vmatpush1.bf16.msra.mxu0 %v1278
    %1323 = vmatprep.subr.bf16.mxu0 0
    %1324 = vmatpush2.bf16.msra.mxu0 0
    %1325 = vmatprep.subr.bf16.mxu0 0
    %1326 = vmatpush2.bf16.msra.mxu0 0
    %1327 = vmatprep.subr.bf16.mxu0 0
    %1328 = vmatpush2.bf16.msra.mxu0 0
    %1329 = vmatprep.subr.bf16.mxu0 0
    %1330 = vmatpush2.bf16.msra.mxu0 0
    %1331 = vmatprep.subr.bf16.mxu0 0
    %1332 = vmatpush2.bf16.msra.mxu0 0
    %1333 = vmatprep.subr.bf16.mxu0 0
    %1334 = vmatpush2.bf16.msra.mxu0 0
    %1335 = vmatprep.subr.bf16.mxu0 0
    %1336 = vmatpush2.bf16.msra.mxu0 0
    %1337 = vmatprep.subr.bf16.mxu0 0
    %1338 = vmatpush2.bf16.msra.mxu0 0
    %1339 = vmatprep.mubr.bf16.mxu0 0
    %1340 = vmatmul.mubr.bf16.gmra.mxu0 %v1305
    %v1341 = vpop.f32.mrf.mxu0
    %v1342 = vadd.f32 %v1300, %v1341
    %v1343 = vpop.f32.mrf.mxu0
    %v1344 = vadd.f32 %v1301, %v1343
    %v1345 = vpop.f32.mrf.mxu0
    %v1346 = vadd.f32 %v1300, %v1345
    %v1347 = vpop.f32.mrf.mxu0
    %v1348 = vadd.f32 %v1301, %v1347
    %1349 = vdwg.mxu0
    %v1350 = vmax.f32 %v1342, 0.0
    %v1351 = vmax.f32 %v1344, 0.0
    %v1352 = vmax.f32 %v1346, 0.0
    %v1353 = vmax.f32 %v1348, 0.0
    %v1354 = vpack.c.bf16 %v1352, %v1350
    %v1355 = vpack.c.bf16 %v1353, %v1351
    %v1356 = vld [vmem:[%s3] sm:$0xf]
    %v1357 = vld [vmem:[%s3 + $0x4] sm:$0xf]
    %v1358 = vld [vmem:[%s3 + $0x8] sm:$0xf]
    %v1359 = vld [vmem:[%s3 + $0xc] sm:$0xf]
    %v1360 = vld [vmem:[%s3 + $0x10] sm:$0xf]
    %v1361 = vld [vmem:[%s3 + $0x14] sm:$0xf]
    %v1362 = vld [vmem:[%s3 + $0x18] sm:$0xf]
    %v1363 = vld [vmem:[%s3 + $0x1c] sm:$0xf]
    %v1364 = vld [vmem:[%s3 + $0x20] sm:$0xf]
    %v1365 = vld [vmem:[%s3 + $0x24] sm:$0xf]
    %v1366 = vld [vmem:[%s3 + $0x28] sm:$0xf]
    %v1367 = vld [vmem:[%s3 + $0x2c] sm:$0xf]
    %v1368 = vld [vmem:[%s3 + $0x30] sm:$0xf]
    %v1369 = vld [vmem:[%s3 + $0x34] sm:$0xf]
    %v1370 = vld [vmem:[%s3 + $0x38] sm:$0xf]
    %v1371 = vld [vmem:[%s3 + $0x3c] sm:$0xf]
    %v1372 = vld [vmem:[%s3 + $0x40] sm:$0xf]
    %v1373 = vld [vmem:[%s3 + $0x44] sm:$0xf]
    %v1374 = vld [vmem:[%s3 + $0x48] sm:$0xf]
    %v1375 = vld [vmem:[%s3 + $0x4c] sm:$0xf]
    %v1376 = vld [vmem:[%s3 + $0x50] sm:$0xf]
    %v1377 = vld [vmem:[%s3 + $0x54] sm:$0xf]
    %v1378 = vld [vmem:[%s3 + $0x58] sm:$0xf]
    %v1379 = vld [vmem:[%s3 + $0x5c] sm:$0xf]
    %v1380 = vld [vmem:[%s3 + $0x60] sm:$0xf]
    %v1381 = vld [vmem:[%s3 + $0x64] sm:$0xf]
    %v1382 = vld [vmem:[%s3 + $0x68] sm:$0xf]
    %v1383 = vld [vmem:[%s3 + $0x6c] sm:$0xf]
    %v1384 = vld [vmem:[%s3 + $0x70] sm:$0xf]
    %v1385 = vld [vmem:[%s3 + $0x74] sm:$0xf]
    %v1386 = vld [vmem:[%s3 + $0x78] sm:$0xf]
    %v1387 = vld [vmem:[%s3 + $0x7c] sm:$0xf]
    %v1388 = vld [vmem:[%s4 + $0x6] sm:$0x1]
    %v1390 = vlaneseq
    %v1391 = vshrl.u32 %v1390, 7
    %v1392 = vsub.s32 0, %v1391
    %v1393 = vrot.slane %v1388, %v1392
    %v1426 = vunpack.c.l.b16 %v1356
    %v1427 = vunpack.c.l.b16 %v1357
    %v1428 = vunpack.c.l.b16 %v1358
    %v1429 = vunpack.c.l.b16 %v1359
    %v1430 = vunpack.c.l.b16 %v1360
    %v1431 = vunpack.c.l.b16 %v1361
    %v1432 = vunpack.c.l.b16 %v1362
    %v1433 = vunpack.c.l.b16 %v1363
    %v1434 = vunpack.c.l.b16 %v1364
    %v1435 = vunpack.c.l.b16 %v1365
    %v1436 = vunpack.c.l.b16 %v1366
    %v1437 = vunpack.c.l.b16 %v1367
    %v1438 = vunpack.c.l.b16 %v1368
    %v1439 = vunpack.c.l.b16 %v1369
    %v1440 = vunpack.c.l.b16 %v1370
    %v1441 = vunpack.c.l.b16 %v1371
    %v1442 = vunpack.c.l.b16 %v1372
    %v1443 = vunpack.c.l.b16 %v1373
    %v1444 = vunpack.c.l.b16 %v1374
    %v1445 = vunpack.c.l.b16 %v1375
    %v1446 = vunpack.c.l.b16 %v1376
    %v1447 = vunpack.c.l.b16 %v1377
    %v1448 = vunpack.c.l.b16 %v1378
    %v1449 = vunpack.c.l.b16 %v1379
    %v1450 = vunpack.c.l.b16 %v1380
    %v1451 = vunpack.c.l.b16 %v1381
    %v1452 = vunpack.c.l.b16 %v1382
    %v1453 = vunpack.c.l.b16 %v1383
    %v1454 = vunpack.c.l.b16 %v1384
    %v1455 = vunpack.c.l.b16 %v1385
    %v1456 = vunpack.c.l.b16 %v1386
    %v1457 = vunpack.c.l.b16 %v1387
    %v1458 = vpack.c.b16 %v1427, %v1426
    %v1459 = vpack.c.b16 %v1429, %v1428
    %v1460 = vpack.c.b16 %v1431, %v1430
    %v1461 = vpack.c.b16 %v1433, %v1432
    %v1462 = vpack.c.b16 %v1435, %v1434
    %v1463 = vpack.c.b16 %v1437, %v1436
    %v1464 = vpack.c.b16 %v1439, %v1438
    %v1465 = vpack.c.b16 %v1441, %v1440
    %v1466 = vpack.c.b16 %v1443, %v1442
    %v1467 = vpack.c.b16 %v1445, %v1444
    %v1468 = vpack.c.b16 %v1447, %v1446
    %v1469 = vpack.c.b16 %v1449, %v1448
    %v1470 = vpack.c.b16 %v1451, %v1450
    %v1471 = vpack.c.b16 %v1453, %v1452
    %v1472 = vpack.c.b16 %v1455, %v1454
    %v1473 = vpack.c.b16 %v1457, %v1456
    %1490 = vrot.lane.b32.xlu0 %v1393, 64
    %v1491 = vpop.permute.xlu0 %1490
    %1493 = vmatprep.subr.bf16.mxu0 0
    %1494 = vmatpush1.bf16.msra.mxu0 %v1465
    %1495 = vmatprep.subr.bf16.mxu0 0
    %1496 = vmatpush1.bf16.msra.mxu0 %v1464
    %1497 = vmatprep.subr.bf16.mxu0 0
    %1498 = vmatpush1.bf16.msra.mxu0 %v1463
    %1499 = vmatprep.subr.bf16.mxu0 0
    %1500 = vmatpush1.bf16.msra.mxu0 %v1462
    %1501 = vmatprep.subr.bf16.mxu0 0
    %1502 = vmatpush1.bf16.msra.mxu0 %v1461
    %1503 = vmatprep.subr.bf16.mxu0 0
    %1504 = vmatpush1.bf16.msra.mxu0 %v1460
    %1505 = vmatprep.subr.bf16.mxu0 0
    %1506 = vmatpush1.bf16.msra.mxu0 %v1459
    %1507 = vmatprep.subr.bf16.mxu0 0
    %1508 = vmatpush1.bf16.msra.mxu0 %v1458
    %1509 = vmatprep.subr.bf16.mxu0 0
    %1510 = vmatpush2.bf16.msra.mxu0 %v1473
    %1511 = vmatprep.subr.bf16.mxu0 0
    %1512 = vmatpush2.bf16.msra.mxu0 %v1472
    %1513 = vmatprep.subr.bf16.mxu0 0
    %1514 = vmatpush2.bf16.msra.mxu0 %v1471
    %1515 = vmatprep.subr.bf16.mxu0 0
    %1516 = vmatpush2.bf16.msra.mxu0 %v1470
    %1517 = vmatprep.subr.bf16.mxu0 0
    %1518 = vmatpush2.bf16.msra.mxu0 %v1469
    %1519 = vmatprep.subr.bf16.mxu0 0
    %1520 = vmatpush2.bf16.msra.mxu0 %v1468
    %1521 = vmatprep.subr.bf16.mxu0 0
    %1522 = vmatpush2.bf16.msra.mxu0 %v1467
    %1523 = vmatprep.subr.bf16.mxu0 0
    %1524 = vmatpush2.bf16.msra.mxu0 %v1466
    %1525 = vmatprep.mubr.bf16.mxu0 %v1355
    %1526 = vmatmul.mubr.bf16.gmra.mxu0 %v1354
    %v1527 = vpop.f32.mrf.mxu0
    %v1528 = vadd.f32 %v1491, %v1527
    %v1529 = vpop.f32.mrf.mxu0
    %v1530 = vpop.f32.mrf.mxu0
    %v1531 = vadd.f32 %v1491, %v1530
    %v1532 = vpop.f32.mrf.mxu0
    %1533 = vdwg.mxu0
    %v1534 = vadd.f32 %v1189, %v1528
    %v1535 = vadd.f32 %v1190, %v1531
    %s1536 = scalar_lea.vmem %s4, 7
    %v1537 = vld [vmem:[%s1536] sm:$0x1]
    %v1538 = vsel %vm26, %v1534, 0.0
    %1539 = vadd.xlane.f32.xlu0 %v1538
    %v1540 = vpop.xlane.xlu0 %1539
    %v1541 = vsel %vm26, %v1535, 0.0
    %1542 = vadd.xlane.f32.xlu0 %v1541
    %v1543 = vpop.xlane.xlu0 %1542
    %v1544 = vmul.f32 %v1540, %v33
    %v1545 = vmul.f32 %v1543, %v33
    %v1546 = vsub.f32 %v1534, %v1544
    %v1547 = vsub.f32 %v1535, %v1545
    %v1548 = vmul.f32 %v1546, %v1546
    %v1549 = vmul.f32 %v1547, %v1547
    %v1550 = vsel %vm26, %v1548, 0.0
    %1551 = vadd.xlane.f32.xlu0 %v1550
    %v1552 = vpop.xlane.xlu0 %1551
    %v1553 = vsel %vm26, %v1549, 0.0
    %1554 = vadd.xlane.f32.xlu0 %v1553
    %v1555 = vpop.xlane.xlu0 %1554
    %v1556 = vmul.f32 %v1552, %v33
    %v1557 = vmul.f32 %v1555, %v33
    %v1558 = vadd.f32 %v1556, 1e-05
    %v1559 = vadd.f32 %v1557, 1e-05
    %v1560 = vrsqrt.pop %v1558
    %v1561 = vrsqrt.pop %v1559
    %v1562 = vmul.f32 %v1546, %v1560
    %v1563 = vmul.f32 %v1547, %v1561
    %v1565 = vlaneseq
    %v1566 = vshrl.u32 %v1565, 7
    %v1567 = vsub.s32 0, %v1566
    %v1568 = vrot.slane %v1537, %v1567
    %v1570 = vmul.f32 %v1562, %v1568
    %v1571 = vmul.f32 %v1563, %v1568
    %1572 = vrot.lane.b32.xlu0 %v1568, 64
    %v1573 = vpop.permute.xlu0 %1572
    %v1575 = vadd.f32 %v1570, %v1573
    %v1576 = vadd.f32 %v1571, %v1573
    %v1577 = vpack.c.bf16 %v1576, %v1575
    %s1578 = scalar_lea.vmem %s2, 160
    %v1579 = vld [vmem:[%s1578] sm:$0xff]
    %v1580 = vld [vmem:[%s1578 + $0x14] sm:$0xff]
    %v1581 = vld [vmem:[%s1578 + $0x28] sm:$0xff]
    %v1582 = vld [vmem:[%s1578 + $0x3c] sm:$0xff]
    %v1583 = vld [vmem:[%s1578 + $0x50] sm:$0xff]
    %v1584 = vld [vmem:[%s1578 + $0x64] sm:$0xff]
    %v1585 = vld [vmem:[%s1578 + $0x78] sm:$0xff]
    %v1586 = vld [vmem:[%s1578 + $0x8c] sm:$0xff]
    %v1587 = vld [vmem:[%s1536 + $0x2] sm:$0x3]
    %v1589 = vlaneseq
    %v1590 = vshrl.u32 %v1589, 7
    %v1591 = vsub.s32 0, %v1590
    %v1592 = vrot.slane %v1587, %v1591
    %v1593 = vlaneseq
    %v1594 = vshrl.u32 %v1593, 7
    %v1595 = vsub.s32 1, %v1594
    %v1596 = vrot.slane %v1587, %v1595
    %v1607 = vunpack.c.l.b16 %v1579
    %v1608 = vunpack.c.h.b16 %v1579
    %v1609 = vunpack.c.l.b16 %v1580
    %v1610 = vunpack.c.h.b16 %v1580
    %v1611 = vunpack.c.l.b16 %v1581
    %v1612 = vunpack.c.h.b16 %v1581
    %v1613 = vunpack.c.l.b16 %v1582
    %v1614 = vunpack.c.h.b16 %v1582
    %v1615 = vunpack.c.l.b16 %v1583
    %v1616 = vunpack.c.h.b16 %v1583
    %v1617 = vunpack.c.l.b16 %v1584
    %v1618 = vunpack.c.h.b16 %v1584
    %v1619 = vunpack.c.l.b16 %v1585
    %v1620 = vunpack.c.h.b16 %v1585
    %v1621 = vunpack.c.l.b16 %v1586
    %v1622 = vunpack.c.h.b16 %v1586
    %v1623 = vpack.c.b16 %v1609, %v1607
    %v1624 = vpack.c.b16 %v1610, %v1608
    %v1625 = vpack.c.b16 %v1613, %v1611
    %v1626 = vpack.c.b16 %v1614, %v1612
    %v1627 = vpack.c.b16 %v1617, %v1615
    %v1628 = vpack.c.b16 %v1618, %v1616
    %v1629 = vpack.c.b16 %v1621, %v1619
    %v1630 = vpack.c.b16 %v1622, %v1620
    %v1640 = vsel %vm26, %v1577, 0
    %1642 = vmatprep.subr.bf16.mxu0 0
    %1643 = vmatpush1.bf16.msra.mxu0 0
    %1644 = vmatprep.subr.bf16.mxu0 0
    %1645 = vmatpush1.bf16.msra.mxu0 0
    %1646 = vmatprep.subr.bf16.mxu0 0
    %1647 = vmatpush1.bf16.msra.mxu0 0
    %1648 = vmatprep.subr.bf16.mxu0 0
    %1649 = vmatpush1.bf16.msra.mxu0 0
    %1650 = vmatprep.subr.bf16.mxu0 %v1630
    %1651 = vmatpush1.bf16.msra.mxu0 %v1629
    %1652 = vmatprep.subr.bf16.mxu0 %v1628
    %1653 = vmatpush1.bf16.msra.mxu0 %v1627
    %1654 = vmatprep.subr.bf16.mxu0 %v1626
    %1655 = vmatpush1.bf16.msra.mxu0 %v1625
    %1656 = vmatprep.subr.bf16.mxu0 %v1624
    %1657 = vmatpush1.bf16.msra.mxu0 %v1623
    %1658 = vmatprep.subr.bf16.mxu0 0
    %1659 = vmatpush2.bf16.msra.mxu0 0
    %1660 = vmatprep.subr.bf16.mxu0 0
    %1661 = vmatpush2.bf16.msra.mxu0 0
    %1662 = vmatprep.subr.bf16.mxu0 0
    %1663 = vmatpush2.bf16.msra.mxu0 0
    %1664 = vmatprep.subr.bf16.mxu0 0
    %1665 = vmatpush2.bf16.msra.mxu0 0
    %1666 = vmatprep.subr.bf16.mxu0 0
    %1667 = vmatpush2.bf16.msra.mxu0 0
    %1668 = vmatprep.subr.bf16.mxu0 0
    %1669 = vmatpush2.bf16.msra.mxu0 0
    %1670 = vmatprep.subr.bf16.mxu0 0
    %1671 = vmatpush2.bf16.msra.mxu0 0
    %1672 = vmatprep.subr.bf16.mxu0 0
    %1673 = vmatpush2.bf16.msra.mxu0 0
    %1674 = vmatprep.mubr.bf16.mxu0 0
    %1675 = vmatmul.mubr.bf16.gmra.mxu0 %v1640
    %v1676 = vpop.f32.mrf.mxu0
    %v1677 = vadd.f32 %v1592, %v1676
    %v1678 = vpop.f32.mrf.mxu0
    %v1679 = vadd.f32 %v1596, %v1678
    %v1680 = vpop.f32.mrf.mxu0
    %v1681 = vadd.f32 %v1592, %v1680
    %v1682 = vpop.f32.mrf.mxu0
    %v1683 = vadd.f32 %v1596, %v1682
    %1684 = vdwg.mxu0
    %v1685 = vpack.c.bf16 %v1681, %v1677
    %v1686 = vpack.c.bf16 %v1683, %v1679
    %v1688 = vunpack.c.l.b16 %v1685
    %v1689 = vunpack.c.h.b16 %v1685
    %v1690 = vpack.c.b16 %v1688, %v1688
    %v1691 = vpack.c.b16 %v1689, %v1689
    %1692 = vrot.lane.b32.xlu0 %v1690, 112
    %v1693 = vpop.permute.xlu0 %1692
    %1694 = vrot.lane.b32.xlu0 %v1691, 112
    %v1695 = vpop.permute.xlu0 %1694
    %1696 = vrot.lane.b32.xlu0 %v1690, 96
    %v1697 = vpop.permute.xlu0 %1696
    %1698 = vrot.lane.b32.xlu0 %v1691, 96
    %v1699 = vpop.permute.xlu0 %1698
    %1700 = vrot.lane.b32.xlu0 %v1690, 80
    %v1701 = vpop.permute.xlu0 %1700
    %1702 = vrot.lane.b32.xlu0 %v1691, 80
    %v1703 = vpop.permute.xlu0 %1702
    %v1705 = vunpack.c.l.b16 %v1686
    %v1706 = vunpack.c.h.b16 %v1686
    %v1707 = vpack.c.b16 %v1705, %v1705
    %v1708 = vpack.c.b16 %v1706, %v1706
    %1709 = vrot.lane.b32.xlu0 %v1707, 112
    %v1710 = vpop.permute.xlu0 %1709
    %1711 = vrot.lane.b32.xlu0 %v1708, 112
    %v1712 = vpop.permute.xlu0 %1711
    %1713 = vrot.lane.b32.xlu0 %v1707, 96
    %v1714 = vpop.permute.xlu0 %1713
    %1715 = vrot.lane.b32.xlu0 %v1708, 96
    %v1716 = vpop.permute.xlu0 %1715
    %1717 = vrot.lane.b32.xlu0 %v1707, 80
    %v1718 = vpop.permute.xlu0 %1717
    %1719 = vrot.lane.b32.xlu0 %v1708, 80
    %v1720 = vpop.permute.xlu0 %1719
    %1721 = vrot.lane.b32.xlu0 %v1690, 64
    %v1722 = vpop.permute.xlu0 %1721
    %v1724 = vsel %vm212, %v1690, 0
    %v1727 = vsel %vm212, %v1722, 0
    %1729 = vmatprep.subr.bf16.mxu0 0
    %1730 = vmatpush1.bf16.xpose.msra.mxu0 0
    %1731 = vmatprep.subr.bf16.mxu0 0
    %1732 = vmatpush1.bf16.xpose.msra.mxu0 0
    %1733 = vmatprep.subr.bf16.mxu0 0
    %1734 = vmatpush1.bf16.xpose.msra.mxu0 0
    %1735 = vmatprep.subr.bf16.mxu0 0
    %1736 = vmatpush1.bf16.xpose.msra.mxu0 0
    %1737 = vmatprep.subr.bf16.mxu0 0
    %1738 = vmatpush1.bf16.xpose.msra.mxu0 0
    %1739 = vmatprep.subr.bf16.mxu0 0
    %1740 = vmatpush1.bf16.xpose.msra.mxu0 0
    %1741 = vmatprep.subr.bf16.mxu0 0
    %1742 = vmatpush1.bf16.xpose.msra.mxu0 0
    %1743 = vmatprep.subr.bf16.mxu0 0
    %1744 = vmatpush1.bf16.xpose.msra.mxu0 %v1727
    %1745 = vmatprep.subr.bf16.mxu0 0
    %1746 = vmatpush2.bf16.xpose.msra.mxu0 0
    %1747 = vmatprep.subr.bf16.mxu0 0
    %1748 = vmatpush2.bf16.xpose.msra.mxu0 0
    %1749 = vmatprep.subr.bf16.mxu0 0
    %1750 = vmatpush2.bf16.xpose.msra.mxu0 0
    %1751 = vmatprep.subr.bf16.mxu0 0
    %1752 = vmatpush2.bf16.xpose.msra.mxu0 0
    %1753 = vmatprep.subr.bf16.mxu0 0
    %1754 = vmatpush2.bf16.xpose.msra.mxu0 0
    %1755 = vmatprep.subr.bf16.mxu0 0
    %1756 = vmatpush2.bf16.xpose.msra.mxu0 0
    %1757 = vmatprep.subr.bf16.mxu0 0
    %1758 = vmatpush2.bf16.xpose.msra.mxu0 0
    %1759 = vmatprep.subr.bf16.mxu0 0
    %1760 = vmatpush2.bf16.xpose.msra.mxu0 0
    %1761 = vmatprep.mubr.bf16.mxu0 0
    %1762 = vmatmul.mubr.bf16.gmra.mxu0 %v1724
    %v1763 = vpop.f32.mrf.mxu0
    %v1764 = vadd.f32 %v24, %v1763
    %v1765 = vpop.f32.mrf.mxu0
    %v1766 = vpop.f32.mrf.mxu0
    %v1767 = vpop.f32.mrf.mxu0
    %1768 = vdwg.mxu0
    %1769 = vrot.lane.b32.xlu0 %v1691, 64
    %v1770 = vpop.permute.xlu0 %1769
    %v1772 = vsel %vm212, %v1691, 0
    %v1775 = vsel %vm212, %v1770, 0
    %1777 = vmatprep.subr.bf16.mxu0 0
    %1778 = vmatpush1.bf16.xpose.msra.mxu0 0
    %1779 = vmatprep.subr.bf16.mxu0 0
    %1780 = vmatpush1.bf16.xpose.msra.mxu0 0
    %1781 = vmatprep.subr.bf16.mxu0 0
    %1782 = vmatpush1.bf16.xpose.msra.mxu0 0
    %1783 = vmatprep.subr.bf16.mxu0 0
    %1784 = vmatpush1.bf16.xpose.msra.mxu0 0
    %1785 = vmatprep.subr.bf16.mxu0 0
    %1786 = vmatpush1.bf16.xpose.msra.mxu0 0
    %1787 = vmatprep.subr.bf16.mxu0 0
    %1788 = vmatpush1.bf16.xpose.msra.mxu0 0
    %1789 = vmatprep.subr.bf16.mxu0 0
    %1790 = vmatpush1.bf16.xpose.msra.mxu0 0
    %1791 = vmatprep.subr.bf16.mxu0 0
    %1792 = vmatpush1.bf16.xpose.msra.mxu0 %v1775
    %1793 = vmatprep.subr.bf16.mxu0 0
    %1794 = vmatpush2.bf16.xpose.msra.mxu0 0
    %1795 = vmatprep.subr.bf16.mxu0 0
    %1796 = vmatpush2.bf16.xpose.msra.mxu0 0
    %1797 = vmatprep.subr.bf16.mxu0 0
    %1798 = vmatpush2.bf16.xpose.msra.mxu0 0
    %1799 = vmatprep.subr.bf16.mxu0 0
    %1800 = vmatpush2.bf16.xpose.msra.mxu0 0
    %1801 = vmatprep.subr.bf16.mxu0 0
    %1802 = vmatpush2.bf16.xpose.msra.mxu0 0
    %1803 = vmatprep.subr.bf16.mxu0 0
    %1804 = vmatpush2.bf16.xpose.msra.mxu0 0
    %1805 = vmatprep.subr.bf16.mxu0 0
    %1806 = vmatpush2.bf16.xpose.msra.mxu0 0
    %1807 = vmatprep.subr.bf16.mxu0 0
    %1808 = vmatpush2.bf16.xpose.msra.mxu0 0
    %1809 = vmatprep.mubr.bf16.mxu0 0
    %1810 = vmatmul.mubr.bf16.gmra.mxu0 %v1772
    %v1811 = vpop.f32.mrf.mxu0
    %v1812 = vadd.f32 %v24, %v1811
    %v1813 = vpop.f32.mrf.mxu0
    %v1814 = vpop.f32.mrf.mxu0
    %v1815 = vpop.f32.mrf.mxu0
    %1816 = vdwg.mxu0
    %v1817 = vunpack.c.l.b16 %v1693
    %v1818 = vpack.c.b16 %v1817, %v1817
    %1819 = vrot.lane.b32.xlu0 %v1818, 64
    %v1820 = vpop.permute.xlu0 %1819
    %v1822 = vsel %vm212, %v1693, 0
    %v1825 = vsel %vm212, %v1820, 0
    %1827 = vmatprep.subr.bf16.mxu0 0
    %1828 = vmatpush1.bf16.xpose.msra.mxu0 0
    %1829 = vmatprep.subr.bf16.mxu0 0
    %1830 = vmatpush1.bf16.xpose.msra.mxu0 0
    %1831 = vmatprep.subr.bf16.mxu0 0
    %1832 = vmatpush1.bf16.xpose.msra.mxu0 0
    %1833 = vmatprep.subr.bf16.mxu0 0
    %1834 = vmatpush1.bf16.xpose.msra.mxu0 0
    %1835 = vmatprep.subr.bf16.mxu0 0
    %1836 = vmatpush1.bf16.xpose.msra.mxu0 0
    %1837 = vmatprep.subr.bf16.mxu0 0
    %1838 = vmatpush1.bf16.xpose.msra.mxu0 0
    %1839 = vmatprep.subr.bf16.mxu0 0
    %1840 = vmatpush1.bf16.xpose.msra.mxu0 0
    %1841 = vmatprep.subr.bf16.mxu0 0
    %1842 = vmatpush1.bf16.xpose.msra.mxu0 %v1825
    %1843 = vmatprep.subr.bf16.mxu0 0
    %1844 = vmatpush2.bf16.xpose.msra.mxu0 0
    %1845 = vmatprep.subr.bf16.mxu0 0
    %1846 = vmatpush2.bf16.xpose.msra.mxu0 0
    %1847 = vmatprep.subr.bf16.mxu0 0
    %1848 = vmatpush2.bf16.xpose.msra.mxu0 0
    %1849 = vmatprep.subr.bf16.mxu0 0
    %1850 = vmatpush2.bf16.xpose.msra.mxu0 0
    %1851 = vmatprep.subr.bf16.mxu0 0
    %1852 = vmatpush2.bf16.xpose.msra.mxu0 0
    %1853 = vmatprep.subr.bf16.mxu0 0
    %1854 = vmatpush2.bf16.xpose.msra.mxu0 0
    %1855 = vmatprep.subr.bf16.mxu0 0
    %1856 = vmatpush2.bf16.xpose.msra.mxu0 0
    %1857 = vmatprep.subr.bf16.mxu0 0
    %1858 = vmatpush2.bf16.xpose.msra.mxu0 0
    %1859 = vmatprep.mubr.bf16.mxu0 0
    %1860 = vmatmul.mubr.bf16.gmra.mxu0 %v1822
    %v1861 = vpop.f32.mrf.mxu0
    %v1862 = vadd.f32 %v24, %v1861
    %v1863 = vpop.f32.mrf.mxu0
    %v1864 = vpop.f32.mrf.mxu0
    %v1865 = vpop.f32.mrf.mxu0
    %1866 = vdwg.mxu0
    %v1867 = vunpack.c.l.b16 %v1695
    %v1868 = vpack.c.b16 %v1867, %v1867
    %1869 = vrot.lane.b32.xlu0 %v1868, 64
    %v1870 = vpop.permute.xlu0 %1869
    %v1872 = vsel %vm212, %v1695, 0
    %v1875 = vsel %vm212, %v1870, 0
    %1877 = vmatprep.subr.bf16.mxu0 0
    %1878 = vmatpush1.bf16.xpose.msra.mxu0 0
    %1879 = vmatprep.subr.bf16.mxu0 0
    %1880 = vmatpush1.bf16.xpose.msra.mxu0 0
    %1881 = vmatprep.subr.bf16.mxu0 0
    %1882 = vmatpush1.bf16.xpose.msra.mxu0 0
    %1883 = vmatprep.subr.bf16.mxu0 0
    %1884 = vmatpush1.bf16.xpose.msra.mxu0 0
    %1885 = vmatprep.subr.bf16.mxu0 0
    %1886 = vmatpush1.bf16.xpose.msra.mxu0 0
    %1887 = vmatprep.subr.bf16.mxu0 0
    %1888 = vmatpush1.bf16.xpose.msra.mxu0 0
    %1889 = vmatprep.subr.bf16.mxu0 0
    %1890 = vmatpush1.bf16.xpose.msra.mxu0 0
    %1891 = vmatprep.subr.bf16.mxu0 0
    %1892 = vmatpush1.bf16.xpose.msra.mxu0 %v1875
    %1893 = vmatprep.subr.bf16.mxu0 0
    %1894 = vmatpush2.bf16.xpose.msra.mxu0 0
    %1895 = vmatprep.subr.bf16.mxu0 0
    %1896 = vmatpush2.bf16.xpose.msra.mxu0 0
    %1897 = vmatprep.subr.bf16.mxu0 0
    %1898 = vmatpush2.bf16.xpose.msra.mxu0 0
    %1899 = vmatprep.subr.bf16.mxu0 0
    %1900 = vmatpush2.bf16.xpose.msra.mxu0 0
    %1901 = vmatprep.subr.bf16.mxu0 0
    %1902 = vmatpush2.bf16.xpose.msra.mxu0 0
    %1903 = vmatprep.subr.bf16.mxu0 0
    %1904 = vmatpush2.bf16.xpose.msra.mxu0 0
    %1905 = vmatprep.subr.bf16.mxu0 0
    %1906 = vmatpush2.bf16.xpose.msra.mxu0 0
    %1907 = vmatprep.subr.bf16.mxu0 0
    %1908 = vmatpush2.bf16.xpose.msra.mxu0 0
    %1909 = vmatprep.mubr.bf16.mxu0 0
    %1910 = vmatmul.mubr.bf16.gmra.mxu0 %v1872
    %v1911 = vpop.f32.mrf.mxu0
    %v1912 = vadd.f32 %v24, %v1911
    %v1913 = vpop.f32.mrf.mxu0
    %v1914 = vpop.f32.mrf.mxu0
    %v1915 = vpop.f32.mrf.mxu0
    %1916 = vdwg.mxu0
    %v1917 = vunpack.c.l.b16 %v1697
    %v1918 = vpack.c.b16 %v1917, %v1917
    %1919 = vrot.lane.b32.xlu0 %v1918, 64
    %v1920 = vpop.permute.xlu0 %1919
    %v1922 = vsel %vm212, %v1697, 0
    %v1925 = vsel %vm212, %v1920, 0
    %1927 = vmatprep.subr.bf16.mxu0 0
    %1928 = vmatpush1.bf16.xpose.msra.mxu0 0
    %1929 = vmatprep.subr.bf16.mxu0 0
    %1930 = vmatpush1.bf16.xpose.msra.mxu0 0
    %1931 = vmatprep.subr.bf16.mxu0 0
    %1932 = vmatpush1.bf16.xpose.msra.mxu0 0
    %1933 = vmatprep.subr.bf16.mxu0 0
    %1934 = vmatpush1.bf16.xpose.msra.mxu0 0
    %1935 = vmatprep.subr.bf16.mxu0 0
    %1936 = vmatpush1.bf16.xpose.msra.mxu0 0
    %1937 = vmatprep.subr.bf16.mxu0 0
    %1938 = vmatpush1.bf16.xpose.msra.mxu0 0
    %1939 = vmatprep.subr.bf16.mxu0 0
    %1940 = vmatpush1.bf16.xpose.msra.mxu0 0
    %1941 = vmatprep.subr.bf16.mxu0 0
    %1942 = vmatpush1.bf16.xpose.msra.mxu0 %v1925
    %1943 = vmatprep.subr.bf16.mxu0 0
    %1944 = vmatpush2.bf16.xpose.msra.mxu0 0
    %1945 = vmatprep.subr.bf16.mxu0 0
    %1946 = vmatpush2.bf16.xpose.msra.mxu0 0
    %1947 = vmatprep.subr.bf16.mxu0 0
    %1948 = vmatpush2.bf16.xpose.msra.mxu0 0
    %1949 = vmatprep.subr.bf16.mxu0 0
    %1950 = vmatpush2.bf16.xpose.msra.mxu0 0
    %1951 = vmatprep.subr.bf16.mxu0 0
    %1952 = vmatpush2.bf16.xpose.msra.mxu0 0
    %1953 = vmatprep.subr.bf16.mxu0 0
    %1954 = vmatpush2.bf16.xpose.msra.mxu0 0
    %1955 = vmatprep.subr.bf16.mxu0 0
    %1956 = vmatpush2.bf16.xpose.msra.mxu0 0
    %1957 = vmatprep.subr.bf16.mxu0 0
    %1958 = vmatpush2.bf16.xpose.msra.mxu0 0
    %1959 = vmatprep.mubr.bf16.mxu0 0
    %1960 = vmatmul.mubr.bf16.gmra.mxu0 %v1922
    %v1961 = vpop.f32.mrf.mxu0
    %v1962 = vadd.f32 %v24, %v1961
    %v1963 = vpop.f32.mrf.mxu0
    %v1964 = vpop.f32.mrf.mxu0
    %v1965 = vpop.f32.mrf.mxu0
    %1966 = vdwg.mxu0
    %v1967 = vunpack.c.l.b16 %v1699
    %v1968 = vpack.c.b16 %v1967, %v1967
    %1969 = vrot.lane.b32.xlu0 %v1968, 64
    %v1970 = vpop.permute.xlu0 %1969
    %v1972 = vsel %vm212, %v1699, 0
    %v1975 = vsel %vm212, %v1970, 0
    %1977 = vmatprep.subr.bf16.mxu0 0
    %1978 = vmatpush1.bf16.xpose.msra.mxu0 0
    %1979 = vmatprep.subr.bf16.mxu0 0
    %1980 = vmatpush1.bf16.xpose.msra.mxu0 0
    %1981 = vmatprep.subr.bf16.mxu0 0
    %1982 = vmatpush1.bf16.xpose.msra.mxu0 0
    %1983 = vmatprep.subr.bf16.mxu0 0
    %1984 = vmatpush1.bf16.xpose.msra.mxu0 0
    %1985 = vmatprep.subr.bf16.mxu0 0
    %1986 = vmatpush1.bf16.xpose.msra.mxu0 0
    %1987 = vmatprep.subr.bf16.mxu0 0
    %1988 = vmatpush1.bf16.xpose.msra.mxu0 0
    %1989 = vmatprep.subr.bf16.mxu0 0
    %1990 = vmatpush1.bf16.xpose.msra.mxu0 0
    %1991 = vmatprep.subr.bf16.mxu0 0
    %1992 = vmatpush1.bf16.xpose.msra.mxu0 %v1975
    %1993 = vmatprep.subr.bf16.mxu0 0
    %1994 = vmatpush2.bf16.xpose.msra.mxu0 0
    %1995 = vmatprep.subr.bf16.mxu0 0
    %1996 = vmatpush2.bf16.xpose.msra.mxu0 0
    %1997 = vmatprep.subr.bf16.mxu0 0
    %1998 = vmatpush2.bf16.xpose.msra.mxu0 0
    %1999 = vmatprep.subr.bf16.mxu0 0
    %2000 = vmatpush2.bf16.xpose.msra.mxu0 0
    %2001 = vmatprep.subr.bf16.mxu0 0
    %2002 = vmatpush2.bf16.xpose.msra.mxu0 0
    %2003 = vmatprep.subr.bf16.mxu0 0
    %2004 = vmatpush2.bf16.xpose.msra.mxu0 0
    %2005 = vmatprep.subr.bf16.mxu0 0
    %2006 = vmatpush2.bf16.xpose.msra.mxu0 0
    %2007 = vmatprep.subr.bf16.mxu0 0
    %2008 = vmatpush2.bf16.xpose.msra.mxu0 0
    %2009 = vmatprep.mubr.bf16.mxu0 0
    %2010 = vmatmul.mubr.bf16.gmra.mxu0 %v1972
    %v2011 = vpop.f32.mrf.mxu0
    %v2012 = vadd.f32 %v24, %v2011
    %v2013 = vpop.f32.mrf.mxu0
    %v2014 = vpop.f32.mrf.mxu0
    %v2015 = vpop.f32.mrf.mxu0
    %2016 = vdwg.mxu0
    %v2017 = vunpack.c.l.b16 %v1701
    %v2018 = vpack.c.b16 %v2017, %v2017
    %2019 = vrot.lane.b32.xlu0 %v2018, 64
    %v2020 = vpop.permute.xlu0 %2019
    %v2022 = vsel %vm212, %v1701, 0
    %v2025 = vsel %vm212, %v2020, 0
    %2027 = vmatprep.subr.bf16.mxu0 0
    %2028 = vmatpush1.bf16.xpose.msra.mxu0 0
    %2029 = vmatprep.subr.bf16.mxu0 0
    %2030 = vmatpush1.bf16.xpose.msra.mxu0 0
    %2031 = vmatprep.subr.bf16.mxu0 0
    %2032 = vmatpush1.bf16.xpose.msra.mxu0 0
    %2033 = vmatprep.subr.bf16.mxu0 0
    %2034 = vmatpush1.bf16.xpose.msra.mxu0 0
    %2035 = vmatprep.subr.bf16.mxu0 0
    %2036 = vmatpush1.bf16.xpose.msra.mxu0 0
    %2037 = vmatprep.subr.bf16.mxu0 0
    %2038 = vmatpush1.bf16.xpose.msra.mxu0 0
    %2039 = vmatprep.subr.bf16.mxu0 0
    %2040 = vmatpush1.bf16.xpose.msra.mxu0 0
    %2041 = vmatprep.subr.bf16.mxu0 0
    %2042 = vmatpush1.bf16.xpose.msra.mxu0 %v2025
    %2043 = vmatprep.subr.bf16.mxu0 0
    %2044 = vmatpush2.bf16.xpose.msra.mxu0 0
    %2045 = vmatprep.subr.bf16.mxu0 0
    %2046 = vmatpush2.bf16.xpose.msra.mxu0 0
    %2047 = vmatprep.subr.bf16.mxu0 0
    %2048 = vmatpush2.bf16.xpose.msra.mxu0 0
    %2049 = vmatprep.subr.bf16.mxu0 0
    %2050 = vmatpush2.bf16.xpose.msra.mxu0 0
    %2051 = vmatprep.subr.bf16.mxu0 0
    %2052 = vmatpush2.bf16.xpose.msra.mxu0 0
    %2053 = vmatprep.subr.bf16.mxu0 0
    %2054 = vmatpush2.bf16.xpose.msra.mxu0 0
    %2055 = vmatprep.subr.bf16.mxu0 0
    %2056 = vmatpush2.bf16.xpose.msra.mxu0 0
    %2057 = vmatprep.subr.bf16.mxu0 0
    %2058 = vmatpush2.bf16.xpose.msra.mxu0 0
    %2059 = vmatprep.mubr.bf16.mxu0 0
    %2060 = vmatmul.mubr.bf16.gmra.mxu0 %v2022
    %v2061 = vpop.f32.mrf.mxu0
    %v2062 = vadd.f32 %v24, %v2061
    %v2063 = vpop.f32.mrf.mxu0
    %v2064 = vpop.f32.mrf.mxu0
    %v2065 = vpop.f32.mrf.mxu0
    %2066 = vdwg.mxu0
    %v2067 = vunpack.c.l.b16 %v1703
    %v2068 = vpack.c.b16 %v2067, %v2067
    %2069 = vrot.lane.b32.xlu0 %v2068, 64
    %v2070 = vpop.permute.xlu0 %2069
    %v2072 = vsel %vm212, %v1703, 0
    %v2075 = vsel %vm212, %v2070, 0
    %2077 = vmatprep.subr.bf16.mxu0 0
    %2078 = vmatpush1.bf16.xpose.msra.mxu0 0
    %2079 = vmatprep.subr.bf16.mxu0 0
    %2080 = vmatpush1.bf16.xpose.msra.mxu0 0
    %2081 = vmatprep.subr.bf16.mxu0 0
    %2082 = vmatpush1.bf16.xpose.msra.mxu0 0
    %2083 = vmatprep.subr.bf16.mxu0 0
    %2084 = vmatpush1.bf16.xpose.msra.mxu0 0
    %2085 = vmatprep.subr.bf16.mxu0 0
    %2086 = vmatpush1.bf16.xpose.msra.mxu0 0
    %2087 = vmatprep.subr.bf16.mxu0 0
    %2088 = vmatpush1.bf16.xpose.msra.mxu0 0
    %2089 = vmatprep.subr.bf16.mxu0 0
    %2090 = vmatpush1.bf16.xpose.msra.mxu0 0
    %2091 = vmatprep.subr.bf16.mxu0 0
    %2092 = vmatpush1.bf16.xpose.msra.mxu0 %v2075
    %2093 = vmatprep.subr.bf16.mxu0 0
    %2094 = vmatpush2.bf16.xpose.msra.mxu0 0
    %2095 = vmatprep.subr.bf16.mxu0 0
    %2096 = vmatpush2.bf16.xpose.msra.mxu0 0
    %2097 = vmatprep.subr.bf16.mxu0 0
    %2098 = vmatpush2.bf16.xpose.msra.mxu0 0
    %2099 = vmatprep.subr.bf16.mxu0 0
    %2100 = vmatpush2.bf16.xpose.msra.mxu0 0
    %2101 = vmatprep.subr.bf16.mxu0 0
    %2102 = vmatpush2.bf16.xpose.msra.mxu0 0
    %2103 = vmatprep.subr.bf16.mxu0 0
    %2104 = vmatpush2.bf16.xpose.msra.mxu0 0
    %2105 = vmatprep.subr.bf16.mxu0 0
    %2106 = vmatpush2.bf16.xpose.msra.mxu0 0
    %2107 = vmatprep.subr.bf16.mxu0 0
    %2108 = vmatpush2.bf16.xpose.msra.mxu0 0
    %2109 = vmatprep.mubr.bf16.mxu0 0
    %2110 = vmatmul.mubr.bf16.gmra.mxu0 %v2072
    %v2111 = vpop.f32.mrf.mxu0
    %v2112 = vadd.f32 %v24, %v2111
    %v2113 = vpop.f32.mrf.mxu0
    %v2114 = vpop.f32.mrf.mxu0
    %v2115 = vpop.f32.mrf.mxu0
    %2116 = vdwg.mxu0
    %v2117 = vsel %vm607, %v1764, -inf
    %2118 = vmax.xlane.f32.xlu0 %v2117
    %v2119 = vpop.xlane.xlu0 %2118
    %v2120 = vsel %vm607, %v1812, -inf
    %2121 = vmax.xlane.f32.xlu0 %v2120
    %v2122 = vpop.xlane.xlu0 %2121
    %v2123 = vsel %vm607, %v1862, -inf
    %2124 = vmax.xlane.f32.xlu0 %v2123
    %v2125 = vpop.xlane.xlu0 %2124
    %v2126 = vsel %vm607, %v1912, -inf
    %2127 = vmax.xlane.f32.xlu0 %v2126
    %v2128 = vpop.xlane.xlu0 %2127
    %v2129 = vsel %vm607, %v1962, -inf
    %2130 = vmax.xlane.f32.xlu0 %v2129
    %v2131 = vpop.xlane.xlu0 %2130
    %v2132 = vsel %vm607, %v2012, -inf
    %2133 = vmax.xlane.f32.xlu0 %v2132
    %v2134 = vpop.xlane.xlu0 %2133
    %v2135 = vsel %vm607, %v2062, -inf
    %2136 = vmax.xlane.f32.xlu0 %v2135
    %v2137 = vpop.xlane.xlu0 %2136
    %v2138 = vsel %vm607, %v2112, -inf
    %2139 = vmax.xlane.f32.xlu0 %v2138
    %v2140 = vpop.xlane.xlu0 %2139
    %v2141 = vsub.f32 %v1764, %v2119
    %v2142 = vsub.f32 %v1812, %v2122
    %v2143 = vsub.f32 %v1862, %v2125
    %v2144 = vsub.f32 %v1912, %v2128
    %v2145 = vsub.f32 %v1962, %v2131
    %v2146 = vsub.f32 %v2012, %v2134
    %v2147 = vsub.f32 %v2062, %v2137
    %v2148 = vsub.f32 %v2112, %v2140
    %v2149 = vmul.f32 %v2141, 1.442695
    %v2150 = vpow.pop %v2149
    %v2151 = vmul.f32 %v2142, 1.442695
    %v2152 = vpow.pop %v2151
    %v2153 = vmul.f32 %v2143, 1.442695
    %v2154 = vpow.pop %v2153
    %v2155 = vmul.f32 %v2144, 1.442695
    %v2156 = vpow.pop %v2155
    %v2157 = vmul.f32 %v2145, 1.442695
    %v2158 = vpow.pop %v2157
    %v2159 = vmul.f32 %v2146, 1.442695
    %v2160 = vpow.pop %v2159
    %v2161 = vmul.f32 %v2147, 1.442695
    %v2162 = vpow.pop %v2161
    %v2163 = vmul.f32 %v2148, 1.442695
    %v2164 = vpow.pop %v2163
    %v2165 = vsel %vm607, %v2150, 0.0
    %2166 = vadd.xlane.f32.xlu0 %v2165
    %v2167 = vpop.xlane.xlu0 %2166
    %v2168 = vsel %vm607, %v2152, 0.0
    %2169 = vadd.xlane.f32.xlu0 %v2168
    %v2170 = vpop.xlane.xlu0 %2169
    %v2171 = vsel %vm607, %v2154, 0.0
    %2172 = vadd.xlane.f32.xlu0 %v2171
    %v2173 = vpop.xlane.xlu0 %2172
    %v2174 = vsel %vm607, %v2156, 0.0
    %2175 = vadd.xlane.f32.xlu0 %v2174
    %v2176 = vpop.xlane.xlu0 %2175
    %v2177 = vsel %vm607, %v2158, 0.0
    %2178 = vadd.xlane.f32.xlu0 %v2177
    %v2179 = vpop.xlane.xlu0 %2178
    %v2180 = vsel %vm607, %v2160, 0.0
    %2181 = vadd.xlane.f32.xlu0 %v2180
    %v2182 = vpop.xlane.xlu0 %2181
    %v2183 = vsel %vm607, %v2162, 0.0
    %2184 = vadd.xlane.f32.xlu0 %v2183
    %v2185 = vpop.xlane.xlu0 %2184
    %v2186 = vsel %vm607, %v2164, 0.0
    %2187 = vadd.xlane.f32.xlu0 %v2186
    %v2188 = vpop.xlane.xlu0 %2187
    %v2189 = vrcp.pop %v2167
    %v2190 = vrcp.pop %v2170
    %v2191 = vrcp.pop %v2173
    %v2192 = vrcp.pop %v2176
    %v2193 = vrcp.pop %v2179
    %v2194 = vrcp.pop %v2182
    %v2195 = vrcp.pop %v2185
    %v2196 = vrcp.pop %v2188
    %v2197 = vmul.f32 %v2150, %v2189
    %v2198 = vmul.f32 %v2152, %v2190
    %v2199 = vmul.f32 %v2154, %v2191
    %v2200 = vmul.f32 %v2156, %v2192
    %v2201 = vmul.f32 %v2158, %v2193
    %v2202 = vmul.f32 %v2160, %v2194
    %v2203 = vmul.f32 %v2162, %v2195
    %v2204 = vmul.f32 %v2164, %v2196
    %v2205 = vpack.c.bf16 %v2197, %v2197
    %v2206 = vpack.c.bf16 %v2198, %v2198
    %v2207 = vpack.c.bf16 %v2199, %v2199
    %v2208 = vpack.c.bf16 %v2200, %v2200
    %v2209 = vpack.c.bf16 %v2201, %v2201
    %v2210 = vpack.c.bf16 %v2202, %v2202
    %v2211 = vpack.c.bf16 %v2203, %v2203
    %v2212 = vpack.c.bf16 %v2204, %v2204
    %v2214 = vsel %vm607, %v2205, 0
    %v2217 = vsel %vm707, %v1707, 0
    %2219 = vmatprep.subr.bf16.mxu0 0
    %2220 = vmatpush1.bf16.msra.mxu0 0
    %2221 = vmatprep.subr.bf16.mxu0 0
    %2222 = vmatpush1.bf16.msra.mxu0 0
    %2223 = vmatprep.subr.bf16.mxu0 0
    %2224 = vmatpush1.bf16.msra.mxu0 0
    %2225 = vmatprep.subr.bf16.mxu0 0
    %2226 = vmatpush1.bf16.msra.mxu0 0
    %2227 = vmatprep.subr.bf16.mxu0 0
    %2228 = vmatpush1.bf16.msra.mxu0 0
    %2229 = vmatprep.subr.bf16.mxu0 0
    %2230 = vmatpush1.bf16.msra.mxu0 0
    %2231 = vmatprep.subr.bf16.mxu0 0
    %2232 = vmatpush1.bf16.msra.mxu0 0
    %2233 = vmatprep.subr.bf16.mxu0 0
    %2234 = vmatpush1.bf16.msra.mxu0 %v2217
    %2235 = vmatprep.subr.bf16.mxu0 0
    %2236 = vmatpush2.bf16.msra.mxu0 0
    %2237 = vmatprep.subr.bf16.mxu0 0
    %2238 = vmatpush2.bf16.msra.mxu0 0
    %2239 = vmatprep.subr.bf16.mxu0 0
    %2240 = vmatpush2.bf16.msra.mxu0 0
    %2241 = vmatprep.subr.bf16.mxu0 0
    %2242 = vmatpush2.bf16.msra.mxu0 0
    %2243 = vmatprep.subr.bf16.mxu0 0
    %2244 = vmatpush2.bf16.msra.mxu0 0
    %2245 = vmatprep.subr.bf16.mxu0 0
    %2246 = vmatpush2.bf16.msra.mxu0 0
    %2247 = vmatprep.subr.bf16.mxu0 0
    %2248 = vmatpush2.bf16.msra.mxu0 0
    %2249 = vmatprep.subr.bf16.mxu0 0
    %2250 = vmatpush2.bf16.msra.mxu0 0
    %2251 = vmatprep.mubr.bf16.mxu0 0
    %2252 = vmatmul.mubr.bf16.gmra.mxu0 %v2214
    %v2253 = vpop.f32.mrf.mxu0
    %v2254 = vadd.f32 0.0, %v2253
    %v2255 = vpop.f32.mrf.mxu0
    %v2256 = vpop.f32.mrf.mxu0
    %v2257 = vpop.f32.mrf.mxu0
    %2258 = vdwg.mxu0
    %v2260 = vsel %vm607, %v2206, 0
    %v2263 = vsel %vm707, %v1708, 0
    %2265 = vmatprep.subr.bf16.mxu0 0
    %2266 = vmatpush1.bf16.msra.mxu0 0
    %2267 = vmatprep.subr.bf16.mxu0 0
    %2268 = vmatpush1.bf16.msra.mxu0 0
    %2269 = vmatprep.subr.bf16.mxu0 0
    %2270 = vmatpush1.bf16.msra.mxu0 0
    %2271 = vmatprep.subr.bf16.mxu0 0
    %2272 = vmatpush1.bf16.msra.mxu0 0
    %2273 = vmatprep.subr.bf16.mxu0 0
    %2274 = vmatpush1.bf16.msra.mxu0 0
    %2275 = vmatprep.subr.bf16.mxu0 0
    %2276 = vmatpush1.bf16.msra.mxu0 0
    %2277 = vmatprep.subr.bf16.mxu0 0
    %2278 = vmatpush1.bf16.msra.mxu0 0
    %2279 = vmatprep.subr.bf16.mxu0 0
    %2280 = vmatpush1.bf16.msra.mxu0 %v2263
    %2281 = vmatprep.subr.bf16.mxu0 0
    %2282 = vmatpush2.bf16.msra.mxu0 0
    %2283 = vmatprep.subr.bf16.mxu0 0
    %2284 = vmatpush2.bf16.msra.mxu0 0
    %2285 = vmatprep.subr.bf16.mxu0 0
    %2286 = vmatpush2.bf16.msra.mxu0 0
    %2287 = vmatprep.subr.bf16.mxu0 0
    %2288 = vmatpush2.bf16.msra.mxu0 0
    %2289 = vmatprep.subr.bf16.mxu0 0
    %2290 = vmatpush2.bf16.msra.mxu0 0
    %2291 = vmatprep.subr.bf16.mxu0 0
    %2292 = vmatpush2.bf16.msra.mxu0 0
    %2293 = vmatprep.subr.bf16.mxu0 0
    %2294 = vmatpush2.bf16.msra.mxu0 0
    %2295 = vmatprep.subr.bf16.mxu0 0
    %2296 = vmatpush2.bf16.msra.mxu0 0
    %2297 = vmatprep.mubr.bf16.mxu0 0
    %2298 = vmatmul.mubr.bf16.gmra.mxu0 %v2260
    %v2299 = vpop.f32.mrf.mxu0
    %v2300 = vadd.f32 0.0, %v2299
    %v2301 = vpop.f32.mrf.mxu0
    %v2302 = vpop.f32.mrf.mxu0
    %v2303 = vpop.f32.mrf.mxu0
    %2304 = vdwg.mxu0
    %v2306 = vsel %vm607, %v2207, 0
    %v2309 = vsel %vm707, %v1710, 0
    %2311 = vmatprep.subr.bf16.mxu0 0
    %2312 = vmatpush1.bf16.msra.mxu0 0
    %2313 = vmatprep.subr.bf16.mxu0 0
    %2314 = vmatpush1.bf16.msra.mxu0 0
    %2315 = vmatprep.subr.bf16.mxu0 0
    %2316 = vmatpush1.bf16.msra.mxu0 0
    %2317 = vmatprep.subr.bf16.mxu0 0
    %2318 = vmatpush1.bf16.msra.mxu0 0
    %2319 = vmatprep.subr.bf16.mxu0 0
    %2320 = vmatpush1.bf16.msra.mxu0 0
    %2321 = vmatprep.subr.bf16.mxu0 0
    %2322 = vmatpush1.bf16.msra.mxu0 0
    %2323 = vmatprep.subr.bf16.mxu0 0
    %2324 = vmatpush1.bf16.msra.mxu0 0
    %2325 = vmatprep.subr.bf16.mxu0 0
    %2326 = vmatpush1.bf16.msra.mxu0 %v2309
    %2327 = vmatprep.subr.bf16.mxu0 0
    %2328 = vmatpush2.bf16.msra.mxu0 0
    %2329 = vmatprep.subr.bf16.mxu0 0
    %2330 = vmatpush2.bf16.msra.mxu0 0
    %2331 = vmatprep.subr.bf16.mxu0 0
    %2332 = vmatpush2.bf16.msra.mxu0 0
    %2333 = vmatprep.subr.bf16.mxu0 0
    %2334 = vmatpush2.bf16.msra.mxu0 0
    %2335 = vmatprep.subr.bf16.mxu0 0
    %2336 = vmatpush2.bf16.msra.mxu0 0
    %2337 = vmatprep.subr.bf16.mxu0 0
    %2338 = vmatpush2.bf16.msra.mxu0 0
    %2339 = vmatprep.subr.bf16.mxu0 0
    %2340 = vmatpush2.bf16.msra.mxu0 0
    %2341 = vmatprep.subr.bf16.mxu0 0
    %2342 = vmatpush2.bf16.msra.mxu0 0
    %2343 = vmatprep.mubr.bf16.mxu0 0
    %2344 = vmatmul.mubr.bf16.gmra.mxu0 %v2306
    %v2345 = vpop.f32.mrf.mxu0
    %v2346 = vadd.f32 0.0, %v2345
    %v2347 = vpop.f32.mrf.mxu0
    %v2348 = vpop.f32.mrf.mxu0
    %v2349 = vpop.f32.mrf.mxu0
    %2350 = vdwg.mxu0
    %v2352 = vsel %vm607, %v2208, 0
    %v2355 = vsel %vm707, %v1712, 0
    %2357 = vmatprep.subr.bf16.mxu0 0
    %2358 = vmatpush1.bf16.msra.mxu0 0
    %2359 = vmatprep.subr.bf16.mxu0 0
    %2360 = vmatpush1.bf16.msra.mxu0 0
    %2361 = vmatprep.subr.bf16.mxu0 0
    %2362 = vmatpush1.bf16.msra.mxu0 0
    %2363 = vmatprep.subr.bf16.mxu0 0
    %2364 = vmatpush1.bf16.msra.mxu0 0
    %2365 = vmatprep.subr.bf16.mxu0 0
    %2366 = vmatpush1.bf16.msra.mxu0 0
    %2367 = vmatprep.subr.bf16.mxu0 0
    %2368 = vmatpush1.bf16.msra.mxu0 0
    %2369 = vmatprep.subr.bf16.mxu0 0
    %2370 = vmatpush1.bf16.msra.mxu0 0
    %2371 = vmatprep.subr.bf16.mxu0 0
    %2372 = vmatpush1.bf16.msra.mxu0 %v2355
    %2373 = vmatprep.subr.bf16.mxu0 0
    %2374 = vmatpush2.bf16.msra.mxu0 0
    %2375 = vmatprep.subr.bf16.mxu0 0
    %2376 = vmatpush2.bf16.msra.mxu0 0
    %2377 = vmatprep.subr.bf16.mxu0 0
    %2378 = vmatpush2.bf16.msra.mxu0 0
    %2379 = vmatprep.subr.bf16.mxu0 0
    %2380 = vmatpush2.bf16.msra.mxu0 0
    %2381 = vmatprep.subr.bf16.mxu0 0
    %2382 = vmatpush2.bf16.msra.mxu0 0
    %2383 = vmatprep.subr.bf16.mxu0 0
    %2384 = vmatpush2.bf16.msra.mxu0 0
    %2385 = vmatprep.subr.bf16.mxu0 0
    %2386 = vmatpush2.bf16.msra.mxu0 0
    %2387 = vmatprep.subr.bf16.mxu0 0
    %2388 = vmatpush2.bf16.msra.mxu0 0
    %2389 = vmatprep.mubr.bf16.mxu0 0
    %2390 = vmatmul.mubr.bf16.gmra.mxu0 %v2352
    %v2391 = vpop.f32.mrf.mxu0
    %v2392 = vadd.f32 0.0, %v2391
    %v2393 = vpop.f32.mrf.mxu0
    %v2394 = vpop.f32.mrf.mxu0
    %v2395 = vpop.f32.mrf.mxu0
    %2396 = vdwg.mxu0
    %v2398 = vsel %vm607, %v2209, 0
    %v2401 = vsel %vm707, %v1714, 0
    %2403 = vmatprep.subr.bf16.mxu0 0
    %2404 = vmatpush1.bf16.msra.mxu0 0
    %2405 = vmatprep.subr.bf16.mxu0 0
    %2406 = vmatpush1.bf16.msra.mxu0 0
    %2407 = vmatprep.subr.bf16.mxu0 0
    %2408 = vmatpush1.bf16.msra.mxu0 0
    %2409 = vmatprep.subr.bf16.mxu0 0
    %2410 = vmatpush1.bf16.msra.mxu0 0
    %2411 = vmatprep.subr.bf16.mxu0 0
    %2412 = vmatpush1.bf16.msra.mxu0 0
    %2413 = vmatprep.subr.bf16.mxu0 0
    %2414 = vmatpush1.bf16.msra.mxu0 0
    %2415 = vmatprep.subr.bf16.mxu0 0
    %2416 = vmatpush1.bf16.msra.mxu0 0
    %2417 = vmatprep.subr.bf16.mxu0 0
    %2418 = vmatpush1.bf16.msra.mxu0 %v2401
    %2419 = vmatprep.subr.bf16.mxu0 0
    %2420 = vmatpush2.bf16.msra.mxu0 0
    %2421 = vmatprep.subr.bf16.mxu0 0
    %2422 = vmatpush2.bf16.msra.mxu0 0
    %2423 = vmatprep.subr.bf16.mxu0 0
    %2424 = vmatpush2.bf16.msra.mxu0 0
    %2425 = vmatprep.subr.bf16.mxu0 0
    %2426 = vmatpush2.bf16.msra.mxu0 0
    %2427 = vmatprep.subr.bf16.mxu0 0
    %2428 = vmatpush2.bf16.msra.mxu0 0
    %2429 = vmatprep.subr.bf16.mxu0 0
    %2430 = vmatpush2.bf16.msra.mxu0 0
    %2431 = vmatprep.subr.bf16.mxu0 0
    %2432 = vmatpush2.bf16.msra.mxu0 0
    %2433 = vmatprep.subr.bf16.mxu0 0
    %2434 = vmatpush2.bf16.msra.mxu0 0
    %2435 = vmatprep.mubr.bf16.mxu0 0
    %2436 = vmatmul.mubr.bf16.gmra.mxu0 %v2398
    %v2437 = vpop.f32.mrf.mxu0
    %v2438 = vadd.f32 0.0, %v2437
    %v2439 = vpop.f32.mrf.mxu0
    %v2440 = vpop.f32.mrf.mxu0
    %v2441 = vpop.f32.mrf.mxu0
    %2442 = vdwg.mxu0
    %v2444 = vsel %vm607, %v2210, 0
    %v2447 = vsel %vm707, %v1716, 0
    %2449 = vmatprep.subr.bf16.mxu0 0
    %2450 = vmatpush1.bf16.msra.mxu0 0
    %2451 = vmatprep.subr.bf16.mxu0 0
    %2452 = vmatpush1.bf16.msra.mxu0 0
    %2453 = vmatprep.subr.bf16.mxu0 0
    %2454 = vmatpush1.bf16.msra.mxu0 0
    %2455 = vmatprep.subr.bf16.mxu0 0
    %2456 = vmatpush1.bf16.msra.mxu0 0
    %2457 = vmatprep.subr.bf16.mxu0 0
    %2458 = vmatpush1.bf16.msra.mxu0 0
    %2459 = vmatprep.subr.bf16.mxu0 0
    %2460 = vmatpush1.bf16.msra.mxu0 0
    %2461 = vmatprep.subr.bf16.mxu0 0
    %2462 = vmatpush1.bf16.msra.mxu0 0
    %2463 = vmatprep.subr.bf16.mxu0 0
    %2464 = vmatpush1.bf16.msra.mxu0 %v2447
    %2465 = vmatprep.subr.bf16.mxu0 0
    %2466 = vmatpush2.bf16.msra.mxu0 0
    %2467 = vmatprep.subr.bf16.mxu0 0
    %2468 = vmatpush2.bf16.msra.mxu0 0
    %2469 = vmatprep.subr.bf16.mxu0 0
    %2470 = vmatpush2.bf16.msra.mxu0 0
    %2471 = vmatprep.subr.bf16.mxu0 0
    %2472 = vmatpush2.bf16.msra.mxu0 0
    %2473 = vmatprep.subr.bf16.mxu0 0
    %2474 = vmatpush2.bf16.msra.mxu0 0
    %2475 = vmatprep.subr.bf16.mxu0 0
    %2476 = vmatpush2.bf16.msra.mxu0 0
    %2477 = vmatprep.subr.bf16.mxu0 0
    %2478 = vmatpush2.bf16.msra.mxu0 0
    %2479 = vmatprep.subr.bf16.mxu0 0
    %2480 = vmatpush2.bf16.msra.mxu0 0
    %2481 = vmatprep.mubr.bf16.mxu0 0
    %2482 = vmatmul.mubr.bf16.gmra.mxu0 %v2444
    %v2483 = vpop.f32.mrf.mxu0
    %v2484 = vadd.f32 0.0, %v2483
    %v2485 = vpop.f32.mrf.mxu0
    %v2486 = vpop.f32.mrf.mxu0
    %v2487 = vpop.f32.mrf.mxu0
    %2488 = vdwg.mxu0
    %v2490 = vsel %vm607, %v2211, 0
    %v2493 = vsel %vm707, %v1718, 0
    %2495 = vmatprep.subr.bf16.mxu0 0
    %2496 = vmatpush1.bf16.msra.mxu0 0
    %2497 = vmatprep.subr.bf16.mxu0 0
    %2498 = vmatpush1.bf16.msra.mxu0 0
    %2499 = vmatprep.subr.bf16.mxu0 0
    %2500 = vmatpush1.bf16.msra.mxu0 0
    %2501 = vmatprep.subr.bf16.mxu0 0
    %2502 = vmatpush1.bf16.msra.mxu0 0
    %2503 = vmatprep.subr.bf16.mxu0 0
    %2504 = vmatpush1.bf16.msra.mxu0 0
    %2505 = vmatprep.subr.bf16.mxu0 0
    %2506 = vmatpush1.bf16.msra.mxu0 0
    %2507 = vmatprep.subr.bf16.mxu0 0
    %2508 = vmatpush1.bf16.msra.mxu0 0
    %2509 = vmatprep.subr.bf16.mxu0 0
    %2510 = vmatpush1.bf16.msra.mxu0 %v2493
    %2511 = vmatprep.subr.bf16.mxu0 0
    %2512 = vmatpush2.bf16.msra.mxu0 0
    %2513 = vmatprep.subr.bf16.mxu0 0
    %2514 = vmatpush2.bf16.msra.mxu0 0
    %2515 = vmatprep.subr.bf16.mxu0 0
    %2516 = vmatpush2.bf16.msra.mxu0 0
    %2517 = vmatprep.subr.bf16.mxu0 0
    %2518 = vmatpush2.bf16.msra.mxu0 0
    %2519 = vmatprep.subr.bf16.mxu0 0
    %2520 = vmatpush2.bf16.msra.mxu0 0
    %2521 = vmatprep.subr.bf16.mxu0 0
    %2522 = vmatpush2.bf16.msra.mxu0 0
    %2523 = vmatprep.subr.bf16.mxu0 0
    %2524 = vmatpush2.bf16.msra.mxu0 0
    %2525 = vmatprep.subr.bf16.mxu0 0
    %2526 = vmatpush2.bf16.msra.mxu0 0
    %2527 = vmatprep.mubr.bf16.mxu0 0
    %2528 = vmatmul.mubr.bf16.gmra.mxu0 %v2490
    %v2529 = vpop.f32.mrf.mxu0
    %v2530 = vadd.f32 0.0, %v2529
    %v2531 = vpop.f32.mrf.mxu0
    %v2532 = vpop.f32.mrf.mxu0
    %v2533 = vpop.f32.mrf.mxu0
    %2534 = vdwg.mxu0
    %v2536 = vsel %vm607, %v2212, 0
    %v2539 = vsel %vm707, %v1720, 0
    %2541 = vmatprep.subr.bf16.mxu0 0
    %2542 = vmatpush1.bf16.msra.mxu0 0
    %2543 = vmatprep.subr.bf16.mxu0 0
    %2544 = vmatpush1.bf16.msra.mxu0 0
    %2545 = vmatprep.subr.bf16.mxu0 0
    %2546 = vmatpush1.bf16.msra.mxu0 0
    %2547 = vmatprep.subr.bf16.mxu0 0
    %2548 = vmatpush1.bf16.msra.mxu0 0
    %2549 = vmatprep.subr.bf16.mxu0 0
    %2550 = vmatpush1.bf16.msra.mxu0 0
    %2551 = vmatprep.subr.bf16.mxu0 0
    %2552 = vmatpush1.bf16.msra.mxu0 0
    %2553 = vmatprep.subr.bf16.mxu0 0
    %2554 = vmatpush1.bf16.msra.mxu0 0
    %2555 = vmatprep.subr.bf16.mxu0 0
    %2556 = vmatpush1.bf16.msra.mxu0 %v2539
    %2557 = vmatprep.subr.bf16.mxu0 0
    %2558 = vmatpush2.bf16.msra.mxu0 0
    %2559 = vmatprep.subr.bf16.mxu0 0
    %2560 = vmatpush2.bf16.msra.mxu0 0
    %2561 = vmatprep.subr.bf16.mxu0 0
    %2562 = vmatpush2.bf16.msra.mxu0 0
    %2563 = vmatprep.subr.bf16.mxu0 0
    %2564 = vmatpush2.bf16.msra.mxu0 0
    %2565 = vmatprep.subr.bf16.mxu0 0
    %2566 = vmatpush2.bf16.msra.mxu0 0
    %2567 = vmatprep.subr.bf16.mxu0 0
    %2568 = vmatpush2.bf16.msra.mxu0 0
    %2569 = vmatprep.subr.bf16.mxu0 0
    %2570 = vmatpush2.bf16.msra.mxu0 0
    %2571 = vmatprep.subr.bf16.mxu0 0
    %2572 = vmatpush2.bf16.msra.mxu0 0
    %2573 = vmatprep.mubr.bf16.mxu0 0
    %2574 = vmatmul.mubr.bf16.gmra.mxu0 %v2536
    %v2575 = vpop.f32.mrf.mxu0
    %v2576 = vadd.f32 0.0, %v2575
    %v2577 = vpop.f32.mrf.mxu0
    %v2578 = vpop.f32.mrf.mxu0
    %v2579 = vpop.f32.mrf.mxu0
    %2580 = vdwg.mxu0
    %2583 = vrot.lane.b32.xlu0 %v2346, 16
    %v2584 = vpop.permute.xlu0 %2583
    %2585 = vrot.lane.b32.xlu0 %v2392, 16
    %v2586 = vpop.permute.xlu0 %2585
    %2591 = vrot.lane.b32.xlu0 %v2438, 32
    %v2592 = vpop.permute.xlu0 %2591
    %2593 = vrot.lane.b32.xlu0 %v2484, 32
    %v2594 = vpop.permute.xlu0 %2593
    %2599 = vrot.lane.b32.xlu0 %v2530, 48
    %v2600 = vpop.permute.xlu0 %2599
    %2601 = vrot.lane.b32.xlu0 %v2576, 48
    %v2602 = vpop.permute.xlu0 %2601
    %v2605 = vsel %vm212, %v2254, %v2584
    %v2606 = vsel %vm212, %v2300, %v2586
    %v2607 = vsel %vm1099, %v2605, %v2592
    %v2608 = vsel %vm1099, %v2606, %v2594
    %v2609 = vsel %vm1102, %v2607, %v2600
    %v2610 = vsel %vm1102, %v2608, %v2602
    %v2611 = vpack.c.bf16 %v2610, %v2609
    %v2612 = vld [vmem:[%s1578 + $0x10] sm:$0xf]
    %v2613 = vld [vmem:[%s1578 + $0x24] sm:$0xf]
    %v2614 = vld [vmem:[%s1578 + $0x38] sm:$0xf]
    %v2615 = vld [vmem:[%s1578 + $0x4c] sm:$0xf]
    %v2616 = vld [vmem:[%s1578 + $0x60] sm:$0xf]
    %v2617 = vld [vmem:[%s1578 + $0x74] sm:$0xf]
    %v2618 = vld [vmem:[%s1578 + $0x88] sm:$0xf]
    %v2619 = vld [vmem:[%s1578 + $0x9c] sm:$0xf]
    %v2620 = vld [vmem:[%s1536 + $0x4] sm:$0x1]
    %v2622 = vlaneseq
    %v2623 = vshrl.u32 %v2622, 7
    %v2624 = vsub.s32 0, %v2623
    %v2625 = vrot.slane %v2620, %v2624
    %v2635 = vunpack.c.l.b16 %v2612
    %v2636 = vunpack.c.l.b16 %v2613
    %v2637 = vunpack.c.l.b16 %v2614
    %v2638 = vunpack.c.l.b16 %v2615
    %v2639 = vunpack.c.l.b16 %v2616
    %v2640 = vunpack.c.l.b16 %v2617
    %v2641 = vunpack.c.l.b16 %v2618
    %v2642 = vunpack.c.l.b16 %v2619
    %v2643 = vpack.c.b16 %v2636, %v2635
    %v2644 = vpack.c.b16 %v2638, %v2637
    %v2645 = vpack.c.b16 %v2640, %v2639
    %v2646 = vpack.c.b16 %v2642, %v2641
    %v2652 = vsel %vm26, %v2611, 0
    %2654 = vmatprep.subr.bf16.mxu0 0
    %2655 = vmatpush1.bf16.msra.mxu0 0
    %2656 = vmatprep.subr.bf16.mxu0 0
    %2657 = vmatpush1.bf16.msra.mxu0 0
    %2658 = vmatprep.subr.bf16.mxu0 0
    %2659 = vmatpush1.bf16.msra.mxu0 0
    %2660 = vmatprep.subr.bf16.mxu0 0
    %2661 = vmatpush1.bf16.msra.mxu0 0
    %2662 = vmatprep.subr.bf16.mxu0 0
    %2663 = vmatpush1.bf16.msra.mxu0 %v2646
    %2664 = vmatprep.subr.bf16.mxu0 0
    %2665 = vmatpush1.bf16.msra.mxu0 %v2645
    %2666 = vmatprep.subr.bf16.mxu0 0
    %2667 = vmatpush1.bf16.msra.mxu0 %v2644
    %2668 = vmatprep.subr.bf16.mxu0 0
    %2669 = vmatpush1.bf16.msra.mxu0 %v2643
    %2670 = vmatprep.subr.bf16.mxu0 0
    %2671 = vmatpush2.bf16.msra.mxu0 0
    %2672 = vmatprep.subr.bf16.mxu0 0
    %2673 = vmatpush2.bf16.msra.mxu0 0
    %2674 = vmatprep.subr.bf16.mxu0 0
    %2675 = vmatpush2.bf16.msra.mxu0 0
    %2676 = vmatprep.subr.bf16.mxu0 0
    %2677 = vmatpush2.bf16.msra.mxu0 0
    %2678 = vmatprep.subr.bf16.mxu0 0
    %2679 = vmatpush2.bf16.msra.mxu0 0
    %2680 = vmatprep.subr.bf16.mxu0 0
    %2681 = vmatpush2.bf16.msra.mxu0 0
    %2682 = vmatprep.subr.bf16.mxu0 0
    %2683 = vmatpush2.bf16.msra.mxu0 0
    %2684 = vmatprep.subr.bf16.mxu0 0
    %2685 = vmatpush2.bf16.msra.mxu0 0
    %2686 = vmatprep.mubr.bf16.mxu0 0
    %2687 = vmatmul.mubr.bf16.gmra.mxu0 %v2652
    %v2688 = vpop.f32.mrf.mxu0
    %v2689 = vadd.f32 %v2625, %v2688
    %v2690 = vpop.f32.mrf.mxu0
    %v2691 = vpop.f32.mrf.mxu0
    %v2692 = vadd.f32 %v2625, %v2691
    %v2693 = vpop.f32.mrf.mxu0
    %2694 = vdwg.mxu0
    %v2695 = vadd.f32 %v1534, %v2689
    %v2696 = vadd.f32 %v1535, %v2692
    %v2697 = vld [vmem:[%s1536 + $0x1] sm:$0x1]
    %v2698 = vsel %vm26, %v2695, 0.0
    %2699 = vadd.xlane.f32.xlu0 %v2698
    %v2700 = vpop.xlane.xlu0 %2699
    %v2701 = vsel %vm26, %v2696, 0.0
    %2702 = vadd.xlane.f32.xlu0 %v2701
    %v2703 = vpop.xlane.xlu0 %2702
    %v2704 = vmul.f32 %v2700, %v33
    %v2705 = vmul.f32 %v2703, %v33
    %v2706 = vsub.f32 %v2695, %v2704
    %v2707 = vsub.f32 %v2696, %v2705
    %v2708 = vmul.f32 %v2706, %v2706
    %v2709 = vmul.f32 %v2707, %v2707
    %v2710 = vsel %vm26, %v2708, 0.0
    %2711 = vadd.xlane.f32.xlu0 %v2710
    %v2712 = vpop.xlane.xlu0 %2711
    %v2713 = vsel %vm26, %v2709, 0.0
    %2714 = vadd.xlane.f32.xlu0 %v2713
    %v2715 = vpop.xlane.xlu0 %2714
    %v2716 = vmul.f32 %v2712, %v33
    %v2717 = vmul.f32 %v2715, %v33
    %v2718 = vadd.f32 %v2716, 1e-05
    %v2719 = vadd.f32 %v2717, 1e-05
    %v2720 = vrsqrt.pop %v2718
    %v2721 = vrsqrt.pop %v2719
    %v2722 = vmul.f32 %v2706, %v2720
    %v2723 = vmul.f32 %v2707, %v2721
    %v2725 = vlaneseq
    %v2726 = vshrl.u32 %v2725, 7
    %v2727 = vsub.s32 0, %v2726
    %v2728 = vrot.slane %v2697, %v2727
    %v2730 = vmul.f32 %v2722, %v2728
    %v2731 = vmul.f32 %v2723, %v2728
    %2732 = vrot.lane.b32.xlu0 %v2728, 64
    %v2733 = vpop.permute.xlu0 %2732
    %v2735 = vadd.f32 %v2730, %v2733
    %v2736 = vadd.f32 %v2731, %v2733
    %v2737 = vpack.c.bf16 %v2736, %v2735
    %v2738 = vld [vmem:[%s1578 + $0x8] sm:$0xff]
    %v2739 = vld [vmem:[%s1578 + $0x1c] sm:$0xff]
    %v2740 = vld [vmem:[%s1578 + $0x30] sm:$0xff]
    %v2741 = vld [vmem:[%s1578 + $0x44] sm:$0xff]
    %v2742 = vld [vmem:[%s1578 + $0x58] sm:$0xff]
    %v2743 = vld [vmem:[%s1578 + $0x6c] sm:$0xff]
    %v2744 = vld [vmem:[%s1578 + $0x80] sm:$0xff]
    %v2745 = vld [vmem:[%s1578 + $0x94] sm:$0xff]
    %v2746 = vld [vmem:[%s1536 + $0x4] sm:$0x7]
    %v2748 = vlaneseq
    %v2749 = vshrl.u32 %v2748, 7
    %v2750 = vsub.s32 0, %v2749
    %v2751 = vrot.slane %v2746, %v2750
    %v2752 = vlaneseq
    %v2753 = vshrl.u32 %v2752, 7
    %v2754 = vsub.s32 1, %v2753
    %v2755 = vrot.slane %v2746, %v2754
    %v2756 = vlaneseq
    %v2757 = vshrl.u32 %v2756, 7
    %v2758 = vsub.s32 2, %v2757
    %v2759 = vrot.slane %v2746, %v2758
    %v2768 = vunpack.c.l.b16 %v2738
    %v2769 = vunpack.c.h.b16 %v2738
    %v2770 = vunpack.c.l.b16 %v2739
    %v2771 = vunpack.c.h.b16 %v2739
    %v2772 = vunpack.c.l.b16 %v2740
    %v2773 = vunpack.c.h.b16 %v2740
    %v2774 = vunpack.c.l.b16 %v2741
    %v2775 = vunpack.c.h.b16 %v2741
    %v2776 = vunpack.c.l.b16 %v2742
    %v2777 = vunpack.c.h.b16 %v2742
    %v2778 = vunpack.c.l.b16 %v2743
    %v2779 = vunpack.c.h.b16 %v2743
    %v2780 = vunpack.c.l.b16 %v2744
    %v2781 = vunpack.c.h.b16 %v2744
    %v2782 = vunpack.c.l.b16 %v2745
    %v2783 = vunpack.c.h.b16 %v2745
    %v2784 = vpack.c.b16 %v2770, %v2768
    %v2785 = vpack.c.b16 %v2771, %v2769
    %v2786 = vpack.c.b16 %v2774, %v2772
    %v2787 = vpack.c.b16 %v2775, %v2773
    %v2788 = vpack.c.b16 %v2778, %v2776
    %v2789 = vpack.c.b16 %v2779, %v2777
    %v2790 = vpack.c.b16 %v2782, %v2780
    %v2791 = vpack.c.b16 %v2783, %v2781
    %2800 = vrot.lane.b32.xlu0 %v2751, 64
    %v2801 = vpop.permute.xlu0 %2800
    %2802 = vrot.lane.b32.xlu0 %v2755, 64
    %v2803 = vpop.permute.xlu0 %2802
    %2804 = vrot.lane.b32.xlu0 %v2759, 64
    %v2805 = vpop.permute.xlu0 %2804
    %v2806 = vsel %vm26, %v2801, %v2803
    %v2807 = vsel %vm26, %v2803, %v2805
    %v2811 = vsel %vm26, %v2737, 0
    %2813 = vmatprep.subr.bf16.mxu0 0
    %2814 = vmatpush1.bf16.msra.mxu0 0
    %2815 = vmatprep.subr.bf16.mxu0 0
    %2816 = vmatpush1.bf16.msra.mxu0 0
    %2817 = vmatprep.subr.bf16.mxu0 0
    %2818 = vmatpush1.bf16.msra.mxu0 0
    %2819 = vmatprep.subr.bf16.mxu0 0
    %2820 = vmatpush1.bf16.msra.mxu0 0
    %2821 = vmatprep.subr.bf16.mxu0 %v2791
    %2822 = vmatpush1.bf16.msra.mxu0 %v2790
    %2823 = vmatprep.subr.bf16.mxu0 %v2789
    %2824 = vmatpush1.bf16.msra.mxu0 %v2788
    %2825 = vmatprep.subr.bf16.mxu0 %v2787
    %2826 = vmatpush1.bf16.msra.mxu0 %v2786
    %2827 = vmatprep.subr.bf16.mxu0 %v2785
    %2828 = vmatpush1.bf16.msra.mxu0 %v2784
    %2829 = vmatprep.subr.bf16.mxu0 0
    %2830 = vmatpush2.bf16.msra.mxu0 0
    %2831 = vmatprep.subr.bf16.mxu0 0
    %2832 = vmatpush2.bf16.msra.mxu0 0
    %2833 = vmatprep.subr.bf16.mxu0 0
    %2834 = vmatpush2.bf16.msra.mxu0 0
    %2835 = vmatprep.subr.bf16.mxu0 0
    %2836 = vmatpush2.bf16.msra.mxu0 0
    %2837 = vmatprep.subr.bf16.mxu0 0
    %2838 = vmatpush2.bf16.msra.mxu0 0
    %2839 = vmatprep.subr.bf16.mxu0 0
    %2840 = vmatpush2.bf16.msra.mxu0 0
    %2841 = vmatprep.subr.bf16.mxu0 0
    %2842 = vmatpush2.bf16.msra.mxu0 0
    %2843 = vmatprep.subr.bf16.mxu0 0
    %2844 = vmatpush2.bf16.msra.mxu0 0
    %2845 = vmatprep.mubr.bf16.mxu0 0
    %2846 = vmatmul.mubr.bf16.gmra.mxu0 %v2811
    %v2847 = vpop.f32.mrf.mxu0
    %v2848 = vadd.f32 %v2806, %v2847
    %v2849 = vpop.f32.mrf.mxu0
    %v2850 = vadd.f32 %v2807, %v2849
    %v2851 = vpop.f32.mrf.mxu0
    %v2852 = vadd.f32 %v2806, %v2851
    %v2853 = vpop.f32.mrf.mxu0
    %v2854 = vadd.f32 %v2807, %v2853
    %2855 = vdwg.mxu0
    %v2856 = vmax.f32 %v2848, 0.0
    %v2857 = vmax.f32 %v2850, 0.0
    %v2858 = vmax.f32 %v2852, 0.0
    %v2859 = vmax.f32 %v2854, 0.0
    %v2860 = vpack.c.bf16 %v2858, %v2856
    %v2861 = vpack.c.bf16 %v2859, %v2857
    %s2862 = scalar_lea.vmem %s3, 128
    %v2863 = vld [vmem:[%s2862] sm:$0xf]
    %v2864 = vld [vmem:[%s2862 + $0x4] sm:$0xf]
    %v2865 = vld [vmem:[%s2862 + $0x8] sm:$0xf]
    %v2866 = vld [vmem:[%s2862 + $0xc] sm:$0xf]
    %v2867 = vld [vmem:[%s2862 + $0x10] sm:$0xf]
    %v2868 = vld [vmem:[%s2862 + $0x14] sm:$0xf]
    %v2869 = vld [vmem:[%s2862 + $0x18] sm:$0xf]
    %v2870 = vld [vmem:[%s2862 + $0x1c] sm:$0xf]
    %v2871 = vld [vmem:[%s2862 + $0x20] sm:$0xf]
    %v2872 = vld [vmem:[%s2862 + $0x24] sm:$0xf]
    %v2873 = vld [vmem:[%s2862 + $0x28] sm:$0xf]
    %v2874 = vld [vmem:[%s2862 + $0x2c] sm:$0xf]
    %v2875 = vld [vmem:[%s2862 + $0x30] sm:$0xf]
    %v2876 = vld [vmem:[%s2862 + $0x34] sm:$0xf]
    %v2877 = vld [vmem:[%s2862 + $0x38] sm:$0xf]
    %v2878 = vld [vmem:[%s2862 + $0x3c] sm:$0xf]
    %v2879 = vld [vmem:[%s2862 + $0x40] sm:$0xf]
    %v2880 = vld [vmem:[%s2862 + $0x44] sm:$0xf]
    %v2881 = vld [vmem:[%s2862 + $0x48] sm:$0xf]
    %v2882 = vld [vmem:[%s2862 + $0x4c] sm:$0xf]
    %v2883 = vld [vmem:[%s2862 + $0x50] sm:$0xf]
    %v2884 = vld [vmem:[%s2862 + $0x54] sm:$0xf]
    %v2885 = vld [vmem:[%s2862 + $0x58] sm:$0xf]
    %v2886 = vld [vmem:[%s2862 + $0x5c] sm:$0xf]
    %v2887 = vld [vmem:[%s2862 + $0x60] sm:$0xf]
    %v2888 = vld [vmem:[%s2862 + $0x64] sm:$0xf]
    %v2889 = vld [vmem:[%s2862 + $0x68] sm:$0xf]
    %v2890 = vld [vmem:[%s2862 + $0x6c] sm:$0xf]
    %v2891 = vld [vmem:[%s2862 + $0x70] sm:$0xf]
    %v2892 = vld [vmem:[%s2862 + $0x74] sm:$0xf]
    %v2893 = vld [vmem:[%s2862 + $0x78] sm:$0xf]
    %v2894 = vld [vmem:[%s2862 + $0x7c] sm:$0xf]
    %v2895 = vld [vmem:[%s1536 + $0x6] sm:$0x1]
    %v2897 = vlaneseq
    %v2898 = vshrl.u32 %v2897, 7
    %v2899 = vsub.s32 0, %v2898
    %v2900 = vrot.slane %v2895, %v2899
    %v2933 = vunpack.c.l.b16 %v2863
    %v2934 = vunpack.c.l.b16 %v2864
    %v2935 = vunpack.c.l.b16 %v2865
    %v2936 = vunpack.c.l.b16 %v2866
    %v2937 = vunpack.c.l.b16 %v2867
    %v2938 = vunpack.c.l.b16 %v2868
    %v2939 = vunpack.c.l.b16 %v2869
    %v2940 = vunpack.c.l.b16 %v2870
    %v2941 = vunpack.c.l.b16 %v2871
    %v2942 = vunpack.c.l.b16 %v2872
    %v2943 = vunpack.c.l.b16 %v2873
    %v2944 = vunpack.c.l.b16 %v2874
    %v2945 = vunpack.c.l.b16 %v2875
    %v2946 = vunpack.c.l.b16 %v2876
    %v2947 = vunpack.c.l.b16 %v2877
    %v2948 = vunpack.c.l.b16 %v2878
    %v2949 = vunpack.c.l.b16 %v2879
    %v2950 = vunpack.c.l.b16 %v2880
    %v2951 = vunpack.c.l.b16 %v2881
    %v2952 = vunpack.c.l.b16 %v2882
    %v2953 = vunpack.c.l.b16 %v2883
    %v2954 = vunpack.c.l.b16 %v2884
    %v2955 = vunpack.c.l.b16 %v2885
    %v2956 = vunpack.c.l.b16 %v2886
    %v2957 = vunpack.c.l.b16 %v2887
    %v2958 = vunpack.c.l.b16 %v2888
    %v2959 = vunpack.c.l.b16 %v2889
    %v2960 = vunpack.c.l.b16 %v2890
    %v2961 = vunpack.c.l.b16 %v2891
    %v2962 = vunpack.c.l.b16 %v2892
    %v2963 = vunpack.c.l.b16 %v2893
    %v2964 = vunpack.c.l.b16 %v2894
    %v2965 = vpack.c.b16 %v2934, %v2933
    %v2966 = vpack.c.b16 %v2936, %v2935
    %v2967 = vpack.c.b16 %v2938, %v2937
    %v2968 = vpack.c.b16 %v2940, %v2939
    %v2969 = vpack.c.b16 %v2942, %v2941
    %v2970 = vpack.c.b16 %v2944, %v2943
    %v2971 = vpack.c.b16 %v2946, %v2945
    %v2972 = vpack.c.b16 %v2948, %v2947
    %v2973 = vpack.c.b16 %v2950, %v2949
    %v2974 = vpack.c.b16 %v2952, %v2951
    %v2975 = vpack.c.b16 %v2954, %v2953
    %v2976 = vpack.c.b16 %v2956, %v2955
    %v2977 = vpack.c.b16 %v2958, %v2957
    %v2978 = vpack.c.b16 %v2960, %v2959
    %v2979 = vpack.c.b16 %v2962, %v2961
    %v2980 = vpack.c.b16 %v2964, %v2963
    %2997 = vrot.lane.b32.xlu0 %v2900, 64
    %v2998 = vpop.permute.xlu0 %2997
    %3000 = vmatprep.subr.bf16.mxu0 0
    %3001 = vmatpush1.bf16.msra.mxu0 %v2972
    %3002 = vmatprep.subr.bf16.mxu0 0
    %3003 = vmatpush1.bf16.msra.mxu0 %v2971
    %3004 = vmatprep.subr.bf16.mxu0 0
    %3005 = vmatpush1.bf16.msra.mxu0 %v2970
    %3006 = vmatprep.subr.bf16.mxu0 0
    %3007 = vmatpush1.bf16.msra.mxu0 %v2969
    %3008 = vmatprep.subr.bf16.mxu0 0
    %3009 = vmatpush1.bf16.msra.mxu0 %v2968
    %3010 = vmatprep.subr.bf16.mxu0 0
    %3011 = vmatpush1.bf16.msra.mxu0 %v2967
    %3012 = vmatprep.subr.bf16.mxu0 0
    %3013 = vmatpush1.bf16.msra.mxu0 %v2966
    %3014 = vmatprep.subr.bf16.mxu0 0
    %3015 = vmatpush1.bf16.msra.mxu0 %v2965
    %3016 = vmatprep.subr.bf16.mxu0 0
    %3017 = vmatpush2.bf16.msra.mxu0 %v2980
    %3018 = vmatprep.subr.bf16.mxu0 0
    %3019 = vmatpush2.bf16.msra.mxu0 %v2979
    %3020 = vmatprep.subr.bf16.mxu0 0
    %3021 = vmatpush2.bf16.msra.mxu0 %v2978
    %3022 = vmatprep.subr.bf16.mxu0 0
    %3023 = vmatpush2.bf16.msra.mxu0 %v2977
    %3024 = vmatprep.subr.bf16.mxu0 0
    %3025 = vmatpush2.bf16.msra.mxu0 %v2976
    %3026 = vmatprep.subr.bf16.mxu0 0
    %3027 = vmatpush2.bf16.msra.mxu0 %v2975
    %3028 = vmatprep.subr.bf16.mxu0 0
    %3029 = vmatpush2.bf16.msra.mxu0 %v2974
    %3030 = vmatprep.subr.bf16.mxu0 0
    %3031 = vmatpush2.bf16.msra.mxu0 %v2973
    %3032 = vmatprep.mubr.bf16.mxu0 %v2861
    %3033 = vmatmul.mubr.bf16.gmra.mxu0 %v2860
    %v3034 = vpop.f32.mrf.mxu0
    %v3035 = vadd.f32 %v2998, %v3034
    %v3036 = vpop.f32.mrf.mxu0
    %v3037 = vpop.f32.mrf.mxu0
    %v3038 = vadd.f32 %v2998, %v3037
    %v3039 = vpop.f32.mrf.mxu0
    %3040 = vdwg.mxu0
    %v3041 = vadd.f32 %v2695, %v3035
    %v3042 = vadd.f32 %v2696, %v3038
    %s3043 = scalar_lea.vmem %s4, 14
    %v3044 = vld [vmem:[%s3043] sm:$0x1]
    %v3045 = vsel %vm26, %v3041, 0.0
    %3046 = vadd.xlane.f32.xlu0 %v3045
    %v3047 = vpop.xlane.xlu0 %3046
    %v3048 = vsel %vm26, %v3042, 0.0
    %3049 = vadd.xlane.f32.xlu0 %v3048
    %v3050 = vpop.xlane.xlu0 %3049
    %v3051 = vmul.f32 %v3047, %v33
    %v3052 = vmul.f32 %v3050, %v33
    %v3053 = vsub.f32 %v3041, %v3051
    %v3054 = vsub.f32 %v3042, %v3052
    %v3055 = vmul.f32 %v3053, %v3053
    %v3056 = vmul.f32 %v3054, %v3054
    %v3057 = vsel %vm26, %v3055, 0.0
    %3058 = vadd.xlane.f32.xlu0 %v3057
    %v3059 = vpop.xlane.xlu0 %3058
    %v3060 = vsel %vm26, %v3056, 0.0
    %3061 = vadd.xlane.f32.xlu0 %v3060
    %v3062 = vpop.xlane.xlu0 %3061
    %v3063 = vmul.f32 %v3059, %v33
    %v3064 = vmul.f32 %v3062, %v33
    %v3065 = vadd.f32 %v3063, 1e-05
    %v3066 = vadd.f32 %v3064, 1e-05
    %v3067 = vrsqrt.pop %v3065
    %v3068 = vrsqrt.pop %v3066
    %v3069 = vmul.f32 %v3053, %v3067
    %v3070 = vmul.f32 %v3054, %v3068
    %v3072 = vlaneseq
    %v3073 = vshrl.u32 %v3072, 7
    %v3074 = vsub.s32 0, %v3073
    %v3075 = vrot.slane %v3044, %v3074
    %v3077 = vmul.f32 %v3069, %v3075
    %v3078 = vmul.f32 %v3070, %v3075
    %3079 = vrot.lane.b32.xlu0 %v3075, 64
    %v3080 = vpop.permute.xlu0 %3079
    %v3082 = vadd.f32 %v3077, %v3080
    %v3083 = vadd.f32 %v3078, %v3080
    %v3084 = vpack.c.bf16 %v3083, %v3082
    %s3085 = scalar_lea.vmem %s2, 320
    %v3086 = vld [vmem:[%s3085] sm:$0xff]
    %v3087 = vld [vmem:[%s3085 + $0x14] sm:$0xff]
    %v3088 = vld [vmem:[%s3085 + $0x28] sm:$0xff]
    %v3089 = vld [vmem:[%s3085 + $0x3c] sm:$0xff]
    %v3090 = vld [vmem:[%s3085 + $0x50] sm:$0xff]
    %v3091 = vld [vmem:[%s3085 + $0x64] sm:$0xff]
    %v3092 = vld [vmem:[%s3085 + $0x78] sm:$0xff]
    %v3093 = vld [vmem:[%s3085 + $0x8c] sm:$0xff]
    %v3094 = vld [vmem:[%s3043 + $0x2] sm:$0x3]
    %v3096 = vlaneseq
    %v3097 = vshrl.u32 %v3096, 7
    %v3098 = vsub.s32 0, %v3097
    %v3099 = vrot.slane %v3094, %v3098
    %v3100 = vlaneseq
    %v3101 = vshrl.u32 %v3100, 7
    %v3102 = vsub.s32 1, %v3101
    %v3103 = vrot.slane %v3094, %v3102
    %v3114 = vunpack.c.l.b16 %v3086
    %v3115 = vunpack.c.h.b16 %v3086
    %v3116 = vunpack.c.l.b16 %v3087
    %v3117 = vunpack.c.h.b16 %v3087
    %v3118 = vunpack.c.l.b16 %v3088
    %v3119 = vunpack.c.h.b16 %v3088
    %v3120 = vunpack.c.l.b16 %v3089
    %v3121 = vunpack.c.h.b16 %v3089
    %v3122 = vunpack.c.l.b16 %v3090
    %v3123 = vunpack.c.h.b16 %v3090
    %v3124 = vunpack.c.l.b16 %v3091
    %v3125 = vunpack.c.h.b16 %v3091
    %v3126 = vunpack.c.l.b16 %v3092
    %v3127 = vunpack.c.h.b16 %v3092
    %v3128 = vunpack.c.l.b16 %v3093
    %v3129 = vunpack.c.h.b16 %v3093
    %v3130 = vpack.c.b16 %v3116, %v3114
    %v3131 = vpack.c.b16 %v3117, %v3115
    %v3132 = vpack.c.b16 %v3120, %v3118
    %v3133 = vpack.c.b16 %v3121, %v3119
    %v3134 = vpack.c.b16 %v3124, %v3122
    %v3135 = vpack.c.b16 %v3125, %v3123
    %v3136 = vpack.c.b16 %v3128, %v3126
    %v3137 = vpack.c.b16 %v3129, %v3127
    %v3147 = vsel %vm26, %v3084, 0
    %3149 = vmatprep.subr.bf16.mxu0 0
    %3150 = vmatpush1.bf16.msra.mxu0 0
    %3151 = vmatprep.subr.bf16.mxu0 0
    %3152 = vmatpush1.bf16.msra.mxu0 0
    %3153 = vmatprep.subr.bf16.mxu0 0
    %3154 = vmatpush1.bf16.msra.mxu0 0
    %3155 = vmatprep.subr.bf16.mxu0 0
    %3156 = vmatpush1.bf16.msra.mxu0 0
    %3157 = vmatprep.subr.bf16.mxu0 %v3137
    %3158 = vmatpush1.bf16.msra.mxu0 %v3136
    %3159 = vmatprep.subr.bf16.mxu0 %v3135
    %3160 = vmatpush1.bf16.msra.mxu0 %v3134
    %3161 = vmatprep.subr.bf16.mxu0 %v3133
    %3162 = vmatpush1.bf16.msra.mxu0 %v3132
    %3163 = vmatprep.subr.bf16.mxu0 %v3131
    %3164 = vmatpush1.bf16.msra.mxu0 %v3130
    %3165 = vmatprep.subr.bf16.mxu0 0
    %3166 = vmatpush2.bf16.msra.mxu0 0
    %3167 = vmatprep.subr.bf16.mxu0 0
    %3168 = vmatpush2.bf16.msra.mxu0 0
    %3169 = vmatprep.subr.bf16.mxu0 0
    %3170 = vmatpush2.bf16.msra.mxu0 0
    %3171 = vmatprep.subr.bf16.mxu0 0
    %3172 = vmatpush2.bf16.msra.mxu0 0
    %3173 = vmatprep.subr.bf16.mxu0 0
    %3174 = vmatpush2.bf16.msra.mxu0 0
    %3175 = vmatprep.subr.bf16.mxu0 0
    %3176 = vmatpush2.bf16.msra.mxu0 0
    %3177 = vmatprep.subr.bf16.mxu0 0
    %3178 = vmatpush2.bf16.msra.mxu0 0
    %3179 = vmatprep.subr.bf16.mxu0 0
    %3180 = vmatpush2.bf16.msra.mxu0 0
    %3181 = vmatprep.mubr.bf16.mxu0 0
    %3182 = vmatmul.mubr.bf16.gmra.mxu0 %v3147
    %v3183 = vpop.f32.mrf.mxu0
    %v3184 = vadd.f32 %v3099, %v3183
    %v3185 = vpop.f32.mrf.mxu0
    %v3186 = vadd.f32 %v3103, %v3185
    %v3187 = vpop.f32.mrf.mxu0
    %v3188 = vadd.f32 %v3099, %v3187
    %v3189 = vpop.f32.mrf.mxu0
    %v3190 = vadd.f32 %v3103, %v3189
    %3191 = vdwg.mxu0
    %v3192 = vpack.c.bf16 %v3188, %v3184
    %v3193 = vpack.c.bf16 %v3190, %v3186
    %v3195 = vunpack.c.l.b16 %v3192
    %v3196 = vunpack.c.h.b16 %v3192
    %v3197 = vpack.c.b16 %v3195, %v3195
    %v3198 = vpack.c.b16 %v3196, %v3196
    %3199 = vrot.lane.b32.xlu0 %v3197, 112
    %v3200 = vpop.permute.xlu0 %3199
    %3201 = vrot.lane.b32.xlu0 %v3198, 112
    %v3202 = vpop.permute.xlu0 %3201
    %3203 = vrot.lane.b32.xlu0 %v3197, 96
    %v3204 = vpop.permute.xlu0 %3203
    %3205 = vrot.lane.b32.xlu0 %v3198, 96
    %v3206 = vpop.permute.xlu0 %3205
    %3207 = vrot.lane.b32.xlu0 %v3197, 80
    %v3208 = vpop.permute.xlu0 %3207
    %3209 = vrot.lane.b32.xlu0 %v3198, 80
    %v3210 = vpop.permute.xlu0 %3209
    %v3212 = vunpack.c.l.b16 %v3193
    %v3213 = vunpack.c.h.b16 %v3193
    %v3214 = vpack.c.b16 %v3212, %v3212
    %v3215 = vpack.c.b16 %v3213, %v3213
    %3216 = vrot.lane.b32.xlu0 %v3214, 112
    %v3217 = vpop.permute.xlu0 %3216
    %3218 = vrot.lane.b32.xlu0 %v3215, 112
    %v3219 = vpop.permute.xlu0 %3218
    %3220 = vrot.lane.b32.xlu0 %v3214, 96
    %v3221 = vpop.permute.xlu0 %3220
    %3222 = vrot.lane.b32.xlu0 %v3215, 96
    %v3223 = vpop.permute.xlu0 %3222
    %3224 = vrot.lane.b32.xlu0 %v3214, 80
    %v3225 = vpop.permute.xlu0 %3224
    %3226 = vrot.lane.b32.xlu0 %v3215, 80
    %v3227 = vpop.permute.xlu0 %3226
    %3228 = vrot.lane.b32.xlu0 %v3197, 64
    %v3229 = vpop.permute.xlu0 %3228
    %v3231 = vsel %vm212, %v3197, 0
    %v3234 = vsel %vm212, %v3229, 0
    %3236 = vmatprep.subr.bf16.mxu0 0
    %3237 = vmatpush1.bf16.xpose.msra.mxu0 0
    %3238 = vmatprep.subr.bf16.mxu0 0
    %3239 = vmatpush1.bf16.xpose.msra.mxu0 0
    %3240 = vmatprep.subr.bf16.mxu0 0
    %3241 = vmatpush1.bf16.xpose.msra.mxu0 0
    %3242 = vmatprep.subr.bf16.mxu0 0
    %3243 = vmatpush1.bf16.xpose.msra.mxu0 0
    %3244 = vmatprep.subr.bf16.mxu0 0
    %3245 = vmatpush1.bf16.xpose.msra.mxu0 0
    %3246 = vmatprep.subr.bf16.mxu0 0
    %3247 = vmatpush1.bf16.xpose.msra.mxu0 0
    %3248 = vmatprep.subr.bf16.mxu0 0
    %3249 = vmatpush1.bf16.xpose.msra.mxu0 0
    %3250 = vmatprep.subr.bf16.mxu0 0
    %3251 = vmatpush1.bf16.xpose.msra.mxu0 %v3234
    %3252 = vmatprep.subr.bf16.mxu0 0
    %3253 = vmatpush2.bf16.xpose.msra.mxu0 0
    %3254 = vmatprep.subr.bf16.mxu0 0
    %3255 = vmatpush2.bf16.xpose.msra.mxu0 0
    %3256 = vmatprep.subr.bf16.mxu0 0
    %3257 = vmatpush2.bf16.xpose.msra.mxu0 0
    %3258 = vmatprep.subr.bf16.mxu0 0
    %3259 = vmatpush2.bf16.xpose.msra.mxu0 0
    %3260 = vmatprep.subr.bf16.mxu0 0
    %3261 = vmatpush2.bf16.xpose.msra.mxu0 0
    %3262 = vmatprep.subr.bf16.mxu0 0
    %3263 = vmatpush2.bf16.xpose.msra.mxu0 0
    %3264 = vmatprep.subr.bf16.mxu0 0
    %3265 = vmatpush2.bf16.xpose.msra.mxu0 0
    %3266 = vmatprep.subr.bf16.mxu0 0
    %3267 = vmatpush2.bf16.xpose.msra.mxu0 0
    %3268 = vmatprep.mubr.bf16.mxu0 0
    %3269 = vmatmul.mubr.bf16.gmra.mxu0 %v3231
    %v3270 = vpop.f32.mrf.mxu0
    %v3271 = vadd.f32 %v24, %v3270
    %v3272 = vpop.f32.mrf.mxu0
    %v3273 = vpop.f32.mrf.mxu0
    %v3274 = vpop.f32.mrf.mxu0
    %3275 = vdwg.mxu0
    %3276 = vrot.lane.b32.xlu0 %v3198, 64
    %v3277 = vpop.permute.xlu0 %3276
    %v3279 = vsel %vm212, %v3198, 0
    %v3282 = vsel %vm212, %v3277, 0
    %3284 = vmatprep.subr.bf16.mxu0 0
    %3285 = vmatpush1.bf16.xpose.msra.mxu0 0
    %3286 = vmatprep.subr.bf16.mxu0 0
    %3287 = vmatpush1.bf16.xpose.msra.mxu0 0
    %3288 = vmatprep.subr.bf16.mxu0 0
    %3289 = vmatpush1.bf16.xpose.msra.mxu0 0
    %3290 = vmatprep.subr.bf16.mxu0 0
    %3291 = vmatpush1.bf16.xpose.msra.mxu0 0
    %3292 = vmatprep.subr.bf16.mxu0 0
    %3293 = vmatpush1.bf16.xpose.msra.mxu0 0
    %3294 = vmatprep.subr.bf16.mxu0 0
    %3295 = vmatpush1.bf16.xpose.msra.mxu0 0
    %3296 = vmatprep.subr.bf16.mxu0 0
    %3297 = vmatpush1.bf16.xpose.msra.mxu0 0
    %3298 = vmatprep.subr.bf16.mxu0 0
    %3299 = vmatpush1.bf16.xpose.msra.mxu0 %v3282
    %3300 = vmatprep.subr.bf16.mxu0 0
    %3301 = vmatpush2.bf16.xpose.msra.mxu0 0
    %3302 = vmatprep.subr.bf16.mxu0 0
    %3303 = vmatpush2.bf16.xpose.msra.mxu0 0
    %3304 = vmatprep.subr.bf16.mxu0 0
    %3305 = vmatpush2.bf16.xpose.msra.mxu0 0
    %3306 = vmatprep.subr.bf16.mxu0 0
    %3307 = vmatpush2.bf16.xpose.msra.mxu0 0
    %3308 = vmatprep.subr.bf16.mxu0 0
    %3309 = vmatpush2.bf16.xpose.msra.mxu0 0
    %3310 = vmatprep.subr.bf16.mxu0 0
    %3311 = vmatpush2.bf16.xpose.msra.mxu0 0
    %3312 = vmatprep.subr.bf16.mxu0 0
    %3313 = vmatpush2.bf16.xpose.msra.mxu0 0
    %3314 = vmatprep.subr.bf16.mxu0 0
    %3315 = vmatpush2.bf16.xpose.msra.mxu0 0
    %3316 = vmatprep.mubr.bf16.mxu0 0
    %3317 = vmatmul.mubr.bf16.gmra.mxu0 %v3279
    %v3318 = vpop.f32.mrf.mxu0
    %v3319 = vadd.f32 %v24, %v3318
    %v3320 = vpop.f32.mrf.mxu0
    %v3321 = vpop.f32.mrf.mxu0
    %v3322 = vpop.f32.mrf.mxu0
    %3323 = vdwg.mxu0
    %v3324 = vunpack.c.l.b16 %v3200
    %v3325 = vpack.c.b16 %v3324, %v3324
    %3326 = vrot.lane.b32.xlu0 %v3325, 64
    %v3327 = vpop.permute.xlu0 %3326
    %v3329 = vsel %vm212, %v3200, 0
    %v3332 = vsel %vm212, %v3327, 0
    %3334 = vmatprep.subr.bf16.mxu0 0
    %3335 = vmatpush1.bf16.xpose.msra.mxu0 0
    %3336 = vmatprep.subr.bf16.mxu0 0
    %3337 = vmatpush1.bf16.xpose.msra.mxu0 0
    %3338 = vmatprep.subr.bf16.mxu0 0
    %3339 = vmatpush1.bf16.xpose.msra.mxu0 0
    %3340 = vmatprep.subr.bf16.mxu0 0
    %3341 = vmatpush1.bf16.xpose.msra.mxu0 0
    %3342 = vmatprep.subr.bf16.mxu0 0
    %3343 = vmatpush1.bf16.xpose.msra.mxu0 0
    %3344 = vmatprep.subr.bf16.mxu0 0
    %3345 = vmatpush1.bf16.xpose.msra.mxu0 0
    %3346 = vmatprep.subr.bf16.mxu0 0
    %3347 = vmatpush1.bf16.xpose.msra.mxu0 0
    %3348 = vmatprep.subr.bf16.mxu0 0
    %3349 = vmatpush1.bf16.xpose.msra.mxu0 %v3332
    %3350 = vmatprep.subr.bf16.mxu0 0
    %3351 = vmatpush2.bf16.xpose.msra.mxu0 0
    %3352 = vmatprep.subr.bf16.mxu0 0
    %3353 = vmatpush2.bf16.xpose.msra.mxu0 0
    %3354 = vmatprep.subr.bf16.mxu0 0
    %3355 = vmatpush2.bf16.xpose.msra.mxu0 0
    %3356 = vmatprep.subr.bf16.mxu0 0
    %3357 = vmatpush2.bf16.xpose.msra.mxu0 0
    %3358 = vmatprep.subr.bf16.mxu0 0
    %3359 = vmatpush2.bf16.xpose.msra.mxu0 0
    %3360 = vmatprep.subr.bf16.mxu0 0
    %3361 = vmatpush2.bf16.xpose.msra.mxu0 0
    %3362 = vmatprep.subr.bf16.mxu0 0
    %3363 = vmatpush2.bf16.xpose.msra.mxu0 0
    %3364 = vmatprep.subr.bf16.mxu0 0
    %3365 = vmatpush2.bf16.xpose.msra.mxu0 0
    %3366 = vmatprep.mubr.bf16.mxu0 0
    %3367 = vmatmul.mubr.bf16.gmra.mxu0 %v3329
    %v3368 = vpop.f32.mrf.mxu0
    %v3369 = vadd.f32 %v24, %v3368
    %v3370 = vpop.f32.mrf.mxu0
    %v3371 = vpop.f32.mrf.mxu0
    %v3372 = vpop.f32.mrf.mxu0
    %3373 = vdwg.mxu0
    %v3374 = vunpack.c.l.b16 %v3202
    %v3375 = vpack.c.b16 %v3374, %v3374
    %3376 = vrot.lane.b32.xlu0 %v3375, 64
    %v3377 = vpop.permute.xlu0 %3376
    %v3379 = vsel %vm212, %v3202, 0
    %v3382 = vsel %vm212, %v3377, 0
    %3384 = vmatprep.subr.bf16.mxu0 0
    %3385 = vmatpush1.bf16.xpose.msra.mxu0 0
    %3386 = vmatprep.subr.bf16.mxu0 0
    %3387 = vmatpush1.bf16.xpose.msra.mxu0 0
    %3388 = vmatprep.subr.bf16.mxu0 0
    %3389 = vmatpush1.bf16.xpose.msra.mxu0 0
    %3390 = vmatprep.subr.bf16.mxu0 0
    %3391 = vmatpush1.bf16.xpose.msra.mxu0 0
    %3392 = vmatprep.subr.bf16.mxu0 0
    %3393 = vmatpush1.bf16.xpose.msra.mxu0 0
    %3394 = vmatprep.subr.bf16.mxu0 0
    %3395 = vmatpush1.bf16.xpose.msra.mxu0 0
    %3396 = vmatprep.subr.bf16.mxu0 0
    %3397 = vmatpush1.bf16.xpose.msra.mxu0 0
    %3398 = vmatprep.subr.bf16.mxu0 0
    %3399 = vmatpush1.bf16.xpose.msra.mxu0 %v3382
    %3400 = vmatprep.subr.bf16.mxu0 0
    %3401 = vmatpush2.bf16.xpose.msra.mxu0 0
    %3402 = vmatprep.subr.bf16.mxu0 0
    %3403 = vmatpush2.bf16.xpose.msra.mxu0 0
    %3404 = vmatprep.subr.bf16.mxu0 0
    %3405 = vmatpush2.bf16.xpose.msra.mxu0 0
    %3406 = vmatprep.subr.bf16.mxu0 0
    %3407 = vmatpush2.bf16.xpose.msra.mxu0 0
    %3408 = vmatprep.subr.bf16.mxu0 0
    %3409 = vmatpush2.bf16.xpose.msra.mxu0 0
    %3410 = vmatprep.subr.bf16.mxu0 0
    %3411 = vmatpush2.bf16.xpose.msra.mxu0 0
    %3412 = vmatprep.subr.bf16.mxu0 0
    %3413 = vmatpush2.bf16.xpose.msra.mxu0 0
    %3414 = vmatprep.subr.bf16.mxu0 0
    %3415 = vmatpush2.bf16.xpose.msra.mxu0 0
    %3416 = vmatprep.mubr.bf16.mxu0 0
    %3417 = vmatmul.mubr.bf16.gmra.mxu0 %v3379
    %v3418 = vpop.f32.mrf.mxu0
    %v3419 = vadd.f32 %v24, %v3418
    %v3420 = vpop.f32.mrf.mxu0
    %v3421 = vpop.f32.mrf.mxu0
    %v3422 = vpop.f32.mrf.mxu0
    %3423 = vdwg.mxu0
    %v3424 = vunpack.c.l.b16 %v3204
    %v3425 = vpack.c.b16 %v3424, %v3424
    %3426 = vrot.lane.b32.xlu0 %v3425, 64
    %v3427 = vpop.permute.xlu0 %3426
    %v3429 = vsel %vm212, %v3204, 0
    %v3432 = vsel %vm212, %v3427, 0
    %3434 = vmatprep.subr.bf16.mxu0 0
    %3435 = vmatpush1.bf16.xpose.msra.mxu0 0
    %3436 = vmatprep.subr.bf16.mxu0 0
    %3437 = vmatpush1.bf16.xpose.msra.mxu0 0
    %3438 = vmatprep.subr.bf16.mxu0 0
    %3439 = vmatpush1.bf16.xpose.msra.mxu0 0
    %3440 = vmatprep.subr.bf16.mxu0 0
    %3441 = vmatpush1.bf16.xpose.msra.mxu0 0
    %3442 = vmatprep.subr.bf16.mxu0 0
    %3443 = vmatpush1.bf16.xpose.msra.mxu0 0
    %3444 = vmatprep.subr.bf16.mxu0 0
    %3445 = vmatpush1.bf16.xpose.msra.mxu0 0
    %3446 = vmatprep.subr.bf16.mxu0 0
    %3447 = vmatpush1.bf16.xpose.msra.mxu0 0
    %3448 = vmatprep.subr.bf16.mxu0 0
    %3449 = vmatpush1.bf16.xpose.msra.mxu0 %v3432
    %3450 = vmatprep.subr.bf16.mxu0 0
    %3451 = vmatpush2.bf16.xpose.msra.mxu0 0
    %3452 = vmatprep.subr.bf16.mxu0 0
    %3453 = vmatpush2.bf16.xpose.msra.mxu0 0
    %3454 = vmatprep.subr.bf16.mxu0 0
    %3455 = vmatpush2.bf16.xpose.msra.mxu0 0
    %3456 = vmatprep.subr.bf16.mxu0 0
    %3457 = vmatpush2.bf16.xpose.msra.mxu0 0
    %3458 = vmatprep.subr.bf16.mxu0 0
    %3459 = vmatpush2.bf16.xpose.msra.mxu0 0
    %3460 = vmatprep.subr.bf16.mxu0 0
    %3461 = vmatpush2.bf16.xpose.msra.mxu0 0
    %3462 = vmatprep.subr.bf16.mxu0 0
    %3463 = vmatpush2.bf16.xpose.msra.mxu0 0
    %3464 = vmatprep.subr.bf16.mxu0 0
    %3465 = vmatpush2.bf16.xpose.msra.mxu0 0
    %3466 = vmatprep.mubr.bf16.mxu0 0
    %3467 = vmatmul.mubr.bf16.gmra.mxu0 %v3429
    %v3468 = vpop.f32.mrf.mxu0
    %v3469 = vadd.f32 %v24, %v3468
    %v3470 = vpop.f32.mrf.mxu0
    %v3471 = vpop.f32.mrf.mxu0
    %v3472 = vpop.f32.mrf.mxu0
    %3473 = vdwg.mxu0
    %v3474 = vunpack.c.l.b16 %v3206
    %v3475 = vpack.c.b16 %v3474, %v3474
    %3476 = vrot.lane.b32.xlu0 %v3475, 64
    %v3477 = vpop.permute.xlu0 %3476
    %v3479 = vsel %vm212, %v3206, 0
    %v3482 = vsel %vm212, %v3477, 0
    %3484 = vmatprep.subr.bf16.mxu0 0
    %3485 = vmatpush1.bf16.xpose.msra.mxu0 0
    %3486 = vmatprep.subr.bf16.mxu0 0
    %3487 = vmatpush1.bf16.xpose.msra.mxu0 0
    %3488 = vmatprep.subr.bf16.mxu0 0
    %3489 = vmatpush1.bf16.xpose.msra.mxu0 0
    %3490 = vmatprep.subr.bf16.mxu0 0
    %3491 = vmatpush1.bf16.xpose.msra.mxu0 0
    %3492 = vmatprep.subr.bf16.mxu0 0
    %3493 = vmatpush1.bf16.xpose.msra.mxu0 0
    %3494 = vmatprep.subr.bf16.mxu0 0
    %3495 = vmatpush1.bf16.xpose.msra.mxu0 0
    %3496 = vmatprep.subr.bf16.mxu0 0
    %3497 = vmatpush1.bf16.xpose.msra.mxu0 0
    %3498 = vmatprep.subr.bf16.mxu0 0
    %3499 = vmatpush1.bf16.xpose.msra.mxu0 %v3482
    %3500 = vmatprep.subr.bf16.mxu0 0
    %3501 = vmatpush2.bf16.xpose.msra.mxu0 0
    %3502 = vmatprep.subr.bf16.mxu0 0
    %3503 = vmatpush2.bf16.xpose.msra.mxu0 0
    %3504 = vmatprep.subr.bf16.mxu0 0
    %3505 = vmatpush2.bf16.xpose.msra.mxu0 0
    %3506 = vmatprep.subr.bf16.mxu0 0
    %3507 = vmatpush2.bf16.xpose.msra.mxu0 0
    %3508 = vmatprep.subr.bf16.mxu0 0
    %3509 = vmatpush2.bf16.xpose.msra.mxu0 0
    %3510 = vmatprep.subr.bf16.mxu0 0
    %3511 = vmatpush2.bf16.xpose.msra.mxu0 0
    %3512 = vmatprep.subr.bf16.mxu0 0
    %3513 = vmatpush2.bf16.xpose.msra.mxu0 0
    %3514 = vmatprep.subr.bf16.mxu0 0
    %3515 = vmatpush2.bf16.xpose.msra.mxu0 0
    %3516 = vmatprep.mubr.bf16.mxu0 0
    %3517 = vmatmul.mubr.bf16.gmra.mxu0 %v3479
    %v3518 = vpop.f32.mrf.mxu0
    %v3519 = vadd.f32 %v24, %v3518
    %v3520 = vpop.f32.mrf.mxu0
    %v3521 = vpop.f32.mrf.mxu0
    %v3522 = vpop.f32.mrf.mxu0
    %3523 = vdwg.mxu0
    %v3524 = vunpack.c.l.b16 %v3208
    %v3525 = vpack.c.b16 %v3524, %v3524
    %3526 = vrot.lane.b32.xlu0 %v3525, 64
    %v3527 = vpop.permute.xlu0 %3526
    %v3529 = vsel %vm212, %v3208, 0
    %v3532 = vsel %vm212, %v3527, 0
    %3534 = vmatprep.subr.bf16.mxu0 0
    %3535 = vmatpush1.bf16.xpose.msra.mxu0 0
    %3536 = vmatprep.subr.bf16.mxu0 0
    %3537 = vmatpush1.bf16.xpose.msra.mxu0 0
    %3538 = vmatprep.subr.bf16.mxu0 0
    %3539 = vmatpush1.bf16.xpose.msra.mxu0 0
    %3540 = vmatprep.subr.bf16.mxu0 0
    %3541 = vmatpush1.bf16.xpose.msra.mxu0 0
    %3542 = vmatprep.subr.bf16.mxu0 0
    %3543 = vmatpush1.bf16.xpose.msra.mxu0 0
    %3544 = vmatprep.subr.bf16.mxu0 0
    %3545 = vmatpush1.bf16.xpose.msra.mxu0 0
    %3546 = vmatprep.subr.bf16.mxu0 0
    %3547 = vmatpush1.bf16.xpose.msra.mxu0 0
    %3548 = vmatprep.subr.bf16.mxu0 0
    %3549 = vmatpush1.bf16.xpose.msra.mxu0 %v3532
    %3550 = vmatprep.subr.bf16.mxu0 0
    %3551 = vmatpush2.bf16.xpose.msra.mxu0 0
    %3552 = vmatprep.subr.bf16.mxu0 0
    %3553 = vmatpush2.bf16.xpose.msra.mxu0 0
    %3554 = vmatprep.subr.bf16.mxu0 0
    %3555 = vmatpush2.bf16.xpose.msra.mxu0 0
    %3556 = vmatprep.subr.bf16.mxu0 0
    %3557 = vmatpush2.bf16.xpose.msra.mxu0 0
    %3558 = vmatprep.subr.bf16.mxu0 0
    %3559 = vmatpush2.bf16.xpose.msra.mxu0 0
    %3560 = vmatprep.subr.bf16.mxu0 0
    %3561 = vmatpush2.bf16.xpose.msra.mxu0 0
    %3562 = vmatprep.subr.bf16.mxu0 0
    %3563 = vmatpush2.bf16.xpose.msra.mxu0 0
    %3564 = vmatprep.subr.bf16.mxu0 0
    %3565 = vmatpush2.bf16.xpose.msra.mxu0 0
    %3566 = vmatprep.mubr.bf16.mxu0 0
    %3567 = vmatmul.mubr.bf16.gmra.mxu0 %v3529
    %v3568 = vpop.f32.mrf.mxu0
    %v3569 = vadd.f32 %v24, %v3568
    %v3570 = vpop.f32.mrf.mxu0
    %v3571 = vpop.f32.mrf.mxu0
    %v3572 = vpop.f32.mrf.mxu0
    %3573 = vdwg.mxu0
    %v3574 = vunpack.c.l.b16 %v3210
    %v3575 = vpack.c.b16 %v3574, %v3574
    %3576 = vrot.lane.b32.xlu0 %v3575, 64
    %v3577 = vpop.permute.xlu0 %3576
    %v3579 = vsel %vm212, %v3210, 0
    %v3582 = vsel %vm212, %v3577, 0
    %3584 = vmatprep.subr.bf16.mxu0 0
    %3585 = vmatpush1.bf16.xpose.msra.mxu0 0
    %3586 = vmatprep.subr.bf16.mxu0 0
    %3587 = vmatpush1.bf16.xpose.msra.mxu0 0
    %3588 = vmatprep.subr.bf16.mxu0 0
    %3589 = vmatpush1.bf16.xpose.msra.mxu0 0
    %3590 = vmatprep.subr.bf16.mxu0 0
    %3591 = vmatpush1.bf16.xpose.msra.mxu0 0
    %3592 = vmatprep.subr.bf16.mxu0 0
    %3593 = vmatpush1.bf16.xpose.msra.mxu0 0
    %3594 = vmatprep.subr.bf16.mxu0 0
    %3595 = vmatpush1.bf16.xpose.msra.mxu0 0
    %3596 = vmatprep.subr.bf16.mxu0 0
    %3597 = vmatpush1.bf16.xpose.msra.mxu0 0
    %3598 = vmatprep.subr.bf16.mxu0 0
    %3599 = vmatpush1.bf16.xpose.msra.mxu0 %v3582
    %3600 = vmatprep.subr.bf16.mxu0 0
    %3601 = vmatpush2.bf16.xpose.msra.mxu0 0
    %3602 = vmatprep.subr.bf16.mxu0 0
    %3603 = vmatpush2.bf16.xpose.msra.mxu0 0
    %3604 = vmatprep.subr.bf16.mxu0 0
    %3605 = vmatpush2.bf16.xpose.msra.mxu0 0
    %3606 = vmatprep.subr.bf16.mxu0 0
    %3607 = vmatpush2.bf16.xpose.msra.mxu0 0
    %3608 = vmatprep.subr.bf16.mxu0 0
    %3609 = vmatpush2.bf16.xpose.msra.mxu0 0
    %3610 = vmatprep.subr.bf16.mxu0 0
    %3611 = vmatpush2.bf16.xpose.msra.mxu0 0
    %3612 = vmatprep.subr.bf16.mxu0 0
    %3613 = vmatpush2.bf16.xpose.msra.mxu0 0
    %3614 = vmatprep.subr.bf16.mxu0 0
    %3615 = vmatpush2.bf16.xpose.msra.mxu0 0
    %3616 = vmatprep.mubr.bf16.mxu0 0
    %3617 = vmatmul.mubr.bf16.gmra.mxu0 %v3579
    %v3618 = vpop.f32.mrf.mxu0
    %v3619 = vadd.f32 %v24, %v3618
    %v3620 = vpop.f32.mrf.mxu0
    %v3621 = vpop.f32.mrf.mxu0
    %v3622 = vpop.f32.mrf.mxu0
    %3623 = vdwg.mxu0
    %v3624 = vsel %vm607, %v3271, -inf
    %3625 = vmax.xlane.f32.xlu0 %v3624
    %v3626 = vpop.xlane.xlu0 %3625
    %v3627 = vsel %vm607, %v3319, -inf
    %3628 = vmax.xlane.f32.xlu0 %v3627
    %v3629 = vpop.xlane.xlu0 %3628
    %v3630 = vsel %vm607, %v3369, -inf
    %3631 = vmax.xlane.f32.xlu0 %v3630
    %v3632 = vpop.xlane.xlu0 %3631
    %v3633 = vsel %vm607, %v3419, -inf
    %3634 = vmax.xlane.f32.xlu0 %v3633
    %v3635 = vpop.xlane.xlu0 %3634
    %v3636 = vsel %vm607, %v3469, -inf
    %3637 = vmax.xlane.f32.xlu0 %v3636
    %v3638 = vpop.xlane.xlu0 %3637
    %v3639 = vsel %vm607, %v3519, -inf
    %3640 = vmax.xlane.f32.xlu0 %v3639
    %v3641 = vpop.xlane.xlu0 %3640
    %v3642 = vsel %vm607, %v3569, -inf
    %3643 = vmax.xlane.f32.xlu0 %v3642
    %v3644 = vpop.xlane.xlu0 %3643
    %v3645 = vsel %vm607, %v3619, -inf
    %3646 = vmax.xlane.f32.xlu0 %v3645
    %v3647 = vpop.xlane.xlu0 %3646
    %v3648 = vsub.f32 %v3271, %v3626
    %v3649 = vsub.f32 %v3319, %v3629
    %v3650 = vsub.f32 %v3369, %v3632
    %v3651 = vsub.f32 %v3419, %v3635
    %v3652 = vsub.f32 %v3469, %v3638
    %v3653 = vsub.f32 %v3519, %v3641
    %v3654 = vsub.f32 %v3569, %v3644
    %v3655 = vsub.f32 %v3619, %v3647
    %v3656 = vmul.f32 %v3648, 1.442695
    %v3657 = vpow.pop %v3656
    %v3658 = vmul.f32 %v3649, 1.442695
    %v3659 = vpow.pop %v3658
    %v3660 = vmul.f32 %v3650, 1.442695
    %v3661 = vpow.pop %v3660
    %v3662 = vmul.f32 %v3651, 1.442695
    %v3663 = vpow.pop %v3662
    %v3664 = vmul.f32 %v3652, 1.442695
    %v3665 = vpow.pop %v3664
    %v3666 = vmul.f32 %v3653, 1.442695
    %v3667 = vpow.pop %v3666
    %v3668 = vmul.f32 %v3654, 1.442695
    %v3669 = vpow.pop %v3668
    %v3670 = vmul.f32 %v3655, 1.442695
    %v3671 = vpow.pop %v3670
    %v3672 = vsel %vm607, %v3657, 0.0
    %3673 = vadd.xlane.f32.xlu0 %v3672
    %v3674 = vpop.xlane.xlu0 %3673
    %v3675 = vsel %vm607, %v3659, 0.0
    %3676 = vadd.xlane.f32.xlu0 %v3675
    %v3677 = vpop.xlane.xlu0 %3676
    %v3678 = vsel %vm607, %v3661, 0.0
    %3679 = vadd.xlane.f32.xlu0 %v3678
    %v3680 = vpop.xlane.xlu0 %3679
    %v3681 = vsel %vm607, %v3663, 0.0
    %3682 = vadd.xlane.f32.xlu0 %v3681
    %v3683 = vpop.xlane.xlu0 %3682
    %v3684 = vsel %vm607, %v3665, 0.0
    %3685 = vadd.xlane.f32.xlu0 %v3684
    %v3686 = vpop.xlane.xlu0 %3685
    %v3687 = vsel %vm607, %v3667, 0.0
    %3688 = vadd.xlane.f32.xlu0 %v3687
    %v3689 = vpop.xlane.xlu0 %3688
    %v3690 = vsel %vm607, %v3669, 0.0
    %3691 = vadd.xlane.f32.xlu0 %v3690
    %v3692 = vpop.xlane.xlu0 %3691
    %v3693 = vsel %vm607, %v3671, 0.0
    %3694 = vadd.xlane.f32.xlu0 %v3693
    %v3695 = vpop.xlane.xlu0 %3694
    %v3696 = vrcp.pop %v3674
    %v3697 = vrcp.pop %v3677
    %v3698 = vrcp.pop %v3680
    %v3699 = vrcp.pop %v3683
    %v3700 = vrcp.pop %v3686
    %v3701 = vrcp.pop %v3689
    %v3702 = vrcp.pop %v3692
    %v3703 = vrcp.pop %v3695
    %v3704 = vmul.f32 %v3657, %v3696
    %v3705 = vmul.f32 %v3659, %v3697
    %v3706 = vmul.f32 %v3661, %v3698
    %v3707 = vmul.f32 %v3663, %v3699
    %v3708 = vmul.f32 %v3665, %v3700
    %v3709 = vmul.f32 %v3667, %v3701
    %v3710 = vmul.f32 %v3669, %v3702
    %v3711 = vmul.f32 %v3671, %v3703
    %v3712 = vpack.c.bf16 %v3704, %v3704
    %v3713 = vpack.c.bf16 %v3705, %v3705
    %v3714 = vpack.c.bf16 %v3706, %v3706
    %v3715 = vpack.c.bf16 %v3707, %v3707
    %v3716 = vpack.c.bf16 %v3708, %v3708
    %v3717 = vpack.c.bf16 %v3709, %v3709
    %v3718 = vpack.c.bf16 %v3710, %v3710
    %v3719 = vpack.c.bf16 %v3711, %v3711
    %v3721 = vsel %vm607, %v3712, 0
    %v3724 = vsel %vm707, %v3214, 0
    %3726 = vmatprep.subr.bf16.mxu0 0
    %3727 = vmatpush1.bf16.msra.mxu0 0
    %3728 = vmatprep.subr.bf16.mxu0 0
    %3729 = vmatpush1.bf16.msra.mxu0 0
    %3730 = vmatprep.subr.bf16.mxu0 0
    %3731 = vmatpush1.bf16.msra.mxu0 0
    %3732 = vmatprep.subr.bf16.mxu0 0
    %3733 = vmatpush1.bf16.msra.mxu0 0
    %3734 = vmatprep.subr.bf16.mxu0 0
    %3735 = vmatpush1.bf16.msra.mxu0 0
    %3736 = vmatprep.subr.bf16.mxu0 0
    %3737 = vmatpush1.bf16.msra.mxu0 0
    %3738 = vmatprep.subr.bf16.mxu0 0
    %3739 = vmatpush1.bf16.msra.mxu0 0
    %3740 = vmatprep.subr.bf16.mxu0 0
    %3741 = vmatpush1.bf16.msra.mxu0 %v3724
    %3742 = vmatprep.subr.bf16.mxu0 0
    %3743 = vmatpush2.bf16.msra.mxu0 0
    %3744 = vmatprep.subr.bf16.mxu0 0
    %3745 = vmatpush2.bf16.msra.mxu0 0
    %3746 = vmatprep.subr.bf16.mxu0 0
    %3747 = vmatpush2.bf16.msra.mxu0 0
    %3748 = vmatprep.subr.bf16.mxu0 0
    %3749 = vmatpush2.bf16.msra.mxu0 0
    %3750 = vmatprep.subr.bf16.mxu0 0
    %3751 = vmatpush2.bf16.msra.mxu0 0
    %3752 = vmatprep.subr.bf16.mxu0 0
    %3753 = vmatpush2.bf16.msra.mxu0 0
    %3754 = vmatprep.subr.bf16.mxu0 0
    %3755 = vmatpush2.bf16.msra.mxu0 0
    %3756 = vmatprep.subr.bf16.mxu0 0
    %3757 = vmatpush2.bf16.msra.mxu0 0
    %3758 = vmatprep.mubr.bf16.mxu0 0
    %3759 = vmatmul.mubr.bf16.gmra.mxu0 %v3721
    %v3760 = vpop.f32.mrf.mxu0
    %v3761 = vadd.f32 0.0, %v3760
    %v3762 = vpop.f32.mrf.mxu0
    %v3763 = vpop.f32.mrf.mxu0
    %v3764 = vpop.f32.mrf.mxu0
    %3765 = vdwg.mxu0
    %v3767 = vsel %vm607, %v3713, 0
    %v3770 = vsel %vm707, %v3215, 0
    %3772 = vmatprep.subr.bf16.mxu0 0
    %3773 = vmatpush1.bf16.msra.mxu0 0
    %3774 = vmatprep.subr.bf16.mxu0 0
    %3775 = vmatpush1.bf16.msra.mxu0 0
    %3776 = vmatprep.subr.bf16.mxu0 0
    %3777 = vmatpush1.bf16.msra.mxu0 0
    %3778 = vmatprep.subr.bf16.mxu0 0
    %3779 = vmatpush1.bf16.msra.mxu0 0
    %3780 = vmatprep.subr.bf16.mxu0 0
    %3781 = vmatpush1.bf16.msra.mxu0 0
    %3782 = vmatprep.subr.bf16.mxu0 0
    %3783 = vmatpush1.bf16.msra.mxu0 0
    %3784 = vmatprep.subr.bf16.mxu0 0
    %3785 = vmatpush1.bf16.msra.mxu0 0
    %3786 = vmatprep.subr.bf16.mxu0 0
    %3787 = vmatpush1.bf16.msra.mxu0 %v3770
    %3788 = vmatprep.subr.bf16.mxu0 0
    %3789 = vmatpush2.bf16.msra.mxu0 0
    %3790 = vmatprep.subr.bf16.mxu0 0
    %3791 = vmatpush2.bf16.msra.mxu0 0
    %3792 = vmatprep.subr.bf16.mxu0 0
    %3793 = vmatpush2.bf16.msra.mxu0 0
    %3794 = vmatprep.subr.bf16.mxu0 0
    %3795 = vmatpush2.bf16.msra.mxu0 0
    %3796 = vmatprep.subr.bf16.mxu0 0
    %3797 = vmatpush2.bf16.msra.mxu0 0
    %3798 = vmatprep.subr.bf16.mxu0 0
    %3799 = vmatpush2.bf16.msra.mxu0 0
    %3800 = vmatprep.subr.bf16.mxu0 0
    %3801 = vmatpush2.bf16.msra.mxu0 0
    %3802 = vmatprep.subr.bf16.mxu0 0
    %3803 = vmatpush2.bf16.msra.mxu0 0
    %3804 = vmatprep.mubr.bf16.mxu0 0
    %3805 = vmatmul.mubr.bf16.gmra.mxu0 %v3767
    %v3806 = vpop.f32.mrf.mxu0
    %v3807 = vadd.f32 0.0, %v3806
    %v3808 = vpop.f32.mrf.mxu0
    %v3809 = vpop.f32.mrf.mxu0
    %v3810 = vpop.f32.mrf.mxu0
    %3811 = vdwg.mxu0
    %v3813 = vsel %vm607, %v3714, 0
    %v3816 = vsel %vm707, %v3217, 0
    %3818 = vmatprep.subr.bf16.mxu0 0
    %3819 = vmatpush1.bf16.msra.mxu0 0
    %3820 = vmatprep.subr.bf16.mxu0 0
    %3821 = vmatpush1.bf16.msra.mxu0 0
    %3822 = vmatprep.subr.bf16.mxu0 0
    %3823 = vmatpush1.bf16.msra.mxu0 0
    %3824 = vmatprep.subr.bf16.mxu0 0
    %3825 = vmatpush1.bf16.msra.mxu0 0
    %3826 = vmatprep.subr.bf16.mxu0 0
    %3827 = vmatpush1.bf16.msra.mxu0 0
    %3828 = vmatprep.subr.bf16.mxu0 0
    %3829 = vmatpush1.bf16.msra.mxu0 0
    %3830 = vmatprep.subr.bf16.mxu0 0
    %3831 = vmatpush1.bf16.msra.mxu0 0
    %3832 = vmatprep.subr.bf16.mxu0 0
    %3833 = vmatpush1.bf16.msra.mxu0 %v3816
    %3834 = vmatprep.subr.bf16.mxu0 0
    %3835 = vmatpush2.bf16.msra.mxu0 0
    %3836 = vmatprep.subr.bf16.mxu0 0
    %3837 = vmatpush2.bf16.msra.mxu0 0
    %3838 = vmatprep.subr.bf16.mxu0 0
    %3839 = vmatpush2.bf16.msra.mxu0 0
    %3840 = vmatprep.subr.bf16.mxu0 0
    %3841 = vmatpush2.bf16.msra.mxu0 0
    %3842 = vmatprep.subr.bf16.mxu0 0
    %3843 = vmatpush2.bf16.msra.mxu0 0
    %3844 = vmatprep.subr.bf16.mxu0 0
    %3845 = vmatpush2.bf16.msra.mxu0 0
    %3846 = vmatprep.subr.bf16.mxu0 0
    %3847 = vmatpush2.bf16.msra.mxu0 0
    %3848 = vmatprep.subr.bf16.mxu0 0
    %3849 = vmatpush2.bf16.msra.mxu0 0
    %3850 = vmatprep.mubr.bf16.mxu0 0
    %3851 = vmatmul.mubr.bf16.gmra.mxu0 %v3813
    %v3852 = vpop.f32.mrf.mxu0
    %v3853 = vadd.f32 0.0, %v3852
    %v3854 = vpop.f32.mrf.mxu0
    %v3855 = vpop.f32.mrf.mxu0
    %v3856 = vpop.f32.mrf.mxu0
    %3857 = vdwg.mxu0
    %v3859 = vsel %vm607, %v3715, 0
    %v3862 = vsel %vm707, %v3219, 0
    %3864 = vmatprep.subr.bf16.mxu0 0
    %3865 = vmatpush1.bf16.msra.mxu0 0
    %3866 = vmatprep.subr.bf16.mxu0 0
    %3867 = vmatpush1.bf16.msra.mxu0 0
    %3868 = vmatprep.subr.bf16.mxu0 0
    %3869 = vmatpush1.bf16.msra.mxu0 0
    %3870 = vmatprep.subr.bf16.mxu0 0
    %3871 = vmatpush1.bf16.msra.mxu0 0
    %3872 = vmatprep.subr.bf16.mxu0 0
    %3873 = vmatpush1.bf16.msra.mxu0 0
    %3874 = vmatprep.subr.bf16.mxu0 0
    %3875 = vmatpush1.bf16.msra.mxu0 0
    %3876 = vmatprep.subr.bf16.mxu0 0
    %3877 = vmatpush1.bf16.msra.mxu0 0
    %3878 = vmatprep.subr.bf16.mxu0 0
    %3879 = vmatpush1.bf16.msra.mxu0 %v3862
    %3880 = vmatprep.subr.bf16.mxu0 0
    %3881 = vmatpush2.bf16.msra.mxu0 0
    %3882 = vmatprep.subr.bf16.mxu0 0
    %3883 = vmatpush2.bf16.msra.mxu0 0
    %3884 = vmatprep.subr.bf16.mxu0 0
    %3885 = vmatpush2.bf16.msra.mxu0 0
    %3886 = vmatprep.subr.bf16.mxu0 0
    %3887 = vmatpush2.bf16.msra.mxu0 0
    %3888 = vmatprep.subr.bf16.mxu0 0
    %3889 = vmatpush2.bf16.msra.mxu0 0
    %3890 = vmatprep.subr.bf16.mxu0 0
    %3891 = vmatpush2.bf16.msra.mxu0 0
    %3892 = vmatprep.subr.bf16.mxu0 0
    %3893 = vmatpush2.bf16.msra.mxu0 0
    %3894 = vmatprep.subr.bf16.mxu0 0
    %3895 = vmatpush2.bf16.msra.mxu0 0
    %3896 = vmatprep.mubr.bf16.mxu0 0
    %3897 = vmatmul.mubr.bf16.gmra.mxu0 %v3859
    %v3898 = vpop.f32.mrf.mxu0
    %v3899 = vadd.f32 0.0, %v3898
    %v3900 = vpop.f32.mrf.mxu0
    %v3901 = vpop.f32.mrf.mxu0
    %v3902 = vpop.f32.mrf.mxu0
    %3903 = vdwg.mxu0
    %v3905 = vsel %vm607, %v3716, 0
    %v3908 = vsel %vm707, %v3221, 0
    %3910 = vmatprep.subr.bf16.mxu0 0
    %3911 = vmatpush1.bf16.msra.mxu0 0
    %3912 = vmatprep.subr.bf16.mxu0 0
    %3913 = vmatpush1.bf16.msra.mxu0 0
    %3914 = vmatprep.subr.bf16.mxu0 0
    %3915 = vmatpush1.bf16.msra.mxu0 0
    %3916 = vmatprep.subr.bf16.mxu0 0
    %3917 = vmatpush1.bf16.msra.mxu0 0
    %3918 = vmatprep.subr.bf16.mxu0 0
    %3919 = vmatpush1.bf16.msra.mxu0 0
    %3920 = vmatprep.subr.bf16.mxu0 0
    %3921 = vmatpush1.bf16.msra.mxu0 0
    %3922 = vmatprep.subr.bf16.mxu0 0
    %3923 = vmatpush1.bf16.msra.mxu0 0
    %3924 = vmatprep.subr.bf16.mxu0 0
    %3925 = vmatpush1.bf16.msra.mxu0 %v3908
    %3926 = vmatprep.subr.bf16.mxu0 0
    %3927 = vmatpush2.bf16.msra.mxu0 0
    %3928 = vmatprep.subr.bf16.mxu0 0
    %3929 = vmatpush2.bf16.msra.mxu0 0
    %3930 = vmatprep.subr.bf16.mxu0 0
    %3931 = vmatpush2.bf16.msra.mxu0 0
    %3932 = vmatprep.subr.bf16.mxu0 0
    %3933 = vmatpush2.bf16.msra.mxu0 0
    %3934 = vmatprep.subr.bf16.mxu0 0
    %3935 = vmatpush2.bf16.msra.mxu0 0
    %3936 = vmatprep.subr.bf16.mxu0 0
    %3937 = vmatpush2.bf16.msra.mxu0 0
    %3938 = vmatprep.subr.bf16.mxu0 0
    %3939 = vmatpush2.bf16.msra.mxu0 0
    %3940 = vmatprep.subr.bf16.mxu0 0
    %3941 = vmatpush2.bf16.msra.mxu0 0
    %3942 = vmatprep.mubr.bf16.mxu0 0
    %3943 = vmatmul.mubr.bf16.gmra.mxu0 %v3905
    %v3944 = vpop.f32.mrf.mxu0
    %v3945 = vadd.f32 0.0, %v3944
    %v3946 = vpop.f32.mrf.mxu0
    %v3947 = vpop.f32.mrf.mxu0
    %v3948 = vpop.f32.mrf.mxu0
    %3949 = vdwg.mxu0
    %v3951 = vsel %vm607, %v3717, 0
    %v3954 = vsel %vm707, %v3223, 0
    %3956 = vmatprep.subr.bf16.mxu0 0
    %3957 = vmatpush1.bf16.msra.mxu0 0
    %3958 = vmatprep.subr.bf16.mxu0 0
    %3959 = vmatpush1.bf16.msra.mxu0 0
    %3960 = vmatprep.subr.bf16.mxu0 0
    %3961 = vmatpush1.bf16.msra.mxu0 0
    %3962 = vmatprep.subr.bf16.mxu0 0
    %3963 = vmatpush1.bf16.msra.mxu0 0
    %3964 = vmatprep.subr.bf16.mxu0 0
    %3965 = vmatpush1.bf16.msra.mxu0 0
    %3966 = vmatprep.subr.bf16.mxu0 0
    %3967 = vmatpush1.bf16.msra.mxu0 0
    %3968 = vmatprep.subr.bf16.mxu0 0
    %3969 = vmatpush1.bf16.msra.mxu0 0
    %3970 = vmatprep.subr.bf16.mxu0 0
    %3971 = vmatpush1.bf16.msra.mxu0 %v3954
    %3972 = vmatprep.subr.bf16.mxu0 0
    %3973 = vmatpush2.bf16.msra.mxu0 0
    %3974 = vmatprep.subr.bf16.mxu0 0
    %3975 = vmatpush2.bf16.msra.mxu0 0
    %3976 = vmatprep.subr.bf16.mxu0 0
    %3977 = vmatpush2.bf16.msra.mxu0 0
    %3978 = vmatprep.subr.bf16.mxu0 0
    %3979 = vmatpush2.bf16.msra.mxu0 0
    %3980 = vmatprep.subr.bf16.mxu0 0
    %3981 = vmatpush2.bf16.msra.mxu0 0
    %3982 = vmatprep.subr.bf16.mxu0 0
    %3983 = vmatpush2.bf16.msra.mxu0 0
    %3984 = vmatprep.subr.bf16.mxu0 0
    %3985 = vmatpush2.bf16.msra.mxu0 0
    %3986 = vmatprep.subr.bf16.mxu0 0
    %3987 = vmatpush2.bf16.msra.mxu0 0
    %3988 = vmatprep.mubr.bf16.mxu0 0
    %3989 = vmatmul.mubr.bf16.gmra.mxu0 %v3951
    %v3990 = vpop.f32.mrf.mxu0
    %v3991 = vadd.f32 0.0, %v3990
    %v3992 = vpop.f32.mrf.mxu0
    %v3993 = vpop.f32.mrf.mxu0
    %v3994 = vpop.f32.mrf.mxu0
    %3995 = vdwg.mxu0
    %v3997 = vsel %vm607, %v3718, 0
    %v4000 = vsel %vm707, %v3225, 0
    %4002 = vmatprep.subr.bf16.mxu0 0
    %4003 = vmatpush1.bf16.msra.mxu0 0
    %4004 = vmatprep.subr.bf16.mxu0 0
    %4005 = vmatpush1.bf16.msra.mxu0 0
    %4006 = vmatprep.subr.bf16.mxu0 0
    %4007 = vmatpush1.bf16.msra.mxu0 0
    %4008 = vmatprep.subr.bf16.mxu0 0
    %4009 = vmatpush1.bf16.msra.mxu0 0
    %4010 = vmatprep.subr.bf16.mxu0 0
    %4011 = vmatpush1.bf16.msra.mxu0 0
    %4012 = vmatprep.subr.bf16.mxu0 0
    %4013 = vmatpush1.bf16.msra.mxu0 0
    %4014 = vmatprep.subr.bf16.mxu0 0
    %4015 = vmatpush1.bf16.msra.mxu0 0
    %4016 = vmatprep.subr.bf16.mxu0 0
    %4017 = vmatpush1.bf16.msra.mxu0 %v4000
    %4018 = vmatprep.subr.bf16.mxu0 0
    %4019 = vmatpush2.bf16.msra.mxu0 0
    %4020 = vmatprep.subr.bf16.mxu0 0
    %4021 = vmatpush2.bf16.msra.mxu0 0
    %4022 = vmatprep.subr.bf16.mxu0 0
    %4023 = vmatpush2.bf16.msra.mxu0 0
    %4024 = vmatprep.subr.bf16.mxu0 0
    %4025 = vmatpush2.bf16.msra.mxu0 0
    %4026 = vmatprep.subr.bf16.mxu0 0
    %4027 = vmatpush2.bf16.msra.mxu0 0
    %4028 = vmatprep.subr.bf16.mxu0 0
    %4029 = vmatpush2.bf16.msra.mxu0 0
    %4030 = vmatprep.subr.bf16.mxu0 0
    %4031 = vmatpush2.bf16.msra.mxu0 0
    %4032 = vmatprep.subr.bf16.mxu0 0
    %4033 = vmatpush2.bf16.msra.mxu0 0
    %4034 = vmatprep.mubr.bf16.mxu0 0
    %4035 = vmatmul.mubr.bf16.gmra.mxu0 %v3997
    %v4036 = vpop.f32.mrf.mxu0
    %v4037 = vadd.f32 0.0, %v4036
    %v4038 = vpop.f32.mrf.mxu0
    %v4039 = vpop.f32.mrf.mxu0
    %v4040 = vpop.f32.mrf.mxu0
    %4041 = vdwg.mxu0
    %v4043 = vsel %vm607, %v3719, 0
    %v4046 = vsel %vm707, %v3227, 0
    %4048 = vmatprep.subr.bf16.mxu0 0
    %4049 = vmatpush1.bf16.msra.mxu0 0
    %4050 = vmatprep.subr.bf16.mxu0 0
    %4051 = vmatpush1.bf16.msra.mxu0 0
    %4052 = vmatprep.subr.bf16.mxu0 0
    %4053 = vmatpush1.bf16.msra.mxu0 0
    %4054 = vmatprep.subr.bf16.mxu0 0
    %4055 = vmatpush1.bf16.msra.mxu0 0
    %4056 = vmatprep.subr.bf16.mxu0 0
    %4057 = vmatpush1.bf16.msra.mxu0 0
    %4058 = vmatprep.subr.bf16.mxu0 0
    %4059 = vmatpush1.bf16.msra.mxu0 0
    %4060 = vmatprep.subr.bf16.mxu0 0
    %4061 = vmatpush1.bf16.msra.mxu0 0
    %4062 = vmatprep.subr.bf16.mxu0 0
    %4063 = vmatpush1.bf16.msra.mxu0 %v4046
    %4064 = vmatprep.subr.bf16.mxu0 0
    %4065 = vmatpush2.bf16.msra.mxu0 0
    %4066 = vmatprep.subr.bf16.mxu0 0
    %4067 = vmatpush2.bf16.msra.mxu0 0
    %4068 = vmatprep.subr.bf16.mxu0 0
    %4069 = vmatpush2.bf16.msra.mxu0 0
    %4070 = vmatprep.subr.bf16.mxu0 0
    %4071 = vmatpush2.bf16.msra.mxu0 0
    %4072 = vmatprep.subr.bf16.mxu0 0
    %4073 = vmatpush2.bf16.msra.mxu0 0
    %4074 = vmatprep.subr.bf16.mxu0 0
    %4075 = vmatpush2.bf16.msra.mxu0 0
    %4076 = vmatprep.subr.bf16.mxu0 0
    %4077 = vmatpush2.bf16.msra.mxu0 0
    %4078 = vmatprep.subr.bf16.mxu0 0
    %4079 = vmatpush2.bf16.msra.mxu0 0
    %4080 = vmatprep.mubr.bf16.mxu0 0
    %4081 = vmatmul.mubr.bf16.gmra.mxu0 %v4043
    %v4082 = vpop.f32.mrf.mxu0
    %v4083 = vadd.f32 0.0, %v4082
    %v4084 = vpop.f32.mrf.mxu0
    %v4085 = vpop.f32.mrf.mxu0
    %v4086 = vpop.f32.mrf.mxu0
    %4087 = vdwg.mxu0
    %4090 = vrot.lane.b32.xlu0 %v3853, 16
    %v4091 = vpop.permute.xlu0 %4090
    %4092 = vrot.lane.b32.xlu0 %v3899, 16
    %v4093 = vpop.permute.xlu0 %4092
    %4098 = vrot.lane.b32.xlu0 %v3945, 32
    %v4099 = vpop.permute.xlu0 %4098
    %4100 = vrot.lane.b32.xlu0 %v3991, 32
    %v4101 = vpop.permute.xlu0 %4100
    %4106 = vrot.lane.b32.xlu0 %v4037, 48
    %v4107 = vpop.permute.xlu0 %4106
    %4108 = vrot.lane.b32.xlu0 %v4083, 48
    %v4109 = vpop.permute.xlu0 %4108
    %v4112 = vsel %vm212, %v3761, %v4091
    %v4113 = vsel %vm212, %v3807, %v4093
    %v4114 = vsel %vm1099, %v4112, %v4099
    %v4115 = vsel %vm1099, %v4113, %v4101
    %v4116 = vsel %vm1102, %v4114, %v4107
    %v4117 = vsel %vm1102, %v4115, %v4109
    %v4118 = vpack.c.bf16 %v4117, %v4116
    %v4119 = vld [vmem:[%s3085 + $0x10] sm:$0xf]
    %v4120 = vld [vmem:[%s3085 + $0x24] sm:$0xf]
    %v4121 = vld [vmem:[%s3085 + $0x38] sm:$0xf]
    %v4122 = vld [vmem:[%s3085 + $0x4c] sm:$0xf]
    %v4123 = vld [vmem:[%s3085 + $0x60] sm:$0xf]
    %v4124 = vld [vmem:[%s3085 + $0x74] sm:$0xf]
    %v4125 = vld [vmem:[%s3085 + $0x88] sm:$0xf]
    %v4126 = vld [vmem:[%s3085 + $0x9c] sm:$0xf]
    %v4127 = vld [vmem:[%s3043 + $0x4] sm:$0x1]
    %v4129 = vlaneseq
    %v4130 = vshrl.u32 %v4129, 7
    %v4131 = vsub.s32 0, %v4130
    %v4132 = vrot.slane %v4127, %v4131
    %v4142 = vunpack.c.l.b16 %v4119
    %v4143 = vunpack.c.l.b16 %v4120
    %v4144 = vunpack.c.l.b16 %v4121
    %v4145 = vunpack.c.l.b16 %v4122
    %v4146 = vunpack.c.l.b16 %v4123
    %v4147 = vunpack.c.l.b16 %v4124
    %v4148 = vunpack.c.l.b16 %v4125
    %v4149 = vunpack.c.l.b16 %v4126
    %v4150 = vpack.c.b16 %v4143, %v4142
    %v4151 = vpack.c.b16 %v4145, %v4144
    %v4152 = vpack.c.b16 %v4147, %v4146
    %v4153 = vpack.c.b16 %v4149, %v4148
    %v4159 = vsel %vm26, %v4118, 0
    %4161 = vmatprep.subr.bf16.mxu0 0
    %4162 = vmatpush1.bf16.msra.mxu0 0
    %4163 = vmatprep.subr.bf16.mxu0 0
    %4164 = vmatpush1.bf16.msra.mxu0 0
    %4165 = vmatprep.subr.bf16.mxu0 0
    %4166 = vmatpush1.bf16.msra.mxu0 0
    %4167 = vmatprep.subr.bf16.mxu0 0
    %4168 = vmatpush1.bf16.msra.mxu0 0
    %4169 = vmatprep.subr.bf16.mxu0 0
    %4170 = vmatpush1.bf16.msra.mxu0 %v4153
    %4171 = vmatprep.subr.bf16.mxu0 0
    %4172 = vmatpush1.bf16.msra.mxu0 %v4152
    %4173 = vmatprep.subr.bf16.mxu0 0
    %4174 = vmatpush1.bf16.msra.mxu0 %v4151
    %4175 = vmatprep.subr.bf16.mxu0 0
    %4176 = vmatpush1.bf16.msra.mxu0 %v4150
    %4177 = vmatprep.subr.bf16.mxu0 0
    %4178 = vmatpush2.bf16.msra.mxu0 0
    %4179 = vmatprep.subr.bf16.mxu0 0
    %4180 = vmatpush2.bf16.msra.mxu0 0
    %4181 = vmatprep.subr.bf16.mxu0 0
    %4182 = vmatpush2.bf16.msra.mxu0 0
    %4183 = vmatprep.subr.bf16.mxu0 0
    %4184 = vmatpush2.bf16.msra.mxu0 0
    %4185 = vmatprep.subr.bf16.mxu0 0
    %4186 = vmatpush2.bf16.msra.mxu0 0
    %4187 = vmatprep.subr.bf16.mxu0 0
    %4188 = vmatpush2.bf16.msra.mxu0 0
    %4189 = vmatprep.subr.bf16.mxu0 0
    %4190 = vmatpush2.bf16.msra.mxu0 0
    %4191 = vmatprep.subr.bf16.mxu0 0
    %4192 = vmatpush2.bf16.msra.mxu0 0
    %4193 = vmatprep.mubr.bf16.mxu0 0
    %4194 = vmatmul.mubr.bf16.gmra.mxu0 %v4159
    %v4195 = vpop.f32.mrf.mxu0
    %v4196 = vadd.f32 %v4132, %v4195
    %v4197 = vpop.f32.mrf.mxu0
    %v4198 = vpop.f32.mrf.mxu0
    %v4199 = vadd.f32 %v4132, %v4198
    %v4200 = vpop.f32.mrf.mxu0
    %4201 = vdwg.mxu0
    %v4202 = vadd.f32 %v3041, %v4196
    %v4203 = vadd.f32 %v3042, %v4199
    %v4204 = vld [vmem:[%s3043 + $0x1] sm:$0x1]
    %v4205 = vsel %vm26, %v4202, 0.0
    %4206 = vadd.xlane.f32.xlu0 %v4205
    %v4207 = vpop.xlane.xlu0 %4206
    %v4208 = vsel %vm26, %v4203, 0.0
    %4209 = vadd.xlane.f32.xlu0 %v4208
    %v4210 = vpop.xlane.xlu0 %4209
    %v4211 = vmul.f32 %v4207, %v33
    %v4212 = vmul.f32 %v4210, %v33
    %v4213 = vsub.f32 %v4202, %v4211
    %v4214 = vsub.f32 %v4203, %v4212
    %v4215 = vmul.f32 %v4213, %v4213
    %v4216 = vmul.f32 %v4214, %v4214
    %v4217 = vsel %vm26, %v4215, 0.0
    %4218 = vadd.xlane.f32.xlu0 %v4217
    %v4219 = vpop.xlane.xlu0 %4218
    %v4220 = vsel %vm26, %v4216, 0.0
    %4221 = vadd.xlane.f32.xlu0 %v4220
    %v4222 = vpop.xlane.xlu0 %4221
    %v4223 = vmul.f32 %v4219, %v33
    %v4224 = vmul.f32 %v4222, %v33
    %v4225 = vadd.f32 %v4223, 1e-05
    %v4226 = vadd.f32 %v4224, 1e-05
    %v4227 = vrsqrt.pop %v4225
    %v4228 = vrsqrt.pop %v4226
    %v4229 = vmul.f32 %v4213, %v4227
    %v4230 = vmul.f32 %v4214, %v4228
    %v4232 = vlaneseq
    %v4233 = vshrl.u32 %v4232, 7
    %v4234 = vsub.s32 0, %v4233
    %v4235 = vrot.slane %v4204, %v4234
    %v4237 = vmul.f32 %v4229, %v4235
    %v4238 = vmul.f32 %v4230, %v4235
    %4239 = vrot.lane.b32.xlu0 %v4235, 64
    %v4240 = vpop.permute.xlu0 %4239
    %v4242 = vadd.f32 %v4237, %v4240
    %v4243 = vadd.f32 %v4238, %v4240
    %v4244 = vpack.c.bf16 %v4243, %v4242
    %v4245 = vld [vmem:[%s3085 + $0x8] sm:$0xff]
    %v4246 = vld [vmem:[%s3085 + $0x1c] sm:$0xff]
    %v4247 = vld [vmem:[%s3085 + $0x30] sm:$0xff]
    %v4248 = vld [vmem:[%s3085 + $0x44] sm:$0xff]
    %v4249 = vld [vmem:[%s3085 + $0x58] sm:$0xff]
    %v4250 = vld [vmem:[%s3085 + $0x6c] sm:$0xff]
    %v4251 = vld [vmem:[%s3085 + $0x80] sm:$0xff]
    %v4252 = vld [vmem:[%s3085 + $0x94] sm:$0xff]
    %v4253 = vld [vmem:[%s3043 + $0x4] sm:$0x7]
    %v4255 = vlaneseq
    %v4256 = vshrl.u32 %v4255, 7
    %v4257 = vsub.s32 0, %v4256
    %v4258 = vrot.slane %v4253, %v4257
    %v4259 = vlaneseq
    %v4260 = vshrl.u32 %v4259, 7
    %v4261 = vsub.s32 1, %v4260
    %v4262 = vrot.slane %v4253, %v4261
    %v4263 = vlaneseq
    %v4264 = vshrl.u32 %v4263, 7
    %v4265 = vsub.s32 2, %v4264
    %v4266 = vrot.slane %v4253, %v4265
    %v4275 = vunpack.c.l.b16 %v4245
    %v4276 = vunpack.c.h.b16 %v4245
    %v4277 = vunpack.c.l.b16 %v4246
    %v4278 = vunpack.c.h.b16 %v4246
    %v4279 = vunpack.c.l.b16 %v4247
    %v4280 = vunpack.c.h.b16 %v4247
    %v4281 = vunpack.c.l.b16 %v4248
    %v4282 = vunpack.c.h.b16 %v4248
    %v4283 = vunpack.c.l.b16 %v4249
    %v4284 = vunpack.c.h.b16 %v4249
    %v4285 = vunpack.c.l.b16 %v4250
    %v4286 = vunpack.c.h.b16 %v4250
    %v4287 = vunpack.c.l.b16 %v4251
    %v4288 = vunpack.c.h.b16 %v4251
    %v4289 = vunpack.c.l.b16 %v4252
    %v4290 = vunpack.c.h.b16 %v4252
    %v4291 = vpack.c.b16 %v4277, %v4275
    %v4292 = vpack.c.b16 %v4278, %v4276
    %v4293 = vpack.c.b16 %v4281, %v4279
    %v4294 = vpack.c.b16 %v4282, %v4280
    %v4295 = vpack.c.b16 %v4285, %v4283
    %v4296 = vpack.c.b16 %v4286, %v4284
    %v4297 = vpack.c.b16 %v4289, %v4287
    %v4298 = vpack.c.b16 %v4290, %v4288
    %4307 = vrot.lane.b32.xlu0 %v4258, 64
    %v4308 = vpop.permute.xlu0 %4307
    %4309 = vrot.lane.b32.xlu0 %v4262, 64
    %v4310 = vpop.permute.xlu0 %4309
    %4311 = vrot.lane.b32.xlu0 %v4266, 64
    %v4312 = vpop.permute.xlu0 %4311
    %v4313 = vsel %vm26, %v4308, %v4310
    %v4314 = vsel %vm26, %v4310, %v4312
    %v4318 = vsel %vm26, %v4244, 0
    %4320 = vmatprep.subr.bf16.mxu0 0
    %4321 = vmatpush1.bf16.msra.mxu0 0
    %4322 = vmatprep.subr.bf16.mxu0 0
    %4323 = vmatpush1.bf16.msra.mxu0 0
    %4324 = vmatprep.subr.bf16.mxu0 0
    %4325 = vmatpush1.bf16.msra.mxu0 0
    %4326 = vmatprep.subr.bf16.mxu0 0
    %4327 = vmatpush1.bf16.msra.mxu0 0
    %4328 = vmatprep.subr.bf16.mxu0 %v4298
    %4329 = vmatpush1.bf16.msra.mxu0 %v4297
    %4330 = vmatprep.subr.bf16.mxu0 %v4296
    %4331 = vmatpush1.bf16.msra.mxu0 %v4295
    %4332 = vmatprep.subr.bf16.mxu0 %v4294
    %4333 = vmatpush1.bf16.msra.mxu0 %v4293
    %4334 = vmatprep.subr.bf16.mxu0 %v4292
    %4335 = vmatpush1.bf16.msra.mxu0 %v4291
    %4336 = vmatprep.subr.bf16.mxu0 0
    %4337 = vmatpush2.bf16.msra.mxu0 0
    %4338 = vmatprep.subr.bf16.mxu0 0
    %4339 = vmatpush2.bf16.msra.mxu0 0
    %4340 = vmatprep.subr.bf16.mxu0 0
    %4341 = vmatpush2.bf16.msra.mxu0 0
    %4342 = vmatprep.subr.bf16.mxu0 0
    %4343 = vmatpush2.bf16.msra.mxu0 0
    %4344 = vmatprep.subr.bf16.mxu0 0
    %4345 = vmatpush2.bf16.msra.mxu0 0
    %4346 = vmatprep.subr.bf16.mxu0 0
    %4347 = vmatpush2.bf16.msra.mxu0 0
    %4348 = vmatprep.subr.bf16.mxu0 0
    %4349 = vmatpush2.bf16.msra.mxu0 0
    %4350 = vmatprep.subr.bf16.mxu0 0
    %4351 = vmatpush2.bf16.msra.mxu0 0
    %4352 = vmatprep.mubr.bf16.mxu0 0
    %4353 = vmatmul.mubr.bf16.gmra.mxu0 %v4318
    %v4354 = vpop.f32.mrf.mxu0
    %v4355 = vadd.f32 %v4313, %v4354
    %v4356 = vpop.f32.mrf.mxu0
    %v4357 = vadd.f32 %v4314, %v4356
    %v4358 = vpop.f32.mrf.mxu0
    %v4359 = vadd.f32 %v4313, %v4358
    %v4360 = vpop.f32.mrf.mxu0
    %v4361 = vadd.f32 %v4314, %v4360
    %4362 = vdwg.mxu0
    %v4363 = vmax.f32 %v4355, 0.0
    %v4364 = vmax.f32 %v4357, 0.0
    %v4365 = vmax.f32 %v4359, 0.0
    %v4366 = vmax.f32 %v4361, 0.0
    %v4367 = vpack.c.bf16 %v4365, %v4363
    %v4368 = vpack.c.bf16 %v4366, %v4364
    %s4369 = scalar_lea.vmem %s3, 256
    %v4370 = vld [vmem:[%s4369] sm:$0xf]
    %v4371 = vld [vmem:[%s4369 + $0x4] sm:$0xf]
    %v4372 = vld [vmem:[%s4369 + $0x8] sm:$0xf]
    %v4373 = vld [vmem:[%s4369 + $0xc] sm:$0xf]
    %v4374 = vld [vmem:[%s4369 + $0x10] sm:$0xf]
    %v4375 = vld [vmem:[%s4369 + $0x14] sm:$0xf]
    %v4376 = vld [vmem:[%s4369 + $0x18] sm:$0xf]
    %v4377 = vld [vmem:[%s4369 + $0x1c] sm:$0xf]
    %v4378 = vld [vmem:[%s4369 + $0x20] sm:$0xf]
    %v4379 = vld [vmem:[%s4369 + $0x24] sm:$0xf]
    %v4380 = vld [vmem:[%s4369 + $0x28] sm:$0xf]
    %v4381 = vld [vmem:[%s4369 + $0x2c] sm:$0xf]
    %v4382 = vld [vmem:[%s4369 + $0x30] sm:$0xf]
    %v4383 = vld [vmem:[%s4369 + $0x34] sm:$0xf]
    %v4384 = vld [vmem:[%s4369 + $0x38] sm:$0xf]
    %v4385 = vld [vmem:[%s4369 + $0x3c] sm:$0xf]
    %v4386 = vld [vmem:[%s4369 + $0x40] sm:$0xf]
    %v4387 = vld [vmem:[%s4369 + $0x44] sm:$0xf]
    %v4388 = vld [vmem:[%s4369 + $0x48] sm:$0xf]
    %v4389 = vld [vmem:[%s4369 + $0x4c] sm:$0xf]
    %v4390 = vld [vmem:[%s4369 + $0x50] sm:$0xf]
    %v4391 = vld [vmem:[%s4369 + $0x54] sm:$0xf]
    %v4392 = vld [vmem:[%s4369 + $0x58] sm:$0xf]
    %v4393 = vld [vmem:[%s4369 + $0x5c] sm:$0xf]
    %v4394 = vld [vmem:[%s4369 + $0x60] sm:$0xf]
    %v4395 = vld [vmem:[%s4369 + $0x64] sm:$0xf]
    %v4396 = vld [vmem:[%s4369 + $0x68] sm:$0xf]
    %v4397 = vld [vmem:[%s4369 + $0x6c] sm:$0xf]
    %v4398 = vld [vmem:[%s4369 + $0x70] sm:$0xf]
    %v4399 = vld [vmem:[%s4369 + $0x74] sm:$0xf]
    %v4400 = vld [vmem:[%s4369 + $0x78] sm:$0xf]
    %v4401 = vld [vmem:[%s4369 + $0x7c] sm:$0xf]
    %v4402 = vld [vmem:[%s3043 + $0x6] sm:$0x1]
    %v4404 = vlaneseq
    %v4405 = vshrl.u32 %v4404, 7
    %v4406 = vsub.s32 0, %v4405
    %v4407 = vrot.slane %v4402, %v4406
    %v4440 = vunpack.c.l.b16 %v4370
    %v4441 = vunpack.c.l.b16 %v4371
    %v4442 = vunpack.c.l.b16 %v4372
    %v4443 = vunpack.c.l.b16 %v4373
    %v4444 = vunpack.c.l.b16 %v4374
    %v4445 = vunpack.c.l.b16 %v4375
    %v4446 = vunpack.c.l.b16 %v4376
    %v4447 = vunpack.c.l.b16 %v4377
    %v4448 = vunpack.c.l.b16 %v4378
    %v4449 = vunpack.c.l.b16 %v4379
    %v4450 = vunpack.c.l.b16 %v4380
    %v4451 = vunpack.c.l.b16 %v4381
    %v4452 = vunpack.c.l.b16 %v4382
    %v4453 = vunpack.c.l.b16 %v4383
    %v4454 = vunpack.c.l.b16 %v4384
    %v4455 = vunpack.c.l.b16 %v4385
    %v4456 = vunpack.c.l.b16 %v4386
    %v4457 = vunpack.c.l.b16 %v4387
    %v4458 = vunpack.c.l.b16 %v4388
    %v4459 = vunpack.c.l.b16 %v4389
    %v4460 = vunpack.c.l.b16 %v4390
    %v4461 = vunpack.c.l.b16 %v4391
    %v4462 = vunpack.c.l.b16 %v4392
    %v4463 = vunpack.c.l.b16 %v4393
    %v4464 = vunpack.c.l.b16 %v4394
    %v4465 = vunpack.c.l.b16 %v4395
    %v4466 = vunpack.c.l.b16 %v4396
    %v4467 = vunpack.c.l.b16 %v4397
    %v4468 = vunpack.c.l.b16 %v4398
    %v4469 = vunpack.c.l.b16 %v4399
    %v4470 = vunpack.c.l.b16 %v4400
    %v4471 = vunpack.c.l.b16 %v4401
    %v4472 = vpack.c.b16 %v4441, %v4440
    %v4473 = vpack.c.b16 %v4443, %v4442
    %v4474 = vpack.c.b16 %v4445, %v4444
    %v4475 = vpack.c.b16 %v4447, %v4446
    %v4476 = vpack.c.b16 %v4449, %v4448
    %v4477 = vpack.c.b16 %v4451, %v4450
    %v4478 = vpack.c.b16 %v4453, %v4452
    %v4479 = vpack.c.b16 %v4455, %v4454
    %v4480 = vpack.c.b16 %v4457, %v4456
    %v4481 = vpack.c.b16 %v4459, %v4458
    %v4482 = vpack.c.b16 %v4461, %v4460
    %v4483 = vpack.c.b16 %v4463, %v4462
    %v4484 = vpack.c.b16 %v4465, %v4464
    %v4485 = vpack.c.b16 %v4467, %v4466
    %v4486 = vpack.c.b16 %v4469, %v4468
    %v4487 = vpack.c.b16 %v4471, %v4470
    %4504 = vrot.lane.b32.xlu0 %v4407, 64
    %v4505 = vpop.permute.xlu0 %4504
    %4507 = vmatprep.subr.bf16.mxu0 0
    %4508 = vmatpush1.bf16.msra.mxu0 %v4479
    %4509 = vmatprep.subr.bf16.mxu0 0
    %4510 = vmatpush1.bf16.msra.mxu0 %v4478
    %4511 = vmatprep.subr.bf16.mxu0 0
    %4512 = vmatpush1.bf16.msra.mxu0 %v4477
    %4513 = vmatprep.subr.bf16.mxu0 0
    %4514 = vmatpush1.bf16.msra.mxu0 %v4476
    %4515 = vmatprep.subr.bf16.mxu0 0
    %4516 = vmatpush1.bf16.msra.mxu0 %v4475
    %4517 = vmatprep.subr.bf16.mxu0 0
    %4518 = vmatpush1.bf16.msra.mxu0 %v4474
    %4519 = vmatprep.subr.bf16.mxu0 0
    %4520 = vmatpush1.bf16.msra.mxu0 %v4473
    %4521 = vmatprep.subr.bf16.mxu0 0
    %4522 = vmatpush1.bf16.msra.mxu0 %v4472
    %4523 = vmatprep.subr.bf16.mxu0 0
    %4524 = vmatpush2.bf16.msra.mxu0 %v4487
    %4525 = vmatprep.subr.bf16.mxu0 0
    %4526 = vmatpush2.bf16.msra.mxu0 %v4486
    %4527 = vmatprep.subr.bf16.mxu0 0
    %4528 = vmatpush2.bf16.msra.mxu0 %v4485
    %4529 = vmatprep.subr.bf16.mxu0 0
    %4530 = vmatpush2.bf16.msra.mxu0 %v4484
    %4531 = vmatprep.subr.bf16.mxu0 0
    %4532 = vmatpush2.bf16.msra.mxu0 %v4483
    %4533 = vmatprep.subr.bf16.mxu0 0
    %4534 = vmatpush2.bf16.msra.mxu0 %v4482
    %4535 = vmatprep.subr.bf16.mxu0 0
    %4536 = vmatpush2.bf16.msra.mxu0 %v4481
    %4537 = vmatprep.subr.bf16.mxu0 0
    %4538 = vmatpush2.bf16.msra.mxu0 %v4480
    %4539 = vmatprep.mubr.bf16.mxu0 %v4368
    %4540 = vmatmul.mubr.bf16.gmra.mxu0 %v4367
    %v4541 = vpop.f32.mrf.mxu0
    %v4542 = vadd.f32 %v4505, %v4541
    %v4543 = vpop.f32.mrf.mxu0
    %v4544 = vpop.f32.mrf.mxu0
    %v4545 = vadd.f32 %v4505, %v4544
    %v4546 = vpop.f32.mrf.mxu0
    %4547 = vdwg.mxu0
    %v4548 = vadd.f32 %v4202, %v4542
    %v4549 = vadd.f32 %v4203, %v4545
    %s4550 = scalar_lea.vmem %s4, 21
    %v4551 = vld [vmem:[%s4550] sm:$0x1]
    %v4552 = vsel %vm26, %v4548, 0.0
    %4553 = vadd.xlane.f32.xlu0 %v4552
    %v4554 = vpop.xlane.xlu0 %4553
    %v4555 = vsel %vm26, %v4549, 0.0
    %4556 = vadd.xlane.f32.xlu0 %v4555
    %v4557 = vpop.xlane.xlu0 %4556
    %v4558 = vmul.f32 %v4554, %v33
    %v4559 = vmul.f32 %v4557, %v33
    %v4560 = vsub.f32 %v4548, %v4558
    %v4561 = vsub.f32 %v4549, %v4559
    %v4562 = vmul.f32 %v4560, %v4560
    %v4563 = vmul.f32 %v4561, %v4561
    %v4564 = vsel %vm26, %v4562, 0.0
    %4565 = vadd.xlane.f32.xlu0 %v4564
    %v4566 = vpop.xlane.xlu0 %4565
    %v4567 = vsel %vm26, %v4563, 0.0
    %4568 = vadd.xlane.f32.xlu0 %v4567
    %v4569 = vpop.xlane.xlu0 %4568
    %v4570 = vmul.f32 %v4566, %v33
    %v4571 = vmul.f32 %v4569, %v33
    %v4572 = vadd.f32 %v4570, 1e-05
    %v4573 = vadd.f32 %v4571, 1e-05
    %v4574 = vrsqrt.pop %v4572
    %v4575 = vrsqrt.pop %v4573
    %v4576 = vmul.f32 %v4560, %v4574
    %v4577 = vmul.f32 %v4561, %v4575
    %v4579 = vlaneseq
    %v4580 = vshrl.u32 %v4579, 7
    %v4581 = vsub.s32 0, %v4580
    %v4582 = vrot.slane %v4551, %v4581
    %v4584 = vmul.f32 %v4576, %v4582
    %v4585 = vmul.f32 %v4577, %v4582
    %4586 = vrot.lane.b32.xlu0 %v4582, 64
    %v4587 = vpop.permute.xlu0 %4586
    %v4589 = vadd.f32 %v4584, %v4587
    %v4590 = vadd.f32 %v4585, %v4587
    %v4591 = vpack.c.bf16 %v4590, %v4589
    %s4592 = scalar_lea.vmem %s2, 480
    %v4593 = vld [vmem:[%s4592] sm:$0xff]
    %v4594 = vld [vmem:[%s4592 + $0x14] sm:$0xff]
    %v4595 = vld [vmem:[%s4592 + $0x28] sm:$0xff]
    %v4596 = vld [vmem:[%s4592 + $0x3c] sm:$0xff]
    %v4597 = vld [vmem:[%s4592 + $0x50] sm:$0xff]
    %v4598 = vld [vmem:[%s4592 + $0x64] sm:$0xff]
    %v4599 = vld [vmem:[%s4592 + $0x78] sm:$0xff]
    %v4600 = vld [vmem:[%s4592 + $0x8c] sm:$0xff]
    %v4601 = vld [vmem:[%s4550 + $0x2] sm:$0x3]
    %v4603 = vlaneseq
    %v4604 = vshrl.u32 %v4603, 7
    %v4605 = vsub.s32 0, %v4604
    %v4606 = vrot.slane %v4601, %v4605
    %v4607 = vlaneseq
    %v4608 = vshrl.u32 %v4607, 7
    %v4609 = vsub.s32 1, %v4608
    %v4610 = vrot.slane %v4601, %v4609
    %v4621 = vunpack.c.l.b16 %v4593
    %v4622 = vunpack.c.h.b16 %v4593
    %v4623 = vunpack.c.l.b16 %v4594
    %v4624 = vunpack.c.h.b16 %v4594
    %v4625 = vunpack.c.l.b16 %v4595
    %v4626 = vunpack.c.h.b16 %v4595
    %v4627 = vunpack.c.l.b16 %v4596
    %v4628 = vunpack.c.h.b16 %v4596
    %v4629 = vunpack.c.l.b16 %v4597
    %v4630 = vunpack.c.h.b16 %v4597
    %v4631 = vunpack.c.l.b16 %v4598
    %v4632 = vunpack.c.h.b16 %v4598
    %v4633 = vunpack.c.l.b16 %v4599
    %v4634 = vunpack.c.h.b16 %v4599
    %v4635 = vunpack.c.l.b16 %v4600
    %v4636 = vunpack.c.h.b16 %v4600
    %v4637 = vpack.c.b16 %v4623, %v4621
    %v4638 = vpack.c.b16 %v4624, %v4622
    %v4639 = vpack.c.b16 %v4627, %v4625
    %v4640 = vpack.c.b16 %v4628, %v4626
    %v4641 = vpack.c.b16 %v4631, %v4629
    %v4642 = vpack.c.b16 %v4632, %v4630
    %v4643 = vpack.c.b16 %v4635, %v4633
    %v4644 = vpack.c.b16 %v4636, %v4634
    %v4654 = vsel %vm26, %v4591, 0
    %4656 = vmatprep.subr.bf16.mxu0 0
    %4657 = vmatpush1.bf16.msra.mxu0 0
    %4658 = vmatprep.subr.bf16.mxu0 0
    %4659 = vmatpush1.bf16.msra.mxu0 0
    %4660 = vmatprep.subr.bf16.mxu0 0
    %4661 = vmatpush1.bf16.msra.mxu0 0
    %4662 = vmatprep.subr.bf16.mxu0 0
    %4663 = vmatpush1.bf16.msra.mxu0 0
    %4664 = vmatprep.subr.bf16.mxu0 %v4644
    %4665 = vmatpush1.bf16.msra.mxu0 %v4643
    %4666 = vmatprep.subr.bf16.mxu0 %v4642
    %4667 = vmatpush1.bf16.msra.mxu0 %v4641
    %4668 = vmatprep.subr.bf16.mxu0 %v4640
    %4669 = vmatpush1.bf16.msra.mxu0 %v4639
    %4670 = vmatprep.subr.bf16.mxu0 %v4638
    %4671 = vmatpush1.bf16.msra.mxu0 %v4637
    %4672 = vmatprep.subr.bf16.mxu0 0
    %4673 = vmatpush2.bf16.msra.mxu0 0
    %4674 = vmatprep.subr.bf16.mxu0 0
    %4675 = vmatpush2.bf16.msra.mxu0 0
    %4676 = vmatprep.subr.bf16.mxu0 0
    %4677 = vmatpush2.bf16.msra.mxu0 0
    %4678 = vmatprep.subr.bf16.mxu0 0
    %4679 = vmatpush2.bf16.msra.mxu0 0
    %4680 = vmatprep.subr.bf16.mxu0 0
    %4681 = vmatpush2.bf16.msra.mxu0 0
    %4682 = vmatprep.subr.bf16.mxu0 0
    %4683 = vmatpush2.bf16.msra.mxu0 0
    %4684 = vmatprep.subr.bf16.mxu0 0
    %4685 = vmatpush2.bf16.msra.mxu0 0
    %4686 = vmatprep.subr.bf16.mxu0 0
    %4687 = vmatpush2.bf16.msra.mxu0 0
    %4688 = vmatprep.mubr.bf16.mxu0 0
    %4689 = vmatmul.mubr.bf16.gmra.mxu0 %v4654
    %v4690 = vpop.f32.mrf.mxu0
    %v4691 = vadd.f32 %v4606, %v4690
    %v4692 = vpop.f32.mrf.mxu0
    %v4693 = vadd.f32 %v4610, %v4692
    %v4694 = vpop.f32.mrf.mxu0
    %v4695 = vadd.f32 %v4606, %v4694
    %v4696 = vpop.f32.mrf.mxu0
    %v4697 = vadd.f32 %v4610, %v4696
    %4698 = vdwg.mxu0
    %v4699 = vpack.c.bf16 %v4695, %v4691
    %v4700 = vpack.c.bf16 %v4697, %v4693
    %v4702 = vunpack.c.l.b16 %v4699
    %v4703 = vunpack.c.h.b16 %v4699
    %v4704 = vpack.c.b16 %v4702, %v4702
    %v4705 = vpack.c.b16 %v4703, %v4703
    %4706 = vrot.lane.b32.xlu0 %v4704, 112
    %v4707 = vpop.permute.xlu0 %4706
    %4708 = vrot.lane.b32.xlu0 %v4705, 112
    %v4709 = vpop.permute.xlu0 %4708
    %4710 = vrot.lane.b32.xlu0 %v4704, 96
    %v4711 = vpop.permute.xlu0 %4710
    %4712 = vrot.lane.b32.xlu0 %v4705, 96
    %v4713 = vpop.permute.xlu0 %4712
    %4714 = vrot.lane.b32.xlu0 %v4704, 80
    %v4715 = vpop.permute.xlu0 %4714
    %4716 = vrot.lane.b32.xlu0 %v4705, 80
    %v4717 = vpop.permute.xlu0 %4716
    %v4719 = vunpack.c.l.b16 %v4700
    %v4720 = vunpack.c.h.b16 %v4700
    %v4721 = vpack.c.b16 %v4719, %v4719
    %v4722 = vpack.c.b16 %v4720, %v4720
    %4723 = vrot.lane.b32.xlu0 %v4721, 112
    %v4724 = vpop.permute.xlu0 %4723
    %4725 = vrot.lane.b32.xlu0 %v4722, 112
    %v4726 = vpop.permute.xlu0 %4725
    %4727 = vrot.lane.b32.xlu0 %v4721, 96
    %v4728 = vpop.permute.xlu0 %4727
    %4729 = vrot.lane.b32.xlu0 %v4722, 96
    %v4730 = vpop.permute.xlu0 %4729
    %4731 = vrot.lane.b32.xlu0 %v4721, 80
    %v4732 = vpop.permute.xlu0 %4731
    %4733 = vrot.lane.b32.xlu0 %v4722, 80
    %v4734 = vpop.permute.xlu0 %4733
    %4735 = vrot.lane.b32.xlu0 %v4704, 64
    %v4736 = vpop.permute.xlu0 %4735
    %v4738 = vsel %vm212, %v4704, 0
    %v4741 = vsel %vm212, %v4736, 0
    %4743 = vmatprep.subr.bf16.mxu0 0
    %4744 = vmatpush1.bf16.xpose.msra.mxu0 0
    %4745 = vmatprep.subr.bf16.mxu0 0
    %4746 = vmatpush1.bf16.xpose.msra.mxu0 0
    %4747 = vmatprep.subr.bf16.mxu0 0
    %4748 = vmatpush1.bf16.xpose.msra.mxu0 0
    %4749 = vmatprep.subr.bf16.mxu0 0
    %4750 = vmatpush1.bf16.xpose.msra.mxu0 0
    %4751 = vmatprep.subr.bf16.mxu0 0
    %4752 = vmatpush1.bf16.xpose.msra.mxu0 0
    %4753 = vmatprep.subr.bf16.mxu0 0
    %4754 = vmatpush1.bf16.xpose.msra.mxu0 0
    %4755 = vmatprep.subr.bf16.mxu0 0
    %4756 = vmatpush1.bf16.xpose.msra.mxu0 0
    %4757 = vmatprep.subr.bf16.mxu0 0
    %4758 = vmatpush1.bf16.xpose.msra.mxu0 %v4741
    %4759 = vmatprep.subr.bf16.mxu0 0
    %4760 = vmatpush2.bf16.xpose.msra.mxu0 0
    %4761 = vmatprep.subr.bf16.mxu0 0
    %4762 = vmatpush2.bf16.xpose.msra.mxu0 0
    %4763 = vmatprep.subr.bf16.mxu0 0
    %4764 = vmatpush2.bf16.xpose.msra.mxu0 0
    %4765 = vmatprep.subr.bf16.mxu0 0
    %4766 = vmatpush2.bf16.xpose.msra.mxu0 0
    %4767 = vmatprep.subr.bf16.mxu0 0
    %4768 = vmatpush2.bf16.xpose.msra.mxu0 0
    %4769 = vmatprep.subr.bf16.mxu0 0
    %4770 = vmatpush2.bf16.xpose.msra.mxu0 0
    %4771 = vmatprep.subr.bf16.mxu0 0
    %4772 = vmatpush2.bf16.xpose.msra.mxu0 0
    %4773 = vmatprep.subr.bf16.mxu0 0
    %4774 = vmatpush2.bf16.xpose.msra.mxu0 0
    %4775 = vmatprep.mubr.bf16.mxu0 0
    %4776 = vmatmul.mubr.bf16.gmra.mxu0 %v4738
    %v4777 = vpop.f32.mrf.mxu0
    %v4778 = vadd.f32 %v24, %v4777
    %v4779 = vpop.f32.mrf.mxu0
    %v4780 = vpop.f32.mrf.mxu0
    %v4781 = vpop.f32.mrf.mxu0
    %4782 = vdwg.mxu0
    %4783 = vrot.lane.b32.xlu0 %v4705, 64
    %v4784 = vpop.permute.xlu0 %4783
    %v4786 = vsel %vm212, %v4705, 0
    %v4789 = vsel %vm212, %v4784, 0
    %4791 = vmatprep.subr.bf16.mxu0 0
    %4792 = vmatpush1.bf16.xpose.msra.mxu0 0
    %4793 = vmatprep.subr.bf16.mxu0 0
    %4794 = vmatpush1.bf16.xpose.msra.mxu0 0
    %4795 = vmatprep.subr.bf16.mxu0 0
    %4796 = vmatpush1.bf16.xpose.msra.mxu0 0
    %4797 = vmatprep.subr.bf16.mxu0 0
    %4798 = vmatpush1.bf16.xpose.msra.mxu0 0
    %4799 = vmatprep.subr.bf16.mxu0 0
    %4800 = vmatpush1.bf16.xpose.msra.mxu0 0
    %4801 = vmatprep.subr.bf16.mxu0 0
    %4802 = vmatpush1.bf16.xpose.msra.mxu0 0
    %4803 = vmatprep.subr.bf16.mxu0 0
    %4804 = vmatpush1.bf16.xpose.msra.mxu0 0
    %4805 = vmatprep.subr.bf16.mxu0 0
    %4806 = vmatpush1.bf16.xpose.msra.mxu0 %v4789
    %4807 = vmatprep.subr.bf16.mxu0 0
    %4808 = vmatpush2.bf16.xpose.msra.mxu0 0
    %4809 = vmatprep.subr.bf16.mxu0 0
    %4810 = vmatpush2.bf16.xpose.msra.mxu0 0
    %4811 = vmatprep.subr.bf16.mxu0 0
    %4812 = vmatpush2.bf16.xpose.msra.mxu0 0
    %4813 = vmatprep.subr.bf16.mxu0 0
    %4814 = vmatpush2.bf16.xpose.msra.mxu0 0
    %4815 = vmatprep.subr.bf16.mxu0 0
    %4816 = vmatpush2.bf16.xpose.msra.mxu0 0
    %4817 = vmatprep.subr.bf16.mxu0 0
    %4818 = vmatpush2.bf16.xpose.msra.mxu0 0
    %4819 = vmatprep.subr.bf16.mxu0 0
    %4820 = vmatpush2.bf16.xpose.msra.mxu0 0
    %4821 = vmatprep.subr.bf16.mxu0 0
    %4822 = vmatpush2.bf16.xpose.msra.mxu0 0
    %4823 = vmatprep.mubr.bf16.mxu0 0
    %4824 = vmatmul.mubr.bf16.gmra.mxu0 %v4786
    %v4825 = vpop.f32.mrf.mxu0
    %v4826 = vadd.f32 %v24, %v4825
    %v4827 = vpop.f32.mrf.mxu0
    %v4828 = vpop.f32.mrf.mxu0
    %v4829 = vpop.f32.mrf.mxu0
    %4830 = vdwg.mxu0
    %v4831 = vunpack.c.l.b16 %v4707
    %v4832 = vpack.c.b16 %v4831, %v4831
    %4833 = vrot.lane.b32.xlu0 %v4832, 64
    %v4834 = vpop.permute.xlu0 %4833
    %v4836 = vsel %vm212, %v4707, 0
    %v4839 = vsel %vm212, %v4834, 0
    %4841 = vmatprep.subr.bf16.mxu0 0
    %4842 = vmatpush1.bf16.xpose.msra.mxu0 0
    %4843 = vmatprep.subr.bf16.mxu0 0
    %4844 = vmatpush1.bf16.xpose.msra.mxu0 0
    %4845 = vmatprep.subr.bf16.mxu0 0
    %4846 = vmatpush1.bf16.xpose.msra.mxu0 0
    %4847 = vmatprep.subr.bf16.mxu0 0
    %4848 = vmatpush1.bf16.xpose.msra.mxu0 0
    %4849 = vmatprep.subr.bf16.mxu0 0
    %4850 = vmatpush1.bf16.xpose.msra.mxu0 0
    %4851 = vmatprep.subr.bf16.mxu0 0
    %4852 = vmatpush1.bf16.xpose.msra.mxu0 0
    %4853 = vmatprep.subr.bf16.mxu0 0
    %4854 = vmatpush1.bf16.xpose.msra.mxu0 0
    %4855 = vmatprep.subr.bf16.mxu0 0
    %4856 = vmatpush1.bf16.xpose.msra.mxu0 %v4839
    %4857 = vmatprep.subr.bf16.mxu0 0
    %4858 = vmatpush2.bf16.xpose.msra.mxu0 0
    %4859 = vmatprep.subr.bf16.mxu0 0
    %4860 = vmatpush2.bf16.xpose.msra.mxu0 0
    %4861 = vmatprep.subr.bf16.mxu0 0
    %4862 = vmatpush2.bf16.xpose.msra.mxu0 0
    %4863 = vmatprep.subr.bf16.mxu0 0
    %4864 = vmatpush2.bf16.xpose.msra.mxu0 0
    %4865 = vmatprep.subr.bf16.mxu0 0
    %4866 = vmatpush2.bf16.xpose.msra.mxu0 0
    %4867 = vmatprep.subr.bf16.mxu0 0
    %4868 = vmatpush2.bf16.xpose.msra.mxu0 0
    %4869 = vmatprep.subr.bf16.mxu0 0
    %4870 = vmatpush2.bf16.xpose.msra.mxu0 0
    %4871 = vmatprep.subr.bf16.mxu0 0
    %4872 = vmatpush2.bf16.xpose.msra.mxu0 0
    %4873 = vmatprep.mubr.bf16.mxu0 0
    %4874 = vmatmul.mubr.bf16.gmra.mxu0 %v4836
    %v4875 = vpop.f32.mrf.mxu0
    %v4876 = vadd.f32 %v24, %v4875
    %v4877 = vpop.f32.mrf.mxu0
    %v4878 = vpop.f32.mrf.mxu0
    %v4879 = vpop.f32.mrf.mxu0
    %4880 = vdwg.mxu0
    %v4881 = vunpack.c.l.b16 %v4709
    %v4882 = vpack.c.b16 %v4881, %v4881
    %4883 = vrot.lane.b32.xlu0 %v4882, 64
    %v4884 = vpop.permute.xlu0 %4883
    %v4886 = vsel %vm212, %v4709, 0
    %v4889 = vsel %vm212, %v4884, 0
    %4891 = vmatprep.subr.bf16.mxu0 0
    %4892 = vmatpush1.bf16.xpose.msra.mxu0 0
    %4893 = vmatprep.subr.bf16.mxu0 0
    %4894 = vmatpush1.bf16.xpose.msra.mxu0 0
    %4895 = vmatprep.subr.bf16.mxu0 0
    %4896 = vmatpush1.bf16.xpose.msra.mxu0 0
    %4897 = vmatprep.subr.bf16.mxu0 0
    %4898 = vmatpush1.bf16.xpose.msra.mxu0 0
    %4899 = vmatprep.subr.bf16.mxu0 0
    %4900 = vmatpush1.bf16.xpose.msra.mxu0 0
    %4901 = vmatprep.subr.bf16.mxu0 0
    %4902 = vmatpush1.bf16.xpose.msra.mxu0 0
    %4903 = vmatprep.subr.bf16.mxu0 0
    %4904 = vmatpush1.bf16.xpose.msra.mxu0 0
    %4905 = vmatprep.subr.bf16.mxu0 0
    %4906 = vmatpush1.bf16.xpose.msra.mxu0 %v4889
    %4907 = vmatprep.subr.bf16.mxu0 0
    %4908 = vmatpush2.bf16.xpose.msra.mxu0 0
    %4909 = vmatprep.subr.bf16.mxu0 0
    %4910 = vmatpush2.bf16.xpose.msra.mxu0 0
    %4911 = vmatprep.subr.bf16.mxu0 0
    %4912 = vmatpush2.bf16.xpose.msra.mxu0 0
    %4913 = vmatprep.subr.bf16.mxu0 0
    %4914 = vmatpush2.bf16.xpose.msra.mxu0 0
    %4915 = vmatprep.subr.bf16.mxu0 0
    %4916 = vmatpush2.bf16.xpose.msra.mxu0 0
    %4917 = vmatprep.subr.bf16.mxu0 0
    %4918 = vmatpush2.bf16.xpose.msra.mxu0 0
    %4919 = vmatprep.subr.bf16.mxu0 0
    %4920 = vmatpush2.bf16.xpose.msra.mxu0 0
    %4921 = vmatprep.subr.bf16.mxu0 0
    %4922 = vmatpush2.bf16.xpose.msra.mxu0 0
    %4923 = vmatprep.mubr.bf16.mxu0 0
    %4924 = vmatmul.mubr.bf16.gmra.mxu0 %v4886
    %v4925 = vpop.f32.mrf.mxu0
    %v4926 = vadd.f32 %v24, %v4925
    %v4927 = vpop.f32.mrf.mxu0
    %v4928 = vpop.f32.mrf.mxu0
    %v4929 = vpop.f32.mrf.mxu0
    %4930 = vdwg.mxu0
    %v4931 = vunpack.c.l.b16 %v4711
    %v4932 = vpack.c.b16 %v4931, %v4931
    %4933 = vrot.lane.b32.xlu0 %v4932, 64
    %v4934 = vpop.permute.xlu0 %4933
    %v4936 = vsel %vm212, %v4711, 0
    %v4939 = vsel %vm212, %v4934, 0
    %4941 = vmatprep.subr.bf16.mxu0 0
    %4942 = vmatpush1.bf16.xpose.msra.mxu0 0
    %4943 = vmatprep.subr.bf16.mxu0 0
    %4944 = vmatpush1.bf16.xpose.msra.mxu0 0
    %4945 = vmatprep.subr.bf16.mxu0 0
    %4946 = vmatpush1.bf16.xpose.msra.mxu0 0
    %4947 = vmatprep.subr.bf16.mxu0 0
    %4948 = vmatpush1.bf16.xpose.msra.mxu0 0
    %4949 = vmatprep.subr.bf16.mxu0 0
    %4950 = vmatpush1.bf16.xpose.msra.mxu0 0
    %4951 = vmatprep.subr.bf16.mxu0 0
    %4952 = vmatpush1.bf16.xpose.msra.mxu0 0
    %4953 = vmatprep.subr.bf16.mxu0 0
    %4954 = vmatpush1.bf16.xpose.msra.mxu0 0
    %4955 = vmatprep.subr.bf16.mxu0 0
    %4956 = vmatpush1.bf16.xpose.msra.mxu0 %v4939
    %4957 = vmatprep.subr.bf16.mxu0 0
    %4958 = vmatpush2.bf16.xpose.msra.mxu0 0
    %4959 = vmatprep.subr.bf16.mxu0 0
    %4960 = vmatpush2.bf16.xpose.msra.mxu0 0
    %4961 = vmatprep.subr.bf16.mxu0 0
    %4962 = vmatpush2.bf16.xpose.msra.mxu0 0
    %4963 = vmatprep.subr.bf16.mxu0 0
    %4964 = vmatpush2.bf16.xpose.msra.mxu0 0
    %4965 = vmatprep.subr.bf16.mxu0 0
    %4966 = vmatpush2.bf16.xpose.msra.mxu0 0
    %4967 = vmatprep.subr.bf16.mxu0 0
    %4968 = vmatpush2.bf16.xpose.msra.mxu0 0
    %4969 = vmatprep.subr.bf16.mxu0 0
    %4970 = vmatpush2.bf16.xpose.msra.mxu0 0
    %4971 = vmatprep.subr.bf16.mxu0 0
    %4972 = vmatpush2.bf16.xpose.msra.mxu0 0
    %4973 = vmatprep.mubr.bf16.mxu0 0
    %4974 = vmatmul.mubr.bf16.gmra.mxu0 %v4936
    %v4975 = vpop.f32.mrf.mxu0
    %v4976 = vadd.f32 %v24, %v4975
    %v4977 = vpop.f32.mrf.mxu0
    %v4978 = vpop.f32.mrf.mxu0
    %v4979 = vpop.f32.mrf.mxu0
    %4980 = vdwg.mxu0
    %v4981 = vunpack.c.l.b16 %v4713
    %v4982 = vpack.c.b16 %v4981, %v4981
    %4983 = vrot.lane.b32.xlu0 %v4982, 64
    %v4984 = vpop.permute.xlu0 %4983
    %v4986 = vsel %vm212, %v4713, 0
    %v4989 = vsel %vm212, %v4984, 0
    %4991 = vmatprep.subr.bf16.mxu0 0
    %4992 = vmatpush1.bf16.xpose.msra.mxu0 0
    %4993 = vmatprep.subr.bf16.mxu0 0
    %4994 = vmatpush1.bf16.xpose.msra.mxu0 0
    %4995 = vmatprep.subr.bf16.mxu0 0
    %4996 = vmatpush1.bf16.xpose.msra.mxu0 0
    %4997 = vmatprep.subr.bf16.mxu0 0
    %4998 = vmatpush1.bf16.xpose.msra.mxu0 0
    %4999 = vmatprep.subr.bf16.mxu0 0
    %5000 = vmatpush1.bf16.xpose.msra.mxu0 0
    %5001 = vmatprep.subr.bf16.mxu0 0
    %5002 = vmatpush1.bf16.xpose.msra.mxu0 0
    %5003 = vmatprep.subr.bf16.mxu0 0
    %5004 = vmatpush1.bf16.xpose.msra.mxu0 0
    %5005 = vmatprep.subr.bf16.mxu0 0
    %5006 = vmatpush1.bf16.xpose.msra.mxu0 %v4989
    %5007 = vmatprep.subr.bf16.mxu0 0
    %5008 = vmatpush2.bf16.xpose.msra.mxu0 0
    %5009 = vmatprep.subr.bf16.mxu0 0
    %5010 = vmatpush2.bf16.xpose.msra.mxu0 0
    %5011 = vmatprep.subr.bf16.mxu0 0
    %5012 = vmatpush2.bf16.xpose.msra.mxu0 0
    %5013 = vmatprep.subr.bf16.mxu0 0
    %5014 = vmatpush2.bf16.xpose.msra.mxu0 0
    %5015 = vmatprep.subr.bf16.mxu0 0
    %5016 = vmatpush2.bf16.xpose.msra.mxu0 0
    %5017 = vmatprep.subr.bf16.mxu0 0
    %5018 = vmatpush2.bf16.xpose.msra.mxu0 0
    %5019 = vmatprep.subr.bf16.mxu0 0
    %5020 = vmatpush2.bf16.xpose.msra.mxu0 0
    %5021 = vmatprep.subr.bf16.mxu0 0
    %5022 = vmatpush2.bf16.xpose.msra.mxu0 0
    %5023 = vmatprep.mubr.bf16.mxu0 0
    %5024 = vmatmul.mubr.bf16.gmra.mxu0 %v4986
    %v5025 = vpop.f32.mrf.mxu0
    %v5026 = vadd.f32 %v24, %v5025
    %v5027 = vpop.f32.mrf.mxu0
    %v5028 = vpop.f32.mrf.mxu0
    %v5029 = vpop.f32.mrf.mxu0
    %5030 = vdwg.mxu0
    %v5031 = vunpack.c.l.b16 %v4715
    %v5032 = vpack.c.b16 %v5031, %v5031
    %5033 = vrot.lane.b32.xlu0 %v5032, 64
    %v5034 = vpop.permute.xlu0 %5033
    %v5036 = vsel %vm212, %v4715, 0
    %v5039 = vsel %vm212, %v5034, 0
    %5041 = vmatprep.subr.bf16.mxu0 0
    %5042 = vmatpush1.bf16.xpose.msra.mxu0 0
    %5043 = vmatprep.subr.bf16.mxu0 0
    %5044 = vmatpush1.bf16.xpose.msra.mxu0 0
    %5045 = vmatprep.subr.bf16.mxu0 0
    %5046 = vmatpush1.bf16.xpose.msra.mxu0 0
    %5047 = vmatprep.subr.bf16.mxu0 0
    %5048 = vmatpush1.bf16.xpose.msra.mxu0 0
    %5049 = vmatprep.subr.bf16.mxu0 0
    %5050 = vmatpush1.bf16.xpose.msra.mxu0 0
    %5051 = vmatprep.subr.bf16.mxu0 0
    %5052 = vmatpush1.bf16.xpose.msra.mxu0 0
    %5053 = vmatprep.subr.bf16.mxu0 0
    %5054 = vmatpush1.bf16.xpose.msra.mxu0 0
    %5055 = vmatprep.subr.bf16.mxu0 0
    %5056 = vmatpush1.bf16.xpose.msra.mxu0 %v5039
    %5057 = vmatprep.subr.bf16.mxu0 0
    %5058 = vmatpush2.bf16.xpose.msra.mxu0 0
    %5059 = vmatprep.subr.bf16.mxu0 0
    %5060 = vmatpush2.bf16.xpose.msra.mxu0 0
    %5061 = vmatprep.subr.bf16.mxu0 0
    %5062 = vmatpush2.bf16.xpose.msra.mxu0 0
    %5063 = vmatprep.subr.bf16.mxu0 0
    %5064 = vmatpush2.bf16.xpose.msra.mxu0 0
    %5065 = vmatprep.subr.bf16.mxu0 0
    %5066 = vmatpush2.bf16.xpose.msra.mxu0 0
    %5067 = vmatprep.subr.bf16.mxu0 0
    %5068 = vmatpush2.bf16.xpose.msra.mxu0 0
    %5069 = vmatprep.subr.bf16.mxu0 0
    %5070 = vmatpush2.bf16.xpose.msra.mxu0 0
    %5071 = vmatprep.subr.bf16.mxu0 0
    %5072 = vmatpush2.bf16.xpose.msra.mxu0 0
    %5073 = vmatprep.mubr.bf16.mxu0 0
    %5074 = vmatmul.mubr.bf16.gmra.mxu0 %v5036
    %v5075 = vpop.f32.mrf.mxu0
    %v5076 = vadd.f32 %v24, %v5075
    %v5077 = vpop.f32.mrf.mxu0
    %v5078 = vpop.f32.mrf.mxu0
    %v5079 = vpop.f32.mrf.mxu0
    %5080 = vdwg.mxu0
    %v5081 = vunpack.c.l.b16 %v4717
    %v5082 = vpack.c.b16 %v5081, %v5081
    %5083 = vrot.lane.b32.xlu0 %v5082, 64
    %v5084 = vpop.permute.xlu0 %5083
    %v5086 = vsel %vm212, %v4717, 0
    %v5089 = vsel %vm212, %v5084, 0
    %5091 = vmatprep.subr.bf16.mxu0 0
    %5092 = vmatpush1.bf16.xpose.msra.mxu0 0
    %5093 = vmatprep.subr.bf16.mxu0 0
    %5094 = vmatpush1.bf16.xpose.msra.mxu0 0
    %5095 = vmatprep.subr.bf16.mxu0 0
    %5096 = vmatpush1.bf16.xpose.msra.mxu0 0
    %5097 = vmatprep.subr.bf16.mxu0 0
    %5098 = vmatpush1.bf16.xpose.msra.mxu0 0
    %5099 = vmatprep.subr.bf16.mxu0 0
    %5100 = vmatpush1.bf16.xpose.msra.mxu0 0
    %5101 = vmatprep.subr.bf16.mxu0 0
    %5102 = vmatpush1.bf16.xpose.msra.mxu0 0
    %5103 = vmatprep.subr.bf16.mxu0 0
    %5104 = vmatpush1.bf16.xpose.msra.mxu0 0
    %5105 = vmatprep.subr.bf16.mxu0 0
    %5106 = vmatpush1.bf16.xpose.msra.mxu0 %v5089
    %5107 = vmatprep.subr.bf16.mxu0 0
    %5108 = vmatpush2.bf16.xpose.msra.mxu0 0
    %5109 = vmatprep.subr.bf16.mxu0 0
    %5110 = vmatpush2.bf16.xpose.msra.mxu0 0
    %5111 = vmatprep.subr.bf16.mxu0 0
    %5112 = vmatpush2.bf16.xpose.msra.mxu0 0
    %5113 = vmatprep.subr.bf16.mxu0 0
    %5114 = vmatpush2.bf16.xpose.msra.mxu0 0
    %5115 = vmatprep.subr.bf16.mxu0 0
    %5116 = vmatpush2.bf16.xpose.msra.mxu0 0
    %5117 = vmatprep.subr.bf16.mxu0 0
    %5118 = vmatpush2.bf16.xpose.msra.mxu0 0
    %5119 = vmatprep.subr.bf16.mxu0 0
    %5120 = vmatpush2.bf16.xpose.msra.mxu0 0
    %5121 = vmatprep.subr.bf16.mxu0 0
    %5122 = vmatpush2.bf16.xpose.msra.mxu0 0
    %5123 = vmatprep.mubr.bf16.mxu0 0
    %5124 = vmatmul.mubr.bf16.gmra.mxu0 %v5086
    %v5125 = vpop.f32.mrf.mxu0
    %v5126 = vadd.f32 %v24, %v5125
    %v5127 = vpop.f32.mrf.mxu0
    %v5128 = vpop.f32.mrf.mxu0
    %v5129 = vpop.f32.mrf.mxu0
    %5130 = vdwg.mxu0
    %v5131 = vsel %vm607, %v4778, -inf
    %5132 = vmax.xlane.f32.xlu0 %v5131
    %v5133 = vpop.xlane.xlu0 %5132
    %v5134 = vsel %vm607, %v4826, -inf
    %5135 = vmax.xlane.f32.xlu0 %v5134
    %v5136 = vpop.xlane.xlu0 %5135
    %v5137 = vsel %vm607, %v4876, -inf
    %5138 = vmax.xlane.f32.xlu0 %v5137
    %v5139 = vpop.xlane.xlu0 %5138
    %v5140 = vsel %vm607, %v4926, -inf
    %5141 = vmax.xlane.f32.xlu0 %v5140
    %v5142 = vpop.xlane.xlu0 %5141
    %v5143 = vsel %vm607, %v4976, -inf
    %5144 = vmax.xlane.f32.xlu0 %v5143
    %v5145 = vpop.xlane.xlu0 %5144
    %v5146 = vsel %vm607, %v5026, -inf
    %5147 = vmax.xlane.f32.xlu0 %v5146
    %v5148 = vpop.xlane.xlu0 %5147
    %v5149 = vsel %vm607, %v5076, -inf
    %5150 = vmax.xlane.f32.xlu0 %v5149
    %v5151 = vpop.xlane.xlu0 %5150
    %v5152 = vsel %vm607, %v5126, -inf
    %5153 = vmax.xlane.f32.xlu0 %v5152
    %v5154 = vpop.xlane.xlu0 %5153
    %v5155 = vsub.f32 %v4778, %v5133
    %v5156 = vsub.f32 %v4826, %v5136
    %v5157 = vsub.f32 %v4876, %v5139
    %v5158 = vsub.f32 %v4926, %v5142
    %v5159 = vsub.f32 %v4976, %v5145
    %v5160 = vsub.f32 %v5026, %v5148
    %v5161 = vsub.f32 %v5076, %v5151
    %v5162 = vsub.f32 %v5126, %v5154
    %v5163 = vmul.f32 %v5155, 1.442695
    %v5164 = vpow.pop %v5163
    %v5165 = vmul.f32 %v5156, 1.442695
    %v5166 = vpow.pop %v5165
    %v5167 = vmul.f32 %v5157, 1.442695
    %v5168 = vpow.pop %v5167
    %v5169 = vmul.f32 %v5158, 1.442695
    %v5170 = vpow.pop %v5169
    %v5171 = vmul.f32 %v5159, 1.442695
    %v5172 = vpow.pop %v5171
    %v5173 = vmul.f32 %v5160, 1.442695
    %v5174 = vpow.pop %v5173
    %v5175 = vmul.f32 %v5161, 1.442695
    %v5176 = vpow.pop %v5175
    %v5177 = vmul.f32 %v5162, 1.442695
    %v5178 = vpow.pop %v5177
    %v5179 = vsel %vm607, %v5164, 0.0
    %5180 = vadd.xlane.f32.xlu0 %v5179
    %v5181 = vpop.xlane.xlu0 %5180
    %v5182 = vsel %vm607, %v5166, 0.0
    %5183 = vadd.xlane.f32.xlu0 %v5182
    %v5184 = vpop.xlane.xlu0 %5183
    %v5185 = vsel %vm607, %v5168, 0.0
    %5186 = vadd.xlane.f32.xlu0 %v5185
    %v5187 = vpop.xlane.xlu0 %5186
    %v5188 = vsel %vm607, %v5170, 0.0
    %5189 = vadd.xlane.f32.xlu0 %v5188
    %v5190 = vpop.xlane.xlu0 %5189
    %v5191 = vsel %vm607, %v5172, 0.0
    %5192 = vadd.xlane.f32.xlu0 %v5191
    %v5193 = vpop.xlane.xlu0 %5192
    %v5194 = vsel %vm607, %v5174, 0.0
    %5195 = vadd.xlane.f32.xlu0 %v5194
    %v5196 = vpop.xlane.xlu0 %5195
    %v5197 = vsel %vm607, %v5176, 0.0
    %5198 = vadd.xlane.f32.xlu0 %v5197
    %v5199 = vpop.xlane.xlu0 %5198
    %v5200 = vsel %vm607, %v5178, 0.0
    %5201 = vadd.xlane.f32.xlu0 %v5200
    %v5202 = vpop.xlane.xlu0 %5201
    %v5203 = vrcp.pop %v5181
    %v5204 = vrcp.pop %v5184
    %v5205 = vrcp.pop %v5187
    %v5206 = vrcp.pop %v5190
    %v5207 = vrcp.pop %v5193
    %v5208 = vrcp.pop %v5196
    %v5209 = vrcp.pop %v5199
    %v5210 = vrcp.pop %v5202
    %v5211 = vmul.f32 %v5164, %v5203
    %v5212 = vmul.f32 %v5166, %v5204
    %v5213 = vmul.f32 %v5168, %v5205
    %v5214 = vmul.f32 %v5170, %v5206
    %v5215 = vmul.f32 %v5172, %v5207
    %v5216 = vmul.f32 %v5174, %v5208
    %v5217 = vmul.f32 %v5176, %v5209
    %v5218 = vmul.f32 %v5178, %v5210
    %v5219 = vpack.c.bf16 %v5211, %v5211
    %v5220 = vpack.c.bf16 %v5212, %v5212
    %v5221 = vpack.c.bf16 %v5213, %v5213
    %v5222 = vpack.c.bf16 %v5214, %v5214
    %v5223 = vpack.c.bf16 %v5215, %v5215
    %v5224 = vpack.c.bf16 %v5216, %v5216
    %v5225 = vpack.c.bf16 %v5217, %v5217
    %v5226 = vpack.c.bf16 %v5218, %v5218
    %v5228 = vsel %vm607, %v5219, 0
    %v5231 = vsel %vm707, %v4721, 0
    %5233 = vmatprep.subr.bf16.mxu0 0
    %5234 = vmatpush1.bf16.msra.mxu0 0
    %5235 = vmatprep.subr.bf16.mxu0 0
    %5236 = vmatpush1.bf16.msra.mxu0 0
    %5237 = vmatprep.subr.bf16.mxu0 0
    %5238 = vmatpush1.bf16.msra.mxu0 0
    %5239 = vmatprep.subr.bf16.mxu0 0
    %5240 = vmatpush1.bf16.msra.mxu0 0
    %5241 = vmatprep.subr.bf16.mxu0 0
    %5242 = vmatpush1.bf16.msra.mxu0 0
    %5243 = vmatprep.subr.bf16.mxu0 0
    %5244 = vmatpush1.bf16.msra.mxu0 0
    %5245 = vmatprep.subr.bf16.mxu0 0
    %5246 = vmatpush1.bf16.msra.mxu0 0
    %5247 = vmatprep.subr.bf16.mxu0 0
    %5248 = vmatpush1.bf16.msra.mxu0 %v5231
    %5249 = vmatprep.subr.bf16.mxu0 0
    %5250 = vmatpush2.bf16.msra.mxu0 0
    %5251 = vmatprep.subr.bf16.mxu0 0
    %5252 = vmatpush2.bf16.msra.mxu0 0
    %5253 = vmatprep.subr.bf16.mxu0 0
    %5254 = vmatpush2.bf16.msra.mxu0 0
    %5255 = vmatprep.subr.bf16.mxu0 0
    %5256 = vmatpush2.bf16.msra.mxu0 0
    %5257 = vmatprep.subr.bf16.mxu0 0
    %5258 = vmatpush2.bf16.msra.mxu0 0
    %5259 = vmatprep.subr.bf16.mxu0 0
    %5260 = vmatpush2.bf16.msra.mxu0 0
    %5261 = vmatprep.subr.bf16.mxu0 0
    %5262 = vmatpush2.bf16.msra.mxu0 0
    %5263 = vmatprep.subr.bf16.mxu0 0
    %5264 = vmatpush2.bf16.msra.mxu0 0
    %5265 = vmatprep.mubr.bf16.mxu0 0
    %5266 = vmatmul.mubr.bf16.gmra.mxu0 %v5228
    %v5267 = vpop.f32.mrf.mxu0
    %v5268 = vadd.f32 0.0, %v5267
    %v5269 = vpop.f32.mrf.mxu0
    %v5270 = vpop.f32.mrf.mxu0
    %v5271 = vpop.f32.mrf.mxu0
    %5272 = vdwg.mxu0
    %v5274 = vsel %vm607, %v5220, 0
    %v5277 = vsel %vm707, %v4722, 0
    %5279 = vmatprep.subr.bf16.mxu0 0
    %5280 = vmatpush1.bf16.msra.mxu0 0
    %5281 = vmatprep.subr.bf16.mxu0 0
    %5282 = vmatpush1.bf16.msra.mxu0 0
    %5283 = vmatprep.subr.bf16.mxu0 0
    %5284 = vmatpush1.bf16.msra.mxu0 0
    %5285 = vmatprep.subr.bf16.mxu0 0
    %5286 = vmatpush1.bf16.msra.mxu0 0
    %5287 = vmatprep.subr.bf16.mxu0 0
    %5288 = vmatpush1.bf16.msra.mxu0 0
    %5289 = vmatprep.subr.bf16.mxu0 0
    %5290 = vmatpush1.bf16.msra.mxu0 0
    %5291 = vmatprep.subr.bf16.mxu0 0
    %5292 = vmatpush1.bf16.msra.mxu0 0
    %5293 = vmatprep.subr.bf16.mxu0 0
    %5294 = vmatpush1.bf16.msra.mxu0 %v5277
    %5295 = vmatprep.subr.bf16.mxu0 0
    %5296 = vmatpush2.bf16.msra.mxu0 0
    %5297 = vmatprep.subr.bf16.mxu0 0
    %5298 = vmatpush2.bf16.msra.mxu0 0
    %5299 = vmatprep.subr.bf16.mxu0 0
    %5300 = vmatpush2.bf16.msra.mxu0 0
    %5301 = vmatprep.subr.bf16.mxu0 0
    %5302 = vmatpush2.bf16.msra.mxu0 0
    %5303 = vmatprep.subr.bf16.mxu0 0
    %5304 = vmatpush2.bf16.msra.mxu0 0
    %5305 = vmatprep.subr.bf16.mxu0 0
    %5306 = vmatpush2.bf16.msra.mxu0 0
    %5307 = vmatprep.subr.bf16.mxu0 0
    %5308 = vmatpush2.bf16.msra.mxu0 0
    %5309 = vmatprep.subr.bf16.mxu0 0
    %5310 = vmatpush2.bf16.msra.mxu0 0
    %5311 = vmatprep.mubr.bf16.mxu0 0
    %5312 = vmatmul.mubr.bf16.gmra.mxu0 %v5274
    %v5313 = vpop.f32.mrf.mxu0
    %v5314 = vadd.f32 0.0, %v5313
    %v5315 = vpop.f32.mrf.mxu0
    %v5316 = vpop.f32.mrf.mxu0
    %v5317 = vpop.f32.mrf.mxu0
    %5318 = vdwg.mxu0
    %v5320 = vsel %vm607, %v5221, 0
    %v5323 = vsel %vm707, %v4724, 0
    %5325 = vmatprep.subr.bf16.mxu0 0
    %5326 = vmatpush1.bf16.msra.mxu0 0
    %5327 = vmatprep.subr.bf16.mxu0 0
    %5328 = vmatpush1.bf16.msra.mxu0 0
    %5329 = vmatprep.subr.bf16.mxu0 0
    %5330 = vmatpush1.bf16.msra.mxu0 0
    %5331 = vmatprep.subr.bf16.mxu0 0
    %5332 = vmatpush1.bf16.msra.mxu0 0
    %5333 = vmatprep.subr.bf16.mxu0 0
    %5334 = vmatpush1.bf16.msra.mxu0 0
    %5335 = vmatprep.subr.bf16.mxu0 0
    %5336 = vmatpush1.bf16.msra.mxu0 0
    %5337 = vmatprep.subr.bf16.mxu0 0
    %5338 = vmatpush1.bf16.msra.mxu0 0
    %5339 = vmatprep.subr.bf16.mxu0 0
    %5340 = vmatpush1.bf16.msra.mxu0 %v5323
    %5341 = vmatprep.subr.bf16.mxu0 0
    %5342 = vmatpush2.bf16.msra.mxu0 0
    %5343 = vmatprep.subr.bf16.mxu0 0
    %5344 = vmatpush2.bf16.msra.mxu0 0
    %5345 = vmatprep.subr.bf16.mxu0 0
    %5346 = vmatpush2.bf16.msra.mxu0 0
    %5347 = vmatprep.subr.bf16.mxu0 0
    %5348 = vmatpush2.bf16.msra.mxu0 0
    %5349 = vmatprep.subr.bf16.mxu0 0
    %5350 = vmatpush2.bf16.msra.mxu0 0
    %5351 = vmatprep.subr.bf16.mxu0 0
    %5352 = vmatpush2.bf16.msra.mxu0 0
    %5353 = vmatprep.subr.bf16.mxu0 0
    %5354 = vmatpush2.bf16.msra.mxu0 0
    %5355 = vmatprep.subr.bf16.mxu0 0
    %5356 = vmatpush2.bf16.msra.mxu0 0
    %5357 = vmatprep.mubr.bf16.mxu0 0
    %5358 = vmatmul.mubr.bf16.gmra.mxu0 %v5320
    %v5359 = vpop.f32.mrf.mxu0
    %v5360 = vadd.f32 0.0, %v5359
    %v5361 = vpop.f32.mrf.mxu0
    %v5362 = vpop.f32.mrf.mxu0
    %v5363 = vpop.f32.mrf.mxu0
    %5364 = vdwg.mxu0
    %v5366 = vsel %vm607, %v5222, 0
    %v5369 = vsel %vm707, %v4726, 0
    %5371 = vmatprep.subr.bf16.mxu0 0
    %5372 = vmatpush1.bf16.msra.mxu0 0
    %5373 = vmatprep.subr.bf16.mxu0 0
    %5374 = vmatpush1.bf16.msra.mxu0 0
    %5375 = vmatprep.subr.bf16.mxu0 0
    %5376 = vmatpush1.bf16.msra.mxu0 0
    %5377 = vmatprep.subr.bf16.mxu0 0
    %5378 = vmatpush1.bf16.msra.mxu0 0
    %5379 = vmatprep.subr.bf16.mxu0 0
    %5380 = vmatpush1.bf16.msra.mxu0 0
    %5381 = vmatprep.subr.bf16.mxu0 0
    %5382 = vmatpush1.bf16.msra.mxu0 0
    %5383 = vmatprep.subr.bf16.mxu0 0
    %5384 = vmatpush1.bf16.msra.mxu0 0
    %5385 = vmatprep.subr.bf16.mxu0 0
    %5386 = vmatpush1.bf16.msra.mxu0 %v5369
    %5387 = vmatprep.subr.bf16.mxu0 0
    %5388 = vmatpush2.bf16.msra.mxu0 0
    %5389 = vmatprep.subr.bf16.mxu0 0
    %5390 = vmatpush2.bf16.msra.mxu0 0
    %5391 = vmatprep.subr.bf16.mxu0 0
    %5392 = vmatpush2.bf16.msra.mxu0 0
    %5393 = vmatprep.subr.bf16.mxu0 0
    %5394 = vmatpush2.bf16.msra.mxu0 0
    %5395 = vmatprep.subr.bf16.mxu0 0
    %5396 = vmatpush2.bf16.msra.mxu0 0
    %5397 = vmatprep.subr.bf16.mxu0 0
    %5398 = vmatpush2.bf16.msra.mxu0 0
    %5399 = vmatprep.subr.bf16.mxu0 0
    %5400 = vmatpush2.bf16.msra.mxu0 0
    %5401 = vmatprep.subr.bf16.mxu0 0
    %5402 = vmatpush2.bf16.msra.mxu0 0
    %5403 = vmatprep.mubr.bf16.mxu0 0
    %5404 = vmatmul.mubr.bf16.gmra.mxu0 %v5366
    %v5405 = vpop.f32.mrf.mxu0
    %v5406 = vadd.f32 0.0, %v5405
    %v5407 = vpop.f32.mrf.mxu0
    %v5408 = vpop.f32.mrf.mxu0
    %v5409 = vpop.f32.mrf.mxu0
    %5410 = vdwg.mxu0
    %v5412 = vsel %vm607, %v5223, 0
    %v5415 = vsel %vm707, %v4728, 0
    %5417 = vmatprep.subr.bf16.mxu0 0
    %5418 = vmatpush1.bf16.msra.mxu0 0
    %5419 = vmatprep.subr.bf16.mxu0 0
    %5420 = vmatpush1.bf16.msra.mxu0 0
    %5421 = vmatprep.subr.bf16.mxu0 0
    %5422 = vmatpush1.bf16.msra.mxu0 0
    %5423 = vmatprep.subr.bf16.mxu0 0
    %5424 = vmatpush1.bf16.msra.mxu0 0
    %5425 = vmatprep.subr.bf16.mxu0 0
    %5426 = vmatpush1.bf16.msra.mxu0 0
    %5427 = vmatprep.subr.bf16.mxu0 0
    %5428 = vmatpush1.bf16.msra.mxu0 0
    %5429 = vmatprep.subr.bf16.mxu0 0
    %5430 = vmatpush1.bf16.msra.mxu0 0
    %5431 = vmatprep.subr.bf16.mxu0 0
    %5432 = vmatpush1.bf16.msra.mxu0 %v5415
    %5433 = vmatprep.subr.bf16.mxu0 0
    %5434 = vmatpush2.bf16.msra.mxu0 0
    %5435 = vmatprep.subr.bf16.mxu0 0
    %5436 = vmatpush2.bf16.msra.mxu0 0
    %5437 = vmatprep.subr.bf16.mxu0 0
    %5438 = vmatpush2.bf16.msra.mxu0 0
    %5439 = vmatprep.subr.bf16.mxu0 0
    %5440 = vmatpush2.bf16.msra.mxu0 0
    %5441 = vmatprep.subr.bf16.mxu0 0
    %5442 = vmatpush2.bf16.msra.mxu0 0
    %5443 = vmatprep.subr.bf16.mxu0 0
    %5444 = vmatpush2.bf16.msra.mxu0 0
    %5445 = vmatprep.subr.bf16.mxu0 0
    %5446 = vmatpush2.bf16.msra.mxu0 0
    %5447 = vmatprep.subr.bf16.mxu0 0
    %5448 = vmatpush2.bf16.msra.mxu0 0
    %5449 = vmatprep.mubr.bf16.mxu0 0
    %5450 = vmatmul.mubr.bf16.gmra.mxu0 %v5412
    %v5451 = vpop.f32.mrf.mxu0
    %v5452 = vadd.f32 0.0, %v5451
    %v5453 = vpop.f32.mrf.mxu0
    %v5454 = vpop.f32.mrf.mxu0
    %v5455 = vpop.f32.mrf.mxu0
    %5456 = vdwg.mxu0
    %v5458 = vsel %vm607, %v5224, 0
    %v5461 = vsel %vm707, %v4730, 0
    %5463 = vmatprep.subr.bf16.mxu0 0
    %5464 = vmatpush1.bf16.msra.mxu0 0
    %5465 = vmatprep.subr.bf16.mxu0 0
    %5466 = vmatpush1.bf16.msra.mxu0 0
    %5467 = vmatprep.subr.bf16.mxu0 0
    %5468 = vmatpush1.bf16.msra.mxu0 0
    %5469 = vmatprep.subr.bf16.mxu0 0
    %5470 = vmatpush1.bf16.msra.mxu0 0
    %5471 = vmatprep.subr.bf16.mxu0 0
    %5472 = vmatpush1.bf16.msra.mxu0 0
    %5473 = vmatprep.subr.bf16.mxu0 0
    %5474 = vmatpush1.bf16.msra.mxu0 0
    %5475 = vmatprep.subr.bf16.mxu0 0
    %5476 = vmatpush1.bf16.msra.mxu0 0
    %5477 = vmatprep.subr.bf16.mxu0 0
    %5478 = vmatpush1.bf16.msra.mxu0 %v5461
    %5479 = vmatprep.subr.bf16.mxu0 0
    %5480 = vmatpush2.bf16.msra.mxu0 0
    %5481 = vmatprep.subr.bf16.mxu0 0
    %5482 = vmatpush2.bf16.msra.mxu0 0
    %5483 = vmatprep.subr.bf16.mxu0 0
    %5484 = vmatpush2.bf16.msra.mxu0 0
    %5485 = vmatprep.subr.bf16.mxu0 0
    %5486 = vmatpush2.bf16.msra.mxu0 0
    %5487 = vmatprep.subr.bf16.mxu0 0
    %5488 = vmatpush2.bf16.msra.mxu0 0
    %5489 = vmatprep.subr.bf16.mxu0 0
    %5490 = vmatpush2.bf16.msra.mxu0 0
    %5491 = vmatprep.subr.bf16.mxu0 0
    %5492 = vmatpush2.bf16.msra.mxu0 0
    %5493 = vmatprep.subr.bf16.mxu0 0
    %5494 = vmatpush2.bf16.msra.mxu0 0
    %5495 = vmatprep.mubr.bf16.mxu0 0
    %5496 = vmatmul.mubr.bf16.gmra.mxu0 %v5458
    %v5497 = vpop.f32.mrf.mxu0
    %v5498 = vadd.f32 0.0, %v5497
    %v5499 = vpop.f32.mrf.mxu0
    %v5500 = vpop.f32.mrf.mxu0
    %v5501 = vpop.f32.mrf.mxu0
    %5502 = vdwg.mxu0
    %v5504 = vsel %vm607, %v5225, 0
    %v5507 = vsel %vm707, %v4732, 0
    %5509 = vmatprep.subr.bf16.mxu0 0
    %5510 = vmatpush1.bf16.msra.mxu0 0
    %5511 = vmatprep.subr.bf16.mxu0 0
    %5512 = vmatpush1.bf16.msra.mxu0 0
    %5513 = vmatprep.subr.bf16.mxu0 0
    %5514 = vmatpush1.bf16.msra.mxu0 0
    %5515 = vmatprep.subr.bf16.mxu0 0
    %5516 = vmatpush1.bf16.msra.mxu0 0
    %5517 = vmatprep.subr.bf16.mxu0 0
    %5518 = vmatpush1.bf16.msra.mxu0 0
    %5519 = vmatprep.subr.bf16.mxu0 0
    %5520 = vmatpush1.bf16.msra.mxu0 0
    %5521 = vmatprep.subr.bf16.mxu0 0
    %5522 = vmatpush1.bf16.msra.mxu0 0
    %5523 = vmatprep.subr.bf16.mxu0 0
    %5524 = vmatpush1.bf16.msra.mxu0 %v5507
    %5525 = vmatprep.subr.bf16.mxu0 0
    %5526 = vmatpush2.bf16.msra.mxu0 0
    %5527 = vmatprep.subr.bf16.mxu0 0
    %5528 = vmatpush2.bf16.msra.mxu0 0
    %5529 = vmatprep.subr.bf16.mxu0 0
    %5530 = vmatpush2.bf16.msra.mxu0 0
    %5531 = vmatprep.subr.bf16.mxu0 0
    %5532 = vmatpush2.bf16.msra.mxu0 0
    %5533 = vmatprep.subr.bf16.mxu0 0
    %5534 = vmatpush2.bf16.msra.mxu0 0
    %5535 = vmatprep.subr.bf16.mxu0 0
    %5536 = vmatpush2.bf16.msra.mxu0 0
    %5537 = vmatprep.subr.bf16.mxu0 0
    %5538 = vmatpush2.bf16.msra.mxu0 0
    %5539 = vmatprep.subr.bf16.mxu0 0
    %5540 = vmatpush2.bf16.msra.mxu0 0
    %5541 = vmatprep.mubr.bf16.mxu0 0
    %5542 = vmatmul.mubr.bf16.gmra.mxu0 %v5504
    %v5543 = vpop.f32.mrf.mxu0
    %v5544 = vadd.f32 0.0, %v5543
    %v5545 = vpop.f32.mrf.mxu0
    %v5546 = vpop.f32.mrf.mxu0
    %v5547 = vpop.f32.mrf.mxu0
    %5548 = vdwg.mxu0
    %v5550 = vsel %vm607, %v5226, 0
    %v5553 = vsel %vm707, %v4734, 0
    %5555 = vmatprep.subr.bf16.mxu0 0
    %5556 = vmatpush1.bf16.msra.mxu0 0
    %5557 = vmatprep.subr.bf16.mxu0 0
    %5558 = vmatpush1.bf16.msra.mxu0 0
    %5559 = vmatprep.subr.bf16.mxu0 0
    %5560 = vmatpush1.bf16.msra.mxu0 0
    %5561 = vmatprep.subr.bf16.mxu0 0
    %5562 = vmatpush1.bf16.msra.mxu0 0
    %5563 = vmatprep.subr.bf16.mxu0 0
    %5564 = vmatpush1.bf16.msra.mxu0 0
    %5565 = vmatprep.subr.bf16.mxu0 0
    %5566 = vmatpush1.bf16.msra.mxu0 0
    %5567 = vmatprep.subr.bf16.mxu0 0
    %5568 = vmatpush1.bf16.msra.mxu0 0
    %5569 = vmatprep.subr.bf16.mxu0 0
    %5570 = vmatpush1.bf16.msra.mxu0 %v5553
    %5571 = vmatprep.subr.bf16.mxu0 0
    %5572 = vmatpush2.bf16.msra.mxu0 0
    %5573 = vmatprep.subr.bf16.mxu0 0
    %5574 = vmatpush2.bf16.msra.mxu0 0
    %5575 = vmatprep.subr.bf16.mxu0 0
    %5576 = vmatpush2.bf16.msra.mxu0 0
    %5577 = vmatprep.subr.bf16.mxu0 0
    %5578 = vmatpush2.bf16.msra.mxu0 0
    %5579 = vmatprep.subr.bf16.mxu0 0
    %5580 = vmatpush2.bf16.msra.mxu0 0
    %5581 = vmatprep.subr.bf16.mxu0 0
    %5582 = vmatpush2.bf16.msra.mxu0 0
    %5583 = vmatprep.subr.bf16.mxu0 0
    %5584 = vmatpush2.bf16.msra.mxu0 0
    %5585 = vmatprep.subr.bf16.mxu0 0
    %5586 = vmatpush2.bf16.msra.mxu0 0
    %5587 = vmatprep.mubr.bf16.mxu0 0
    %5588 = vmatmul.mubr.bf16.gmra.mxu0 %v5550
    %v5589 = vpop.f32.mrf.mxu0
    %v5590 = vadd.f32 0.0, %v5589
    %v5591 = vpop.f32.mrf.mxu0
    %v5592 = vpop.f32.mrf.mxu0
    %v5593 = vpop.f32.mrf.mxu0
    %5594 = vdwg.mxu0
    %5597 = vrot.lane.b32.xlu0 %v5360, 16
    %v5598 = vpop.permute.xlu0 %5597
    %5599 = vrot.lane.b32.xlu0 %v5406, 16
    %v5600 = vpop.permute.xlu0 %5599
    %5605 = vrot.lane.b32.xlu0 %v5452, 32
    %v5606 = vpop.permute.xlu0 %5605
    %5607 = vrot.lane.b32.xlu0 %v5498, 32
    %v5608 = vpop.permute.xlu0 %5607
    %5613 = vrot.lane.b32.xlu0 %v5544, 48
    %v5614 = vpop.permute.xlu0 %5613
    %5615 = vrot.lane.b32.xlu0 %v5590, 48
    %v5616 = vpop.permute.xlu0 %5615
    %v5619 = vsel %vm212, %v5268, %v5598
    %v5620 = vsel %vm212, %v5314, %v5600
    %v5621 = vsel %vm1099, %v5619, %v5606
    %v5622 = vsel %vm1099, %v5620, %v5608
    %v5623 = vsel %vm1102, %v5621, %v5614
    %v5624 = vsel %vm1102, %v5622, %v5616
    %v5625 = vpack.c.bf16 %v5624, %v5623
    %v5626 = vld [vmem:[%s4592 + $0x10] sm:$0xf]
    %v5627 = vld [vmem:[%s4592 + $0x24] sm:$0xf]
    %v5628 = vld [vmem:[%s4592 + $0x38] sm:$0xf]
    %v5629 = vld [vmem:[%s4592 + $0x4c] sm:$0xf]
    %v5630 = vld [vmem:[%s4592 + $0x60] sm:$0xf]
    %v5631 = vld [vmem:[%s4592 + $0x74] sm:$0xf]
    %v5632 = vld [vmem:[%s4592 + $0x88] sm:$0xf]
    %v5633 = vld [vmem:[%s4592 + $0x9c] sm:$0xf]
    %v5634 = vld [vmem:[%s4550 + $0x4] sm:$0x1]
    %v5636 = vlaneseq
    %v5637 = vshrl.u32 %v5636, 7
    %v5638 = vsub.s32 0, %v5637
    %v5639 = vrot.slane %v5634, %v5638
    %v5649 = vunpack.c.l.b16 %v5626
    %v5650 = vunpack.c.l.b16 %v5627
    %v5651 = vunpack.c.l.b16 %v5628
    %v5652 = vunpack.c.l.b16 %v5629
    %v5653 = vunpack.c.l.b16 %v5630
    %v5654 = vunpack.c.l.b16 %v5631
    %v5655 = vunpack.c.l.b16 %v5632
    %v5656 = vunpack.c.l.b16 %v5633
    %v5657 = vpack.c.b16 %v5650, %v5649
    %v5658 = vpack.c.b16 %v5652, %v5651
    %v5659 = vpack.c.b16 %v5654, %v5653
    %v5660 = vpack.c.b16 %v5656, %v5655
    %v5666 = vsel %vm26, %v5625, 0
    %5668 = vmatprep.subr.bf16.mxu0 0
    %5669 = vmatpush1.bf16.msra.mxu0 0
    %5670 = vmatprep.subr.bf16.mxu0 0
    %5671 = vmatpush1.bf16.msra.mxu0 0
    %5672 = vmatprep.subr.bf16.mxu0 0
    %5673 = vmatpush1.bf16.msra.mxu0 0
    %5674 = vmatprep.subr.bf16.mxu0 0
    %5675 = vmatpush1.bf16.msra.mxu0 0
    %5676 = vmatprep.subr.bf16.mxu0 0
    %5677 = vmatpush1.bf16.msra.mxu0 %v5660
    %5678 = vmatprep.subr.bf16.mxu0 0
    %5679 = vmatpush1.bf16.msra.mxu0 %v5659
    %5680 = vmatprep.subr.bf16.mxu0 0
    %5681 = vmatpush1.bf16.msra.mxu0 %v5658
    %5682 = vmatprep.subr.bf16.mxu0 0
    %5683 = vmatpush1.bf16.msra.mxu0 %v5657
    %5684 = vmatprep.subr.bf16.mxu0 0
    %5685 = vmatpush2.bf16.msra.mxu0 0
    %5686 = vmatprep.subr.bf16.mxu0 0
    %5687 = vmatpush2.bf16.msra.mxu0 0
    %5688 = vmatprep.subr.bf16.mxu0 0
    %5689 = vmatpush2.bf16.msra.mxu0 0
    %5690 = vmatprep.subr.bf16.mxu0 0
    %5691 = vmatpush2.bf16.msra.mxu0 0
    %5692 = vmatprep.subr.bf16.mxu0 0
    %5693 = vmatpush2.bf16.msra.mxu0 0
    %5694 = vmatprep.subr.bf16.mxu0 0
    %5695 = vmatpush2.bf16.msra.mxu0 0
    %5696 = vmatprep.subr.bf16.mxu0 0
    %5697 = vmatpush2.bf16.msra.mxu0 0
    %5698 = vmatprep.subr.bf16.mxu0 0
    %5699 = vmatpush2.bf16.msra.mxu0 0
    %5700 = vmatprep.mubr.bf16.mxu0 0
    %5701 = vmatmul.mubr.bf16.gmra.mxu0 %v5666
    %v5702 = vpop.f32.mrf.mxu0
    %v5703 = vadd.f32 %v5639, %v5702
    %v5704 = vpop.f32.mrf.mxu0
    %v5705 = vpop.f32.mrf.mxu0
    %v5706 = vadd.f32 %v5639, %v5705
    %v5707 = vpop.f32.mrf.mxu0
    %5708 = vdwg.mxu0
    %v5709 = vadd.f32 %v4548, %v5703
    %v5710 = vadd.f32 %v4549, %v5706
    %v5711 = vld [vmem:[%s4550 + $0x1] sm:$0x1]
    %v5712 = vsel %vm26, %v5709, 0.0
    %5713 = vadd.xlane.f32.xlu0 %v5712
    %v5714 = vpop.xlane.xlu0 %5713
    %v5715 = vsel %vm26, %v5710, 0.0
    %5716 = vadd.xlane.f32.xlu0 %v5715
    %v5717 = vpop.xlane.xlu0 %5716
    %v5718 = vmul.f32 %v5714, %v33
    %v5719 = vmul.f32 %v5717, %v33
    %v5720 = vsub.f32 %v5709, %v5718
    %v5721 = vsub.f32 %v5710, %v5719
    %v5722 = vmul.f32 %v5720, %v5720
    %v5723 = vmul.f32 %v5721, %v5721
    %v5724 = vsel %vm26, %v5722, 0.0
    %5725 = vadd.xlane.f32.xlu0 %v5724
    %v5726 = vpop.xlane.xlu0 %5725
    %v5727 = vsel %vm26, %v5723, 0.0
    %5728 = vadd.xlane.f32.xlu0 %v5727
    %v5729 = vpop.xlane.xlu0 %5728
    %v5730 = vmul.f32 %v5726, %v33
    %v5731 = vmul.f32 %v5729, %v33
    %v5732 = vadd.f32 %v5730, 1e-05
    %v5733 = vadd.f32 %v5731, 1e-05
    %v5734 = vrsqrt.pop %v5732
    %v5735 = vrsqrt.pop %v5733
    %v5736 = vmul.f32 %v5720, %v5734
    %v5737 = vmul.f32 %v5721, %v5735
    %v5739 = vlaneseq
    %v5740 = vshrl.u32 %v5739, 7
    %v5741 = vsub.s32 0, %v5740
    %v5742 = vrot.slane %v5711, %v5741
    %v5744 = vmul.f32 %v5736, %v5742
    %v5745 = vmul.f32 %v5737, %v5742
    %5746 = vrot.lane.b32.xlu0 %v5742, 64
    %v5747 = vpop.permute.xlu0 %5746
    %v5749 = vadd.f32 %v5744, %v5747
    %v5750 = vadd.f32 %v5745, %v5747
    %v5751 = vpack.c.bf16 %v5750, %v5749
    %v5752 = vld [vmem:[%s4592 + $0x8] sm:$0xff]
    %v5753 = vld [vmem:[%s4592 + $0x1c] sm:$0xff]
    %v5754 = vld [vmem:[%s4592 + $0x30] sm:$0xff]
    %v5755 = vld [vmem:[%s4592 + $0x44] sm:$0xff]
    %v5756 = vld [vmem:[%s4592 + $0x58] sm:$0xff]
    %v5757 = vld [vmem:[%s4592 + $0x6c] sm:$0xff]
    %v5758 = vld [vmem:[%s4592 + $0x80] sm:$0xff]
    %v5759 = vld [vmem:[%s4592 + $0x94] sm:$0xff]
    %v5760 = vld [vmem:[%s4550 + $0x4] sm:$0x7]
    %v5762 = vlaneseq
    %v5763 = vshrl.u32 %v5762, 7
    %v5764 = vsub.s32 0, %v5763
    %v5765 = vrot.slane %v5760, %v5764
    %v5766 = vlaneseq
    %v5767 = vshrl.u32 %v5766, 7
    %v5768 = vsub.s32 1, %v5767
    %v5769 = vrot.slane %v5760, %v5768
    %v5770 = vlaneseq
    %v5771 = vshrl.u32 %v5770, 7
    %v5772 = vsub.s32 2, %v5771
    %v5773 = vrot.slane %v5760, %v5772
    %v5782 = vunpack.c.l.b16 %v5752
    %v5783 = vunpack.c.h.b16 %v5752
    %v5784 = vunpack.c.l.b16 %v5753
    %v5785 = vunpack.c.h.b16 %v5753
    %v5786 = vunpack.c.l.b16 %v5754
    %v5787 = vunpack.c.h.b16 %v5754
    %v5788 = vunpack.c.l.b16 %v5755
    %v5789 = vunpack.c.h.b16 %v5755
    %v5790 = vunpack.c.l.b16 %v5756
    %v5791 = vunpack.c.h.b16 %v5756
    %v5792 = vunpack.c.l.b16 %v5757
    %v5793 = vunpack.c.h.b16 %v5757
    %v5794 = vunpack.c.l.b16 %v5758
    %v5795 = vunpack.c.h.b16 %v5758
    %v5796 = vunpack.c.l.b16 %v5759
    %v5797 = vunpack.c.h.b16 %v5759
    %v5798 = vpack.c.b16 %v5784, %v5782
    %v5799 = vpack.c.b16 %v5785, %v5783
    %v5800 = vpack.c.b16 %v5788, %v5786
    %v5801 = vpack.c.b16 %v5789, %v5787
    %v5802 = vpack.c.b16 %v5792, %v5790
    %v5803 = vpack.c.b16 %v5793, %v5791
    %v5804 = vpack.c.b16 %v5796, %v5794
    %v5805 = vpack.c.b16 %v5797, %v5795
    %5814 = vrot.lane.b32.xlu0 %v5765, 64
    %v5815 = vpop.permute.xlu0 %5814
    %5816 = vrot.lane.b32.xlu0 %v5769, 64
    %v5817 = vpop.permute.xlu0 %5816
    %5818 = vrot.lane.b32.xlu0 %v5773, 64
    %v5819 = vpop.permute.xlu0 %5818
    %v5820 = vsel %vm26, %v5815, %v5817
    %v5821 = vsel %vm26, %v5817, %v5819
    %v5825 = vsel %vm26, %v5751, 0
    %5827 = vmatprep.subr.bf16.mxu0 0
    %5828 = vmatpush1.bf16.msra.mxu0 0
    %5829 = vmatprep.subr.bf16.mxu0 0
    %5830 = vmatpush1.bf16.msra.mxu0 0
    %5831 = vmatprep.subr.bf16.mxu0 0
    %5832 = vmatpush1.bf16.msra.mxu0 0
    %5833 = vmatprep.subr.bf16.mxu0 0
    %5834 = vmatpush1.bf16.msra.mxu0 0
    %5835 = vmatprep.subr.bf16.mxu0 %v5805
    %5836 = vmatpush1.bf16.msra.mxu0 %v5804
    %5837 = vmatprep.subr.bf16.mxu0 %v5803
    %5838 = vmatpush1.bf16.msra.mxu0 %v5802
    %5839 = vmatprep.subr.bf16.mxu0 %v5801
    %5840 = vmatpush1.bf16.msra.mxu0 %v5800
    %5841 = vmatprep.subr.bf16.mxu0 %v5799
    %5842 = vmatpush1.bf16.msra.mxu0 %v5798
    %5843 = vmatprep.subr.bf16.mxu0 0
    %5844 = vmatpush2.bf16.msra.mxu0 0
    %5845 = vmatprep.subr.bf16.mxu0 0
    %5846 = vmatpush2.bf16.msra.mxu0 0
    %5847 = vmatprep.subr.bf16.mxu0 0
    %5848 = vmatpush2.bf16.msra.mxu0 0
    %5849 = vmatprep.subr.bf16.mxu0 0
    %5850 = vmatpush2.bf16.msra.mxu0 0
    %5851 = vmatprep.subr.bf16.mxu0 0
    %5852 = vmatpush2.bf16.msra.mxu0 0
    %5853 = vmatprep.subr.bf16.mxu0 0
    %5854 = vmatpush2.bf16.msra.mxu0 0
    %5855 = vmatprep.subr.bf16.mxu0 0
    %5856 = vmatpush2.bf16.msra.mxu0 0
    %5857 = vmatprep.subr.bf16.mxu0 0
    %5858 = vmatpush2.bf16.msra.mxu0 0
    %5859 = vmatprep.mubr.bf16.mxu0 0
    %5860 = vmatmul.mubr.bf16.gmra.mxu0 %v5825
    %v5861 = vpop.f32.mrf.mxu0
    %v5862 = vadd.f32 %v5820, %v5861
    %v5863 = vpop.f32.mrf.mxu0
    %v5864 = vadd.f32 %v5821, %v5863
    %v5865 = vpop.f32.mrf.mxu0
    %v5866 = vadd.f32 %v5820, %v5865
    %v5867 = vpop.f32.mrf.mxu0
    %v5868 = vadd.f32 %v5821, %v5867
    %5869 = vdwg.mxu0
    %v5870 = vmax.f32 %v5862, 0.0
    %v5871 = vmax.f32 %v5864, 0.0
    %v5872 = vmax.f32 %v5866, 0.0
    %v5873 = vmax.f32 %v5868, 0.0
    %v5874 = vpack.c.bf16 %v5872, %v5870
    %v5875 = vpack.c.bf16 %v5873, %v5871
    %s5876 = scalar_lea.vmem %s3, 384
    %v5877 = vld [vmem:[%s5876] sm:$0xf]
    %v5878 = vld [vmem:[%s5876 + $0x4] sm:$0xf]
    %v5879 = vld [vmem:[%s5876 + $0x8] sm:$0xf]
    %v5880 = vld [vmem:[%s5876 + $0xc] sm:$0xf]
    %v5881 = vld [vmem:[%s5876 + $0x10] sm:$0xf]
    %v5882 = vld [vmem:[%s5876 + $0x14] sm:$0xf]
    %v5883 = vld [vmem:[%s5876 + $0x18] sm:$0xf]
    %v5884 = vld [vmem:[%s5876 + $0x1c] sm:$0xf]
    %v5885 = vld [vmem:[%s5876 + $0x20] sm:$0xf]
    %v5886 = vld [vmem:[%s5876 + $0x24] sm:$0xf]
    %v5887 = vld [vmem:[%s5876 + $0x28] sm:$0xf]
    %v5888 = vld [vmem:[%s5876 + $0x2c] sm:$0xf]
    %v5889 = vld [vmem:[%s5876 + $0x30] sm:$0xf]
    %v5890 = vld [vmem:[%s5876 + $0x34] sm:$0xf]
    %v5891 = vld [vmem:[%s5876 + $0x38] sm:$0xf]
    %v5892 = vld [vmem:[%s5876 + $0x3c] sm:$0xf]
    %v5893 = vld [vmem:[%s5876 + $0x40] sm:$0xf]
    %v5894 = vld [vmem:[%s5876 + $0x44] sm:$0xf]
    %v5895 = vld [vmem:[%s5876 + $0x48] sm:$0xf]
    %v5896 = vld [vmem:[%s5876 + $0x4c] sm:$0xf]
    %v5897 = vld [vmem:[%s5876 + $0x50] sm:$0xf]
    %v5898 = vld [vmem:[%s5876 + $0x54] sm:$0xf]
    %v5899 = vld [vmem:[%s5876 + $0x58] sm:$0xf]
    %v5900 = vld [vmem:[%s5876 + $0x5c] sm:$0xf]
    %v5901 = vld [vmem:[%s5876 + $0x60] sm:$0xf]
    %v5902 = vld [vmem:[%s5876 + $0x64] sm:$0xf]
    %v5903 = vld [vmem:[%s5876 + $0x68] sm:$0xf]
    %v5904 = vld [vmem:[%s5876 + $0x6c] sm:$0xf]
    %v5905 = vld [vmem:[%s5876 + $0x70] sm:$0xf]
    %v5906 = vld [vmem:[%s5876 + $0x74] sm:$0xf]
    %v5907 = vld [vmem:[%s5876 + $0x78] sm:$0xf]
    %v5908 = vld [vmem:[%s5876 + $0x7c] sm:$0xf]
    %v5909 = vld [vmem:[%s4550 + $0x6] sm:$0x1]
    %v5911 = vlaneseq
    %v5912 = vshrl.u32 %v5911, 7
    %v5913 = vsub.s32 0, %v5912
    %v5914 = vrot.slane %v5909, %v5913
    %v5947 = vunpack.c.l.b16 %v5877
    %v5948 = vunpack.c.l.b16 %v5878
    %v5949 = vunpack.c.l.b16 %v5879
    %v5950 = vunpack.c.l.b16 %v5880
    %v5951 = vunpack.c.l.b16 %v5881
    %v5952 = vunpack.c.l.b16 %v5882
    %v5953 = vunpack.c.l.b16 %v5883
    %v5954 = vunpack.c.l.b16 %v5884
    %v5955 = vunpack.c.l.b16 %v5885
    %v5956 = vunpack.c.l.b16 %v5886
    %v5957 = vunpack.c.l.b16 %v5887
    %v5958 = vunpack.c.l.b16 %v5888
    %v5959 = vunpack.c.l.b16 %v5889
    %v5960 = vunpack.c.l.b16 %v5890
    %v5961 = vunpack.c.l.b16 %v5891
    %v5962 = vunpack.c.l.b16 %v5892
    %v5963 = vunpack.c.l.b16 %v5893
    %v5964 = vunpack.c.l.b16 %v5894
    %v5965 = vunpack.c.l.b16 %v5895
    %v5966 = vunpack.c.l.b16 %v5896
    %v5967 = vunpack.c.l.b16 %v5897
    %v5968 = vunpack.c.l.b16 %v5898
    %v5969 = vunpack.c.l.b16 %v5899
    %v5970 = vunpack.c.l.b16 %v5900
    %v5971 = vunpack.c.l.b16 %v5901
    %v5972 = vunpack.c.l.b16 %v5902
    %v5973 = vunpack.c.l.b16 %v5903
    %v5974 = vunpack.c.l.b16 %v5904
    %v5975 = vunpack.c.l.b16 %v5905
    %v5976 = vunpack.c.l.b16 %v5906
    %v5977 = vunpack.c.l.b16 %v5907
    %v5978 = vunpack.c.l.b16 %v5908
    %v5979 = vpack.c.b16 %v5948, %v5947
    %v5980 = vpack.c.b16 %v5950, %v5949
    %v5981 = vpack.c.b16 %v5952, %v5951
    %v5982 = vpack.c.b16 %v5954, %v5953
    %v5983 = vpack.c.b16 %v5956, %v5955
    %v5984 = vpack.c.b16 %v5958, %v5957
    %v5985 = vpack.c.b16 %v5960, %v5959
    %v5986 = vpack.c.b16 %v5962, %v5961
    %v5987 = vpack.c.b16 %v5964, %v5963
    %v5988 = vpack.c.b16 %v5966, %v5965
    %v5989 = vpack.c.b16 %v5968, %v5967
    %v5990 = vpack.c.b16 %v5970, %v5969
    %v5991 = vpack.c.b16 %v5972, %v5971
    %v5992 = vpack.c.b16 %v5974, %v5973
    %v5993 = vpack.c.b16 %v5976, %v5975
    %v5994 = vpack.c.b16 %v5978, %v5977
    %6011 = vrot.lane.b32.xlu0 %v5914, 64
    %v6012 = vpop.permute.xlu0 %6011
    %6014 = vmatprep.subr.bf16.mxu0 0
    %6015 = vmatpush1.bf16.msra.mxu0 %v5986
    %6016 = vmatprep.subr.bf16.mxu0 0
    %6017 = vmatpush1.bf16.msra.mxu0 %v5985
    %6018 = vmatprep.subr.bf16.mxu0 0
    %6019 = vmatpush1.bf16.msra.mxu0 %v5984
    %6020 = vmatprep.subr.bf16.mxu0 0
    %6021 = vmatpush1.bf16.msra.mxu0 %v5983
    %6022 = vmatprep.subr.bf16.mxu0 0
    %6023 = vmatpush1.bf16.msra.mxu0 %v5982
    %6024 = vmatprep.subr.bf16.mxu0 0
    %6025 = vmatpush1.bf16.msra.mxu0 %v5981
    %6026 = vmatprep.subr.bf16.mxu0 0
    %6027 = vmatpush1.bf16.msra.mxu0 %v5980
    %6028 = vmatprep.subr.bf16.mxu0 0
    %6029 = vmatpush1.bf16.msra.mxu0 %v5979
    %6030 = vmatprep.subr.bf16.mxu0 0
    %6031 = vmatpush2.bf16.msra.mxu0 %v5994
    %6032 = vmatprep.subr.bf16.mxu0 0
    %6033 = vmatpush2.bf16.msra.mxu0 %v5993
    %6034 = vmatprep.subr.bf16.mxu0 0
    %6035 = vmatpush2.bf16.msra.mxu0 %v5992
    %6036 = vmatprep.subr.bf16.mxu0 0
    %6037 = vmatpush2.bf16.msra.mxu0 %v5991
    %6038 = vmatprep.subr.bf16.mxu0 0
    %6039 = vmatpush2.bf16.msra.mxu0 %v5990
    %6040 = vmatprep.subr.bf16.mxu0 0
    %6041 = vmatpush2.bf16.msra.mxu0 %v5989
    %6042 = vmatprep.subr.bf16.mxu0 0
    %6043 = vmatpush2.bf16.msra.mxu0 %v5988
    %6044 = vmatprep.subr.bf16.mxu0 0
    %6045 = vmatpush2.bf16.msra.mxu0 %v5987
    %6046 = vmatprep.mubr.bf16.mxu0 %v5875
    %6047 = vmatmul.mubr.bf16.gmra.mxu0 %v5874
    %v6048 = vpop.f32.mrf.mxu0
    %v6049 = vadd.f32 %v6012, %v6048
    %v6050 = vpop.f32.mrf.mxu0
    %v6051 = vpop.f32.mrf.mxu0
    %v6052 = vadd.f32 %v6012, %v6051
    %v6053 = vpop.f32.mrf.mxu0
    %6054 = vdwg.mxu0
    %v6055 = vadd.f32 %v5709, %v6049
    %v6056 = vadd.f32 %v5710, %v6052
    %s6057 = scalar_lea.vmem %s4, 28
    %v6058 = vld [vmem:[%s6057] sm:$0x1]
    %v6059 = vsel %vm26, %v6055, 0.0
    %6060 = vadd.xlane.f32.xlu0 %v6059
    %v6061 = vpop.xlane.xlu0 %6060
    %v6062 = vsel %vm26, %v6056, 0.0
    %6063 = vadd.xlane.f32.xlu0 %v6062
    %v6064 = vpop.xlane.xlu0 %6063
    %v6065 = vmul.f32 %v6061, %v33
    %v6066 = vmul.f32 %v6064, %v33
    %v6067 = vsub.f32 %v6055, %v6065
    %v6068 = vsub.f32 %v6056, %v6066
    %v6069 = vmul.f32 %v6067, %v6067
    %v6070 = vmul.f32 %v6068, %v6068
    %v6071 = vsel %vm26, %v6069, 0.0
    %6072 = vadd.xlane.f32.xlu0 %v6071
    %v6073 = vpop.xlane.xlu0 %6072
    %v6074 = vsel %vm26, %v6070, 0.0
    %6075 = vadd.xlane.f32.xlu0 %v6074
    %v6076 = vpop.xlane.xlu0 %6075
    %v6077 = vmul.f32 %v6073, %v33
    %v6078 = vmul.f32 %v6076, %v33
    %v6079 = vadd.f32 %v6077, 1e-05
    %v6080 = vadd.f32 %v6078, 1e-05
    %v6081 = vrsqrt.pop %v6079
    %v6082 = vrsqrt.pop %v6080
    %v6083 = vmul.f32 %v6067, %v6081
    %v6084 = vmul.f32 %v6068, %v6082
    %v6086 = vlaneseq
    %v6087 = vshrl.u32 %v6086, 7
    %v6088 = vsub.s32 0, %v6087
    %v6089 = vrot.slane %v6058, %v6088
    %v6091 = vmul.f32 %v6083, %v6089
    %v6092 = vmul.f32 %v6084, %v6089
    %6093 = vrot.lane.b32.xlu0 %v6089, 64
    %v6094 = vpop.permute.xlu0 %6093
    %v6096 = vadd.f32 %v6091, %v6094
    %v6097 = vadd.f32 %v6092, %v6094
    %v6098 = vpack.c.bf16 %v6097, %v6096
    %s6099 = scalar_lea.vmem %s2, 640
    %v6100 = vld [vmem:[%s6099] sm:$0xf]
    %v6101 = vld [vmem:[%s6099 + $0x14] sm:$0xf]
    %v6102 = vld [vmem:[%s6099 + $0x28] sm:$0xf]
    %v6103 = vld [vmem:[%s6099 + $0x3c] sm:$0xf]
    %v6104 = vld [vmem:[%s6099 + $0x50] sm:$0xf]
    %v6105 = vld [vmem:[%s6099 + $0x64] sm:$0xf]
    %v6106 = vld [vmem:[%s6099 + $0x78] sm:$0xf]
    %v6107 = vld [vmem:[%s6099 + $0x8c] sm:$0xf]
    %v6108 = vld [vmem:[%s6057 + $0x1] sm:$0x1]
    %v6110 = vlaneseq
    %v6111 = vshrl.u32 %v6110, 7
    %v6112 = vsub.s32 0, %v6111
    %v6113 = vrot.slane %v6108, %v6112
    %v6123 = vunpack.c.l.b16 %v6100
    %v6124 = vunpack.c.l.b16 %v6101
    %v6125 = vunpack.c.l.b16 %v6102
    %v6126 = vunpack.c.l.b16 %v6103
    %v6127 = vunpack.c.l.b16 %v6104
    %v6128 = vunpack.c.l.b16 %v6105
    %v6129 = vunpack.c.l.b16 %v6106
    %v6130 = vunpack.c.l.b16 %v6107
    %v6131 = vpack.c.b16 %v6124, %v6123
    %v6132 = vpack.c.b16 %v6126, %v6125
    %v6133 = vpack.c.b16 %v6128, %v6127
    %v6134 = vpack.c.b16 %v6130, %v6129
    %v6140 = vsel %vm26, %v6098, 0
    %6142 = vmatprep.subr.bf16.mxu0 0
    %6143 = vmatpush1.bf16.msra.mxu0 0
    %6144 = vmatprep.subr.bf16.mxu0 0
    %6145 = vmatpush1.bf16.msra.mxu0 0
    %6146 = vmatprep.subr.bf16.mxu0 0
    %6147 = vmatpush1.bf16.msra.mxu0 0
    %6148 = vmatprep.subr.bf16.mxu0 0
    %6149 = vmatpush1.bf16.msra.mxu0 0
    %6150 = vmatprep.subr.bf16.mxu0 0
    %6151 = vmatpush1.bf16.msra.mxu0 %v6134
    %6152 = vmatprep.subr.bf16.mxu0 0
    %6153 = vmatpush1.bf16.msra.mxu0 %v6133
    %6154 = vmatprep.subr.bf16.mxu0 0
    %6155 = vmatpush1.bf16.msra.mxu0 %v6132
    %6156 = vmatprep.subr.bf16.mxu0 0
    %6157 = vmatpush1.bf16.msra.mxu0 %v6131
    %6158 = vmatprep.subr.bf16.mxu0 0
    %6159 = vmatpush2.bf16.msra.mxu0 0
    %6160 = vmatprep.subr.bf16.mxu0 0
    %6161 = vmatpush2.bf16.msra.mxu0 0
    %6162 = vmatprep.subr.bf16.mxu0 0
    %6163 = vmatpush2.bf16.msra.mxu0 0
    %6164 = vmatprep.subr.bf16.mxu0 0
    %6165 = vmatpush2.bf16.msra.mxu0 0
    %6166 = vmatprep.subr.bf16.mxu0 0
    %6167 = vmatpush2.bf16.msra.mxu0 0
    %6168 = vmatprep.subr.bf16.mxu0 0
    %6169 = vmatpush2.bf16.msra.mxu0 0
    %6170 = vmatprep.subr.bf16.mxu0 0
    %6171 = vmatpush2.bf16.msra.mxu0 0
    %6172 = vmatprep.subr.bf16.mxu0 0
    %6173 = vmatpush2.bf16.msra.mxu0 0
    %6174 = vmatprep.mubr.bf16.mxu0 0
    %6175 = vmatmul.mubr.bf16.gmra.mxu0 %v6140
    %v6176 = vpop.f32.mrf.mxu0
    %v6177 = vadd.f32 %v6113, %v6176
    %v6178 = vpop.f32.mrf.mxu0
    %v6179 = vpop.f32.mrf.mxu0
    %v6180 = vadd.f32 %v6113, %v6179
    %v6181 = vpop.f32.mrf.mxu0
    %6182 = vdwg.mxu0
    %6183 = vst [vmem:[#allocation2] sm:$0xff] %v6177
    %6184 = vst [vmem:[#allocation2 + $0x8] sm:$0xff] %v6180
    // Predicated region
    $region22: #{baby_pt_forward.1} parent=1 // pred_check
      _
    $region23: #{baby_pt_forward.1} parent=1 // pred_check_branch
      %6186 = sbr.rel (0) target = $region25
    $region24: #{baby_pt_forward.1} parent=1 // pred_region
      %s6188 = ssub.s32 256, 256
      %6189 = vsyncadd [#allocation3], %s6188
      %s6190 = sshll.u32 [#allocation2], 4
      %s6191 = int_to_ptr.vmem [resolvable:$true] %s6190
      %6196 = dma.vmem_to_hbm [thread:$0]  %s6191, 256, %s5, [#allocation3], 128, 128, 8
    $region25: #{baby_pt_forward.1} parent=1 // pred_fallthru
      _
    // Predicated region
    $region26: #{baby_pt_forward.1} parent=1 // pred_check
      _
    $region27: #{baby_pt_forward.1} parent=1 // pred_check_branch
      %6198 = sbr.rel (0) target = $region29
    $region28: #{baby_pt_forward.1} parent=1 // pred_region
      %6199 = dma.done [#allocation3], 256
    $region29: #{baby_pt_forward.1} parent=1 // pred_fallthru
      _
    %6200 = vsyncpa [#allocation3], 1

</llo_original>
